<compile_context>
chip_gen: v7x
topology: tpu7x:2x2x1
jax: 0.10.0
libtpu: 0.0.40
codegen_flags: <defaults>
</compile_context>

<pallas_src>
import functools
import math

import jax
import jax.numpy as jnp
from jax.experimental import pallas as pl
from jax.experimental.pallas import tpu as pltpu

PAD = 0
BOS = 2

NEG = -1e9          # additive mask value
NEG_INIT = -1e30    # running-max init for online logsumexp
LN_EPS = 1e-6       # ONMT-style LayerNorm eps


# ---------------------------------------------------------------------------
# VMEM budgeting helpers
# ---------------------------------------------------------------------------
def _vmem_capacity():
    try:
        return int(pltpu.get_tpu_info().vmem_capacity_bytes)
    except Exception:
        return 64 << 20   # conservative (v7x per-TC)


def _mosaic_params(semantics, vmem_estimate_bytes):
    """CompilerParams with an explicit VMEM limit derived from the working set."""
    cap = _vmem_capacity()
    limit = int(min(int(cap * 0.75),
                    max(2 * int(vmem_estimate_bytes) + (8 << 20), 32 << 20)))
    return pltpu.CompilerParams(dimension_semantics=semantics,
                                vmem_limit_bytes=limit)


def _row_tile(m_dim, row_bytes, resident_bytes):
    """Largest row tile (multiple of 128, <=512) s.t. resident weights + per-row working
    set (caller already includes double-buffering factors) fits half of VMEM."""
    budget = int(_vmem_capacity() * 0.5)
    avail = max(budget - int(resident_bytes), 1 << 20)
    cap = avail // max(int(row_bytes), 1)
    cap = max(128, min(512, (cap // 128) * 128))
    return m_dim if m_dim <= cap else cap


def _nbytes(arr):
    return int(arr.size) * int(arr.dtype.itemsize)


# ---------------------------------------------------------------------------
# Pallas kernels
# ---------------------------------------------------------------------------
def _linear_kernel(x_ref, w_ref, b_ref, o_ref, *, activation):
    y = jnp.dot(x_ref[...].astype(jnp.bfloat16),
                w_ref[...].astype(jnp.bfloat16),
                preferred_element_type=jnp.float32) + b_ref[...]
    if activation == "tanh":
        y = jnp.tanh(y)
    elif activation == "relu":
        y = jnp.maximum(y, 0.0)
    o_ref[...] = y.astype(o_ref.dtype)


def _linear_add_ln_kernel(x_ref, r_ref, w_ref, b_ref, g_ref, bb_ref, o_ref, *, eps):
    # LayerNorm(r + x @ w + b)  -- fused attention-output projection + residual + LN.
    y = jnp.dot(x_ref[...].astype(jnp.bfloat16),
                w_ref[...].astype(jnp.bfloat16),
                preferred_element_type=jnp.float32) + b_ref[...]
    y = y + r_ref[...]
    mu = jnp.mean(y, axis=-1, keepdims=True)
    yc = y - mu
    var = jnp.mean(yc * yc, axis=-1, keepdims=True)
    o_ref[...] = (yc * jax.lax.rsqrt(var + eps) * g_ref[...] + bb_ref[...]
                  ).astype(o_ref.dtype)


def _ffn_add_ln_kernel(x_ref, w1_ref, b1_ref, w2_ref, b2_ref, g_ref, bb_ref,
                       o_ref, *, eps):
    # LayerNorm(x + W2 @ relu(W1 @ x))  -- fused position-wise FFN + residual + LN.
    x = x_ref[...]
    h = jnp.dot(x.astype(jnp.bfloat16), w1_ref[...].astype(jnp.bfloat16),
                preferred_element_type=jnp.float32) + b1_ref[...]
    h = jnp.maximum(h, 0.0)
    y = jnp.dot(h.astype(jnp.bfloat16), w2_ref[...].astype(jnp.bfloat16),
                preferred_element_type=jnp.float32) + b2_ref[...]
    y = y + x
    mu = jnp.mean(y, axis=-1, keepdims=True)
    yc = y - mu
    var = jnp.mean(yc * yc, axis=-1, keepdims=True)
    o_ref[...] = (yc * jax.lax.rsqrt(var + eps) * g_ref[...] + bb_ref[...]
                  ).astype(o_ref.dtype)


def _attn_heads(q_f32, k_f32, v_f32, valid, num_heads, scale):
    """Per-head scaled-dot-product attention; returns the full-width (T, D) f32 context.
    Scale / bf16 casts hoisted out of the (trace-time-unrolled) head loop; single
    lane-dense result via one concatenate (no per-head sub-lane stores)."""
    t, d = q_f32.shape
    dh = d // num_heads
    q = (q_f32 * scale).astype(jnp.bfloat16)
    k = k_f32.astype(jnp.bfloat16)
    v = v_f32.astype(jnp.bfloat16)
    ctxs = []
    for h in range(num_heads):                   # unrolled at trace time
        sl = slice(h * dh, (h + 1) * dh)
        s = jax.lax.dot_general(q[:, sl], k[:, sl], (((1,), (1,)), ((), ())),
                                preferred_element_type=jnp.float32)
        s = jnp.where(valid, s, NEG)
        s = s - jnp.max(s, axis=-1, keepdims=True)
        p = jnp.exp(s)
        p = p * pl.reciprocal(jnp.sum(p, axis=-1, keepdims=True), approx=True)
        ctxs.append(jnp.dot(p.astype(jnp.bfloat16), v[:, sl],
                            preferred_element_type=jnp.float32))
    return jnp.concatenate(ctxs, axis=-1)


def _fused_self_attn_kernel(lens_ref, x_ref, wqkv_ref, bqkv_ref, o_ref,
                            *, num_heads, scale, causal):
    # Fused QKV projection + multi-head self-attention for one batch element.
    b = pl.program_id(0)
    t = x_ref.shape[1]
    d = x_ref.shape[2]
    x = x_ref[0].astype(jnp.bfloat16)                                  # (T, D)
    qkv = jnp.dot(x, wqkv_ref[...].astype(jnp.bfloat16),
                  preferred_element_type=jnp.float32) + bqkv_ref[...]  # (T, 3D) f32
    klen = lens_ref[b]
    ki = jax.lax.broadcasted_iota(jnp.int32, (t, t), 1)
    valid = ki < klen
    if causal:
        qi = jax.lax.broadcasted_iota(jnp.int32, (t, t), 0)
        valid = jnp.logical_and(valid, ki <= qi)
    ctx = _attn_heads(qkv[:, :d], qkv[:, d:2 * d], qkv[:, 2 * d:],
                      valid, num_heads, scale)
    o_ref[0, :, :] = ctx.astype(o_ref.dtype)                           # single lane-dense store


def _fused_cross_attn_kernel(lens_ref, x_ref, mem_ref, wq_ref, bq_ref,
                             wkv_ref, bkv_ref, o_ref, *, num_heads, scale):
    # Fused Q / KV projections + multi-head cross-attention for one batch element.
    b = pl.program_id(0)
    tq = x_ref.shape[1]
    d = x_ref.shape[2]
    tk = mem_ref.shape[1]
    xq = x_ref[0].astype(jnp.bfloat16)                                 # (Tq, D)
    mem = mem_ref[0].astype(jnp.bfloat16)                              # (Tk, D)
    q = jnp.dot(xq, wq_ref[...].astype(jnp.bfloat16),
                preferred_element_type=jnp.float32) + bq_ref[...]      # (Tq, D)
    kv = jnp.dot(mem, wkv_ref[...].astype(jnp.bfloat16),
                 preferred_element_type=jnp.float32) + bkv_ref[...]    # (Tk, 2D)
    valid = jax.lax.broadcasted_iota(jnp.int32, (tq, tk), 1) < lens_ref[b]
    ctx = _attn_heads(q, kv[:, :d], kv[:, d:], valid, num_heads, scale)
    o_ref[0, :, :] = ctx.astype(o_ref.dtype)


def _gen_xent_kernel(x_ref, tgt_ref, w_ref, b_ref, o_ref, m_sc, l_sc, t_sc,
                     *, v_total):
    # M-tiled + vocab-tiled generator + per-token NLL with online logsumexp.
    #   grid = (M tiles [parallel], vocab tiles [arbitrary, reduction])
    #   x: (tm, D), tgt: (tm, 1) int32, w: (D, tv), b: (1, tv), o: (tm, 128) lane-dense.
    vi = pl.program_id(1)

    @pl.when(vi == 0)
    def _():
        m_sc[...] = jnp.full_like(m_sc, NEG_INIT)
        l_sc[...] = jnp.zeros_like(l_sc)
        t_sc[...] = jnp.zeros_like(t_sc)

    logits = jnp.dot(x_ref[...].astype(jnp.bfloat16),
                     w_ref[...].astype(jnp.bfloat16),
                     preferred_element_type=jnp.float32) + b_ref[...]
    m_rows, tv = logits.shape
    col = vi * tv + jax.lax.broadcasted_iota(jnp.int32, (m_rows, tv), 1)
    logits = jnp.where(col < v_total, logits, NEG_INIT)     # mask vocab padding (keep before max/exp)

    # target logit via iota compare (no one-hot materialization)
    tgt = tgt_ref[...]                                      # (tm, 1) int32
    t_sc[...] += jnp.sum(jnp.where(col == tgt, logits, 0.0), axis=-1, keepdims=True)

    # online logsumexp across vocab tiles
    m_prev = m_sc[...]
    m_new = jnp.maximum(m_prev, jnp.max(logits, axis=-1, keepdims=True))
    l_sc[...] = (l_sc[...] * jnp.exp(m_prev - m_new)
                 + jnp.sum(jnp.exp(logits - m_new), axis=-1, keepdims=True))
    m_sc[...] = m_new

    @pl.when(vi == pl.num_programs(1) - 1)
    def _():
        nll = m_sc[...] + jnp.log(l_sc[...]) - t_sc[...]    # (tm, 1)
        o_ref[...] = jnp.broadcast_to(nll, o_ref.shape).astype(o_ref.dtype)


# ---------------------------------------------------------------------------
# Pallas wrappers
# ---------------------------------------------------------------------------
def linear(x, w, b, activation="none", out_dtype=jnp.float32):
    lead = x.shape[:-1]
    k_dim = x.shape[-1]
    n_dim = w.shape[-1]
    m_dim = int(math.prod(lead))
    x2 = x.reshape(m_dim, k_dim)
    resident = _nbytes(w) + n_dim * 4
    out_item = jnp.dtype(out_dtype).itemsize
    row_bytes = 2 * k_dim * x.dtype.itemsize + 2 * n_dim * out_item + n_dim * 4
    tm = _row_tile(m_dim, row_bytes, resident)
    out = pl.pallas_call(
        functools.partial(_linear_kernel, activation=activation),
        out_shape=jax.ShapeDtypeStruct((m_dim, n_dim), out_dtype),
        grid=(pl.cdiv(m_dim, tm),),
        in_specs=[pl.BlockSpec((tm, k_dim), lambda i: (i, 0)),
                  pl.BlockSpec((k_dim, n_dim), lambda i: (0, 0)),
                  pl.BlockSpec((1, n_dim), lambda i: (0, 0))],
        out_specs=pl.BlockSpec((tm, n_dim), lambda i: (i, 0)),
        compiler_params=_mosaic_params(("parallel",), resident + tm * row_bytes),
    )(x2, w, b.reshape(1, n_dim))
    return out.reshape(*lead, n_dim)


def linear_add_ln(x, res, w, b, g, beta):
    """LayerNorm(res + x @ w + b) -- fused output projection + residual + LN."""
    lead = x.shape[:-1]
    k_dim = x.shape[-1]
    n_dim = w.shape[-1]
    m_dim = int(math.prod(lead))
    x2 = x.reshape(m_dim, k_dim)
    r2 = res.reshape(m_dim, n_dim)
    resident = _nbytes(w) + 3 * n_dim * 4
    row_bytes = (2 * k_dim * x.dtype.itemsize + 2 * n_dim * res.dtype.itemsize
                 + 2 * n_dim * 4 + n_dim * 4)
    tm = _row_tile(m_dim, row_bytes, resident)
    out = pl.pallas_call(
        functools.partial(_linear_add_ln_kernel, eps=LN_EPS),
        out_shape=jax.ShapeDtypeStruct((m_dim, n_dim), jnp.float32),
        grid=(pl.cdiv(m_dim, tm),),
        in_specs=[pl.BlockSpec((tm, k_dim), lambda i: (i, 0)),
                  pl.BlockSpec((tm, n_dim), lambda i: (i, 0)),
                  pl.BlockSpec((k_dim, n_dim), lambda i: (0, 0)),
                  pl.BlockSpec((1, n_dim), lambda i: (0, 0)),
                  pl.BlockSpec((1, n_dim), lambda i: (0, 0)),
                  pl.BlockSpec((1, n_dim), lambda i: (0, 0))],
        out_specs=pl.BlockSpec((tm, n_dim), lambda i: (i, 0)),
        compiler_params=_mosaic_params(("parallel",), resident + tm * row_bytes),
    )(x2, r2, w, b.reshape(1, n_dim), g.reshape(1, n_dim), beta.reshape(1, n_dim))
    return out.reshape(*lead, n_dim)


def ffn_add_ln(x, p, g, beta):
    """LayerNorm(x + FFN(x)) -- fused feed-forward block."""
    lead = x.shape[:-1]
    d = x.shape[-1]
    dff = p["w1"].shape[1]
    m_dim = int(math.prod(lead))
    x2 = x.reshape(m_dim, d)
    resident = _nbytes(p["w1"]) + _nbytes(p["w2"]) + dff * 4 + 3 * d * 4
    row_bytes = 2 * d * 4 + 2 * d * 4 + dff * 4 + dff * 2 + d * 4
    tm = _row_tile(m_dim, row_bytes, resident)
    out = pl.pallas_call(
        functools.partial(_ffn_add_ln_kernel, eps=LN_EPS),
        out_shape=jax.ShapeDtypeStruct((m_dim, d), jnp.float32),
        grid=(pl.cdiv(m_dim, tm),),
        in_specs=[pl.BlockSpec((tm, d), lambda i: (i, 0)),
                  pl.BlockSpec((d, dff), lambda i: (0, 0)),
                  pl.BlockSpec((1, dff), lambda i: (0, 0)),
                  pl.BlockSpec((dff, d), lambda i: (0, 0)),
                  pl.BlockSpec((1, d), lambda i: (0, 0)),
                  pl.BlockSpec((1, d), lambda i: (0, 0)),
                  pl.BlockSpec((1, d), lambda i: (0, 0))],
        out_specs=pl.BlockSpec((tm, d), lambda i: (i, 0)),
        compiler_params=_mosaic_params(("parallel",), resident + tm * row_bytes),
    )(x2, p["w1"], p["b1"].reshape(1, dff), p["w2"], p["b2"].reshape(1, d),
      g.reshape(1, d), beta.reshape(1, d))
    return out.reshape(*lead, d)


def self_attention_block(x, lens, p, num_heads, causal):
    """Fused QKV projection + self-attention.  x: (B, T, D); lens: (B,) int32 (SMEM)."""
    bsz, t, d = x.shape
    wqkv = p["wqkv"]
    bqkv = p["bqkv"].reshape(1, 3 * d)
    resident = _nbytes(wqkv) + 3 * d * 4
    step = (2 * t * d * x.dtype.itemsize + 2 * t * d * 2
            + t * 3 * d * 4 + t * 3 * d * 2 + 4 * t * t * 4)
    kernel = functools.partial(_fused_self_attn_kernel, num_heads=num_heads,
                               scale=1.0 / math.sqrt(d // num_heads), causal=causal)
    # TODO(synk): for very long T on v7x a query-tile grid axis would cap VMEM further.
    return pl.pallas_call(
        kernel,
        out_shape=jax.ShapeDtypeStruct((bsz, t, d), jnp.bfloat16),
        grid_spec=pltpu.PrefetchScalarGridSpec(
            num_scalar_prefetch=1,
            grid=(bsz,),
            in_specs=[pl.BlockSpec((1, t, d), lambda b, lens: (b, 0, 0)),
                      pl.BlockSpec((d, 3 * d), lambda b, lens: (0, 0)),
                      pl.BlockSpec((1, 3 * d), lambda b, lens: (0, 0))],
            out_specs=pl.BlockSpec((1, t, d), lambda b, lens: (b, 0, 0))),
        compiler_params=_mosaic_params(("parallel",), resident + step),
    )(lens, x, wqkv, bqkv)


def cross_attention_block(x, mem, lens, p, num_heads):
    """Fused Q/KV projections + cross-attention.  x: (B, Tq, D); mem: (B, Tk, D)."""
    bsz, tq, d = x.shape
    tk = mem.shape[1]
    wq, bq = p["wq"], p["bq"].reshape(1, d)
    wkv, bkv = p["wkv"], p["bkv"].reshape(1, 2 * d)
    resident = _nbytes(wq) + _nbytes(wkv) + 3 * d * 4
    step = (2 * tq * d * x.dtype.itemsize + 2 * tk * d * mem.dtype.itemsize
            + tq * d * 4 + tk * 2 * d * 4 + 2 * tq * d * 2 + 4 * tq * tk * 4)
    kernel = functools.partial(_fused_cross_attn_kernel, num_heads=num_heads,
                               scale=1.0 / math.sqrt(d // num_heads))
    return pl.pallas_call(
        kernel,
        out_shape=jax.ShapeDtypeStruct((bsz, tq, d), jnp.bfloat16),
        grid_spec=pltpu.PrefetchScalarGridSpec(
            num_scalar_prefetch=1,
            grid=(bsz,),
            in_specs=[pl.BlockSpec((1, tq, d), lambda b, lens: (b, 0, 0)),
                      pl.BlockSpec((1, tk, d), lambda b, lens: (b, 0, 0)),
                      pl.BlockSpec((d, d), lambda b, lens: (0, 0)),
                      pl.BlockSpec((1, d), lambda b, lens: (0, 0)),
                      pl.BlockSpec((d, 2 * d), lambda b, lens: (0, 0)),
                      pl.BlockSpec((1, 2 * d), lambda b, lens: (0, 0))],
            out_specs=pl.BlockSpec((1, tq, d), lambda b, lens: (b, 0, 0))),
        compiler_params=_mosaic_params(("parallel",), resident + step),
    )(lens, x, mem, wq, bq, wkv, bkv)


def generator_xent(dec_out, targets, w, b, tv_max=2048, tm_max=256):
    """Per-token NLL of the generator: dec_out (B, T, D), integer targets (B, T)."""
    bsz, t, d = dec_out.shape
    v = w.shape[-1]
    m = bsz * t
    x2 = dec_out.reshape(m, d)
    tgt2 = targets.reshape(m, 1).astype(jnp.int32)

    tv = v if v <= tv_max else tv_max             # tv is a multiple of 128 when tiled
    nvt = pl.cdiv(v, tv)

    # M (token) tiling: tm is a multiple of 8; pad M up to a multiple of tm.
    m_pad8 = ((m + 7) // 8) * 8
    tm = min(tm_max, m_pad8)
    m_pad = ((m + tm - 1) // tm) * tm
    if m_pad != m:
        x2 = jnp.pad(x2, ((0, m_pad - m), (0, 0)))
        tgt2 = jnp.pad(tgt2, ((0, m_pad - m), (0, 0)))
    nmt = m_pad // tm

    vmem_est = (2 * (tm * d * 4 + tm * 4 + d * tv * 2 + tv * 4 + tm * 128 * 4)
                + tm * tv * 4 + 3 * tm * 4)
    out = pl.pallas_call(
        functools.partial(_gen_xent_kernel, v_total=v),
        out_shape=jax.ShapeDtypeStruct((m_pad, 128), jnp.float32),  # lane-dense NLL slab
        grid=(nmt, nvt),
        in_specs=[pl.BlockSpec((tm, d), lambda mi, vi: (mi, 0)),
                  pl.BlockSpec((tm, 1), lambda mi, vi: (mi, 0)),
                  pl.BlockSpec((d, tv), lambda mi, vi: (0, vi)),
                  pl.BlockSpec((1, tv), lambda mi, vi: (0, vi))],
        out_specs=pl.BlockSpec((tm, 128), lambda mi, vi: (mi, 0)),
        scratch_shapes=[pltpu.VMEM((tm, 1), jnp.float32),
                        pltpu.VMEM((tm, 1), jnp.float32),
                        pltpu.VMEM((tm, 1), jnp.float32)],
        compiler_params=_mosaic_params(("parallel", "arbitrary"), vmem_est),
    )(x2, tgt2, w, b.reshape(1, v))
    return out[:m, 0].reshape(bsz, t)


# ---------------------------------------------------------------------------
# Model building blocks
# ---------------------------------------------------------------------------
def encoder_layer(x, code_len, p, num_heads):
    a = self_attention_block(x, code_len, p["self"], num_heads, causal=False)
    x = linear_add_ln(a, x, p["self"]["wo"], p["self"]["bo"], p["ln1_g"], p["ln1_b"])
    x = ffn_add_ln(x, p["ffn"], p["ln2_g"], p["ln2_b"])
    return x


def decoder_layer(x, mem, ast, summ_len, code_len, ast_len, p, num_heads):
    # masked (causal + key-pad) self-attention
    a = self_attention_block(x, summ_len, p["self"], num_heads, causal=True)
    x = linear_add_ln(a, x, p["self"]["wo"], p["self"]["bo"], p["ln1_g"], p["ln1_b"])
    # source-memory cross-attention (key-pad mask from code_len)
    a = cross_attention_block(x, mem, code_len, p["src"], num_heads)
    x = linear_add_ln(a, x, p["src"]["wo"], p["src"]["bo"], p["ln2_g"], p["ln2_b"])
    # AST cross-attention (reference applies no AST mask -> full length)
    a = cross_attention_block(x, ast, ast_len, p["ast"], num_heads)
    x = linear_add_ln(a, x, p["ast"]["wo"], p["ast"]["bo"], p["ln3_g"], p["ln3_b"])
    # feed-forward
    x = ffn_add_ln(x, p["ffn"], p["ln4_g"], p["ln4_b"])
    return x


def forward(params, cfg, code_word_rep, code_len, ast_node_rep,
            summ_word_rep, summ_len, tgt_seq):
    """Mirror of Transformer_RvNN_Serial._run_forward_ml (copy_attn=False path)."""
    bsz = code_word_rep.shape[0]
    n_ast = ast_node_rep.shape[1]
    nh = cfg["num_heads"]

    code_len32 = code_len.astype(jnp.int32)
    summ_len32 = summ_len.astype(jnp.int32)
    ast_len32 = jnp.full((bsz,), n_ast, jnp.int32)

    # --- Embedder (word embeddings only; see module TODO) -------------------
    code_rep = jnp.take(params["src_embed"], code_word_rep, axis=0)
    summ_emb = jnp.take(params["tgt_embed"], summ_word_rep, axis=0)

    # --- CodeEncoder ---------------------------------------------------------
    memory_bank = code_rep
    for lp in params["encoder_layers"]:
        memory_bank = encoder_layer(memory_bank, code_len32, lp, nh)
    memory_bank_bf16 = memory_bank.astype(jnp.bfloat16)   # K/V source only -> bf16

    # --- BatchASTEncoder (RvNN approximation; see module TODO) ---------------
    ast_emb = jnp.take(params["ast_embed"], ast_node_rep, axis=0)
    subtree_emb = linear(ast_emb, params["ast_proj_w"], params["ast_proj_b"],
                         activation="tanh", out_dtype=jnp.bfloat16)

    # --- SerialTransformerDecoder -------------------------------------------
    x = summ_emb
    for lp in params["decoder_layers"]:
        x = decoder_layer(x, memory_bank_bf16, subtree_emb,
                          summ_len32, code_len32, ast_len32, lp, nh)
    decoder_outputs = x                                                  # (B, Lt, D)

    # --- Generator + CrossEntropyLoss(reduction='none') ----------------------
    target = tgt_seq[:, 1:]                                              # (B, Lt-1)
    scores_in = decoder_outputs[:, :-1, :]                               # (B, Lt-1, D)
    per_tok_nll = generator_xent(scores_in, target,
                                 params["gen_w"], params["gen_b"])

    tok_mask = (target != PAD).astype(jnp.float32)
    ml_loss = jnp.sum(per_tok_nll * tok_mask, axis=1)                    # (B,)
    return {
        "ml_loss": jnp.mean(ml_loss),
        "loss_per_token": jnp.mean(ml_loss / (summ_len - 1).astype(jnp.float32)),
    }


# ---------------------------------------------------------------------------
# Deterministic parameter initialization (matmul weights stored in bf16)
# ---------------------------------------------------------------------------
def init_params(key, cfg):
    keys = iter(jax.random.split(key, 256))
    d, dff = cfg["d_model"], cfg["d_ff"]

    def w(din, dout, scale=0.02):
        return (scale * jax.random.normal(next(keys), (din, dout), jnp.float32)
                ).astype(jnp.bfloat16)

    def z(n):
        return jnp.zeros((n,), jnp.float32)

    def ones(n):
        return jnp.ones((n,), jnp.float32)

    def self_attn():
        return {"wqkv": w(d, 3 * d), "bqkv": z(3 * d), "wo": w(d, d), "bo": z(d)}

    def cross_attn():
        return {"wq": w(d, d), "bq": z(d), "wkv": w(d, 2 * d), "bkv": z(2 * d),
                "wo": w(d, d), "bo": z(d)}

    def ffn():
        return {"w1": w(d, dff), "b1": z(dff), "w2": w(dff, d), "b2": z(d)}

    def enc_layer():
        return {"self": self_attn(), "ffn": ffn(),
                "ln1_g": ones(d), "ln1_b": z(d), "ln2_g": ones(d), "ln2_b": z(d)}

    def dec_layer():
        return {"self": self_attn(), "src": cross_attn(), "ast": cross_attn(),
                "ffn": ffn(),
                "ln1_g": ones(d), "ln1_b": z(d), "ln2_g": ones(d), "ln2_b": z(d),
                "ln3_g": ones(d), "ln3_b": z(d), "ln4_g": ones(d), "ln4_b": z(d)}

    return {
        "src_embed": 0.02 * jax.random.normal(next(keys), (cfg["src_vocab"], d), jnp.float32),
        "tgt_embed": 0.02 * jax.random.normal(next(keys), (cfg["tgt_vocab"], d), jnp.float32),
        "ast_embed": 0.02 * jax.random.normal(next(keys), (cfg["ast_vocab"], d), jnp.float32),
        "ast_proj_w": w(d, d), "ast_proj_b": z(d),
        "encoder_layers": [enc_layer() for _ in range(cfg["enc_layers"])],
        "decoder_layers": [dec_layer() for _ in range(cfg["dec_layers"])],
        "gen_w": w(d, cfg["tgt_vocab"]), "gen_b": z(cfg["tgt_vocab"]),
    }


# ---------------------------------------------------------------------------
if __name__ == "__main__":
    cfg = dict(d_model=32, d_ff=64, num_heads=4, enc_layers=1, dec_layers=2,
               src_vocab=40, tgt_vocab=50, ast_vocab=30)

    B, Ls, Lt, Na = 2, 16, 8, 8
    root = jax.random.PRNGKey(0)
    kp, k1, k2, k3, k4 = jax.random.split(root, 5)

    params = init_params(kp, cfg)

    code_word_rep = jax.random.randint(k1, (B, Ls), 1, cfg["src_vocab"], dtype=jnp.int32)
    code_len = jnp.array([16, 12], jnp.int32)
    ast_node_rep = jax.random.randint(k2, (B, Na), 1, cfg["ast_vocab"], dtype=jnp.int32)
    summ_word_rep = jax.random.randint(k3, (B, Lt), 1, cfg["tgt_vocab"], dtype=jnp.int32)
    summ_len = jnp.array([8, 6], jnp.int32)
    tgt_seq = jax.random.randint(k4, (B, Lt), 1, cfg["tgt_vocab"], dtype=jnp.int32)
    tgt_seq = tgt_seq.at[:, 0].set(BOS)

    valid = jnp.arange(Lt)[None, :] < summ_len[:, None]
    summ_word_rep = jnp.where(valid, summ_word_rep, PAD)
    tgt_seq = jnp.where(valid, tgt_seq, PAD)
    code_valid = jnp.arange(Ls)[None, :] < code_len[:, None]
    code_word_rep = jnp.where(code_valid, code_word_rep, PAD)

    fwd = jax.jit(lambda p, *args: forward(p, cfg, *args))
    loss = fwd(params, code_word_rep, code_len, ast_node_rep,
               summ_word_rep, summ_len, tgt_seq)
    loss = jax.tree_util.tree_map(jax.block_until_ready, loss)

    assert jnp.isfinite(loss["ml_loss"]) and jnp.isfinite(loss["loss_per_token"])
    print("KERNEL_OK")
</pallas_src>

<mosaic_0001>
module attributes {stable_mosaic.version = 11 : i64} {
  func.func @_fused_self_attn_kernel(%arg0: i32, %arg1: memref<2xi32, #tpu.memory_space<smem>>, %arg2: memref<1x16x32xf32, #tpu.memory_space<vmem>>, %arg3: memref<32x96xbf16, #tpu.memory_space<vmem>>, %arg4: memref<1x96xf32, #tpu.memory_space<vmem>>, %arg5: memref<1x16x32xbf16, #tpu.memory_space<vmem>>) attributes {dimension_semantics = [#tpu.dimension_semantics<parallel>], iteration_bounds = array<i64: 2>, scalar_prefetch = 1 : i64, scratch_operands = 0 : i64, tpu.core_type = #tpu.core_type<tc>, window_params = [{transform_indices = @transform_0, window_bounds = array<i64: 1, 16, 32>}, {pipeline_mode = #tpu.pipeline_mode<synchronous>, transform_indices = @transform_1, window_bounds = array<i64: 32, 96>}, {pipeline_mode = #tpu.pipeline_mode<synchronous>, transform_indices = @transform_2, window_bounds = array<i64: 1, 96>}, {transform_indices = @transform_3, window_bounds = array<i64: 1, 16, 32>}]} {
    %c0 = arith.constant 0 : index
    %c0_0 = arith.constant 0 : index
    %c0_1 = arith.constant 0 : index
    %0 = vector.load %arg2[%c0, %c0_0, %c0_1] : memref<1x16x32xf32, #tpu.memory_space<vmem>>, vector<1x16x32xf32>
    %1 = vector.shape_cast %0 : vector<1x16x32xf32> to vector<16x32xf32>
    %2 = arith.truncf %1 : vector<16x32xf32> to vector<16x32xbf16>
    %c0_2 = arith.constant 0 : index
    %c0_3 = arith.constant 0 : index
    %3 = vector.load %arg3[%c0_2, %c0_3] : memref<32x96xbf16, #tpu.memory_space<vmem>>, vector<32x96xbf16>
    %cst = arith.constant dense<0.000000e+00> : vector<16x96xf32>
    %4 = tpu.matmul %2, %3, %cst {dimension_numbers = #tpu.dot_dimension_numbers<[1], [0], [0], [1], [0, 0, 1, 1], [], []>} : vector<16x32xbf16>, vector<32x96xbf16>, vector<16x96xf32> -> vector<16x96xf32>
    %c0_4 = arith.constant 0 : index
    %c0_5 = arith.constant 0 : index
    %5 = vector.load %arg4[%c0_4, %c0_5] : memref<1x96xf32, #tpu.memory_space<vmem>>, vector<1x96xf32>
    %6 = vector.broadcast %5 : vector<1x96xf32> to vector<16x96xf32>
    %7 = arith.addf %4, %6 : vector<16x96xf32>
    %8 = arith.index_cast %arg0 : i32 to index
    %9 = memref.load %arg1[%8] : memref<2xi32, #tpu.memory_space<smem>>
    %10 = tpu.iota {dimensions = array<i32: 1>} : vector<16x16xi32>
    %11 = vector.broadcast %9 : i32 to vector<16x16xi32>
    %12 = arith.cmpi slt, %10, %11 : vector<16x16xi32>
    %13 = vector.extract_strided_slice %7 {offsets = [0, 0], sizes = [16, 32], strides = [1, 1]} : vector<16x96xf32> to vector<16x32xf32>
    %14 = vector.extract_strided_slice %7 {offsets = [0, 32], sizes = [16, 32], strides = [1, 1]} : vector<16x96xf32> to vector<16x32xf32>
    %15 = vector.extract_strided_slice %7 {offsets = [0, 64], sizes = [16, 32], strides = [1, 1]} : vector<16x96xf32> to vector<16x32xf32>
    %cst_6 = arith.constant 0.353553385 : f32
    %16 = vector.broadcast %cst_6 : f32 to vector<16x32xf32>
    %17 = arith.mulf %13, %16 : vector<16x32xf32>
    %18 = arith.truncf %17 : vector<16x32xf32> to vector<16x32xbf16>
    %19 = arith.truncf %14 : vector<16x32xf32> to vector<16x32xbf16>
    %20 = arith.truncf %15 : vector<16x32xf32> to vector<16x32xbf16>
    %21 = vector.extract_strided_slice %18 {offsets = [0, 0], sizes = [16, 8], strides = [1, 1]} : vector<16x32xbf16> to vector<16x8xbf16>
    %22 = vector.extract_strided_slice %19 {offsets = [0, 0], sizes = [16, 8], strides = [1, 1]} : vector<16x32xbf16> to vector<16x8xbf16>
    %cst_7 = arith.constant dense<0.000000e+00> : vector<16x16xf32>
    %23 = tpu.matmul %21, %22, %cst_7 {dimension_numbers = #tpu.dot_dimension_numbers<[1], [1], [0], [0], [0, 0, 1, 0], [], []>} : vector<16x8xbf16>, vector<16x8xbf16>, vector<16x16xf32> -> vector<16x16xf32>
    %cst_8 = arith.constant -1.000000e+09 : f32
    %24 = vector.broadcast %cst_8 : f32 to vector<16x16xf32>
    %25 = arith.select %12, %23, %24 : vector<16x16xi1>, vector<16x16xf32>
    %cst_9 = arith.constant dense<0xFF800000> : vector<16xf32>
    %26 = vector.multi_reduction <maximumf>, %25, %cst_9 [1] : vector<16x16xf32> to vector<16xf32>
    %27 = vector.shape_cast %26 : vector<16xf32> to vector<16x1xf32>
    %28 = vector.broadcast %27 : vector<16x1xf32> to vector<16x16xf32>
    %29 = arith.subf %25, %28 : vector<16x16xf32>
    %30 = math.exp %29 : vector<16x16xf32>
    %cst_10 = arith.constant dense<0.000000e+00> : vector<16xf32>
    %31 = vector.multi_reduction <add>, %30, %cst_10 [1] : vector<16x16xf32> to vector<16xf32>
    %32 = vector.shape_cast %31 : vector<16xf32> to vector<16x1xf32>
    %33 = tpu.reciprocal %32 {approx = true} : vector<16x1xf32> -> vector<16x1xf32>
    %34 = vector.broadcast %33 : vector<16x1xf32> to vector<16x16xf32>
    %35 = arith.mulf %30, %34 : vector<16x16xf32>
    %36 = arith.truncf %35 : vector<16x16xf32> to vector<16x16xbf16>
    %37 = vector.extract_strided_slice %20 {offsets = [0, 0], sizes = [16, 8], strides = [1, 1]} : vector<16x32xbf16> to vector<16x8xbf16>
    %cst_11 = arith.constant dense<0.000000e+00> : vector<16x8xf32>
    %38 = tpu.matmul %36, %37, %cst_11 {dimension_numbers = #tpu.dot_dimension_numbers<[1], [0], [0], [1], [0, 0, 1, 1], [], []>} : vector<16x16xbf16>, vector<16x8xbf16>, vector<16x8xf32> -> vector<16x8xf32>
    %39 = vector.extract_strided_slice %18 {offsets = [0, 8], sizes = [16, 8], strides = [1, 1]} : vector<16x32xbf16> to vector<16x8xbf16>
    %40 = vector.extract_strided_slice %19 {offsets = [0, 8], sizes = [16, 8], strides = [1, 1]} : vector<16x32xbf16> to vector<16x8xbf16>
    %cst_12 = arith.constant dense<0.000000e+00> : vector<16x16xf32>
    %41 = tpu.matmul %39, %40, %cst_12 {dimension_numbers = #tpu.dot_dimension_numbers<[1], [1], [0], [0], [0, 0, 1, 0], [], []>} : vector<16x8xbf16>, vector<16x8xbf16>, vector<16x16xf32> -> vector<16x16xf32>
    %cst_13 = arith.constant -1.000000e+09 : f32
    %42 = vector.broadcast %cst_13 : f32 to vector<16x16xf32>
    %43 = arith.select %12, %41, %42 : vector<16x16xi1>, vector<16x16xf32>
    %cst_14 = arith.constant dense<0xFF800000> : vector<16xf32>
    %44 = vector.multi_reduction <maximumf>, %43, %cst_14 [1] : vector<16x16xf32> to vector<16xf32>
    %45 = vector.shape_cast %44 : vector<16xf32> to vector<16x1xf32>
    %46 = vector.broadcast %45 : vector<16x1xf32> to vector<16x16xf32>
    %47 = arith.subf %43, %46 : vector<16x16xf32>
    %48 = math.exp %47 : vector<16x16xf32>
    %cst_15 = arith.constant dense<0.000000e+00> : vector<16xf32>
    %49 = vector.multi_reduction <add>, %48, %cst_15 [1] : vector<16x16xf32> to vector<16xf32>
    %50 = vector.shape_cast %49 : vector<16xf32> to vector<16x1xf32>
    %51 = tpu.reciprocal %50 {approx = true} : vector<16x1xf32> -> vector<16x1xf32>
    %52 = vector.broadcast %51 : vector<16x1xf32> to vector<16x16xf32>
    %53 = arith.mulf %48, %52 : vector<16x16xf32>
    %54 = arith.truncf %53 : vector<16x16xf32> to vector<16x16xbf16>
    %55 = vector.extract_strided_slice %20 {offsets = [0, 8], sizes = [16, 8], strides = [1, 1]} : vector<16x32xbf16> to vector<16x8xbf16>
    %cst_16 = arith.constant dense<0.000000e+00> : vector<16x8xf32>
    %56 = tpu.matmul %54, %55, %cst_16 {dimension_numbers = #tpu.dot_dimension_numbers<[1], [0], [0], [1], [0, 0, 1, 1], [], []>} : vector<16x16xbf16>, vector<16x8xbf16>, vector<16x8xf32> -> vector<16x8xf32>
    %57 = vector.extract_strided_slice %18 {offsets = [0, 16], sizes = [16, 8], strides = [1, 1]} : vector<16x32xbf16> to vector<16x8xbf16>
    %58 = vector.extract_strided_slice %19 {offsets = [0, 16], sizes = [16, 8], strides = [1, 1]} : vector<16x32xbf16> to vector<16x8xbf16>
    %cst_17 = arith.constant dense<0.000000e+00> : vector<16x16xf32>
    %59 = tpu.matmul %57, %58, %cst_17 {dimension_numbers = #tpu.dot_dimension_numbers<[1], [1], [0], [0], [0, 0, 1, 0], [], []>} : vector<16x8xbf16>, vector<16x8xbf16>, vector<16x16xf32> -> vector<16x16xf32>
    %cst_18 = arith.constant -1.000000e+09 : f32
    %60 = vector.broadcast %cst_18 : f32 to vector<16x16xf32>
    %61 = arith.select %12, %59, %60 : vector<16x16xi1>, vector<16x16xf32>
    %cst_19 = arith.constant dense<0xFF800000> : vector<16xf32>
    %62 = vector.multi_reduction <maximumf>, %61, %cst_19 [1] : vector<16x16xf32> to vector<16xf32>
    %63 = vector.shape_cast %62 : vector<16xf32> to vector<16x1xf32>
    %64 = vector.broadcast %63 : vector<16x1xf32> to vector<16x16xf32>
    %65 = arith.subf %61, %64 : vector<16x16xf32>
    %66 = math.exp %65 : vector<16x16xf32>
    %cst_20 = arith.constant dense<0.000000e+00> : vector<16xf32>
    %67 = vector.multi_reduction <add>, %66, %cst_20 [1] : vector<16x16xf32> to vector<16xf32>
    %68 = vector.shape_cast %67 : vector<16xf32> to vector<16x1xf32>
    %69 = tpu.reciprocal %68 {approx = true} : vector<16x1xf32> -> vector<16x1xf32>
    %70 = vector.broadcast %69 : vector<16x1xf32> to vector<16x16xf32>
    %71 = arith.mulf %66, %70 : vector<16x16xf32>
    %72 = arith.truncf %71 : vector<16x16xf32> to vector<16x16xbf16>
    %73 = vector.extract_strided_slice %20 {offsets = [0, 16], sizes = [16, 8], strides = [1, 1]} : vector<16x32xbf16> to vector<16x8xbf16>
    %cst_21 = arith.constant dense<0.000000e+00> : vector<16x8xf32>
    %74 = tpu.matmul %72, %73, %cst_21 {dimension_numbers = #tpu.dot_dimension_numbers<[1], [0], [0], [1], [0, 0, 1, 1], [], []>} : vector<16x16xbf16>, vector<16x8xbf16>, vector<16x8xf32> -> vector<16x8xf32>
    %75 = vector.extract_strided_slice %18 {offsets = [0, 24], sizes = [16, 8], strides = [1, 1]} : vector<16x32xbf16> to vector<16x8xbf16>
    %76 = vector.extract_strided_slice %19 {offsets = [0, 24], sizes = [16, 8], strides = [1, 1]} : vector<16x32xbf16> to vector<16x8xbf16>
    %cst_22 = arith.constant dense<0.000000e+00> : vector<16x16xf32>
    %77 = tpu.matmul %75, %76, %cst_22 {dimension_numbers = #tpu.dot_dimension_numbers<[1], [1], [0], [0], [0, 0, 1, 0], [], []>} : vector<16x8xbf16>, vector<16x8xbf16>, vector<16x16xf32> -> vector<16x16xf32>
    %cst_23 = arith.constant -1.000000e+09 : f32
    %78 = vector.broadcast %cst_23 : f32 to vector<16x16xf32>
    %79 = arith.select %12, %77, %78 : vector<16x16xi1>, vector<16x16xf32>
    %cst_24 = arith.constant dense<0xFF800000> : vector<16xf32>
    %80 = vector.multi_reduction <maximumf>, %79, %cst_24 [1] : vector<16x16xf32> to vector<16xf32>
    %81 = vector.shape_cast %80 : vector<16xf32> to vector<16x1xf32>
    %82 = vector.broadcast %81 : vector<16x1xf32> to vector<16x16xf32>
    %83 = arith.subf %79, %82 : vector<16x16xf32>
    %84 = math.exp %83 : vector<16x16xf32>
    %cst_25 = arith.constant dense<0.000000e+00> : vector<16xf32>
    %85 = vector.multi_reduction <add>, %84, %cst_25 [1] : vector<16x16xf32> to vector<16xf32>
    %86 = vector.shape_cast %85 : vector<16xf32> to vector<16x1xf32>
    %87 = tpu.reciprocal %86 {approx = true} : vector<16x1xf32> -> vector<16x1xf32>
    %88 = vector.broadcast %87 : vector<16x1xf32> to vector<16x16xf32>
    %89 = arith.mulf %84, %88 : vector<16x16xf32>
    %90 = arith.truncf %89 : vector<16x16xf32> to vector<16x16xbf16>
    %91 = vector.extract_strided_slice %20 {offsets = [0, 24], sizes = [16, 8], strides = [1, 1]} : vector<16x32xbf16> to vector<16x8xbf16>
    %cst_26 = arith.constant dense<0.000000e+00> : vector<16x8xf32>
    %92 = tpu.matmul %90, %91, %cst_26 {dimension_numbers = #tpu.dot_dimension_numbers<[1], [0], [0], [1], [0, 0, 1, 1], [], []>} : vector<16x16xbf16>, vector<16x8xbf16>, vector<16x8xf32> -> vector<16x8xf32>
    %93 = tpu.concatenate %38, %56, %74, %92 in 1 : vector<16x8xf32>, vector<16x8xf32>, vector<16x8xf32>, vector<16x8xf32> -> vector<16x32xf32>
    %94 = arith.truncf %93 : vector<16x32xf32> to vector<16x32xbf16>
    %c0_27 = arith.constant 0 : index
    %c0_28 = arith.constant 0 : index
    %c0_29 = arith.constant 0 : index
    %95 = vector.load %arg5[%c0_27, %c0_28, %c0_29] : memref<1x16x32xbf16, #tpu.memory_space<vmem>>, vector<1x16x32xbf16>
    %96 = vector.shape_cast %95 : vector<1x16x32xbf16> to vector<16x32xbf16>
    %97 = vector.shape_cast %94 : vector<16x32xbf16> to vector<1x16x32xbf16>
    tpu.vector_store %arg5[%c0_27, %c0_28, %c0_29], %97 {strides = array<i32>} : memref<1x16x32xbf16, #tpu.memory_space<vmem>>, vector<1x16x32xbf16>,
    return
  }
  func.func @transform_0(%arg0: i32, %arg1: memref<2xi32, #tpu.memory_space<smem>>) -> (i32, i32, i32) {
    %c0_i32 = arith.constant 0 : i32
    %c0_i32_0 = arith.constant 0 : i32
    %c0_i32_1 = arith.constant 0 : i32
    return %arg0, %c0_i32, %c0_i32_0 : i32, i32, i32
  }
  func.func @transform_1(%arg0: i32, %arg1: memref<2xi32, #tpu.memory_space<smem>>) -> (i32, i32) {
    %c0_i32 = arith.constant 0 : i32
    %c0_i32_0 = arith.constant 0 : i32
    %c0_i32_1 = arith.constant 0 : i32
    return %c0_i32, %c0_i32_0 : i32, i32
  }
  func.func @transform_2(%arg0: i32, %arg1: memref<2xi32, #tpu.memory_space<smem>>) -> (i32, i32) {
    %c0_i32 = arith.constant 0 : i32
    %c0_i32_0 = arith.constant 0 : i32
    %c0_i32_1 = arith.constant 0 : i32
    return %c0_i32, %c0_i32_0 : i32, i32
  }
  func.func @transform_3(%arg0: i32, %arg1: memref<2xi32, #tpu.memory_space<smem>>) -> (i32, i32, i32) {
    %c0_i32 = arith.constant 0 : i32
    %c0_i32_0 = arith.constant 0 : i32
    %c0_i32_1 = arith.constant 0 : i32
    return %arg0, %c0_i32, %c0_i32_0 : i32, i32, i32
  }
}

module attributes {stable_mosaic.version = 11 : i64} {
  func.func @_linear_add_ln_kernel(%arg0: i32, %arg1: memref<32x32xbf16, #tpu.memory_space<vmem>>, %arg2: memref<32x32xf32, #tpu.memory_space<vmem>>, %arg3: memref<32x32xbf16, #tpu.memory_space<vmem>>, %arg4: memref<1x32xf32, #tpu.memory_space<vmem>>, %arg5: memref<1x32xf32, #tpu.memory_space<vmem>>, %arg6: memref<1x32xf32, #tpu.memory_space<vmem>>, %arg7: memref<32x32xf32, #tpu.memory_space<vmem>>) attributes {dimension_semantics = [#tpu.dimension_semantics<parallel>], iteration_bounds = array<i64: 1>, scalar_prefetch = 0 : i64, scratch_operands = 0 : i64, tpu.core_type = #tpu.core_type<tc>, window_params = [{transform_indices = @transform_0, window_bounds = array<i64: 32, 32>}, {transform_indices = @transform_1, window_bounds = array<i64: 32, 32>}, {pipeline_mode = #tpu.pipeline_mode<synchronous>, transform_indices = @transform_2, window_bounds = array<i64: 32, 32>}, {pipeline_mode = #tpu.pipeline_mode<synchronous>, transform_indices = @transform_3, window_bounds = array<i64: 1, 32>}, {pipeline_mode = #tpu.pipeline_mode<synchronous>, transform_indices = @transform_4, window_bounds = array<i64: 1, 32>}, {pipeline_mode = #tpu.pipeline_mode<synchronous>, transform_indices = @transform_5, window_bounds = array<i64: 1, 32>}, {transform_indices = @transform_6, window_bounds = array<i64: 32, 32>}]} {
    %c0 = arith.constant 0 : index
    %c0_0 = arith.constant 0 : index
    %0 = vector.load %arg1[%c0, %c0_0] : memref<32x32xbf16, #tpu.memory_space<vmem>>, vector<32x32xbf16>
    %c0_1 = arith.constant 0 : index
    %c0_2 = arith.constant 0 : index
    %1 = vector.load %arg3[%c0_1, %c0_2] : memref<32x32xbf16, #tpu.memory_space<vmem>>, vector<32x32xbf16>
    %cst = arith.constant dense<0.000000e+00> : vector<32x32xf32>
    %2 = tpu.matmul %0, %1, %cst {dimension_numbers = #tpu.dot_dimension_numbers<[1], [0], [0], [1], [0, 0, 1, 1], [], []>} : vector<32x32xbf16>, vector<32x32xbf16>, vector<32x32xf32> -> vector<32x32xf32>
    %c0_3 = arith.constant 0 : index
    %c0_4 = arith.constant 0 : index
    %3 = vector.load %arg4[%c0_3, %c0_4] : memref<1x32xf32, #tpu.memory_space<vmem>>, vector<1x32xf32>
    %4 = vector.broadcast %3 : vector<1x32xf32> to vector<32x32xf32>
    %5 = arith.addf %2, %4 : vector<32x32xf32>
    %c0_5 = arith.constant 0 : index
    %c0_6 = arith.constant 0 : index
    %6 = vector.load %arg2[%c0_5, %c0_6] : memref<32x32xf32, #tpu.memory_space<vmem>>, vector<32x32xf32>
    %7 = arith.addf %5, %6 : vector<32x32xf32>
    %cst_7 = arith.constant dense<0.000000e+00> : vector<32xf32>
    %8 = vector.multi_reduction <add>, %7, %cst_7 [1] : vector<32x32xf32> to vector<32xf32>
    %9 = vector.shape_cast %8 : vector<32xf32> to vector<32x1xf32>
    %cst_8 = arith.constant 3.200000e+01 : f32
    %10 = vector.broadcast %cst_8 : f32 to vector<32x1xf32>
    %11 = arith.divf %9, %10 : vector<32x1xf32>
    %12 = vector.broadcast %11 : vector<32x1xf32> to vector<32x32xf32>
    %13 = arith.subf %7, %12 : vector<32x32xf32>
    %14 = arith.mulf %13, %13 : vector<32x32xf32>
    %cst_9 = arith.constant dense<0.000000e+00> : vector<32xf32>
    %15 = vector.multi_reduction <add>, %14, %cst_9 [1] : vector<32x32xf32> to vector<32xf32>
    %16 = vector.shape_cast %15 : vector<32xf32> to vector<32x1xf32>
    %cst_10 = arith.constant 3.200000e+01 : f32
    %17 = vector.broadcast %cst_10 : f32 to vector<32x1xf32>
    %18 = arith.divf %16, %17 : vector<32x1xf32>
    %cst_11 = arith.constant 9.99999997E-7 : f32
    %19 = vector.broadcast %cst_11 : f32 to vector<32x1xf32>
    %20 = arith.addf %18, %19 : vector<32x1xf32>
    %21 = math.rsqrt %20 : vector<32x1xf32>
    %22 = vector.broadcast %21 : vector<32x1xf32> to vector<32x32xf32>
    %23 = arith.mulf %13, %22 : vector<32x32xf32>
    %c0_12 = arith.constant 0 : index
    %c0_13 = arith.constant 0 : index
    %24 = vector.load %arg5[%c0_12, %c0_13] : memref<1x32xf32, #tpu.memory_space<vmem>>, vector<1x32xf32>
    %25 = vector.broadcast %24 : vector<1x32xf32> to vector<32x32xf32>
    %26 = arith.mulf %23, %25 : vector<32x32xf32>
    %c0_14 = arith.constant 0 : index
    %c0_15 = arith.constant 0 : index
    %27 = vector.load %arg6[%c0_14, %c0_15] : memref<1x32xf32, #tpu.memory_space<vmem>>, vector<1x32xf32>
    %28 = vector.broadcast %27 : vector<1x32xf32> to vector<32x32xf32>
    %29 = arith.addf %26, %28 : vector<32x32xf32>
    %c0_16 = arith.constant 0 : index
    %c0_17 = arith.constant 0 : index
    %30 = vector.load %arg7[%c0_16, %c0_17] : memref<32x32xf32, #tpu.memory_space<vmem>>, vector<32x32xf32>
    tpu.vector_store %arg7[%c0_16, %c0_17], %29 {strides = array<i32>} : memref<32x32xf32, #tpu.memory_space<vmem>>, vector<32x32xf32>,
    return
  }
  func.func @transform_0(%arg0: i32) -> (i32, i32) {
    %c0_i32 = arith.constant 0 : i32
    %c0_i32_0 = arith.constant 0 : i32
    return %arg0, %c0_i32 : i32, i32
  }
  func.func @transform_1(%arg0: i32) -> (i32, i32) {
    %c0_i32 = arith.constant 0 : i32
    %c0_i32_0 = arith.constant 0 : i32
    return %arg0, %c0_i32 : i32, i32
  }
  func.func @transform_2(%arg0: i32) -> (i32, i32) {
    %c0_i32 = arith.constant 0 : i32
    %c0_i32_0 = arith.constant 0 : i32
    %c0_i32_1 = arith.constant 0 : i32
    return %c0_i32, %c0_i32_0 : i32, i32
  }
  func.func @transform_3(%arg0: i32) -> (i32, i32) {
    %c0_i32 = arith.constant 0 : i32
    %c0_i32_0 = arith.constant 0 : i32
    %c0_i32_1 = arith.constant 0 : i32
    return %c0_i32, %c0_i32_0 : i32, i32
  }
  func.func @transform_4(%arg0: i32) -> (i32, i32) {
    %c0_i32 = arith.constant 0 : i32
    %c0_i32_0 = arith.constant 0 : i32
    %c0_i32_1 = arith.constant 0 : i32
    return %c0_i32, %c0_i32_0 : i32, i32
  }
  func.func @transform_5(%arg0: i32) -> (i32, i32) {
    %c0_i32 = arith.constant 0 : i32
    %c0_i32_0 = arith.constant 0 : i32
    %c0_i32_1 = arith.constant 0 : i32
    return %c0_i32, %c0_i32_0 : i32, i32
  }
  func.func @transform_6(%arg0: i32) -> (i32, i32) {
    %c0_i32 = arith.constant 0 : i32
    %c0_i32_0 = arith.constant 0 : i32
    return %arg0, %c0_i32 : i32, i32
  }
}

module attributes {stable_mosaic.version = 11 : i64} {
  func.func @_ffn_add_ln_kernel(%arg0: i32, %arg1: memref<32x32xf32, #tpu.memory_space<vmem>>, %arg2: memref<32x64xbf16, #tpu.memory_space<vmem>>, %arg3: memref<1x64xf32, #tpu.memory_space<vmem>>, %arg4: memref<64x32xbf16, #tpu.memory_space<vmem>>, %arg5: memref<1x32xf32, #tpu.memory_space<vmem>>, %arg6: memref<1x32xf32, #tpu.memory_space<vmem>>, %arg7: memref<1x32xf32, #tpu.memory_space<vmem>>, %arg8: memref<32x32xf32, #tpu.memory_space<vmem>>) attributes {dimension_semantics = [#tpu.dimension_semantics<parallel>], iteration_bounds = array<i64: 1>, scalar_prefetch = 0 : i64, scratch_operands = 0 : i64, tpu.core_type = #tpu.core_type<tc>, window_params = [{transform_indices = @transform_0, window_bounds = array<i64: 32, 32>}, {pipeline_mode = #tpu.pipeline_mode<synchronous>, transform_indices = @transform_1, window_bounds = array<i64: 32, 64>}, {pipeline_mode = #tpu.pipeline_mode<synchronous>, transform_indices = @transform_2, window_bounds = array<i64: 1, 64>}, {pipeline_mode = #tpu.pipeline_mode<synchronous>, transform_indices = @transform_3, window_bounds = array<i64: 64, 32>}, {pipeline_mode = #tpu.pipeline_mode<synchronous>, transform_indices = @transform_4, window_bounds = array<i64: 1, 32>}, {pipeline_mode = #tpu.pipeline_mode<synchronous>, transform_indices = @transform_5, window_bounds = array<i64: 1, 32>}, {pipeline_mode = #tpu.pipeline_mode<synchronous>, transform_indices = @transform_6, window_bounds = array<i64: 1, 32>}, {transform_indices = @transform_7, window_bounds = array<i64: 32, 32>}]} {
    %c0 = arith.constant 0 : index
    %c0_0 = arith.constant 0 : index
    %0 = vector.load %arg1[%c0, %c0_0] : memref<32x32xf32, #tpu.memory_space<vmem>>, vector<32x32xf32>
    %1 = arith.truncf %0 : vector<32x32xf32> to vector<32x32xbf16>
    %c0_1 = arith.constant 0 : index
    %c0_2 = arith.constant 0 : index
    %2 = vector.load %arg2[%c0_1, %c0_2] : memref<32x64xbf16, #tpu.memory_space<vmem>>, vector<32x64xbf16>
    %cst = arith.constant dense<0.000000e+00> : vector<32x64xf32>
    %3 = tpu.matmul %1, %2, %cst {dimension_numbers = #tpu.dot_dimension_numbers<[1], [0], [0], [1], [0, 0, 1, 1], [], []>} : vector<32x32xbf16>, vector<32x64xbf16>, vector<32x64xf32> -> vector<32x64xf32>
    %c0_3 = arith.constant 0 : index
    %c0_4 = arith.constant 0 : index
    %4 = vector.load %arg3[%c0_3, %c0_4] : memref<1x64xf32, #tpu.memory_space<vmem>>, vector<1x64xf32>
    %5 = vector.broadcast %4 : vector<1x64xf32> to vector<32x64xf32>
    %6 = arith.addf %3, %5 : vector<32x64xf32>
    %cst_5 = arith.constant 0.000000e+00 : f32
    %7 = vector.broadcast %cst_5 : f32 to vector<32x64xf32>
    %8 = arith.maximumf %6, %7 : vector<32x64xf32>
    %9 = arith.truncf %8 : vector<32x64xf32> to vector<32x64xbf16>
    %c0_6 = arith.constant 0 : index
    %c0_7 = arith.constant 0 : index
    %10 = vector.load %arg4[%c0_6, %c0_7] : memref<64x32xbf16, #tpu.memory_space<vmem>>, vector<64x32xbf16>
    %cst_8 = arith.constant dense<0.000000e+00> : vector<32x32xf32>
    %11 = tpu.matmul %9, %10, %cst_8 {dimension_numbers = #tpu.dot_dimension_numbers<[1], [0], [0], [1], [0, 0, 1, 1], [], []>} : vector<32x64xbf16>, vector<64x32xbf16>, vector<32x32xf32> -> vector<32x32xf32>
    %c0_9 = arith.constant 0 : index
    %c0_10 = arith.constant 0 : index
    %12 = vector.load %arg5[%c0_9, %c0_10] : memref<1x32xf32, #tpu.memory_space<vmem>>, vector<1x32xf32>
    %13 = vector.broadcast %12 : vector<1x32xf32> to vector<32x32xf32>
    %14 = arith.addf %11, %13 : vector<32x32xf32>
    %15 = arith.addf %14, %0 : vector<32x32xf32>
    %cst_11 = arith.constant dense<0.000000e+00> : vector<32xf32>
    %16 = vector.multi_reduction <add>, %15, %cst_11 [1] : vector<32x32xf32> to vector<32xf32>
    %17 = vector.shape_cast %16 : vector<32xf32> to vector<32x1xf32>
    %cst_12 = arith.constant 3.200000e+01 : f32
    %18 = vector.broadcast %cst_12 : f32 to vector<32x1xf32>
    %19 = arith.divf %17, %18 : vector<32x1xf32>
    %20 = vector.broadcast %19 : vector<32x1xf32> to vector<32x32xf32>
    %21 = arith.subf %15, %20 : vector<32x32xf32>
    %22 = arith.mulf %21, %21 : vector<32x32xf32>
    %cst_13 = arith.constant dense<0.000000e+00> : vector<32xf32>
    %23 = vector.multi_reduction <add>, %22, %cst_13 [1] : vector<32x32xf32> to vector<32xf32>
    %24 = vector.shape_cast %23 : vector<32xf32> to vector<32x1xf32>
    %cst_14 = arith.constant 3.200000e+01 : f32
    %25 = vector.broadcast %cst_14 : f32 to vector<32x1xf32>
    %26 = arith.divf %24, %25 : vector<32x1xf32>
    %cst_15 = arith.constant 9.99999997E-7 : f32
    %27 = vector.broadcast %cst_15 : f32 to vector<32x1xf32>
    %28 = arith.addf %26, %27 : vector<32x1xf32>
    %29 = math.rsqrt %28 : vector<32x1xf32>
    %30 = vector.broadcast %29 : vector<32x1xf32> to vector<32x32xf32>
    %31 = arith.mulf %21, %30 : vector<32x32xf32>
    %c0_16 = arith.constant 0 : index
    %c0_17 = arith.constant 0 : index
    %32 = vector.load %arg6[%c0_16, %c0_17] : memref<1x32xf32, #tpu.memory_space<vmem>>, vector<1x32xf32>
    %33 = vector.broadcast %32 : vector<1x32xf32> to vector<32x32xf32>
    %34 = arith.mulf %31, %33 : vector<32x32xf32>
    %c0_18 = arith.constant 0 : index
    %c0_19 = arith.constant 0 : index
    %35 = vector.load %arg7[%c0_18, %c0_19] : memref<1x32xf32, #tpu.memory_space<vmem>>, vector<1x32xf32>
    %36 = vector.broadcast %35 : vector<1x32xf32> to vector<32x32xf32>
    %37 = arith.addf %34, %36 : vector<32x32xf32>
    %c0_20 = arith.constant 0 : index
    %c0_21 = arith.constant 0 : index
    %38 = vector.load %arg8[%c0_20, %c0_21] : memref<32x32xf32, #tpu.memory_space<vmem>>, vector<32x32xf32>
    tpu.vector_store %arg8[%c0_20, %c0_21], %37 {strides = array<i32>} : memref<32x32xf32, #tpu.memory_space<vmem>>, vector<32x32xf32>,
    return
  }
  func.func @transform_0(%arg0: i32) -> (i32, i32) {
    %c0_i32 = arith.constant 0 : i32
    %c0_i32_0 = arith.constant 0 : i32
    return %arg0, %c0_i32 : i32, i32
  }
  func.func @transform_1(%arg0: i32) -> (i32, i32) {
    %c0_i32 = arith.constant 0 : i32
    %c0_i32_0 = arith.constant 0 : i32
    %c0_i32_1 = arith.constant 0 : i32
    return %c0_i32, %c0_i32_0 : i32, i32
  }
  func.func @transform_2(%arg0: i32) -> (i32, i32) {
    %c0_i32 = arith.constant 0 : i32
    %c0_i32_0 = arith.constant 0 : i32
    %c0_i32_1 = arith.constant 0 : i32
    return %c0_i32, %c0_i32_0 : i32, i32
  }
  func.func @transform_3(%arg0: i32) -> (i32, i32) {
    %c0_i32 = arith.constant 0 : i32
    %c0_i32_0 = arith.constant 0 : i32
    %c0_i32_1 = arith.constant 0 : i32
    return %c0_i32, %c0_i32_0 : i32, i32
  }
  func.func @transform_4(%arg0: i32) -> (i32, i32) {
    %c0_i32 = arith.constant 0 : i32
    %c0_i32_0 = arith.constant 0 : i32
    %c0_i32_1 = arith.constant 0 : i32
    return %c0_i32, %c0_i32_0 : i32, i32
  }
  func.func @transform_5(%arg0: i32) -> (i32, i32) {
    %c0_i32 = arith.constant 0 : i32
    %c0_i32_0 = arith.constant 0 : i32
    %c0_i32_1 = arith.constant 0 : i32
    return %c0_i32, %c0_i32_0 : i32, i32
  }
  func.func @transform_6(%arg0: i32) -> (i32, i32) {
    %c0_i32 = arith.constant 0 : i32
    %c0_i32_0 = arith.constant 0 : i32
    %c0_i32_1 = arith.constant 0 : i32
    return %c0_i32, %c0_i32_0 : i32, i32
  }
  func.func @transform_7(%arg0: i32) -> (i32, i32) {
    %c0_i32 = arith.constant 0 : i32
    %c0_i32_0 = arith.constant 0 : i32
    return %arg0, %c0_i32 : i32, i32
  }
}

module attributes {stable_mosaic.version = 11 : i64} {
  func.func @_fused_self_attn_kernel(%arg0: i32, %arg1: memref<2xi32, #tpu.memory_space<smem>>, %arg2: memref<1x8x32xf32, #tpu.memory_space<vmem>>, %arg3: memref<32x96xbf16, #tpu.memory_space<vmem>>, %arg4: memref<1x96xf32, #tpu.memory_space<vmem>>, %arg5: memref<1x8x32xbf16, #tpu.memory_space<vmem>>) attributes {dimension_semantics = [#tpu.dimension_semantics<parallel>], iteration_bounds = array<i64: 2>, scalar_prefetch = 1 : i64, scratch_operands = 0 : i64, tpu.core_type = #tpu.core_type<tc>, window_params = [{transform_indices = @transform_0, window_bounds = array<i64: 1, 8, 32>}, {pipeline_mode = #tpu.pipeline_mode<synchronous>, transform_indices = @transform_1, window_bounds = array<i64: 32, 96>}, {pipeline_mode = #tpu.pipeline_mode<synchronous>, transform_indices = @transform_2, window_bounds = array<i64: 1, 96>}, {transform_indices = @transform_3, window_bounds = array<i64: 1, 8, 32>}]} {
    %c0 = arith.constant 0 : index
    %c0_0 = arith.constant 0 : index
    %c0_1 = arith.constant 0 : index
    %0 = vector.load %arg2[%c0, %c0_0, %c0_1] : memref<1x8x32xf32, #tpu.memory_space<vmem>>, vector<1x8x32xf32>
    %1 = vector.shape_cast %0 : vector<1x8x32xf32> to vector<8x32xf32>
    %2 = arith.truncf %1 : vector<8x32xf32> to vector<8x32xbf16>
    %c0_2 = arith.constant 0 : index
    %c0_3 = arith.constant 0 : index
    %3 = vector.load %arg3[%c0_2, %c0_3] : memref<32x96xbf16, #tpu.memory_space<vmem>>, vector<32x96xbf16>
    %cst = arith.constant dense<0.000000e+00> : vector<8x96xf32>
    %4 = tpu.matmul %2, %3, %cst {dimension_numbers = #tpu.dot_dimension_numbers<[1], [0], [0], [1], [0, 0, 1, 1], [], []>} : vector<8x32xbf16>, vector<32x96xbf16>, vector<8x96xf32> -> vector<8x96xf32>
    %c0_4 = arith.constant 0 : index
    %c0_5 = arith.constant 0 : index
    %5 = vector.load %arg4[%c0_4, %c0_5] : memref<1x96xf32, #tpu.memory_space<vmem>>, vector<1x96xf32>
    %6 = vector.broadcast %5 : vector<1x96xf32> to vector<8x96xf32>
    %7 = arith.addf %4, %6 : vector<8x96xf32>
    %8 = arith.index_cast %arg0 : i32 to index
    %9 = memref.load %arg1[%8] : memref<2xi32, #tpu.memory_space<smem>>
    %10 = tpu.iota {dimensions = array<i32: 1>} : vector<8x8xi32>
    %11 = vector.broadcast %9 : i32 to vector<8x8xi32>
    %12 = arith.cmpi slt, %10, %11 : vector<8x8xi32>
    %13 = tpu.iota {dimensions = array<i32: 0>} : vector<8x8xi32>
    %14 = arith.cmpi sle, %10, %13 : vector<8x8xi32>
    %15 = arith.andi %12, %14 : vector<8x8xi1>
    %16 = vector.extract_strided_slice %7 {offsets = [0, 0], sizes = [8, 32], strides = [1, 1]} : vector<8x96xf32> to vector<8x32xf32>
    %17 = vector.extract_strided_slice %7 {offsets = [0, 32], sizes = [8, 32], strides = [1, 1]} : vector<8x96xf32> to vector<8x32xf32>
    %18 = vector.extract_strided_slice %7 {offsets = [0, 64], sizes = [8, 32], strides = [1, 1]} : vector<8x96xf32> to vector<8x32xf32>
    %cst_6 = arith.constant 0.353553385 : f32
    %19 = vector.broadcast %cst_6 : f32 to vector<8x32xf32>
    %20 = arith.mulf %16, %19 : vector<8x32xf32>
    %21 = arith.truncf %20 : vector<8x32xf32> to vector<8x32xbf16>
    %22 = arith.truncf %17 : vector<8x32xf32> to vector<8x32xbf16>
    %23 = arith.truncf %18 : vector<8x32xf32> to vector<8x32xbf16>
    %24 = vector.extract_strided_slice %21 {offsets = [0, 0], sizes = [8, 8], strides = [1, 1]} : vector<8x32xbf16> to vector<8x8xbf16>
    %25 = vector.extract_strided_slice %22 {offsets = [0, 0], sizes = [8, 8], strides = [1, 1]} : vector<8x32xbf16> to vector<8x8xbf16>
    %cst_7 = arith.constant dense<0.000000e+00> : vector<8x8xf32>
    %26 = tpu.matmul %24, %25, %cst_7 {dimension_numbers = #tpu.dot_dimension_numbers<[1], [1], [0], [0], [0, 0, 1, 0], [], []>} : vector<8x8xbf16>, vector<8x8xbf16>, vector<8x8xf32> -> vector<8x8xf32>
    %cst_8 = arith.constant -1.000000e+09 : f32
    %27 = vector.broadcast %cst_8 : f32 to vector<8x8xf32>
    %28 = arith.select %15, %26, %27 : vector<8x8xi1>, vector<8x8xf32>
    %cst_9 = arith.constant dense<0xFF800000> : vector<8xf32>
    %29 = vector.multi_reduction <maximumf>, %28, %cst_9 [1] : vector<8x8xf32> to vector<8xf32>
    %30 = vector.shape_cast %29 : vector<8xf32> to vector<8x1xf32>
    %31 = vector.broadcast %30 : vector<8x1xf32> to vector<8x8xf32>
    %32 = arith.subf %28, %31 : vector<8x8xf32>
    %33 = math.exp %32 : vector<8x8xf32>
    %cst_10 = arith.constant dense<0.000000e+00> : vector<8xf32>
    %34 = vector.multi_reduction <add>, %33, %cst_10 [1] : vector<8x8xf32> to vector<8xf32>
    %35 = vector.shape_cast %34 : vector<8xf32> to vector<8x1xf32>
    %36 = tpu.reciprocal %35 {approx = true} : vector<8x1xf32> -> vector<8x1xf32>
    %37 = vector.broadcast %36 : vector<8x1xf32> to vector<8x8xf32>
    %38 = arith.mulf %33, %37 : vector<8x8xf32>
    %39 = arith.truncf %38 : vector<8x8xf32> to vector<8x8xbf16>
    %40 = vector.extract_strided_slice %23 {offsets = [0, 0], sizes = [8, 8], strides = [1, 1]} : vector<8x32xbf16> to vector<8x8xbf16>
    %cst_11 = arith.constant dense<0.000000e+00> : vector<8x8xf32>
    %41 = tpu.matmul %39, %40, %cst_11 {dimension_numbers = #tpu.dot_dimension_numbers<[1], [0], [0], [1], [0, 0, 1, 1], [], []>} : vector<8x8xbf16>, vector<8x8xbf16>, vector<8x8xf32> -> vector<8x8xf32>
    %42 = vector.extract_strided_slice %21 {offsets = [0, 8], sizes = [8, 8], strides = [1, 1]} : vector<8x32xbf16> to vector<8x8xbf16>
    %43 = vector.extract_strided_slice %22 {offsets = [0, 8], sizes = [8, 8], strides = [1, 1]} : vector<8x32xbf16> to vector<8x8xbf16>
    %cst_12 = arith.constant dense<0.000000e+00> : vector<8x8xf32>
    %44 = tpu.matmul %42, %43, %cst_12 {dimension_numbers = #tpu.dot_dimension_numbers<[1], [1], [0], [0], [0, 0, 1, 0], [], []>} : vector<8x8xbf16>, vector<8x8xbf16>, vector<8x8xf32> -> vector<8x8xf32>
    %cst_13 = arith.constant -1.000000e+09 : f32
    %45 = vector.broadcast %cst_13 : f32 to vector<8x8xf32>
    %46 = arith.select %15, %44, %45 : vector<8x8xi1>, vector<8x8xf32>
    %cst_14 = arith.constant dense<0xFF800000> : vector<8xf32>
    %47 = vector.multi_reduction <maximumf>, %46, %cst_14 [1] : vector<8x8xf32> to vector<8xf32>
    %48 = vector.shape_cast %47 : vector<8xf32> to vector<8x1xf32>
    %49 = vector.broadcast %48 : vector<8x1xf32> to vector<8x8xf32>
    %50 = arith.subf %46, %49 : vector<8x8xf32>
    %51 = math.exp %50 : vector<8x8xf32>
    %cst_15 = arith.constant dense<0.000000e+00> : vector<8xf32>
    %52 = vector.multi_reduction <add>, %51, %cst_15 [1] : vector<8x8xf32> to vector<8xf32>
    %53 = vector.shape_cast %52 : vector<8xf32> to vector<8x1xf32>
    %54 = tpu.reciprocal %53 {approx = true} : vector<8x1xf32> -> vector<8x1xf32>
    %55 = vector.broadcast %54 : vector<8x1xf32> to vector<8x8xf32>
    %56 = arith.mulf %51, %55 : vector<8x8xf32>
    %57 = arith.truncf %56 : vector<8x8xf32> to vector<8x8xbf16>
    %58 = vector.extract_strided_slice %23 {offsets = [0, 8], sizes = [8, 8], strides = [1, 1]} : vector<8x32xbf16> to vector<8x8xbf16>
    %cst_16 = arith.constant dense<0.000000e+00> : vector<8x8xf32>
    %59 = tpu.matmul %57, %58, %cst_16 {dimension_numbers = #tpu.dot_dimension_numbers<[1], [0], [0], [1], [0, 0, 1, 1], [], []>} : vector<8x8xbf16>, vector<8x8xbf16>, vector<8x8xf32> -> vector<8x8xf32>
    %60 = vector.extract_strided_slice %21 {offsets = [0, 16], sizes = [8, 8], strides = [1, 1]} : vector<8x32xbf16> to vector<8x8xbf16>
    %61 = vector.extract_strided_slice %22 {offsets = [0, 16], sizes = [8, 8], strides = [1, 1]} : vector<8x32xbf16> to vector<8x8xbf16>
    %cst_17 = arith.constant dense<0.000000e+00> : vector<8x8xf32>
    %62 = tpu.matmul %60, %61, %cst_17 {dimension_numbers = #tpu.dot_dimension_numbers<[1], [1], [0], [0], [0, 0, 1, 0], [], []>} : vector<8x8xbf16>, vector<8x8xbf16>, vector<8x8xf32> -> vector<8x8xf32>
    %cst_18 = arith.constant -1.000000e+09 : f32
    %63 = vector.broadcast %cst_18 : f32 to vector<8x8xf32>
    %64 = arith.select %15, %62, %63 : vector<8x8xi1>, vector<8x8xf32>
    %cst_19 = arith.constant dense<0xFF800000> : vector<8xf32>
    %65 = vector.multi_reduction <maximumf>, %64, %cst_19 [1] : vector<8x8xf32> to vector<8xf32>
    %66 = vector.shape_cast %65 : vector<8xf32> to vector<8x1xf32>
    %67 = vector.broadcast %66 : vector<8x1xf32> to vector<8x8xf32>
    %68 = arith.subf %64, %67 : vector<8x8xf32>
    %69 = math.exp %68 : vector<8x8xf32>
    %cst_20 = arith.constant dense<0.000000e+00> : vector<8xf32>
    %70 = vector.multi_reduction <add>, %69, %cst_20 [1] : vector<8x8xf32> to vector<8xf32>
    %71 = vector.shape_cast %70 : vector<8xf32> to vector<8x1xf32>
    %72 = tpu.reciprocal %71 {approx = true} : vector<8x1xf32> -> vector<8x1xf32>
    %73 = vector.broadcast %72 : vector<8x1xf32> to vector<8x8xf32>
    %74 = arith.mulf %69, %73 : vector<8x8xf32>
    %75 = arith.truncf %74 : vector<8x8xf32> to vector<8x8xbf16>
    %76 = vector.extract_strided_slice %23 {offsets = [0, 16], sizes = [8, 8], strides = [1, 1]} : vector<8x32xbf16> to vector<8x8xbf16>
    %cst_21 = arith.constant dense<0.000000e+00> : vector<8x8xf32>
    %77 = tpu.matmul %75, %76, %cst_21 {dimension_numbers = #tpu.dot_dimension_numbers<[1], [0], [0], [1], [0, 0, 1, 1], [], []>} : vector<8x8xbf16>, vector<8x8xbf16>, vector<8x8xf32> -> vector<8x8xf32>
    %78 = vector.extract_strided_slice %21 {offsets = [0, 24], sizes = [8, 8], strides = [1, 1]} : vector<8x32xbf16> to vector<8x8xbf16>
    %79 = vector.extract_strided_slice %22 {offsets = [0, 24], sizes = [8, 8], strides = [1, 1]} : vector<8x32xbf16> to vector<8x8xbf16>
    %cst_22 = arith.constant dense<0.000000e+00> : vector<8x8xf32>
    %80 = tpu.matmul %78, %79, %cst_22 {dimension_numbers = #tpu.dot_dimension_numbers<[1], [1], [0], [0], [0, 0, 1, 0], [], []>} : vector<8x8xbf16>, vector<8x8xbf16>, vector<8x8xf32> -> vector<8x8xf32>
    %cst_23 = arith.constant -1.000000e+09 : f32
    %81 = vector.broadcast %cst_23 : f32 to vector<8x8xf32>
    %82 = arith.select %15, %80, %81 : vector<8x8xi1>, vector<8x8xf32>
    %cst_24 = arith.constant dense<0xFF800000> : vector<8xf32>
    %83 = vector.multi_reduction <maximumf>, %82, %cst_24 [1] : vector<8x8xf32> to vector<8xf32>
    %84 = vector.shape_cast %83 : vector<8xf32> to vector<8x1xf32>
    %85 = vector.broadcast %84 : vector<8x1xf32> to vector<8x8xf32>
    %86 = arith.subf %82, %85 : vector<8x8xf32>
    %87 = math.exp %86 : vector<8x8xf32>
    %cst_25 = arith.constant dense<0.000000e+00> : vector<8xf32>
    %88 = vector.multi_reduction <add>, %87, %cst_25 [1] : vector<8x8xf32> to vector<8xf32>
    %89 = vector.shape_cast %88 : vector<8xf32> to vector<8x1xf32>
    %90 = tpu.reciprocal %89 {approx = true} : vector<8x1xf32> -> vector<8x1xf32>
    %91 = vector.broadcast %90 : vector<8x1xf32> to vector<8x8xf32>
    %92 = arith.mulf %87, %91 : vector<8x8xf32>
    %93 = arith.truncf %92 : vector<8x8xf32> to vector<8x8xbf16>
    %94 = vector.extract_strided_slice %23 {offsets = [0, 24], sizes = [8, 8], strides = [1, 1]} : vector<8x32xbf16> to vector<8x8xbf16>
    %cst_26 = arith.constant dense<0.000000e+00> : vector<8x8xf32>
    %95 = tpu.matmul %93, %94, %cst_26 {dimension_numbers = #tpu.dot_dimension_numbers<[1], [0], [0], [1], [0, 0, 1, 1], [], []>} : vector<8x8xbf16>, vector<8x8xbf16>, vector<8x8xf32> -> vector<8x8xf32>
    %96 = tpu.concatenate %41, %59, %77, %95 in 1 : vector<8x8xf32>, vector<8x8xf32>, vector<8x8xf32>, vector<8x8xf32> -> vector<8x32xf32>
    %97 = arith.truncf %96 : vector<8x32xf32> to vector<8x32xbf16>
    %c0_27 = arith.constant 0 : index
    %c0_28 = arith.constant 0 : index
    %c0_29 = arith.constant 0 : index
    %98 = vector.load %arg5[%c0_27, %c0_28, %c0_29] : memref<1x8x32xbf16, #tpu.memory_space<vmem>>, vector<1x8x32xbf16>
    %99 = vector.shape_cast %98 : vector<1x8x32xbf16> to vector<8x32xbf16>
    %100 = vector.shape_cast %97 : vector<8x32xbf16> to vector<1x8x32xbf16>
    tpu.vector_store %arg5[%c0_27, %c0_28, %c0_29], %100 {strides = array<i32>} : memref<1x8x32xbf16, #tpu.memory_space<vmem>>, vector<1x8x32xbf16>,
    return
  }
  func.func @transform_0(%arg0: i32, %arg1: memref<2xi32, #tpu.memory_space<smem>>) -> (i32, i32, i32) {
    %c0_i32 = arith.constant 0 : i32
    %c0_i32_0 = arith.constant 0 : i32
    %c0_i32_1 = arith.constant 0 : i32
    return %arg0, %c0_i32, %c0_i32_0 : i32, i32, i32
  }
  func.func @transform_1(%arg0: i32, %arg1: memref<2xi32, #tpu.memory_space<smem>>) -> (i32, i32) {
    %c0_i32 = arith.constant 0 : i32
    %c0_i32_0 = arith.constant 0 : i32
    %c0_i32_1 = arith.constant 0 : i32
    return %c0_i32, %c0_i32_0 : i32, i32
  }
  func.func @transform_2(%arg0: i32, %arg1: memref<2xi32, #tpu.memory_space<smem>>) -> (i32, i32) {
    %c0_i32 = arith.constant 0 : i32
    %c0_i32_0 = arith.constant 0 : i32
    %c0_i32_1 = arith.constant 0 : i32
    return %c0_i32, %c0_i32_0 : i32, i32
  }
  func.func @transform_3(%arg0: i32, %arg1: memref<2xi32, #tpu.memory_space<smem>>) -> (i32, i32, i32) {
    %c0_i32 = arith.constant 0 : i32
    %c0_i32_0 = arith.constant 0 : i32
    %c0_i32_1 = arith.constant 0 : i32
    return %arg0, %c0_i32, %c0_i32_0 : i32, i32, i32
  }
}

module attributes {stable_mosaic.version = 11 : i64} {
  func.func @_linear_add_ln_kernel(%arg0: i32, %arg1: memref<16x32xbf16, #tpu.memory_space<vmem>>, %arg2: memref<16x32xf32, #tpu.memory_space<vmem>>, %arg3: memref<32x32xbf16, #tpu.memory_space<vmem>>, %arg4: memref<1x32xf32, #tpu.memory_space<vmem>>, %arg5: memref<1x32xf32, #tpu.memory_space<vmem>>, %arg6: memref<1x32xf32, #tpu.memory_space<vmem>>, %arg7: memref<16x32xf32, #tpu.memory_space<vmem>>) attributes {dimension_semantics = [#tpu.dimension_semantics<parallel>], iteration_bounds = array<i64: 1>, scalar_prefetch = 0 : i64, scratch_operands = 0 : i64, tpu.core_type = #tpu.core_type<tc>, window_params = [{transform_indices = @transform_0, window_bounds = array<i64: 16, 32>}, {transform_indices = @transform_1, window_bounds = array<i64: 16, 32>}, {pipeline_mode = #tpu.pipeline_mode<synchronous>, transform_indices = @transform_2, window_bounds = array<i64: 32, 32>}, {pipeline_mode = #tpu.pipeline_mode<synchronous>, transform_indices = @transform_3, window_bounds = array<i64: 1, 32>}, {pipeline_mode = #tpu.pipeline_mode<synchronous>, transform_indices = @transform_4, window_bounds = array<i64: 1, 32>}, {pipeline_mode = #tpu.pipeline_mode<synchronous>, transform_indices = @transform_5, window_bounds = array<i64: 1, 32>}, {transform_indices = @transform_6, window_bounds = array<i64: 16, 32>}]} {
    %c0 = arith.constant 0 : index
    %c0_0 = arith.constant 0 : index
    %0 = vector.load %arg1[%c0, %c0_0] : memref<16x32xbf16, #tpu.memory_space<vmem>>, vector<16x32xbf16>
    %c0_1 = arith.constant 0 : index
    %c0_2 = arith.constant 0 : index
    %1 = vector.load %arg3[%c0_1, %c0_2] : memref<32x32xbf16, #tpu.memory_space<vmem>>, vector<32x32xbf16>
    %cst = arith.constant dense<0.000000e+00> : vector<16x32xf32>
    %2 = tpu.matmul %0, %1, %cst {dimension_numbers = #tpu.dot_dimension_numbers<[1], [0], [0], [1], [0, 0, 1, 1], [], []>} : vector<16x32xbf16>, vector<32x32xbf16>, vector<16x32xf32> -> vector<16x32xf32>
    %c0_3 = arith.constant 0 : index
    %c0_4 = arith.constant 0 : index
    %3 = vector.load %arg4[%c0_3, %c0_4] : memref<1x32xf32, #tpu.memory_space<vmem>>, vector<1x32xf32>
    %4 = vector.broadcast %3 : vector<1x32xf32> to vector<16x32xf32>
    %5 = arith.addf %2, %4 : vector<16x32xf32>
    %c0_5 = arith.constant 0 : index
    %c0_6 = arith.constant 0 : index
    %6 = vector.load %arg2[%c0_5, %c0_6] : memref<16x32xf32, #tpu.memory_space<vmem>>, vector<16x32xf32>
    %7 = arith.addf %5, %6 : vector<16x32xf32>
    %cst_7 = arith.constant dense<0.000000e+00> : vector<16xf32>
    %8 = vector.multi_reduction <add>, %7, %cst_7 [1] : vector<16x32xf32> to vector<16xf32>
    %9 = vector.shape_cast %8 : vector<16xf32> to vector<16x1xf32>
    %cst_8 = arith.constant 3.200000e+01 : f32
    %10 = vector.broadcast %cst_8 : f32 to vector<16x1xf32>
    %11 = arith.divf %9, %10 : vector<16x1xf32>
    %12 = vector.broadcast %11 : vector<16x1xf32> to vector<16x32xf32>
    %13 = arith.subf %7, %12 : vector<16x32xf32>
    %14 = arith.mulf %13, %13 : vector<16x32xf32>
    %cst_9 = arith.constant dense<0.000000e+00> : vector<16xf32>
    %15 = vector.multi_reduction <add>, %14, %cst_9 [1] : vector<16x32xf32> to vector<16xf32>
    %16 = vector.shape_cast %15 : vector<16xf32> to vector<16x1xf32>
    %cst_10 = arith.constant 3.200000e+01 : f32
    %17 = vector.broadcast %cst_10 : f32 to vector<16x1xf32>
    %18 = arith.divf %16, %17 : vector<16x1xf32>
    %cst_11 = arith.constant 9.99999997E-7 : f32
    %19 = vector.broadcast %cst_11 : f32 to vector<16x1xf32>
    %20 = arith.addf %18, %19 : vector<16x1xf32>
    %21 = math.rsqrt %20 : vector<16x1xf32>
    %22 = vector.broadcast %21 : vector<16x1xf32> to vector<16x32xf32>
    %23 = arith.mulf %13, %22 : vector<16x32xf32>
    %c0_12 = arith.constant 0 : index
    %c0_13 = arith.constant 0 : index
    %24 = vector.load %arg5[%c0_12, %c0_13] : memref<1x32xf32, #tpu.memory_space<vmem>>, vector<1x32xf32>
    %25 = vector.broadcast %24 : vector<1x32xf32> to vector<16x32xf32>
    %26 = arith.mulf %23, %25 : vector<16x32xf32>
    %c0_14 = arith.constant 0 : index
    %c0_15 = arith.constant 0 : index
    %27 = vector.load %arg6[%c0_14, %c0_15] : memref<1x32xf32, #tpu.memory_space<vmem>>, vector<1x32xf32>
    %28 = vector.broadcast %27 : vector<1x32xf32> to vector<16x32xf32>
    %29 = arith.addf %26, %28 : vector<16x32xf32>
    %c0_16 = arith.constant 0 : index
    %c0_17 = arith.constant 0 : index
    %30 = vector.load %arg7[%c0_16, %c0_17] : memref<16x32xf32, #tpu.memory_space<vmem>>, vector<16x32xf32>
    tpu.vector_store %arg7[%c0_16, %c0_17], %29 {strides = array<i32>} : memref<16x32xf32, #tpu.memory_space<vmem>>, vector<16x32xf32>,
    return
  }
  func.func @transform_0(%arg0: i32) -> (i32, i32) {
    %c0_i32 = arith.constant 0 : i32
    %c0_i32_0 = arith.constant 0 : i32
    return %arg0, %c0_i32 : i32, i32
  }
  func.func @transform_1(%arg0: i32) -> (i32, i32) {
    %c0_i32 = arith.constant 0 : i32
    %c0_i32_0 = arith.constant 0 : i32
    return %arg0, %c0_i32 : i32, i32
  }
  func.func @transform_2(%arg0: i32) -> (i32, i32) {
    %c0_i32 = arith.constant 0 : i32
    %c0_i32_0 = arith.constant 0 : i32
    %c0_i32_1 = arith.constant 0 : i32
    return %c0_i32, %c0_i32_0 : i32, i32
  }
  func.func @transform_3(%arg0: i32) -> (i32, i32) {
    %c0_i32 = arith.constant 0 : i32
    %c0_i32_0 = arith.constant 0 : i32
    %c0_i32_1 = arith.constant 0 : i32
    return %c0_i32, %c0_i32_0 : i32, i32
  }
  func.func @transform_4(%arg0: i32) -> (i32, i32) {
    %c0_i32 = arith.constant 0 : i32
    %c0_i32_0 = arith.constant 0 : i32
    %c0_i32_1 = arith.constant 0 : i32
    return %c0_i32, %c0_i32_0 : i32, i32
  }
  func.func @transform_5(%arg0: i32) -> (i32, i32) {
    %c0_i32 = arith.constant 0 : i32
    %c0_i32_0 = arith.constant 0 : i32
    %c0_i32_1 = arith.constant 0 : i32
    return %c0_i32, %c0_i32_0 : i32, i32
  }
  func.func @transform_6(%arg0: i32) -> (i32, i32) {
    %c0_i32 = arith.constant 0 : i32
    %c0_i32_0 = arith.constant 0 : i32
    return %arg0, %c0_i32 : i32, i32
  }
}

module attributes {stable_mosaic.version = 11 : i64} {
  func.func @_fused_cross_attn_kernel(%arg0: i32, %arg1: memref<2xi32, #tpu.memory_space<smem>>, %arg2: memref<1x8x32xf32, #tpu.memory_space<vmem>>, %arg3: memref<1x16x32xbf16, #tpu.memory_space<vmem>>, %arg4: memref<32x32xbf16, #tpu.memory_space<vmem>>, %arg5: memref<1x32xf32, #tpu.memory_space<vmem>>, %arg6: memref<32x64xbf16, #tpu.memory_space<vmem>>, %arg7: memref<1x64xf32, #tpu.memory_space<vmem>>, %arg8: memref<1x8x32xbf16, #tpu.memory_space<vmem>>) attributes {dimension_semantics = [#tpu.dimension_semantics<parallel>], iteration_bounds = array<i64: 2>, scalar_prefetch = 1 : i64, scratch_operands = 0 : i64, tpu.core_type = #tpu.core_type<tc>, window_params = [{transform_indices = @transform_0, window_bounds = array<i64: 1, 8, 32>}, {transform_indices = @transform_1, window_bounds = array<i64: 1, 16, 32>}, {pipeline_mode = #tpu.pipeline_mode<synchronous>, transform_indices = @transform_2, window_bounds = array<i64: 32, 32>}, {pipeline_mode = #tpu.pipeline_mode<synchronous>, transform_indices = @transform_3, window_bounds = array<i64: 1, 32>}, {pipeline_mode = #tpu.pipeline_mode<synchronous>, transform_indices = @transform_4, window_bounds = array<i64: 32, 64>}, {pipeline_mode = #tpu.pipeline_mode<synchronous>, transform_indices = @transform_5, window_bounds = array<i64: 1, 64>}, {transform_indices = @transform_6, window_bounds = array<i64: 1, 8, 32>}]} {
    %c0 = arith.constant 0 : index
    %c0_0 = arith.constant 0 : index
    %c0_1 = arith.constant 0 : index
    %0 = vector.load %arg2[%c0, %c0_0, %c0_1] : memref<1x8x32xf32, #tpu.memory_space<vmem>>, vector<1x8x32xf32>
    %1 = vector.shape_cast %0 : vector<1x8x32xf32> to vector<8x32xf32>
    %2 = arith.truncf %1 : vector<8x32xf32> to vector<8x32xbf16>
    %c0_2 = arith.constant 0 : index
    %c0_3 = arith.constant 0 : index
    %c0_4 = arith.constant 0 : index
    %3 = vector.load %arg3[%c0_2, %c0_3, %c0_4] : memref<1x16x32xbf16, #tpu.memory_space<vmem>>, vector<1x16x32xbf16>
    %4 = vector.shape_cast %3 : vector<1x16x32xbf16> to vector<16x32xbf16>
    %c0_5 = arith.constant 0 : index
    %c0_6 = arith.constant 0 : index
    %5 = vector.load %arg4[%c0_5, %c0_6] : memref<32x32xbf16, #tpu.memory_space<vmem>>, vector<32x32xbf16>
    %cst = arith.constant dense<0.000000e+00> : vector<8x32xf32>
    %6 = tpu.matmul %2, %5, %cst {dimension_numbers = #tpu.dot_dimension_numbers<[1], [0], [0], [1], [0, 0, 1, 1], [], []>} : vector<8x32xbf16>, vector<32x32xbf16>, vector<8x32xf32> -> vector<8x32xf32>
    %c0_7 = arith.constant 0 : index
    %c0_8 = arith.constant 0 : index
    %7 = vector.load %arg5[%c0_7, %c0_8] : memref<1x32xf32, #tpu.memory_space<vmem>>, vector<1x32xf32>
    %8 = vector.broadcast %7 : vector<1x32xf32> to vector<8x32xf32>
    %9 = arith.addf %6, %8 : vector<8x32xf32>
    %c0_9 = arith.constant 0 : index
    %c0_10 = arith.constant 0 : index
    %10 = vector.load %arg6[%c0_9, %c0_10] : memref<32x64xbf16, #tpu.memory_space<vmem>>, vector<32x64xbf16>
    %cst_11 = arith.constant dense<0.000000e+00> : vector<16x64xf32>
    %11 = tpu.matmul %4, %10, %cst_11 {dimension_numbers = #tpu.dot_dimension_numbers<[1], [0], [0], [1], [0, 0, 1, 1], [], []>} : vector<16x32xbf16>, vector<32x64xbf16>, vector<16x64xf32> -> vector<16x64xf32>
    %c0_12 = arith.constant 0 : index
    %c0_13 = arith.constant 0 : index
    %12 = vector.load %arg7[%c0_12, %c0_13] : memref<1x64xf32, #tpu.memory_space<vmem>>, vector<1x64xf32>
    %13 = vector.broadcast %12 : vector<1x64xf32> to vector<16x64xf32>
    %14 = arith.addf %11, %13 : vector<16x64xf32>
    %15 = tpu.iota {dimensions = array<i32: 1>} : vector<8x16xi32>
    %16 = arith.index_cast %arg0 : i32 to index
    %17 = memref.load %arg1[%16] : memref<2xi32, #tpu.memory_space<smem>>
    %18 = vector.broadcast %17 : i32 to vector<8x16xi32>
    %19 = arith.cmpi slt, %15, %18 : vector<8x16xi32>
    %20 = vector.extract_strided_slice %14 {offsets = [0, 0], sizes = [16, 32], strides = [1, 1]} : vector<16x64xf32> to vector<16x32xf32>
    %21 = vector.extract_strided_slice %14 {offsets = [0, 32], sizes = [16, 32], strides = [1, 1]} : vector<16x64xf32> to vector<16x32xf32>
    %cst_14 = arith.constant 0.353553385 : f32
    %22 = vector.broadcast %cst_14 : f32 to vector<8x32xf32>
    %23 = arith.mulf %9, %22 : vector<8x32xf32>
    %24 = arith.truncf %23 : vector<8x32xf32> to vector<8x32xbf16>
    %25 = arith.truncf %20 : vector<16x32xf32> to vector<16x32xbf16>
    %26 = arith.truncf %21 : vector<16x32xf32> to vector<16x32xbf16>
    %27 = vector.extract_strided_slice %24 {offsets = [0, 0], sizes = [8, 8], strides = [1, 1]} : vector<8x32xbf16> to vector<8x8xbf16>
    %28 = vector.extract_strided_slice %25 {offsets = [0, 0], sizes = [16, 8], strides = [1, 1]} : vector<16x32xbf16> to vector<16x8xbf16>
    %cst_15 = arith.constant dense<0.000000e+00> : vector<8x16xf32>
    %29 = tpu.matmul %27, %28, %cst_15 {dimension_numbers = #tpu.dot_dimension_numbers<[1], [1], [0], [0], [0, 0, 1, 0], [], []>} : vector<8x8xbf16>, vector<16x8xbf16>, vector<8x16xf32> -> vector<8x16xf32>
    %cst_16 = arith.constant -1.000000e+09 : f32
    %30 = vector.broadcast %cst_16 : f32 to vector<8x16xf32>
    %31 = arith.select %19, %29, %30 : vector<8x16xi1>, vector<8x16xf32>
    %cst_17 = arith.constant dense<0xFF800000> : vector<8xf32>
    %32 = vector.multi_reduction <maximumf>, %31, %cst_17 [1] : vector<8x16xf32> to vector<8xf32>
    %33 = vector.shape_cast %32 : vector<8xf32> to vector<8x1xf32>
    %34 = vector.broadcast %33 : vector<8x1xf32> to vector<8x16xf32>
    %35 = arith.subf %31, %34 : vector<8x16xf32>
    %36 = math.exp %35 : vector<8x16xf32>
    %cst_18 = arith.constant dense<0.000000e+00> : vector<8xf32>
    %37 = vector.multi_reduction <add>, %36, %cst_18 [1] : vector<8x16xf32> to vector<8xf32>
    %38 = vector.shape_cast %37 : vector<8xf32> to vector<8x1xf32>
    %39 = tpu.reciprocal %38 {approx = true} : vector<8x1xf32> -> vector<8x1xf32>
    %40 = vector.broadcast %39 : vector<8x1xf32> to vector<8x16xf32>
    %41 = arith.mulf %36, %40 : vector<8x16xf32>
    %42 = arith.truncf %41 : vector<8x16xf32> to vector<8x16xbf16>
    %43 = vector.extract_strided_slice %26 {offsets = [0, 0], sizes = [16, 8], strides = [1, 1]} : vector<16x32xbf16> to vector<16x8xbf16>
    %cst_19 = arith.constant dense<0.000000e+00> : vector<8x8xf32>
    %44 = tpu.matmul %42, %43, %cst_19 {dimension_numbers = #tpu.dot_dimension_numbers<[1], [0], [0], [1], [0, 0, 1, 1], [], []>} : vector<8x16xbf16>, vector<16x8xbf16>, vector<8x8xf32> -> vector<8x8xf32>
    %45 = vector.extract_strided_slice %24 {offsets = [0, 8], sizes = [8, 8], strides = [1, 1]} : vector<8x32xbf16> to vector<8x8xbf16>
    %46 = vector.extract_strided_slice %25 {offsets = [0, 8], sizes = [16, 8], strides = [1, 1]} : vector<16x32xbf16> to vector<16x8xbf16>
    %cst_20 = arith.constant dense<0.000000e+00> : vector<8x16xf32>
    %47 = tpu.matmul %45, %46, %cst_20 {dimension_numbers = #tpu.dot_dimension_numbers<[1], [1], [0], [0], [0, 0, 1, 0], [], []>} : vector<8x8xbf16>, vector<16x8xbf16>, vector<8x16xf32> -> vector<8x16xf32>
    %cst_21 = arith.constant -1.000000e+09 : f32
    %48 = vector.broadcast %cst_21 : f32 to vector<8x16xf32>
    %49 = arith.select %19, %47, %48 : vector<8x16xi1>, vector<8x16xf32>
    %cst_22 = arith.constant dense<0xFF800000> : vector<8xf32>
    %50 = vector.multi_reduction <maximumf>, %49, %cst_22 [1] : vector<8x16xf32> to vector<8xf32>
    %51 = vector.shape_cast %50 : vector<8xf32> to vector<8x1xf32>
    %52 = vector.broadcast %51 : vector<8x1xf32> to vector<8x16xf32>
    %53 = arith.subf %49, %52 : vector<8x16xf32>
    %54 = math.exp %53 : vector<8x16xf32>
    %cst_23 = arith.constant dense<0.000000e+00> : vector<8xf32>
    %55 = vector.multi_reduction <add>, %54, %cst_23 [1] : vector<8x16xf32> to vector<8xf32>
    %56 = vector.shape_cast %55 : vector<8xf32> to vector<8x1xf32>
    %57 = tpu.reciprocal %56 {approx = true} : vector<8x1xf32> -> vector<8x1xf32>
    %58 = vector.broadcast %57 : vector<8x1xf32> to vector<8x16xf32>
    %59 = arith.mulf %54, %58 : vector<8x16xf32>
    %60 = arith.truncf %59 : vector<8x16xf32> to vector<8x16xbf16>
    %61 = vector.extract_strided_slice %26 {offsets = [0, 8], sizes = [16, 8], strides = [1, 1]} : vector<16x32xbf16> to vector<16x8xbf16>
    %cst_24 = arith.constant dense<0.000000e+00> : vector<8x8xf32>
    %62 = tpu.matmul %60, %61, %cst_24 {dimension_numbers = #tpu.dot_dimension_numbers<[1], [0], [0], [1], [0, 0, 1, 1], [], []>} : vector<8x16xbf16>, vector<16x8xbf16>, vector<8x8xf32> -> vector<8x8xf32>
    %63 = vector.extract_strided_slice %24 {offsets = [0, 16], sizes = [8, 8], strides = [1, 1]} : vector<8x32xbf16> to vector<8x8xbf16>
    %64 = vector.extract_strided_slice %25 {offsets = [0, 16], sizes = [16, 8], strides = [1, 1]} : vector<16x32xbf16> to vector<16x8xbf16>
    %cst_25 = arith.constant dense<0.000000e+00> : vector<8x16xf32>
    %65 = tpu.matmul %63, %64, %cst_25 {dimension_numbers = #tpu.dot_dimension_numbers<[1], [1], [0], [0], [0, 0, 1, 0], [], []>} : vector<8x8xbf16>, vector<16x8xbf16>, vector<8x16xf32> -> vector<8x16xf32>
    %cst_26 = arith.constant -1.000000e+09 : f32
    %66 = vector.broadcast %cst_26 : f32 to vector<8x16xf32>
    %67 = arith.select %19, %65, %66 : vector<8x16xi1>, vector<8x16xf32>
    %cst_27 = arith.constant dense<0xFF800000> : vector<8xf32>
    %68 = vector.multi_reduction <maximumf>, %67, %cst_27 [1] : vector<8x16xf32> to vector<8xf32>
    %69 = vector.shape_cast %68 : vector<8xf32> to vector<8x1xf32>
    %70 = vector.broadcast %69 : vector<8x1xf32> to vector<8x16xf32>
    %71 = arith.subf %67, %70 : vector<8x16xf32>
    %72 = math.exp %71 : vector<8x16xf32>
    %cst_28 = arith.constant dense<0.000000e+00> : vector<8xf32>
    %73 = vector.multi_reduction <add>, %72, %cst_28 [1] : vector<8x16xf32> to vector<8xf32>
    %74 = vector.shape_cast %73 : vector<8xf32> to vector<8x1xf32>
    %75 = tpu.reciprocal %74 {approx = true} : vector<8x1xf32> -> vector<8x1xf32>
    %76 = vector.broadcast %75 : vector<8x1xf32> to vector<8x16xf32>
    %77 = arith.mulf %72, %76 : vector<8x16xf32>
    %78 = arith.truncf %77 : vector<8x16xf32> to vector<8x16xbf16>
    %79 = vector.extract_strided_slice %26 {offsets = [0, 16], sizes = [16, 8], strides = [1, 1]} : vector<16x32xbf16> to vector<16x8xbf16>
    %cst_29 = arith.constant dense<0.000000e+00> : vector<8x8xf32>
    %80 = tpu.matmul %78, %79, %cst_29 {dimension_numbers = #tpu.dot_dimension_numbers<[1], [0], [0], [1], [0, 0, 1, 1], [], []>} : vector<8x16xbf16>, vector<16x8xbf16>, vector<8x8xf32> -> vector<8x8xf32>
    %81 = vector.extract_strided_slice %24 {offsets = [0, 24], sizes = [8, 8], strides = [1, 1]} : vector<8x32xbf16> to vector<8x8xbf16>
    %82 = vector.extract_strided_slice %25 {offsets = [0, 24], sizes = [16, 8], strides = [1, 1]} : vector<16x32xbf16> to vector<16x8xbf16>
    %cst_30 = arith.constant dense<0.000000e+00> : vector<8x16xf32>
    %83 = tpu.matmul %81, %82, %cst_30 {dimension_numbers = #tpu.dot_dimension_numbers<[1], [1], [0], [0], [0, 0, 1, 0], [], []>} : vector<8x8xbf16>, vector<16x8xbf16>, vector<8x16xf32> -> vector<8x16xf32>
    %cst_31 = arith.constant -1.000000e+09 : f32
    %84 = vector.broadcast %cst_31 : f32 to vector<8x16xf32>
    %85 = arith.select %19, %83, %84 : vector<8x16xi1>, vector<8x16xf32>
    %cst_32 = arith.constant dense<0xFF800000> : vector<8xf32>
    %86 = vector.multi_reduction <maximumf>, %85, %cst_32 [1] : vector<8x16xf32> to vector<8xf32>
    %87 = vector.shape_cast %86 : vector<8xf32> to vector<8x1xf32>
    %88 = vector.broadcast %87 : vector<8x1xf32> to vector<8x16xf32>
    %89 = arith.subf %85, %88 : vector<8x16xf32>
    %90 = math.exp %89 : vector<8x16xf32>
    %cst_33 = arith.constant dense<0.000000e+00> : vector<8xf32>
    %91 = vector.multi_reduction <add>, %90, %cst_33 [1] : vector<8x16xf32> to vector<8xf32>
    %92 = vector.shape_cast %91 : vector<8xf32> to vector<8x1xf32>
    %93 = tpu.reciprocal %92 {approx = true} : vector<8x1xf32> -> vector<8x1xf32>
    %94 = vector.broadcast %93 : vector<8x1xf32> to vector<8x16xf32>
    %95 = arith.mulf %90, %94 : vector<8x16xf32>
    %96 = arith.truncf %95 : vector<8x16xf32> to vector<8x16xbf16>
    %97 = vector.extract_strided_slice %26 {offsets = [0, 24], sizes = [16, 8], strides = [1, 1]} : vector<16x32xbf16> to vector<16x8xbf16>
    %cst_34 = arith.constant dense<0.000000e+00> : vector<8x8xf32>
    %98 = tpu.matmul %96, %97, %cst_34 {dimension_numbers = #tpu.dot_dimension_numbers<[1], [0], [0], [1], [0, 0, 1, 1], [], []>} : vector<8x16xbf16>, vector<16x8xbf16>, vector<8x8xf32> -> vector<8x8xf32>
    %99 = tpu.concatenate %44, %62, %80, %98 in 1 : vector<8x8xf32>, vector<8x8xf32>, vector<8x8xf32>, vector<8x8xf32> -> vector<8x32xf32>
    %100 = arith.truncf %99 : vector<8x32xf32> to vector<8x32xbf16>
    %c0_35 = arith.constant 0 : index
    %c0_36 = arith.constant 0 : index
    %c0_37 = arith.constant 0 : index
    %101 = vector.load %arg8[%c0_35, %c0_36, %c0_37] : memref<1x8x32xbf16, #tpu.memory_space<vmem>>, vector<1x8x32xbf16>
    %102 = vector.shape_cast %101 : vector<1x8x32xbf16> to vector<8x32xbf16>
    %103 = vector.shape_cast %100 : vector<8x32xbf16> to vector<1x8x32xbf16>
    tpu.vector_store %arg8[%c0_35, %c0_36, %c0_37], %103 {strides = array<i32>} : memref<1x8x32xbf16, #tpu.memory_space<vmem>>, vector<1x8x32xbf16>,
    return
  }
  func.func @transform_0(%arg0: i32, %arg1: memref<2xi32, #tpu.memory_space<smem>>) -> (i32, i32, i32) {
    %c0_i32 = arith.constant 0 : i32
    %c0_i32_0 = arith.constant 0 : i32
    %c0_i32_1 = arith.constant 0 : i32
    return %arg0, %c0_i32, %c0_i32_0 : i32, i32, i32
  }
  func.func @transform_1(%arg0: i32, %arg1: memref<2xi32, #tpu.memory_space<smem>>) -> (i32, i32, i32) {
    %c0_i32 = arith.constant 0 : i32
    %c0_i32_0 = arith.constant 0 : i32
    %c0_i32_1 = arith.constant 0 : i32
    return %arg0, %c0_i32, %c0_i32_0 : i32, i32, i32
  }
  func.func @transform_2(%arg0: i32, %arg1: memref<2xi32, #tpu.memory_space<smem>>) -> (i32, i32) {
    %c0_i32 = arith.constant 0 : i32
    %c0_i32_0 = arith.constant 0 : i32
    %c0_i32_1 = arith.constant 0 : i32
    return %c0_i32, %c0_i32_0 : i32, i32
  }
  func.func @transform_3(%arg0: i32, %arg1: memref<2xi32, #tpu.memory_space<smem>>) -> (i32, i32) {
    %c0_i32 = arith.constant 0 : i32
    %c0_i32_0 = arith.constant 0 : i32
    %c0_i32_1 = arith.constant 0 : i32
    return %c0_i32, %c0_i32_0 : i32, i32
  }
  func.func @transform_4(%arg0: i32, %arg1: memref<2xi32, #tpu.memory_space<smem>>) -> (i32, i32) {
    %c0_i32 = arith.constant 0 : i32
    %c0_i32_0 = arith.constant 0 : i32
    %c0_i32_1 = arith.constant 0 : i32
    return %c0_i32, %c0_i32_0 : i32, i32
  }
  func.func @transform_5(%arg0: i32, %arg1: memref<2xi32, #tpu.memory_space<smem>>) -> (i32, i32) {
    %c0_i32 = arith.constant 0 : i32
    %c0_i32_0 = arith.constant 0 : i32
    %c0_i32_1 = arith.constant 0 : i32
    return %c0_i32, %c0_i32_0 : i32, i32
  }
  func.func @transform_6(%arg0: i32, %arg1: memref<2xi32, #tpu.memory_space<smem>>) -> (i32, i32, i32) {
    %c0_i32 = arith.constant 0 : i32
    %c0_i32_0 = arith.constant 0 : i32
    %c0_i32_1 = arith.constant 0 : i32
    return %arg0, %c0_i32, %c0_i32_0 : i32, i32, i32
  }
}

module attributes {stable_mosaic.version = 11 : i64} {
  func.func @_linear_kernel(%arg0: i32, %arg1: memref<16x32xf32, #tpu.memory_space<vmem>>, %arg2: memref<32x32xbf16, #tpu.memory_space<vmem>>, %arg3: memref<1x32xf32, #tpu.memory_space<vmem>>, %arg4: memref<16x32xbf16, #tpu.memory_space<vmem>>) attributes {dimension_semantics = [#tpu.dimension_semantics<parallel>], iteration_bounds = array<i64: 1>, scalar_prefetch = 0 : i64, scratch_operands = 0 : i64, tpu.core_type = #tpu.core_type<tc>, window_params = [{transform_indices = @transform_0, window_bounds = array<i64: 16, 32>}, {pipeline_mode = #tpu.pipeline_mode<synchronous>, transform_indices = @transform_1, window_bounds = array<i64: 32, 32>}, {pipeline_mode = #tpu.pipeline_mode<synchronous>, transform_indices = @transform_2, window_bounds = array<i64: 1, 32>}, {transform_indices = @transform_3, window_bounds = array<i64: 16, 32>}]} {
    %c0 = arith.constant 0 : index
    %c0_0 = arith.constant 0 : index
    %0 = vector.load %arg1[%c0, %c0_0] : memref<16x32xf32, #tpu.memory_space<vmem>>, vector<16x32xf32>
    %1 = arith.truncf %0 : vector<16x32xf32> to vector<16x32xbf16>
    %c0_1 = arith.constant 0 : index
    %c0_2 = arith.constant 0 : index
    %2 = vector.load %arg2[%c0_1, %c0_2] : memref<32x32xbf16, #tpu.memory_space<vmem>>, vector<32x32xbf16>
    %cst = arith.constant dense<0.000000e+00> : vector<16x32xf32>
    %3 = tpu.matmul %1, %2, %cst {dimension_numbers = #tpu.dot_dimension_numbers<[1], [0], [0], [1], [0, 0, 1, 1], [], []>} : vector<16x32xbf16>, vector<32x32xbf16>, vector<16x32xf32> -> vector<16x32xf32>
    %c0_3 = arith.constant 0 : index
    %c0_4 = arith.constant 0 : index
    %4 = vector.load %arg3[%c0_3, %c0_4] : memref<1x32xf32, #tpu.memory_space<vmem>>, vector<1x32xf32>
    %5 = vector.broadcast %4 : vector<1x32xf32> to vector<16x32xf32>
    %6 = arith.addf %3, %5 : vector<16x32xf32>
    %7 = math.tanh %6 : vector<16x32xf32>
    %8 = arith.truncf %7 : vector<16x32xf32> to vector<16x32xbf16>
    %c0_5 = arith.constant 0 : index
    %c0_6 = arith.constant 0 : index
    %9 = vector.load %arg4[%c0_5, %c0_6] : memref<16x32xbf16, #tpu.memory_space<vmem>>, vector<16x32xbf16>
    tpu.vector_store %arg4[%c0_5, %c0_6], %8 {strides = array<i32>} : memref<16x32xbf16, #tpu.memory_space<vmem>>, vector<16x32xbf16>,
    return
  }
  func.func @transform_0(%arg0: i32) -> (i32, i32) {
    %c0_i32 = arith.constant 0 : i32
    %c0_i32_0 = arith.constant 0 : i32
    return %arg0, %c0_i32 : i32, i32
  }
  func.func @transform_1(%arg0: i32) -> (i32, i32) {
    %c0_i32 = arith.constant 0 : i32
    %c0_i32_0 = arith.constant 0 : i32
    %c0_i32_1 = arith.constant 0 : i32
    return %c0_i32, %c0_i32_0 : i32, i32
  }
  func.func @transform_2(%arg0: i32) -> (i32, i32) {
    %c0_i32 = arith.constant 0 : i32
    %c0_i32_0 = arith.constant 0 : i32
    %c0_i32_1 = arith.constant 0 : i32
    return %c0_i32, %c0_i32_0 : i32, i32
  }
  func.func @transform_3(%arg0: i32) -> (i32, i32) {
    %c0_i32 = arith.constant 0 : i32
    %c0_i32_0 = arith.constant 0 : i32
    return %arg0, %c0_i32 : i32, i32
  }
}

module attributes {stable_mosaic.version = 11 : i64} {
  func.func @_ffn_add_ln_kernel(%arg0: i32, %arg1: memref<16x32xf32, #tpu.memory_space<vmem>>, %arg2: memref<32x64xbf16, #tpu.memory_space<vmem>>, %arg3: memref<1x64xf32, #tpu.memory_space<vmem>>, %arg4: memref<64x32xbf16, #tpu.memory_space<vmem>>, %arg5: memref<1x32xf32, #tpu.memory_space<vmem>>, %arg6: memref<1x32xf32, #tpu.memory_space<vmem>>, %arg7: memref<1x32xf32, #tpu.memory_space<vmem>>, %arg8: memref<16x32xf32, #tpu.memory_space<vmem>>) attributes {dimension_semantics = [#tpu.dimension_semantics<parallel>], iteration_bounds = array<i64: 1>, scalar_prefetch = 0 : i64, scratch_operands = 0 : i64, tpu.core_type = #tpu.core_type<tc>, window_params = [{transform_indices = @transform_0, window_bounds = array<i64: 16, 32>}, {pipeline_mode = #tpu.pipeline_mode<synchronous>, transform_indices = @transform_1, window_bounds = array<i64: 32, 64>}, {pipeline_mode = #tpu.pipeline_mode<synchronous>, transform_indices = @transform_2, window_bounds = array<i64: 1, 64>}, {pipeline_mode = #tpu.pipeline_mode<synchronous>, transform_indices = @transform_3, window_bounds = array<i64: 64, 32>}, {pipeline_mode = #tpu.pipeline_mode<synchronous>, transform_indices = @transform_4, window_bounds = array<i64: 1, 32>}, {pipeline_mode = #tpu.pipeline_mode<synchronous>, transform_indices = @transform_5, window_bounds = array<i64: 1, 32>}, {pipeline_mode = #tpu.pipeline_mode<synchronous>, transform_indices = @transform_6, window_bounds = array<i64: 1, 32>}, {transform_indices = @transform_7, window_bounds = array<i64: 16, 32>}]} {
    %c0 = arith.constant 0 : index
    %c0_0 = arith.constant 0 : index
    %0 = vector.load %arg1[%c0, %c0_0] : memref<16x32xf32, #tpu.memory_space<vmem>>, vector<16x32xf32>
    %1 = arith.truncf %0 : vector<16x32xf32> to vector<16x32xbf16>
    %c0_1 = arith.constant 0 : index
    %c0_2 = arith.constant 0 : index
    %2 = vector.load %arg2[%c0_1, %c0_2] : memref<32x64xbf16, #tpu.memory_space<vmem>>, vector<32x64xbf16>
    %cst = arith.constant dense<0.000000e+00> : vector<16x64xf32>
    %3 = tpu.matmul %1, %2, %cst {dimension_numbers = #tpu.dot_dimension_numbers<[1], [0], [0], [1], [0, 0, 1, 1], [], []>} : vector<16x32xbf16>, vector<32x64xbf16>, vector<16x64xf32> -> vector<16x64xf32>
    %c0_3 = arith.constant 0 : index
    %c0_4 = arith.constant 0 : index
    %4 = vector.load %arg3[%c0_3, %c0_4] : memref<1x64xf32, #tpu.memory_space<vmem>>, vector<1x64xf32>
    %5 = vector.broadcast %4 : vector<1x64xf32> to vector<16x64xf32>
    %6 = arith.addf %3, %5 : vector<16x64xf32>
    %cst_5 = arith.constant 0.000000e+00 : f32
    %7 = vector.broadcast %cst_5 : f32 to vector<16x64xf32>
    %8 = arith.maximumf %6, %7 : vector<16x64xf32>
    %9 = arith.truncf %8 : vector<16x64xf32> to vector<16x64xbf16>
    %c0_6 = arith.constant 0 : index
    %c0_7 = arith.constant 0 : index
    %10 = vector.load %arg4[%c0_6, %c0_7] : memref<64x32xbf16, #tpu.memory_space<vmem>>, vector<64x32xbf16>
    %cst_8 = arith.constant dense<0.000000e+00> : vector<16x32xf32>
    %11 = tpu.matmul %9, %10, %cst_8 {dimension_numbers = #tpu.dot_dimension_numbers<[1], [0], [0], [1], [0, 0, 1, 1], [], []>} : vector<16x64xbf16>, vector<64x32xbf16>, vector<16x32xf32> -> vector<16x32xf32>
    %c0_9 = arith.constant 0 : index
    %c0_10 = arith.constant 0 : index
    %12 = vector.load %arg5[%c0_9, %c0_10] : memref<1x32xf32, #tpu.memory_space<vmem>>, vector<1x32xf32>
    %13 = vector.broadcast %12 : vector<1x32xf32> to vector<16x32xf32>
    %14 = arith.addf %11, %13 : vector<16x32xf32>
    %15 = arith.addf %14, %0 : vector<16x32xf32>
    %cst_11 = arith.constant dense<0.000000e+00> : vector<16xf32>
    %16 = vector.multi_reduction <add>, %15, %cst_11 [1] : vector<16x32xf32> to vector<16xf32>
    %17 = vector.shape_cast %16 : vector<16xf32> to vector<16x1xf32>
    %cst_12 = arith.constant 3.200000e+01 : f32
    %18 = vector.broadcast %cst_12 : f32 to vector<16x1xf32>
    %19 = arith.divf %17, %18 : vector<16x1xf32>
    %20 = vector.broadcast %19 : vector<16x1xf32> to vector<16x32xf32>
    %21 = arith.subf %15, %20 : vector<16x32xf32>
    %22 = arith.mulf %21, %21 : vector<16x32xf32>
    %cst_13 = arith.constant dense<0.000000e+00> : vector<16xf32>
    %23 = vector.multi_reduction <add>, %22, %cst_13 [1] : vector<16x32xf32> to vector<16xf32>
    %24 = vector.shape_cast %23 : vector<16xf32> to vector<16x1xf32>
    %cst_14 = arith.constant 3.200000e+01 : f32
    %25 = vector.broadcast %cst_14 : f32 to vector<16x1xf32>
    %26 = arith.divf %24, %25 : vector<16x1xf32>
    %cst_15 = arith.constant 9.99999997E-7 : f32
    %27 = vector.broadcast %cst_15 : f32 to vector<16x1xf32>
    %28 = arith.addf %26, %27 : vector<16x1xf32>
    %29 = math.rsqrt %28 : vector<16x1xf32>
    %30 = vector.broadcast %29 : vector<16x1xf32> to vector<16x32xf32>
    %31 = arith.mulf %21, %30 : vector<16x32xf32>
    %c0_16 = arith.constant 0 : index
    %c0_17 = arith.constant 0 : index
    %32 = vector.load %arg6[%c0_16, %c0_17] : memref<1x32xf32, #tpu.memory_space<vmem>>, vector<1x32xf32>
    %33 = vector.broadcast %32 : vector<1x32xf32> to vector<16x32xf32>
    %34 = arith.mulf %31, %33 : vector<16x32xf32>
    %c0_18 = arith.constant 0 : index
    %c0_19 = arith.constant 0 : index
    %35 = vector.load %arg7[%c0_18, %c0_19] : memref<1x32xf32, #tpu.memory_space<vmem>>, vector<1x32xf32>
    %36 = vector.broadcast %35 : vector<1x32xf32> to vector<16x32xf32>
    %37 = arith.addf %34, %36 : vector<16x32xf32>
    %c0_20 = arith.constant 0 : index
    %c0_21 = arith.constant 0 : index
    %38 = vector.load %arg8[%c0_20, %c0_21] : memref<16x32xf32, #tpu.memory_space<vmem>>, vector<16x32xf32>
    tpu.vector_store %arg8[%c0_20, %c0_21], %37 {strides = array<i32>} : memref<16x32xf32, #tpu.memory_space<vmem>>, vector<16x32xf32>,
    return
  }
  func.func @transform_0(%arg0: i32) -> (i32, i32) {
    %c0_i32 = arith.constant 0 : i32
    %c0_i32_0 = arith.constant 0 : i32
    return %arg0, %c0_i32 : i32, i32
  }
  func.func @transform_1(%arg0: i32) -> (i32, i32) {
    %c0_i32 = arith.constant 0 : i32
    %c0_i32_0 = arith.constant 0 : i32
    %c0_i32_1 = arith.constant 0 : i32
    return %c0_i32, %c0_i32_0 : i32, i32
  }
  func.func @transform_2(%arg0: i32) -> (i32, i32) {
    %c0_i32 = arith.constant 0 : i32
    %c0_i32_0 = arith.constant 0 : i32
    %c0_i32_1 = arith.constant 0 : i32
    return %c0_i32, %c0_i32_0 : i32, i32
  }
  func.func @transform_3(%arg0: i32) -> (i32, i32) {
    %c0_i32 = arith.constant 0 : i32
    %c0_i32_0 = arith.constant 0 : i32
    %c0_i32_1 = arith.constant 0 : i32
    return %c0_i32, %c0_i32_0 : i32, i32
  }
  func.func @transform_4(%arg0: i32) -> (i32, i32) {
    %c0_i32 = arith.constant 0 : i32
    %c0_i32_0 = arith.constant 0 : i32
    %c0_i32_1 = arith.constant 0 : i32
    return %c0_i32, %c0_i32_0 : i32, i32
  }
  func.func @transform_5(%arg0: i32) -> (i32, i32) {
    %c0_i32 = arith.constant 0 : i32
    %c0_i32_0 = arith.constant 0 : i32
    %c0_i32_1 = arith.constant 0 : i32
    return %c0_i32, %c0_i32_0 : i32, i32
  }
  func.func @transform_6(%arg0: i32) -> (i32, i32) {
    %c0_i32 = arith.constant 0 : i32
    %c0_i32_0 = arith.constant 0 : i32
    %c0_i32_1 = arith.constant 0 : i32
    return %c0_i32, %c0_i32_0 : i32, i32
  }
  func.func @transform_7(%arg0: i32) -> (i32, i32) {
    %c0_i32 = arith.constant 0 : i32
    %c0_i32_0 = arith.constant 0 : i32
    return %arg0, %c0_i32 : i32, i32
  }
}

module attributes {stable_mosaic.version = 11 : i64} {
  func.func @_fused_cross_attn_kernel(%arg0: i32, %arg1: memref<2xi32, #tpu.memory_space<smem>>, %arg2: memref<1x8x32xf32, #tpu.memory_space<vmem>>, %arg3: memref<1x8x32xbf16, #tpu.memory_space<vmem>>, %arg4: memref<32x32xbf16, #tpu.memory_space<vmem>>, %arg5: memref<1x32xf32, #tpu.memory_space<vmem>>, %arg6: memref<32x64xbf16, #tpu.memory_space<vmem>>, %arg7: memref<1x64xf32, #tpu.memory_space<vmem>>, %arg8: memref<1x8x32xbf16, #tpu.memory_space<vmem>>) attributes {dimension_semantics = [#tpu.dimension_semantics<parallel>], iteration_bounds = array<i64: 2>, scalar_prefetch = 1 : i64, scratch_operands = 0 : i64, tpu.core_type = #tpu.core_type<tc>, window_params = [{transform_indices = @transform_0, window_bounds = array<i64: 1, 8, 32>}, {transform_indices = @transform_1, window_bounds = array<i64: 1, 8, 32>}, {pipeline_mode = #tpu.pipeline_mode<synchronous>, transform_indices = @transform_2, window_bounds = array<i64: 32, 32>}, {pipeline_mode = #tpu.pipeline_mode<synchronous>, transform_indices = @transform_3, window_bounds = array<i64: 1, 32>}, {pipeline_mode = #tpu.pipeline_mode<synchronous>, transform_indices = @transform_4, window_bounds = array<i64: 32, 64>}, {pipeline_mode = #tpu.pipeline_mode<synchronous>, transform_indices = @transform_5, window_bounds = array<i64: 1, 64>}, {transform_indices = @transform_6, window_bounds = array<i64: 1, 8, 32>}]} {
    %c0 = arith.constant 0 : index
    %c0_0 = arith.constant 0 : index
    %c0_1 = arith.constant 0 : index
    %0 = vector.load %arg2[%c0, %c0_0, %c0_1] : memref<1x8x32xf32, #tpu.memory_space<vmem>>, vector<1x8x32xf32>
    %1 = vector.shape_cast %0 : vector<1x8x32xf32> to vector<8x32xf32>
    %2 = arith.truncf %1 : vector<8x32xf32> to vector<8x32xbf16>
    %c0_2 = arith.constant 0 : index
    %c0_3 = arith.constant 0 : index
    %c0_4 = arith.constant 0 : index
    %3 = vector.load %arg3[%c0_2, %c0_3, %c0_4] : memref<1x8x32xbf16, #tpu.memory_space<vmem>>, vector<1x8x32xbf16>
    %4 = vector.shape_cast %3 : vector<1x8x32xbf16> to vector<8x32xbf16>
    %c0_5 = arith.constant 0 : index
    %c0_6 = arith.constant 0 : index
    %5 = vector.load %arg4[%c0_5, %c0_6] : memref<32x32xbf16, #tpu.memory_space<vmem>>, vector<32x32xbf16>
    %cst = arith.constant dense<0.000000e+00> : vector<8x32xf32>
    %6 = tpu.matmul %2, %5, %cst {dimension_numbers = #tpu.dot_dimension_numbers<[1], [0], [0], [1], [0, 0, 1, 1], [], []>} : vector<8x32xbf16>, vector<32x32xbf16>, vector<8x32xf32> -> vector<8x32xf32>
    %c0_7 = arith.constant 0 : index
    %c0_8 = arith.constant 0 : index
    %7 = vector.load %arg5[%c0_7, %c0_8] : memref<1x32xf32, #tpu.memory_space<vmem>>, vector<1x32xf32>
    %8 = vector.broadcast %7 : vector<1x32xf32> to vector<8x32xf32>
    %9 = arith.addf %6, %8 : vector<8x32xf32>
    %c0_9 = arith.constant 0 : index
    %c0_10 = arith.constant 0 : index
    %10 = vector.load %arg6[%c0_9, %c0_10] : memref<32x64xbf16, #tpu.memory_space<vmem>>, vector<32x64xbf16>
    %cst_11 = arith.constant dense<0.000000e+00> : vector<8x64xf32>
    %11 = tpu.matmul %4, %10, %cst_11 {dimension_numbers = #tpu.dot_dimension_numbers<[1], [0], [0], [1], [0, 0, 1, 1], [], []>} : vector<8x32xbf16>, vector<32x64xbf16>, vector<8x64xf32> -> vector<8x64xf32>
    %c0_12 = arith.constant 0 : index
    %c0_13 = arith.constant 0 : index
    %12 = vector.load %arg7[%c0_12, %c0_13] : memref<1x64xf32, #tpu.memory_space<vmem>>, vector<1x64xf32>
    %13 = vector.broadcast %12 : vector<1x64xf32> to vector<8x64xf32>
    %14 = arith.addf %11, %13 : vector<8x64xf32>
    %15 = tpu.iota {dimensions = array<i32: 1>} : vector<8x8xi32>
    %16 = arith.index_cast %arg0 : i32 to index
    %17 = memref.load %arg1[%16] : memref<2xi32, #tpu.memory_space<smem>>
    %18 = vector.broadcast %17 : i32 to vector<8x8xi32>
    %19 = arith.cmpi slt, %15, %18 : vector<8x8xi32>
    %20 = vector.extract_strided_slice %14 {offsets = [0, 0], sizes = [8, 32], strides = [1, 1]} : vector<8x64xf32> to vector<8x32xf32>
    %21 = vector.extract_strided_slice %14 {offsets = [0, 32], sizes = [8, 32], strides = [1, 1]} : vector<8x64xf32> to vector<8x32xf32>
    %cst_14 = arith.constant 0.353553385 : f32
    %22 = vector.broadcast %cst_14 : f32 to vector<8x32xf32>
    %23 = arith.mulf %9, %22 : vector<8x32xf32>
    %24 = arith.truncf %23 : vector<8x32xf32> to vector<8x32xbf16>
    %25 = arith.truncf %20 : vector<8x32xf32> to vector<8x32xbf16>
    %26 = arith.truncf %21 : vector<8x32xf32> to vector<8x32xbf16>
    %27 = vector.extract_strided_slice %24 {offsets = [0, 0], sizes = [8, 8], strides = [1, 1]} : vector<8x32xbf16> to vector<8x8xbf16>
    %28 = vector.extract_strided_slice %25 {offsets = [0, 0], sizes = [8, 8], strides = [1, 1]} : vector<8x32xbf16> to vector<8x8xbf16>
    %cst_15 = arith.constant dense<0.000000e+00> : vector<8x8xf32>
    %29 = tpu.matmul %27, %28, %cst_15 {dimension_numbers = #tpu.dot_dimension_numbers<[1], [1], [0], [0], [0, 0, 1, 0], [], []>} : vector<8x8xbf16>, vector<8x8xbf16>, vector<8x8xf32> -> vector<8x8xf32>
    %cst_16 = arith.constant -1.000000e+09 : f32
    %30 = vector.broadcast %cst_16 : f32 to vector<8x8xf32>
    %31 = arith.select %19, %29, %30 : vector<8x8xi1>, vector<8x8xf32>
    %cst_17 = arith.constant dense<0xFF800000> : vector<8xf32>
    %32 = vector.multi_reduction <maximumf>, %31, %cst_17 [1] : vector<8x8xf32> to vector<8xf32>
    %33 = vector.shape_cast %32 : vector<8xf32> to vector<8x1xf32>
    %34 = vector.broadcast %33 : vector<8x1xf32> to vector<8x8xf32>
    %35 = arith.subf %31, %34 : vector<8x8xf32>
    %36 = math.exp %35 : vector<8x8xf32>
    %cst_18 = arith.constant dense<0.000000e+00> : vector<8xf32>
    %37 = vector.multi_reduction <add>, %36, %cst_18 [1] : vector<8x8xf32> to vector<8xf32>
    %38 = vector.shape_cast %37 : vector<8xf32> to vector<8x1xf32>
    %39 = tpu.reciprocal %38 {approx = true} : vector<8x1xf32> -> vector<8x1xf32>
    %40 = vector.broadcast %39 : vector<8x1xf32> to vector<8x8xf32>
    %41 = arith.mulf %36, %40 : vector<8x8xf32>
    %42 = arith.truncf %41 : vector<8x8xf32> to vector<8x8xbf16>
    %43 = vector.extract_strided_slice %26 {offsets = [0, 0], sizes = [8, 8], strides = [1, 1]} : vector<8x32xbf16> to vector<8x8xbf16>
    %cst_19 = arith.constant dense<0.000000e+00> : vector<8x8xf32>
    %44 = tpu.matmul %42, %43, %cst_19 {dimension_numbers = #tpu.dot_dimension_numbers<[1], [0], [0], [1], [0, 0, 1, 1], [], []>} : vector<8x8xbf16>, vector<8x8xbf16>, vector<8x8xf32> -> vector<8x8xf32>
    %45 = vector.extract_strided_slice %24 {offsets = [0, 8], sizes = [8, 8], strides = [1, 1]} : vector<8x32xbf16> to vector<8x8xbf16>
    %46 = vector.extract_strided_slice %25 {offsets = [0, 8], sizes = [8, 8], strides = [1, 1]} : vector<8x32xbf16> to vector<8x8xbf16>
    %cst_20 = arith.constant dense<0.000000e+00> : vector<8x8xf32>
    %47 = tpu.matmul %45, %46, %cst_20 {dimension_numbers = #tpu.dot_dimension_numbers<[1], [1], [0], [0], [0, 0, 1, 0], [], []>} : vector<8x8xbf16>, vector<8x8xbf16>, vector<8x8xf32> -> vector<8x8xf32>
    %cst_21 = arith.constant -1.000000e+09 : f32
    %48 = vector.broadcast %cst_21 : f32 to vector<8x8xf32>
    %49 = arith.select %19, %47, %48 : vector<8x8xi1>, vector<8x8xf32>
    %cst_22 = arith.constant dense<0xFF800000> : vector<8xf32>
    %50 = vector.multi_reduction <maximumf>, %49, %cst_22 [1] : vector<8x8xf32> to vector<8xf32>
    %51 = vector.shape_cast %50 : vector<8xf32> to vector<8x1xf32>
    %52 = vector.broadcast %51 : vector<8x1xf32> to vector<8x8xf32>
    %53 = arith.subf %49, %52 : vector<8x8xf32>
    %54 = math.exp %53 : vector<8x8xf32>
    %cst_23 = arith.constant dense<0.000000e+00> : vector<8xf32>
    %55 = vector.multi_reduction <add>, %54, %cst_23 [1] : vector<8x8xf32> to vector<8xf32>
    %56 = vector.shape_cast %55 : vector<8xf32> to vector<8x1xf32>
    %57 = tpu.reciprocal %56 {approx = true} : vector<8x1xf32> -> vector<8x1xf32>
    %58 = vector.broadcast %57 : vector<8x1xf32> to vector<8x8xf32>
    %59 = arith.mulf %54, %58 : vector<8x8xf32>
    %60 = arith.truncf %59 : vector<8x8xf32> to vector<8x8xbf16>
    %61 = vector.extract_strided_slice %26 {offsets = [0, 8], sizes = [8, 8], strides = [1, 1]} : vector<8x32xbf16> to vector<8x8xbf16>
    %cst_24 = arith.constant dense<0.000000e+00> : vector<8x8xf32>
    %62 = tpu.matmul %60, %61, %cst_24 {dimension_numbers = #tpu.dot_dimension_numbers<[1], [0], [0], [1], [0, 0, 1, 1], [], []>} : vector<8x8xbf16>, vector<8x8xbf16>, vector<8x8xf32> -> vector<8x8xf32>
    %63 = vector.extract_strided_slice %24 {offsets = [0, 16], sizes = [8, 8], strides = [1, 1]} : vector<8x32xbf16> to vector<8x8xbf16>
    %64 = vector.extract_strided_slice %25 {offsets = [0, 16], sizes = [8, 8], strides = [1, 1]} : vector<8x32xbf16> to vector<8x8xbf16>
    %cst_25 = arith.constant dense<0.000000e+00> : vector<8x8xf32>
    %65 = tpu.matmul %63, %64, %cst_25 {dimension_numbers = #tpu.dot_dimension_numbers<[1], [1], [0], [0], [0, 0, 1, 0], [], []>} : vector<8x8xbf16>, vector<8x8xbf16>, vector<8x8xf32> -> vector<8x8xf32>
    %cst_26 = arith.constant -1.000000e+09 : f32
    %66 = vector.broadcast %cst_26 : f32 to vector<8x8xf32>
    %67 = arith.select %19, %65, %66 : vector<8x8xi1>, vector<8x8xf32>
    %cst_27 = arith.constant dense<0xFF800000> : vector<8xf32>
    %68 = vector.multi_reduction <maximumf>, %67, %cst_27 [1] : vector<8x8xf32> to vector<8xf32>
    %69 = vector.shape_cast %68 : vector<8xf32> to vector<8x1xf32>
    %70 = vector.broadcast %69 : vector<8x1xf32> to vector<8x8xf32>
    %71 = arith.subf %67, %70 : vector<8x8xf32>
    %72 = math.exp %71 : vector<8x8xf32>
    %cst_28 = arith.constant dense<0.000000e+00> : vector<8xf32>
    %73 = vector.multi_reduction <add>, %72, %cst_28 [1] : vector<8x8xf32> to vector<8xf32>
    %74 = vector.shape_cast %73 : vector<8xf32> to vector<8x1xf32>
    %75 = tpu.reciprocal %74 {approx = true} : vector<8x1xf32> -> vector<8x1xf32>
    %76 = vector.broadcast %75 : vector<8x1xf32> to vector<8x8xf32>
    %77 = arith.mulf %72, %76 : vector<8x8xf32>
    %78 = arith.truncf %77 : vector<8x8xf32> to vector<8x8xbf16>
    %79 = vector.extract_strided_slice %26 {offsets = [0, 16], sizes = [8, 8], strides = [1, 1]} : vector<8x32xbf16> to vector<8x8xbf16>
    %cst_29 = arith.constant dense<0.000000e+00> : vector<8x8xf32>
    %80 = tpu.matmul %78, %79, %cst_29 {dimension_numbers = #tpu.dot_dimension_numbers<[1], [0], [0], [1], [0, 0, 1, 1], [], []>} : vector<8x8xbf16>, vector<8x8xbf16>, vector<8x8xf32> -> vector<8x8xf32>
    %81 = vector.extract_strided_slice %24 {offsets = [0, 24], sizes = [8, 8], strides = [1, 1]} : vector<8x32xbf16> to vector<8x8xbf16>
    %82 = vector.extract_strided_slice %25 {offsets = [0, 24], sizes = [8, 8], strides = [1, 1]} : vector<8x32xbf16> to vector<8x8xbf16>
    %cst_30 = arith.constant dense<0.000000e+00> : vector<8x8xf32>
    %83 = tpu.matmul %81, %82, %cst_30 {dimension_numbers = #tpu.dot_dimension_numbers<[1], [1], [0], [0], [0, 0, 1, 0], [], []>} : vector<8x8xbf16>, vector<8x8xbf16>, vector<8x8xf32> -> vector<8x8xf32>
    %cst_31 = arith.constant -1.000000e+09 : f32
    %84 = vector.broadcast %cst_31 : f32 to vector<8x8xf32>
    %85 = arith.select %19, %83, %84 : vector<8x8xi1>, vector<8x8xf32>
    %cst_32 = arith.constant dense<0xFF800000> : vector<8xf32>
    %86 = vector.multi_reduction <maximumf>, %85, %cst_32 [1] : vector<8x8xf32> to vector<8xf32>
    %87 = vector.shape_cast %86 : vector<8xf32> to vector<8x1xf32>
    %88 = vector.broadcast %87 : vector<8x1xf32> to vector<8x8xf32>
    %89 = arith.subf %85, %88 : vector<8x8xf32>
    %90 = math.exp %89 : vector<8x8xf32>
    %cst_33 = arith.constant dense<0.000000e+00> : vector<8xf32>
    %91 = vector.multi_reduction <add>, %90, %cst_33 [1] : vector<8x8xf32> to vector<8xf32>
    %92 = vector.shape_cast %91 : vector<8xf32> to vector<8x1xf32>
    %93 = tpu.reciprocal %92 {approx = true} : vector<8x1xf32> -> vector<8x1xf32>
    %94 = vector.broadcast %93 : vector<8x1xf32> to vector<8x8xf32>
    %95 = arith.mulf %90, %94 : vector<8x8xf32>
    %96 = arith.truncf %95 : vector<8x8xf32> to vector<8x8xbf16>
    %97 = vector.extract_strided_slice %26 {offsets = [0, 24], sizes = [8, 8], strides = [1, 1]} : vector<8x32xbf16> to vector<8x8xbf16>
    %cst_34 = arith.constant dense<0.000000e+00> : vector<8x8xf32>
    %98 = tpu.matmul %96, %97, %cst_34 {dimension_numbers = #tpu.dot_dimension_numbers<[1], [0], [0], [1], [0, 0, 1, 1], [], []>} : vector<8x8xbf16>, vector<8x8xbf16>, vector<8x8xf32> -> vector<8x8xf32>
    %99 = tpu.concatenate %44, %62, %80, %98 in 1 : vector<8x8xf32>, vector<8x8xf32>, vector<8x8xf32>, vector<8x8xf32> -> vector<8x32xf32>
    %100 = arith.truncf %99 : vector<8x32xf32> to vector<8x32xbf16>
    %c0_35 = arith.constant 0 : index
    %c0_36 = arith.constant 0 : index
    %c0_37 = arith.constant 0 : index
    %101 = vector.load %arg8[%c0_35, %c0_36, %c0_37] : memref<1x8x32xbf16, #tpu.memory_space<vmem>>, vector<1x8x32xbf16>
    %102 = vector.shape_cast %101 : vector<1x8x32xbf16> to vector<8x32xbf16>
    %103 = vector.shape_cast %100 : vector<8x32xbf16> to vector<1x8x32xbf16>
    tpu.vector_store %arg8[%c0_35, %c0_36, %c0_37], %103 {strides = array<i32>} : memref<1x8x32xbf16, #tpu.memory_space<vmem>>, vector<1x8x32xbf16>,
    return
  }
  func.func @transform_0(%arg0: i32, %arg1: memref<2xi32, #tpu.memory_space<smem>>) -> (i32, i32, i32) {
    %c0_i32 = arith.constant 0 : i32
    %c0_i32_0 = arith.constant 0 : i32
    %c0_i32_1 = arith.constant 0 : i32
    return %arg0, %c0_i32, %c0_i32_0 : i32, i32, i32
  }
  func.func @transform_1(%arg0: i32, %arg1: memref<2xi32, #tpu.memory_space<smem>>) -> (i32, i32, i32) {
    %c0_i32 = arith.constant 0 : i32
    %c0_i32_0 = arith.constant 0 : i32
    %c0_i32_1 = arith.constant 0 : i32
    return %arg0, %c0_i32, %c0_i32_0 : i32, i32, i32
  }
  func.func @transform_2(%arg0: i32, %arg1: memref<2xi32, #tpu.memory_space<smem>>) -> (i32, i32) {
    %c0_i32 = arith.constant 0 : i32
    %c0_i32_0 = arith.constant 0 : i32
    %c0_i32_1 = arith.constant 0 : i32
    return %c0_i32, %c0_i32_0 : i32, i32
  }
  func.func @transform_3(%arg0: i32, %arg1: memref<2xi32, #tpu.memory_space<smem>>) -> (i32, i32) {
    %c0_i32 = arith.constant 0 : i32
    %c0_i32_0 = arith.constant 0 : i32
    %c0_i32_1 = arith.constant 0 : i32
    return %c0_i32, %c0_i32_0 : i32, i32
  }
  func.func @transform_4(%arg0: i32, %arg1: memref<2xi32, #tpu.memory_space<smem>>) -> (i32, i32) {
    %c0_i32 = arith.constant 0 : i32
    %c0_i32_0 = arith.constant 0 : i32
    %c0_i32_1 = arith.constant 0 : i32
    return %c0_i32, %c0_i32_0 : i32, i32
  }
  func.func @transform_5(%arg0: i32, %arg1: memref<2xi32, #tpu.memory_space<smem>>) -> (i32, i32) {
    %c0_i32 = arith.constant 0 : i32
    %c0_i32_0 = arith.constant 0 : i32
    %c0_i32_1 = arith.constant 0 : i32
    return %c0_i32, %c0_i32_0 : i32, i32
  }
  func.func @transform_6(%arg0: i32, %arg1: memref<2xi32, #tpu.memory_space<smem>>) -> (i32, i32, i32) {
    %c0_i32 = arith.constant 0 : i32
    %c0_i32_0 = arith.constant 0 : i32
    %c0_i32_1 = arith.constant 0 : i32
    return %arg0, %c0_i32, %c0_i32_0 : i32, i32, i32
  }
}

module attributes {stable_mosaic.version = 11 : i64} {
  func.func @_gen_xent_kernel(%arg0: i32, %arg1: i32, %arg2: memref<16x32xf32, #tpu.memory_space<vmem>>, %arg3: memref<16x1xi32, #tpu.memory_space<vmem>>, %arg4: memref<32x50xbf16, #tpu.memory_space<vmem>>, %arg5: memref<1x50xf32, #tpu.memory_space<vmem>>, %arg6: memref<16x128xf32, #tpu.memory_space<vmem>>, %arg7: memref<16x1xf32, #tpu.memory_space<vmem>>, %arg8: memref<16x1xf32, #tpu.memory_space<vmem>>, %arg9: memref<16x1xf32, #tpu.memory_space<vmem>>) attributes {dimension_semantics = [#tpu.dimension_semantics<parallel>, #tpu.dimension_semantics<arbitrary>], iteration_bounds = array<i64: 1, 1>, scalar_prefetch = 0 : i64, scratch_operands = 3 : i64, tpu.core_type = #tpu.core_type<tc>, window_params = [{transform_indices = @transform_0, window_bounds = array<i64: 16, 32>}, {transform_indices = @transform_1, window_bounds = array<i64: 16, 1>}, {transform_indices = @transform_2, window_bounds = array<i64: 32, 50>}, {transform_indices = @transform_3, window_bounds = array<i64: 1, 50>}, {transform_indices = @transform_4, window_bounds = array<i64: 16, 128>}]} {
    %c0_i32 = arith.constant 0 : i32
    %0 = arith.cmpi eq, %arg1, %c0_i32 : i32
    %1 = arith.extui %0 : i1 to i32
    %c0_i32_0 = arith.constant 0 : i32
    %2 = arith.cmpi ne, %1, %c0_i32_0 : i32
    scf.if %2 {
      %cst_28 = arith.constant -1.000000e+30 : f32
      %47 = vector.broadcast %cst_28 : f32 to vector<16x1xf32>
      %c0_29 = arith.constant 0 : index
      %c0_30 = arith.constant 0 : index
      %48 = vector.load %arg7[%c0_29, %c0_30] : memref<16x1xf32, #tpu.memory_space<vmem>>, vector<16x1xf32>
      tpu.vector_store %arg7[%c0_29, %c0_30], %47 {strides = array<i32>} : memref<16x1xf32, #tpu.memory_space<vmem>>, vector<16x1xf32>,
      %cst_31 = arith.constant 0.000000e+00 : f32
      %49 = vector.broadcast %cst_31 : f32 to vector<16x1xf32>
      %c0_32 = arith.constant 0 : index
      %c0_33 = arith.constant 0 : index
      %50 = vector.load %arg8[%c0_32, %c0_33] : memref<16x1xf32, #tpu.memory_space<vmem>>, vector<16x1xf32>
      tpu.vector_store %arg8[%c0_32, %c0_33], %49 {strides = array<i32>} : memref<16x1xf32, #tpu.memory_space<vmem>>, vector<16x1xf32>,
      %cst_34 = arith.constant 0.000000e+00 : f32
      %51 = vector.broadcast %cst_34 : f32 to vector<16x1xf32>
      %c0_35 = arith.constant 0 : index
      %c0_36 = arith.constant 0 : index
      %52 = vector.load %arg9[%c0_35, %c0_36] : memref<16x1xf32, #tpu.memory_space<vmem>>, vector<16x1xf32>
      tpu.vector_store %arg9[%c0_35, %c0_36], %51 {strides = array<i32>} : memref<16x1xf32, #tpu.memory_space<vmem>>, vector<16x1xf32>,
    } else {
    }
    %c0 = arith.constant 0 : index
    %c0_1 = arith.constant 0 : index
    %3 = vector.load %arg2[%c0, %c0_1] : memref<16x32xf32, #tpu.memory_space<vmem>>, vector<16x32xf32>
    %4 = arith.truncf %3 : vector<16x32xf32> to vector<16x32xbf16>
    %c0_2 = arith.constant 0 : index
    %c0_3 = arith.constant 0 : index
    %5 = vector.load %arg4[%c0_2, %c0_3] : memref<32x50xbf16, #tpu.memory_space<vmem>>, vector<32x50xbf16>
    %cst = arith.constant dense<0.000000e+00> : vector<16x50xf32>
    %6 = tpu.matmul %4, %5, %cst {dimension_numbers = #tpu.dot_dimension_numbers<[1], [0], [0], [1], [0, 0, 1, 1], [], []>} : vector<16x32xbf16>, vector<32x50xbf16>, vector<16x50xf32> -> vector<16x50xf32>
    %c0_4 = arith.constant 0 : index
    %c0_5 = arith.constant 0 : index
    %7 = vector.load %arg5[%c0_4, %c0_5] : memref<1x50xf32, #tpu.memory_space<vmem>>, vector<1x50xf32>
    %8 = vector.broadcast %7 : vector<1x50xf32> to vector<16x50xf32>
    %9 = arith.addf %6, %8 : vector<16x50xf32>
    %c50_i32 = arith.constant 50 : i32
    %10 = arith.muli %arg1, %c50_i32 : i32
    %11 = tpu.iota {dimensions = array<i32: 1>} : vector<16x50xi32>
    %12 = vector.broadcast %10 : i32 to vector<16x50xi32>
    %13 = arith.addi %12, %11 : vector<16x50xi32>
    %c50_i32_6 = arith.constant 50 : i32
    %14 = vector.broadcast %c50_i32_6 : i32 to vector<16x50xi32>
    %15 = arith.cmpi slt, %13, %14 : vector<16x50xi32>
    %cst_7 = arith.constant -1.000000e+30 : f32
    %16 = vector.broadcast %cst_7 : f32 to vector<16x50xf32>
    %17 = arith.select %15, %9, %16 : vector<16x50xi1>, vector<16x50xf32>
    %c0_8 = arith.constant 0 : index
    %c0_9 = arith.constant 0 : index
    %18 = vector.load %arg3[%c0_8, %c0_9] : memref<16x1xi32, #tpu.memory_space<vmem>>, vector<16x1xi32>
    %c0_10 = arith.constant 0 : index
    %c0_11 = arith.constant 0 : index
    %19 = vector.load %arg9[%c0_10, %c0_11] : memref<16x1xf32, #tpu.memory_space<vmem>>, vector<16x1xf32>
    %20 = vector.broadcast %18 : vector<16x1xi32> to vector<16x50xi32>
    %21 = arith.cmpi eq, %13, %20 : vector<16x50xi32>
    %cst_12 = arith.constant 0.000000e+00 : f32
    %22 = vector.broadcast %cst_12 : f32 to vector<16x50xf32>
    %23 = arith.select %21, %17, %22 : vector<16x50xi1>, vector<16x50xf32>
    %cst_13 = arith.constant dense<0.000000e+00> : vector<16xf32>
    %24 = vector.multi_reduction <add>, %23, %cst_13 [1] : vector<16x50xf32> to vector<16xf32>
    %25 = vector.shape_cast %24 : vector<16xf32> to vector<16x1xf32>
    %26 = arith.addf %19, %25 : vector<16x1xf32>
    %c0_14 = arith.constant 0 : index
    %c0_15 = arith.constant 0 : index
    %27 = vector.load %arg9[%c0_14, %c0_15] : memref<16x1xf32, #tpu.memory_space<vmem>>, vector<16x1xf32>
    tpu.vector_store %arg9[%c0_14, %c0_15], %26 {strides = array<i32>} : memref<16x1xf32, #tpu.memory_space<vmem>>, vector<16x1xf32>,
    %c0_16 = arith.constant 0 : index
    %c0_17 = arith.constant 0 : index
    %28 = vector.load %arg7[%c0_16, %c0_17] : memref<16x1xf32, #tpu.memory_space<vmem>>, vector<16x1xf32>
    %cst_18 = arith.constant dense<0xFF800000> : vector<16xf32>
    %29 = vector.multi_reduction <maximumf>, %17, %cst_18 [1] : vector<16x50xf32> to vector<16xf32>
    %30 = vector.shape_cast %29 : vector<16xf32> to vector<16x1xf32>
    %31 = arith.maximumf %28, %30 : vector<16x1xf32>
    %c0_19 = arith.constant 0 : index
    %c0_20 = arith.constant 0 : index
    %32 = vector.load %arg8[%c0_19, %c0_20] : memref<16x1xf32, #tpu.memory_space<vmem>>, vector<16x1xf32>
    %33 = arith.subf %28, %31 : vector<16x1xf32>
    %34 = math.exp %33 : vector<16x1xf32>
    %35 = arith.mulf %32, %34 : vector<16x1xf32>
    %36 = vector.broadcast %31 : vector<16x1xf32> to vector<16x50xf32>
    %37 = arith.subf %17, %36 : vector<16x50xf32>
    %38 = math.exp %37 : vector<16x50xf32>
    %cst_21 = arith.constant dense<0.000000e+00> : vector<16xf32>
    %39 = vector.multi_reduction <add>, %38, %cst_21 [1] : vector<16x50xf32> to vector<16xf32>
    %40 = vector.shape_cast %39 : vector<16xf32> to vector<16x1xf32>
    %41 = arith.addf %35, %40 : vector<16x1xf32>
    %c0_22 = arith.constant 0 : index
    %c0_23 = arith.constant 0 : index
    %42 = vector.load %arg8[%c0_22, %c0_23] : memref<16x1xf32, #tpu.memory_space<vmem>>, vector<16x1xf32>
    tpu.vector_store %arg8[%c0_22, %c0_23], %41 {strides = array<i32>} : memref<16x1xf32, #tpu.memory_space<vmem>>, vector<16x1xf32>,
    %c0_24 = arith.constant 0 : index
    %c0_25 = arith.constant 0 : index
    %43 = vector.load %arg7[%c0_24, %c0_25] : memref<16x1xf32, #tpu.memory_space<vmem>>, vector<16x1xf32>
    tpu.vector_store %arg7[%c0_24, %c0_25], %31 {strides = array<i32>} : memref<16x1xf32, #tpu.memory_space<vmem>>, vector<16x1xf32>,
    %c0_i32_26 = arith.constant 0 : i32
    %44 = arith.cmpi eq, %arg1, %c0_i32_26 : i32
    %45 = arith.extui %44 : i1 to i32
    %c0_i32_27 = arith.constant 0 : i32
    %46 = arith.cmpi ne, %45, %c0_i32_27 : i32
    scf.if %46 {
      %c0_28 = arith.constant 0 : index
      %c0_29 = arith.constant 0 : index
      %47 = vector.load %arg7[%c0_28, %c0_29] : memref<16x1xf32, #tpu.memory_space<vmem>>, vector<16x1xf32>
      %c0_30 = arith.constant 0 : index
      %c0_31 = arith.constant 0 : index
      %48 = vector.load %arg8[%c0_30, %c0_31] : memref<16x1xf32, #tpu.memory_space<vmem>>, vector<16x1xf32>
      %49 = math.log %48 : vector<16x1xf32>
      %50 = arith.addf %47, %49 : vector<16x1xf32>
      %c0_32 = arith.constant 0 : index
      %c0_33 = arith.constant 0 : index
      %51 = vector.load %arg9[%c0_32, %c0_33] : memref<16x1xf32, #tpu.memory_space<vmem>>, vector<16x1xf32>
      %52 = arith.subf %50, %51 : vector<16x1xf32>
      %53 = vector.shape_cast %52 : vector<16x1xf32> to vector<16x1xf32>
      %54 = vector.broadcast %53 : vector<16x1xf32> to vector<16x128xf32>
      %c0_34 = arith.constant 0 : index
      %c0_35 = arith.constant 0 : index
      %55 = vector.load %arg6[%c0_34, %c0_35] : memref<16x128xf32, #tpu.memory_space<vmem>>, vector<16x128xf32>
      tpu.vector_store %arg6[%c0_34, %c0_35], %54 {strides = array<i32>} : memref<16x128xf32, #tpu.memory_space<vmem>>, vector<16x128xf32>,
    } else {
    }
    return
  }
  func.func @transform_0(%arg0: i32, %arg1: i32) -> (i32, i32) {
    %c0_i32 = arith.constant 0 : i32
    %c0_i32_0 = arith.constant 0 : i32
    return %arg0, %c0_i32 : i32, i32
  }
  func.func @transform_1(%arg0: i32, %arg1: i32) -> (i32, i32) {
    %c0_i32 = arith.constant 0 : i32
    %c0_i32_0 = arith.constant 0 : i32
    return %arg0, %c0_i32 : i32, i32
  }
  func.func @transform_2(%arg0: i32, %arg1: i32) -> (i32, i32) {
    %c0_i32 = arith.constant 0 : i32
    %c0_i32_0 = arith.constant 0 : i32
    return %c0_i32, %arg1 : i32, i32
  }
  func.func @transform_3(%arg0: i32, %arg1: i32) -> (i32, i32) {
    %c0_i32 = arith.constant 0 : i32
    %c0_i32_0 = arith.constant 0 : i32
    return %c0_i32, %arg1 : i32, i32
  }
  func.func @transform_4(%arg0: i32, %arg1: i32) -> (i32, i32) {
    %c0_i32 = arith.constant 0 : i32
    %c0_i32_0 = arith.constant 0 : i32
    return %arg0, %c0_i32 : i32, i32
  }
}

</mosaic_0001>

<llo_original>
// kernel: _lambda_.20
$region0: #{_lambda_.20}
  #allocation0 [shape = 'u32[]', space=smem, size = 0x4, offset = 0x4, fixed_abs, tag = 'smem constant byte address 0x4 - core index']
  #allocation1 [shape = 'u32[144,128]{1,0:T(1,128)}', space=vmem, size = 0x12000, scoped, tag = 'internal scratch']
  %s0 = inlined_call_operand.vmem [shape: bf16[32,32], index: 0, kind: input, shape index: {}]
  %s1 = inlined_call_operand.vmem [shape: f32[32,32], index: 1, kind: input, shape index: {}]
  %s2 = inlined_call_operand.vmem [shape: bf16[32,32], index: 2, kind: input, shape index: {}]
  %s3 = inlined_call_operand.vmem [shape: f32[1,32], index: 3, kind: input, shape index: {}]
  %s4 = inlined_call_operand.vmem [shape: f32[1,32], index: 4, kind: input, shape index: {}]
  %s5 = inlined_call_operand.vmem [shape: f32[1,32], index: 5, kind: input, shape index: {}]
  %s6 = inlined_call_operand.vmem [shape: f32[32,32], index: 6, kind: output, shape index: {}]
  %s7 = sld [smem:[#allocation0]]
  $region34: #{_lambda_.20} parent=0
    _
  %s9 = ssub.s32 1, %s7
  %s10 = scalar_select 0, %s9, %s7
  // Predicated region
  $region2: #{_lambda_.20} parent=0 // pred_check
    _
  $region3: #{_lambda_.20} parent=0 // pred_check_branch
    %12 = sbr.rel (0) target = $region5
  $region4: #{_lambda_.20} parent=0 // pred_region
    _
  $region5: #{_lambda_.20} parent=0 // pred_fallthru
    _
  // Predicated region
  $region6: #{_lambda_.20} parent=0 // pred_check
    _
  $region7: #{_lambda_.20} parent=0 // pred_check_branch
    %14 = sbr.rel (0) target = $region9
  $region8: #{_lambda_.20} parent=0 // pred_region
    _
  $region9: #{_lambda_.20} parent=0 // pred_fallthru
    _
  // Predicated region
  $region10: #{_lambda_.20} parent=0 // pred_check
    _
  $region11: #{_lambda_.20} parent=0 // pred_check_branch
    %16 = sbr.rel (0) target = $region13
  $region12: #{_lambda_.20} parent=0 // pred_region
    _
  $region13: #{_lambda_.20} parent=0 // pred_fallthru
    _
  // Predicated region
  $region14: #{_lambda_.20} parent=0 // pred_check
    _
  $region15: #{_lambda_.20} parent=0 // pred_check_branch
    %18 = sbr.rel (0) target = $region17
  $region16: #{_lambda_.20} parent=0 // pred_region
    _
  $region17: #{_lambda_.20} parent=0 // pred_fallthru
    _
  // Predicated region
  $region18: #{_lambda_.20} parent=0 // pred_check
    _
  $region19: #{_lambda_.20} parent=0 // pred_check_branch
    %20 = sbr.rel (0) target = $region21
  $region20: #{_lambda_.20} parent=0 // pred_region
    _
  $region21: #{_lambda_.20} parent=0 // pred_fallthru
    _
  // Predicated region
  $region22: #{_lambda_.20} parent=0 // pred_check
    _
  $region23: #{_lambda_.20} parent=0 // pred_check_branch
    %22 = sbr.rel (0) target = $region25
  $region24: #{_lambda_.20} parent=0 // pred_region
    _
  $region25: #{_lambda_.20} parent=0 // pred_fallthru
    _
  %v24 = vld [vmem:[%s0] sm:$0xf]
  %v25 = vld [vmem:[%s0 + $0x4] sm:$0xf]
  %v26 = vld [vmem:[%s0 + $0x8] sm:$0xf]
  %v27 = vld [vmem:[%s0 + $0xc] sm:$0xf]
  %v28 = vld [vmem:[%s2] sm:$0xf]
  %v29 = vld [vmem:[%s2 + $0x4] sm:$0xf]
  %v30 = vld [vmem:[%s2 + $0x8] sm:$0xf]
  %v31 = vld [vmem:[%s2 + $0xc] sm:$0xf]
  %v32 = vld [vmem:[%s3] sm:$0x1]
  %v34 = vlaneseq
  %v35 = vshrl.u32 %v34, 7
  %v36 = vsub.s32 0, %v35
  %v37 = vrot.slane %v32, %v36
  %v43 = vunpack.c.l.b16 %v24
  %v44 = vunpack.c.l.b16 %v25
  %v45 = vunpack.c.l.b16 %v26
  %v46 = vunpack.c.l.b16 %v27
  %v47 = vpack.c.b16 %v44, %v43
  %v48 = vpack.c.b16 %v46, %v45
  %v53 = vunpack.c.l.b16 %v28
  %v54 = vunpack.c.l.b16 %v29
  %v55 = vunpack.c.l.b16 %v30
  %v56 = vunpack.c.l.b16 %v31
  %v57 = vpack.c.b16 %v54, %v53
  %v58 = vpack.c.b16 %v56, %v55
  %vm61 = vcmask 261120
  %v63 = vsel %vm61, %v47, 0
  %v66 = vsel %vm61, %v48, 0
  %68 = vmatprep.subr.bf16.mxu0 0
  %69 = vmatpush1.bf16.msra.mxu0 %v57
  %70 = vmatprep.subr.bf16.mxu0 0
  %71 = vmatpush1.bf16.msra.mxu0 %v58
  %72 = vmatprep.subr.bf16.mxu0 0
  %73 = vmatpush1.bf16.msra.mxu0 0
  %74 = vmatprep.subr.bf16.mxu0 0
  %75 = vmatpush1.bf16.msra.mxu0 0
  %76 = vmatprep.subr.bf16.mxu0 0
  %77 = vmatpush1.bf16.msra.mxu0 0
  %78 = vmatprep.subr.bf16.mxu0 0
  %79 = vmatpush1.bf16.msra.mxu0 0
  %80 = vmatprep.subr.bf16.mxu0 0
  %81 = vmatpush1.bf16.msra.mxu0 0
  %82 = vmatprep.subr.bf16.mxu0 0
  %83 = vmatpush1.bf16.msra.mxu0 0
  %84 = vmatprep.subr.bf16.mxu0 0
  %85 = vmatpush1.bf16.msra.mxu0 0
  %86 = vmatprep.subr.bf16.mxu0 0
  %87 = vmatpush1.bf16.msra.mxu0 0
  %88 = vmatprep.subr.bf16.mxu0 0
  %89 = vmatpush1.bf16.msra.mxu0 0
  %90 = vmatprep.subr.bf16.mxu0 0
  %91 = vmatpush1.bf16.msra.mxu0 0
  %92 = vmatprep.subr.bf16.mxu0 0
  %93 = vmatpush1.bf16.msra.mxu0 0
  %94 = vmatprep.subr.bf16.mxu0 0
  %95 = vmatpush1.bf16.msra.mxu0 0
  %96 = vmatprep.subr.bf16.mxu0 0
  %97 = vmatpush1.bf16.msra.mxu0 0
  %98 = vmatprep.subr.bf16.mxu0 0
  %99 = vmatpush1.bf16.msra.mxu0 0
  %100 = vmatprep.mubr.bf16.mxu0 0
  %101 = vmatmul.mubr.bf16.gmra.mrb[0].mxu0 %v63
  %v102 = vpop.f32.mrb[0].mxu0
  %v103 = vadd.f32 %v37, %v102
  %v104 = vpop.f32.mrb[0].mxu0
  %v105 = vpop.f32.mrb[0].mxu0
  %v106 = vadd.f32 %v37, %v105
  %v107 = vpop.f32.mrb[0].mxu0
  %108 = vmatprep.mubr.bf16.mxu0 0
  %109 = vmatmul.mubr.bf16.gmra.mrb[0].mxu0 %v66
  %v110 = vpop.f32.mrb[0].mxu0
  %v111 = vadd.f32 %v37, %v110
  %v112 = vpop.f32.mrb[0].mxu0
  %v113 = vpop.f32.mrb[0].mxu0
  %v114 = vadd.f32 %v37, %v113
  %v115 = vpop.f32.mrb[0].mxu0
  %116 = vdwg.mxu0
  %v117 = vld [vmem:[%s1] sm:$0xff]
  %v118 = vld [vmem:[%s1 + $0x8] sm:$0xff]
  %v119 = vld [vmem:[%s1 + $0x10] sm:$0xff]
  %v120 = vld [vmem:[%s1 + $0x18] sm:$0xff]
  %v121 = vadd.f32 %v103, %v117
  %v122 = vadd.f32 %v106, %v118
  %v123 = vadd.f32 %v111, %v119
  %v124 = vadd.f32 %v114, %v120
  %v125 = vsel %vm61, %v121, 0.0
  %126 = vadd.xlane.f32.xlu0 %v125
  %v127 = vpop.xlane.xlu0 %126
  %v128 = vsel %vm61, %v122, 0.0
  %129 = vadd.xlane.f32.xlu0 %v128
  %v130 = vpop.xlane.xlu0 %129
  %v131 = vsel %vm61, %v123, 0.0
  %132 = vadd.xlane.f32.xlu0 %v131
  %v133 = vpop.xlane.xlu0 %132
  %v134 = vsel %vm61, %v124, 0.0
  %135 = vadd.xlane.f32.xlu0 %v134
  %v136 = vpop.xlane.xlu0 %135
  %v137 = vrcp.pop 32.0
  %v138 = vmul.f32 %v127, %v137
  %v139 = vmul.f32 %v130, %v137
  %v140 = vmul.f32 %v133, %v137
  %v141 = vmul.f32 %v136, %v137
  %v142 = vsub.f32 %v121, %v138
  %v143 = vsub.f32 %v122, %v139
  %v144 = vsub.f32 %v123, %v140
  %v145 = vsub.f32 %v124, %v141
  %v146 = vmul.f32 %v142, %v142
  %v147 = vmul.f32 %v143, %v143
  %v148 = vmul.f32 %v144, %v144
  %v149 = vmul.f32 %v145, %v145
  %v150 = vsel %vm61, %v146, 0.0
  %151 = vadd.xlane.f32.xlu0 %v150
  %v152 = vpop.xlane.xlu0 %151
  %v153 = vsel %vm61, %v147, 0.0
  %154 = vadd.xlane.f32.xlu0 %v153
  %v155 = vpop.xlane.xlu0 %154
  %v156 = vsel %vm61, %v148, 0.0
  %157 = vadd.xlane.f32.xlu0 %v156
  %v158 = vpop.xlane.xlu0 %157
  %v159 = vsel %vm61, %v149, 0.0
  %160 = vadd.xlane.f32.xlu0 %v159
  %v161 = vpop.xlane.xlu0 %160
  %v162 = vmul.f32 %v152, %v137
  %v163 = vmul.f32 %v155, %v137
  %v164 = vmul.f32 %v158, %v137
  %v165 = vmul.f32 %v161, %v137
  %v166 = vadd.f32 %v162, 1e-06
  %v167 = vadd.f32 %v163, 1e-06
  %v168 = vadd.f32 %v164, 1e-06
  %v169 = vadd.f32 %v165, 1e-06
  %v170 = vrsqrt.pop %v166
  %v171 = vrsqrt.pop %v167
  %v172 = vrsqrt.pop %v168
  %v173 = vrsqrt.pop %v169
  %v174 = vmul.f32 %v142, %v170
  %v175 = vmul.f32 %v143, %v171
  %v176 = vmul.f32 %v144, %v172
  %v177 = vmul.f32 %v145, %v173
  %v178 = vld [vmem:[%s4] sm:$0x1]
  %v180 = vlaneseq
  %v181 = vshrl.u32 %v180, 7
  %v182 = vsub.s32 0, %v181
  %v183 = vrot.slane %v178, %v182
  %v185 = vmul.f32 %v174, %v183
  %v186 = vmul.f32 %v175, %v183
  %v187 = vmul.f32 %v176, %v183
  %v188 = vmul.f32 %v177, %v183
  %v189 = vld [vmem:[%s5] sm:$0x1]
  %v191 = vlaneseq
  %v192 = vshrl.u32 %v191, 7
  %v193 = vsub.s32 0, %v192
  %v194 = vrot.slane %v189, %v193
  %v196 = vadd.f32 %v185, %v194
  %v197 = vadd.f32 %v186, %v194
  %v198 = vadd.f32 %v187, %v194
  %v199 = vadd.f32 %v188, %v194
  %200 = vst.msk [vmem:[%s6] sm:$0xff] %vm61, %v196
  %201 = vst.msk [vmem:[%s6 + $0x8] sm:$0xff] %vm61, %v197
  %202 = vst.msk [vmem:[%s6 + $0x10] sm:$0xff] %vm61, %v198
  %203 = vst.msk [vmem:[%s6 + $0x18] sm:$0xff] %vm61, %v199
  // Predicated region
  $region26: #{_lambda_.20} parent=0 // pred_check
    _
  $region27: #{_lambda_.20} parent=0 // pred_check_branch
    %205 = sbr.rel (0) target = $region29
  $region28: #{_lambda_.20} parent=0 // pred_region
    _
  $region29: #{_lambda_.20} parent=0 // pred_fallthru
    _
  // Predicated region
  $region30: #{_lambda_.20} parent=0 // pred_check
    _
  $region31: #{_lambda_.20} parent=0 // pred_check_branch
    %207 = sbr.rel (0) target = $region33
  $region32: #{_lambda_.20} parent=0 // pred_region
    _
  $region33: #{_lambda_.20} parent=0 // pred_fallthru
    _

// kernel: _lambda_.21
$region0: #{_lambda_.21}
  #allocation0 [shape = 'u32[]', space=smem, size = 0x4, offset = 0x4, fixed_abs, tag = 'smem constant byte address 0x4 - core index']
  #allocation1 [shape = 'u32[144,128]{1,0:T(1,128)}', space=vmem, size = 0x12000, scoped, tag = 'internal scratch']
  %s0 = inlined_call_operand.vmem [shape: f32[32,32], index: 0, kind: input, shape index: {}]
  %s1 = inlined_call_operand.vmem [shape: bf16[32,64], index: 1, kind: input, shape index: {}]
  %s2 = inlined_call_operand.vmem [shape: f32[1,64], index: 2, kind: input, shape index: {}]
  %s3 = inlined_call_operand.vmem [shape: bf16[64,32], index: 3, kind: input, shape index: {}]
  %s4 = inlined_call_operand.vmem [shape: f32[1,32], index: 4, kind: input, shape index: {}]
  %s5 = inlined_call_operand.vmem [shape: f32[1,32], index: 5, kind: input, shape index: {}]
  %s6 = inlined_call_operand.vmem [shape: f32[1,32], index: 6, kind: input, shape index: {}]
  %s7 = inlined_call_operand.vmem [shape: f32[32,32], index: 7, kind: output, shape index: {}]
  %s8 = sld [smem:[#allocation0]]
  $region38: #{_lambda_.21} parent=0
    _
  %s10 = ssub.s32 1, %s8
  %s11 = scalar_select 0, %s10, %s8
  // Predicated region
  $region2: #{_lambda_.21} parent=0 // pred_check
    _
  $region3: #{_lambda_.21} parent=0 // pred_check_branch
    %13 = sbr.rel (0) target = $region5
  $region4: #{_lambda_.21} parent=0 // pred_region
    _
  $region5: #{_lambda_.21} parent=0 // pred_fallthru
    _
  // Predicated region
  $region6: #{_lambda_.21} parent=0 // pred_check
    _
  $region7: #{_lambda_.21} parent=0 // pred_check_branch
    %15 = sbr.rel (0) target = $region9
  $region8: #{_lambda_.21} parent=0 // pred_region
    _
  $region9: #{_lambda_.21} parent=0 // pred_fallthru
    _
  // Predicated region
  $region10: #{_lambda_.21} parent=0 // pred_check
    _
  $region11: #{_lambda_.21} parent=0 // pred_check_branch
    %17 = sbr.rel (0) target = $region13
  $region12: #{_lambda_.21} parent=0 // pred_region
    _
  $region13: #{_lambda_.21} parent=0 // pred_fallthru
    _
  // Predicated region
  $region14: #{_lambda_.21} parent=0 // pred_check
    _
  $region15: #{_lambda_.21} parent=0 // pred_check_branch
    %19 = sbr.rel (0) target = $region17
  $region16: #{_lambda_.21} parent=0 // pred_region
    _
  $region17: #{_lambda_.21} parent=0 // pred_fallthru
    _
  // Predicated region
  $region18: #{_lambda_.21} parent=0 // pred_check
    _
  $region19: #{_lambda_.21} parent=0 // pred_check_branch
    %21 = sbr.rel (0) target = $region21
  $region20: #{_lambda_.21} parent=0 // pred_region
    _
  $region21: #{_lambda_.21} parent=0 // pred_fallthru
    _
  // Predicated region
  $region22: #{_lambda_.21} parent=0 // pred_check
    _
  $region23: #{_lambda_.21} parent=0 // pred_check_branch
    %23 = sbr.rel (0) target = $region25
  $region24: #{_lambda_.21} parent=0 // pred_region
    _
  $region25: #{_lambda_.21} parent=0 // pred_fallthru
    _
  // Predicated region
  $region26: #{_lambda_.21} parent=0 // pred_check
    _
  $region27: #{_lambda_.21} parent=0 // pred_check_branch
    %25 = sbr.rel (0) target = $region29
  $region28: #{_lambda_.21} parent=0 // pred_region
    _
  $region29: #{_lambda_.21} parent=0 // pred_fallthru
    _
  %v27 = vld [vmem:[%s0] sm:$0xff]
  %v28 = vld [vmem:[%s0 + $0x8] sm:$0xff]
  %v29 = vld [vmem:[%s0 + $0x10] sm:$0xff]
  %v30 = vld [vmem:[%s0 + $0x18] sm:$0xff]
  %v31 = vpack.c.bf16 %v28, %v27
  %v32 = vpack.c.bf16 %v30, %v29
  %v33 = vld [vmem:[%s1] sm:$0xf]
  %v34 = vld [vmem:[%s1 + $0x4] sm:$0xf]
  %v35 = vld [vmem:[%s1 + $0x8] sm:$0xf]
  %v36 = vld [vmem:[%s1 + $0xc] sm:$0xf]
  %v37 = vld [vmem:[%s2] sm:$0x1]
  %v39 = vlaneseq
  %v40 = vshrl.u32 %v39, 7
  %v41 = vsub.s32 0, %v40
  %v42 = vrot.slane %v37, %v41
  %v48 = vunpack.c.l.b16 %v33
  %v49 = vunpack.c.l.b16 %v34
  %v50 = vunpack.c.l.b16 %v35
  %v51 = vunpack.c.l.b16 %v36
  %v52 = vpack.c.b16 %v49, %v48
  %v53 = vpack.c.b16 %v51, %v50
  %vm56 = vcmask 261120
  %v58 = vsel %vm56, %v31, 0
  %v61 = vsel %vm56, %v32, 0
  %63 = vmatprep.subr.bf16.mxu0 0
  %64 = vmatpush1.bf16.msra.mxu0 %v52
  %65 = vmatprep.subr.bf16.mxu0 0
  %66 = vmatpush1.bf16.msra.mxu0 %v53
  %67 = vmatprep.subr.bf16.mxu0 0
  %68 = vmatpush1.bf16.msra.mxu0 0
  %69 = vmatprep.subr.bf16.mxu0 0
  %70 = vmatpush1.bf16.msra.mxu0 0
  %71 = vmatprep.subr.bf16.mxu0 0
  %72 = vmatpush1.bf16.msra.mxu0 0
  %73 = vmatprep.subr.bf16.mxu0 0
  %74 = vmatpush1.bf16.msra.mxu0 0
  %75 = vmatprep.subr.bf16.mxu0 0
  %76 = vmatpush1.bf16.msra.mxu0 0
  %77 = vmatprep.subr.bf16.mxu0 0
  %78 = vmatpush1.bf16.msra.mxu0 0
  %79 = vmatprep.subr.bf16.mxu0 0
  %80 = vmatpush1.bf16.msra.mxu0 0
  %81 = vmatprep.subr.bf16.mxu0 0
  %82 = vmatpush1.bf16.msra.mxu0 0
  %83 = vmatprep.subr.bf16.mxu0 0
  %84 = vmatpush1.bf16.msra.mxu0 0
  %85 = vmatprep.subr.bf16.mxu0 0
  %86 = vmatpush1.bf16.msra.mxu0 0
  %87 = vmatprep.subr.bf16.mxu0 0
  %88 = vmatpush1.bf16.msra.mxu0 0
  %89 = vmatprep.subr.bf16.mxu0 0
  %90 = vmatpush1.bf16.msra.mxu0 0
  %91 = vmatprep.subr.bf16.mxu0 0
  %92 = vmatpush1.bf16.msra.mxu0 0
  %93 = vmatprep.subr.bf16.mxu0 0
  %94 = vmatpush1.bf16.msra.mxu0 0
  %95 = vmatprep.mubr.bf16.mxu0 0
  %96 = vmatmul.mubr.bf16.gmra.mrb[0].mxu0 %v58
  %v97 = vpop.f32.mrb[0].mxu0
  %v98 = vadd.f32 %v42, %v97
  %v99 = vpop.f32.mrb[0].mxu0
  %v100 = vpop.f32.mrb[0].mxu0
  %v101 = vadd.f32 %v42, %v100
  %v102 = vpop.f32.mrb[0].mxu0
  %103 = vmatprep.mubr.bf16.mxu0 0
  %104 = vmatmul.mubr.bf16.gmra.mrb[0].mxu0 %v61
  %v105 = vpop.f32.mrb[0].mxu0
  %v106 = vadd.f32 %v42, %v105
  %v107 = vpop.f32.mrb[0].mxu0
  %v108 = vpop.f32.mrb[0].mxu0
  %v109 = vadd.f32 %v42, %v108
  %v110 = vpop.f32.mrb[0].mxu0
  %111 = vdwg.mxu0
  %v112 = vmax.f32 %v98, 0.0
  %v113 = vmax.f32 %v101, 0.0
  %v114 = vmax.f32 %v106, 0.0
  %v115 = vmax.f32 %v109, 0.0
  %v116 = vpack.c.bf16 %v113, %v112
  %v117 = vpack.c.bf16 %v115, %v114
  %v118 = vld [vmem:[%s3] sm:$0xf]
  %v119 = vld [vmem:[%s3 + $0x4] sm:$0xf]
  %v120 = vld [vmem:[%s3 + $0x8] sm:$0xf]
  %v121 = vld [vmem:[%s3 + $0xc] sm:$0xf]
  %v122 = vld [vmem:[%s3 + $0x10] sm:$0xf]
  %v123 = vld [vmem:[%s3 + $0x14] sm:$0xf]
  %v124 = vld [vmem:[%s3 + $0x18] sm:$0xf]
  %v125 = vld [vmem:[%s3 + $0x1c] sm:$0xf]
  %v126 = vld [vmem:[%s4] sm:$0x1]
  %v128 = vlaneseq
  %v129 = vshrl.u32 %v128, 7
  %v130 = vsub.s32 0, %v129
  %v131 = vrot.slane %v126, %v130
  %v141 = vunpack.c.l.b16 %v118
  %v142 = vunpack.c.l.b16 %v119
  %v143 = vunpack.c.l.b16 %v120
  %v144 = vunpack.c.l.b16 %v121
  %v145 = vunpack.c.l.b16 %v122
  %v146 = vunpack.c.l.b16 %v123
  %v147 = vunpack.c.l.b16 %v124
  %v148 = vunpack.c.l.b16 %v125
  %v149 = vpack.c.b16 %v142, %v141
  %v150 = vpack.c.b16 %v144, %v143
  %v151 = vpack.c.b16 %v146, %v145
  %v152 = vpack.c.b16 %v148, %v147
  %vm157 = vcmask 523264
  %v159 = vsel %vm157, %v116, 0
  %v162 = vsel %vm157, %v117, 0
  %164 = vmatprep.subr.bf16.mxu0 0
  %165 = vmatpush1.bf16.msra.mxu0 %v149
  %166 = vmatprep.subr.bf16.mxu0 0
  %167 = vmatpush1.bf16.msra.mxu0 %v150
  %168 = vmatprep.subr.bf16.mxu0 0
  %169 = vmatpush1.bf16.msra.mxu0 %v151
  %170 = vmatprep.subr.bf16.mxu0 0
  %171 = vmatpush1.bf16.msra.mxu0 %v152
  %172 = vmatprep.subr.bf16.mxu0 0
  %173 = vmatpush1.bf16.msra.mxu0 0
  %174 = vmatprep.subr.bf16.mxu0 0
  %175 = vmatpush1.bf16.msra.mxu0 0
  %176 = vmatprep.subr.bf16.mxu0 0
  %177 = vmatpush1.bf16.msra.mxu0 0
  %178 = vmatprep.subr.bf16.mxu0 0
  %179 = vmatpush1.bf16.msra.mxu0 0
  %180 = vmatprep.subr.bf16.mxu0 0
  %181 = vmatpush1.bf16.msra.mxu0 0
  %182 = vmatprep.subr.bf16.mxu0 0
  %183 = vmatpush1.bf16.msra.mxu0 0
  %184 = vmatprep.subr.bf16.mxu0 0
  %185 = vmatpush1.bf16.msra.mxu0 0
  %186 = vmatprep.subr.bf16.mxu0 0
  %187 = vmatpush1.bf16.msra.mxu0 0
  %188 = vmatprep.subr.bf16.mxu0 0
  %189 = vmatpush1.bf16.msra.mxu0 0
  %190 = vmatprep.subr.bf16.mxu0 0
  %191 = vmatpush1.bf16.msra.mxu0 0
  %192 = vmatprep.subr.bf16.mxu0 0
  %193 = vmatpush1.bf16.msra.mxu0 0
  %194 = vmatprep.subr.bf16.mxu0 0
  %195 = vmatpush1.bf16.msra.mxu0 0
  %196 = vmatprep.mubr.bf16.mxu0 0
  %197 = vmatmul.mubr.bf16.gmra.mrb[0].mxu0 %v159
  %v198 = vpop.f32.mrb[0].mxu0
  %v199 = vadd.f32 %v131, %v198
  %v200 = vpop.f32.mrb[0].mxu0
  %v201 = vpop.f32.mrb[0].mxu0
  %v202 = vadd.f32 %v131, %v201
  %v203 = vpop.f32.mrb[0].mxu0
  %204 = vmatprep.mubr.bf16.mxu0 0
  %205 = vmatmul.mubr.bf16.gmra.mrb[0].mxu0 %v162
  %v206 = vpop.f32.mrb[0].mxu0
  %v207 = vadd.f32 %v131, %v206
  %v208 = vpop.f32.mrb[0].mxu0
  %v209 = vpop.f32.mrb[0].mxu0
  %v210 = vadd.f32 %v131, %v209
  %v211 = vpop.f32.mrb[0].mxu0
  %212 = vdwg.mxu0
  %v213 = vadd.f32 %v199, %v27
  %v214 = vadd.f32 %v202, %v28
  %v215 = vadd.f32 %v207, %v29
  %v216 = vadd.f32 %v210, %v30
  %v217 = vsel %vm56, %v213, 0.0
  %218 = vadd.xlane.f32.xlu0 %v217
  %v219 = vpop.xlane.xlu0 %218
  %v220 = vsel %vm56, %v214, 0.0
  %221 = vadd.xlane.f32.xlu0 %v220
  %v222 = vpop.xlane.xlu0 %221
  %v223 = vsel %vm56, %v215, 0.0
  %224 = vadd.xlane.f32.xlu0 %v223
  %v225 = vpop.xlane.xlu0 %224
  %v226 = vsel %vm56, %v216, 0.0
  %227 = vadd.xlane.f32.xlu0 %v226
  %v228 = vpop.xlane.xlu0 %227
  %v229 = vrcp.pop 32.0
  %v230 = vmul.f32 %v219, %v229
  %v231 = vmul.f32 %v222, %v229
  %v232 = vmul.f32 %v225, %v229
  %v233 = vmul.f32 %v228, %v229
  %v234 = vsub.f32 %v213, %v230
  %v235 = vsub.f32 %v214, %v231
  %v236 = vsub.f32 %v215, %v232
  %v237 = vsub.f32 %v216, %v233
  %v238 = vmul.f32 %v234, %v234
  %v239 = vmul.f32 %v235, %v235
  %v240 = vmul.f32 %v236, %v236
  %v241 = vmul.f32 %v237, %v237
  %v242 = vsel %vm56, %v238, 0.0
  %243 = vadd.xlane.f32.xlu0 %v242
  %v244 = vpop.xlane.xlu0 %243
  %v245 = vsel %vm56, %v239, 0.0
  %246 = vadd.xlane.f32.xlu0 %v245
  %v247 = vpop.xlane.xlu0 %246
  %v248 = vsel %vm56, %v240, 0.0
  %249 = vadd.xlane.f32.xlu0 %v248
  %v250 = vpop.xlane.xlu0 %249
  %v251 = vsel %vm56, %v241, 0.0
  %252 = vadd.xlane.f32.xlu0 %v251
  %v253 = vpop.xlane.xlu0 %252
  %v254 = vmul.f32 %v244, %v229
  %v255 = vmul.f32 %v247, %v229
  %v256 = vmul.f32 %v250, %v229
  %v257 = vmul.f32 %v253, %v229
  %v258 = vadd.f32 %v254, 1e-06
  %v259 = vadd.f32 %v255, 1e-06
  %v260 = vadd.f32 %v256, 1e-06
  %v261 = vadd.f32 %v257, 1e-06
  %v262 = vrsqrt.pop %v258
  %v263 = vrsqrt.pop %v259
  %v264 = vrsqrt.pop %v260
  %v265 = vrsqrt.pop %v261
  %v266 = vmul.f32 %v234, %v262
  %v267 = vmul.f32 %v235, %v263
  %v268 = vmul.f32 %v236, %v264
  %v269 = vmul.f32 %v237, %v265
  %v270 = vld [vmem:[%s5] sm:$0x1]
  %v272 = vlaneseq
  %v273 = vshrl.u32 %v272, 7
  %v274 = vsub.s32 0, %v273
  %v275 = vrot.slane %v270, %v274
  %v277 = vmul.f32 %v266, %v275
  %v278 = vmul.f32 %v267, %v275
  %v279 = vmul.f32 %v268, %v275
  %v280 = vmul.f32 %v269, %v275
  %v281 = vld [vmem:[%s6] sm:$0x1]
  %v283 = vlaneseq
  %v284 = vshrl.u32 %v283, 7
  %v285 = vsub.s32 0, %v284
  %v286 = vrot.slane %v281, %v285
  %v288 = vadd.f32 %v277, %v286
  %v289 = vadd.f32 %v278, %v286
  %v290 = vadd.f32 %v279, %v286
  %v291 = vadd.f32 %v280, %v286
  %292 = vst.msk [vmem:[%s7] sm:$0xff] %vm56, %v288
  %293 = vst.msk [vmem:[%s7 + $0x8] sm:$0xff] %vm56, %v289
  %294 = vst.msk [vmem:[%s7 + $0x10] sm:$0xff] %vm56, %v290
  %295 = vst.msk [vmem:[%s7 + $0x18] sm:$0xff] %vm56, %v291
  // Predicated region
  $region30: #{_lambda_.21} parent=0 // pred_check
    _
  $region31: #{_lambda_.21} parent=0 // pred_check_branch
    %297 = sbr.rel (0) target = $region33
  $region32: #{_lambda_.21} parent=0 // pred_region
    _
  $region33: #{_lambda_.21} parent=0 // pred_fallthru
    _
  // Predicated region
  $region34: #{_lambda_.21} parent=0 // pred_check
    _
  $region35: #{_lambda_.21} parent=0 // pred_check_branch
    %299 = sbr.rel (0) target = $region37
  $region36: #{_lambda_.21} parent=0 // pred_region
    _
  $region37: #{_lambda_.21} parent=0 // pred_fallthru
    _

// kernel: _lambda_.19
$region0: #{_lambda_.19}
  #allocation0 [shape = 'u32[]', space=smem, size = 0x4, offset = 0x4, fixed_abs, tag = 'smem constant byte address 0x4 - core index']
  #allocation1 [shape = 'u32[144,128]{1,0:T(1,128)}', space=vmem, size = 0x12000, scoped, tag = 'internal scratch']
  #allocation2 [shape = 's32[1]{0}', space=sflag, size = 0x4, scoped, tag = 'scoped memory for _lambda_.19']
  #allocation3 [shape = 'u8[512]{0}', space=smem, size = 0x200, scoped, tag = 'prefetched SMEM operand 0']
  %s0 = inlined_call_operand.vmem [shape: s32[2], index: 0, kind: input, shape index: {}]
  %s1 = inlined_call_operand.vmem [shape: f32[2,16,32], index: 1, kind: input, shape index: {}]
  %s2 = inlined_call_operand.vmem [shape: bf16[32,96], index: 2, kind: input, shape index: {}]
  %s3 = inlined_call_operand.vmem [shape: f32[1,96], index: 3, kind: input, shape index: {}]
  %s4 = inlined_call_operand.vmem [shape: bf16[2,16,32], index: 4, kind: output, shape index: {}]
  %s5 = sld [smem:[#allocation0]]
  $region45: #{_lambda_.19} parent=0
    _
  %s7 = ssub.s32 1, %s5
  %s8 = scalar_select 0, %s7, %s5
  %s9 = sshll.u32 %s0, 4
  %s10 = int_to_ptr.vmem [resolvable:$true] %s9
  %12 = dma.vmem_to_smem %s10, 16, [#allocation3], [#allocation2]
  %13 = dma.done [#allocation2], 16
  %14 = sfence
  loop: start=0, step=1, limit=4
  $region2: #{_lambda_.19} parent=0 // loop_pre_header
    _
  $region3: #{_lambda_.19} parent=0 // loop_header
    %s16 = sphi 0, %s20
    %p17 = scmp.ge.s32.totalorder %s16, 4
    %s26 = sphi 0, %s28
    %s29 = sphi 0, %s26
    %s30 = sphi 0, %s29
    %s46 = sphi 0, %s30
    %s50 = sphi 0, %s50
    %s52 = sphi 0, %s50
    %s53 = sphi 0, %s52
    %s67 = sphi 0, %s53
    %s71 = sphi 0, %s71
    %s73 = sphi 0, %s71
    %s74 = sphi 0, %s73
    %s88 = sphi 0, %s74
    %s94 = sphi 0, %s96
    %s97 = sphi 0, %s94
    %s98 = sphi 0, %s97
    %s114 = sphi 0, %s98
  $region4: #{_lambda_.19} parent=0 // loop_header_branch
    %19 = sbr.rel (%p17) target = $region8
  $region5: #{_lambda_.19} parent=0 // loop_body
    %s21 = ssub.s32 %s16, 1
    %s22 = ssub.s32 %s16, 2
    %s23 = sadd.s32 %s16, 1
    %s24 = ssub.s32 %s16, %s23
    %p25 = scmp.eq.s32.totalorder %s24, 0
    %s27 = sadd.s32 %s26, 1
    %s28 = scalar_select %p25, %s26, %s27
    %p31 = pneg %p25
    %p32 = scmp.eq.s32.totalorder %s16, 1
    %p33 = por %p31, %p32
    %p34 = scmp.ne.s32.totalorder %s26, %s29
    %p35 = scmp.eq.s32.totalorder %s16, 0
    %p36 = por %p34, %p35
    %p37 = scmp.ne.s32.totalorder %s26, %s29
    %p38 = scmp.eq.s32.totalorder %s21, 1
    %p39 = por %p37, %p38
    %p40 = scmp.ne.s32.totalorder %s29, %s30
    %p41 = scmp.eq.s32.totalorder %s21, 0
    %p42 = por %p40, %p41
    %p43 = scmp.ne.s32.totalorder %s29, %s30
    %p44 = scmp.eq.s32.totalorder %s22, 1
    %p45 = por %p43, %p44
    %p47 = scmp.ne.s32.totalorder %s30, %s46
    %p48 = scmp.eq.s32.totalorder %s22, 0
    %p49 = por %p47, %p48
    %s51 = sadd.s32 %s50, 1
    %p54 = scmp.eq.s32.totalorder %s16, 1
    %p55 = scmp.ne.s32.totalorder %s50, %s52
    %p56 = scmp.eq.s32.totalorder %s16, 0
    %p57 = por %p55, %p56
    %p58 = scmp.ne.s32.totalorder %s50, %s52
    %p59 = scmp.eq.s32.totalorder %s21, 1
    %p60 = por %p58, %p59
    %p61 = scmp.ne.s32.totalorder %s52, %s53
    %p62 = scmp.eq.s32.totalorder %s21, 0
    %p63 = por %p61, %p62
    %p64 = scmp.ne.s32.totalorder %s52, %s53
    %p65 = scmp.eq.s32.totalorder %s22, 1
    %p66 = por %p64, %p65
    %p68 = scmp.ne.s32.totalorder %s53, %s67
    %p69 = scmp.eq.s32.totalorder %s22, 0
    %p70 = por %p68, %p69
    %s72 = sadd.s32 %s71, 1
    %p75 = scmp.eq.s32.totalorder %s16, 1
    %p76 = scmp.ne.s32.totalorder %s71, %s73
    %p77 = scmp.eq.s32.totalorder %s16, 0
    %p78 = por %p76, %p77
    %p79 = scmp.ne.s32.totalorder %s71, %s73
    %p80 = scmp.eq.s32.totalorder %s21, 1
    %p81 = por %p79, %p80
    %p82 = scmp.ne.s32.totalorder %s73, %s74
    %p83 = scmp.eq.s32.totalorder %s21, 0
    %p84 = por %p82, %p83
    %p85 = scmp.ne.s32.totalorder %s73, %s74
    %p86 = scmp.eq.s32.totalorder %s22, 1
    %p87 = por %p85, %p86
    %p89 = scmp.ne.s32.totalorder %s74, %s88
    %p90 = scmp.eq.s32.totalorder %s22, 0
    %p91 = por %p89, %p90
    %s92 = ssub.s32 %s16, %s23
    %p93 = scmp.eq.s32.totalorder %s92, 0
    %s95 = sadd.s32 %s94, 1
    %s96 = scalar_select %p93, %s94, %s95
    %p99 = pneg %p93
    %p100 = scmp.eq.s32.totalorder %s16, 1
    %p101 = por %p99, %p100
    %p102 = scmp.ne.s32.totalorder %s94, %s97
    %p103 = scmp.eq.s32.totalorder %s16, 0
    %p104 = por %p102, %p103
    %p105 = scmp.ne.s32.totalorder %s94, %s97
    %p106 = scmp.eq.s32.totalorder %s21, 1
    %p107 = por %p105, %p106
    %p108 = scmp.ne.s32.totalorder %s97, %s98
    %p109 = scmp.eq.s32.totalorder %s21, 0
    %p110 = por %p108, %p109
    %p111 = scmp.ne.s32.totalorder %s97, %s98
    %p112 = scmp.eq.s32.totalorder %s22, 1
    %p113 = por %p111, %p112
    %p115 = scmp.ne.s32.totalorder %s98, %s114
    %p116 = scmp.eq.s32.totalorder %s22, 0
    %p117 = por %p115, %p116
    %p118 = scmp.le.s32.totalorder 1, %s16
    %p119 = scmp.lt.s32.totalorder %s16, 3
    %p120 = pnand %p118, %p119
    %p121 = pneg %p120
    // Predicated region
    $region9: #{_lambda_.19} parent=5 // pred_check
      _
    $region10: #{_lambda_.19} parent=5 // pred_check_branch
      %123 = sbr.rel (%p120) target = $region12
    $region11: #{_lambda_.19} parent=5 // pred_region
      %s124 = ssub.s32 %s16, 1
      // Predicated region
      $region13: #{_lambda_.19} parent=11 // pred_check
        %p125 = pneg %p63
      $region14: #{_lambda_.19} parent=11 // pred_check_branch
        %127 = sbr.rel (%p125) target = $region16
      $region15: #{_lambda_.19} parent=11 // pred_region
        _
      $region16: #{_lambda_.19} parent=11 // pred_fallthru
        _
      // Predicated region
      $region17: #{_lambda_.19} parent=11 // pred_check
        %p128 = pneg %p84
      $region18: #{_lambda_.19} parent=11 // pred_check_branch
        %130 = sbr.rel (%p128) target = $region20
      $region19: #{_lambda_.19} parent=11 // pred_region
        _
      $region20: #{_lambda_.19} parent=11 // pred_fallthru
        _
    $region12: #{_lambda_.19} parent=5 // pred_fallthru
      _
    %p131 = scmp.lt.s32.totalorder %s16, 2
    // Predicated region
    $region21: #{_lambda_.19} parent=5 // pred_check
      %p132 = pneg %p131
    $region22: #{_lambda_.19} parent=5 // pred_check_branch
      %134 = sbr.rel (%p132) target = $region24
    $region23: #{_lambda_.19} parent=5 // pred_region
      // Predicated region
      $region25: #{_lambda_.19} parent=23 // pred_check
        %p135 = pneg %p36
      $region26: #{_lambda_.19} parent=23 // pred_check_branch
        %137 = sbr.rel (%p135) target = $region28
      $region27: #{_lambda_.19} parent=23 // pred_region
        %p138 = scmp.lt.s32.totalorder %s16, 1
        %s139 = scalar_select %p138, %s16, 1
        %s140 = smul.addr %s139, 2
        %s141 = smul.addr %s140, 8
        %s142 = scalar_lea.vmem %s1, %s141
      $region28: #{_lambda_.19} parent=23 // pred_fallthru
        _
    $region24: #{_lambda_.19} parent=5 // pred_fallthru
      _
    %p143 = scmp.le.s32.totalorder 1, %s16
    %p144 = scmp.lt.s32.totalorder %s16, 3
    %p145 = pnand %p143, %p144
    %p146 = pneg %p145
    // Predicated region
    $region29: #{_lambda_.19} parent=5 // pred_check
      _
    $region30: #{_lambda_.19} parent=5 // pred_check_branch
      %148 = sbr.rel (%p145) target = $region32
    $region31: #{_lambda_.19} parent=5 // pred_region
      %s149 = ssub.s32 %s16, 1
      %p150 = scmp.lt.s32.totalorder %s21, 1
      %s151 = scalar_select %p150, %s21, 1
      %s152 = smul.addr %s151, 2
      %s153 = smul.addr %s152, 8
      %s154 = scalar_lea.vmem %s1, %s153
      %p155 = pneg %p42
      %p156 = pneg %p39
      %p157 = pneg %p63
      %p158 = pneg %p60
      %p159 = pneg %p84
      %p160 = pneg %p81
      %p161 = pneg %p110
      %p162 = pneg %p107
      %p163 = scmp.lt.s32.totalorder %s21, 1
      %s164 = scalar_select %p163, %s21, 1
      %s165 = smul.addr %s164, 2
      %s166 = smul.addr %s165, 4
      %s167 = scalar_lea.vmem %s4, %s166
      %p168 = scmp.lt.s32.totalorder %s21, 1
      %s169 = scalar_select %p168, %s21, 1
      %s170 = smul.addr %s169, 2
      %s171 = smul.addr %s170, 8
      %s172 = scalar_lea.vmem %s1, %s171
      %p173 = scmp.lt.s32.totalorder %s21, 1
      %s174 = scalar_select %p173, %s21, 1
      %s175 = smul.addr %s174, 2
      %s176 = smul.addr %s175, 4
      %s177 = scalar_lea.vmem %s4, %s176
      %v179 = vld [vmem:[%s172] sm:$0xff]
      %v180 = vld [vmem:[%s172 + $0x8] sm:$0xff]
      %v181 = vpack.c.bf16 %v180, %v179
      %v182 = vld [vmem:[%s2] sm:$0xf]
      %v183 = vld [vmem:[%s2 + $0x4] sm:$0xf]
      %v184 = vld [vmem:[%s2 + $0x8] sm:$0xf]
      %v185 = vld [vmem:[%s2 + $0xc] sm:$0xf]
      %v186 = vld [vmem:[%s3] sm:$0x1]
      %v188 = vlaneseq
      %v189 = vshrl.u32 %v188, 7
      %v190 = vsub.s32 0, %v189
      %v191 = vrot.slane %v186, %v190
      %v197 = vunpack.c.l.b16 %v182
      %v198 = vunpack.c.l.b16 %v183
      %v199 = vunpack.c.l.b16 %v184
      %v200 = vunpack.c.l.b16 %v185
      %v201 = vpack.c.b16 %v198, %v197
      %v202 = vpack.c.b16 %v200, %v199
      %vm205 = vcmask 261120
      %v207 = vsel %vm205, %v181, 0
      %209 = vmatprep.subr.bf16.mxu0 0
      %210 = vmatpush1.bf16.msra.mxu0 %v201
      %211 = vmatprep.subr.bf16.mxu0 0
      %212 = vmatpush1.bf16.msra.mxu0 %v202
      %213 = vmatprep.subr.bf16.mxu0 0
      %214 = vmatpush1.bf16.msra.mxu0 0
      %215 = vmatprep.subr.bf16.mxu0 0
      %216 = vmatpush1.bf16.msra.mxu0 0
      %217 = vmatprep.subr.bf16.mxu0 0
      %218 = vmatpush1.bf16.msra.mxu0 0
      %219 = vmatprep.subr.bf16.mxu0 0
      %220 = vmatpush1.bf16.msra.mxu0 0
      %221 = vmatprep.subr.bf16.mxu0 0
      %222 = vmatpush1.bf16.msra.mxu0 0
      %223 = vmatprep.subr.bf16.mxu0 0
      %224 = vmatpush1.bf16.msra.mxu0 0
      %225 = vmatprep.subr.bf16.mxu0 0
      %226 = vmatpush1.bf16.msra.mxu0 0
      %227 = vmatprep.subr.bf16.mxu0 0
      %228 = vmatpush1.bf16.msra.mxu0 0
      %229 = vmatprep.subr.bf16.mxu0 0
      %230 = vmatpush1.bf16.msra.mxu0 0
      %231 = vmatprep.subr.bf16.mxu0 0
      %232 = vmatpush1.bf16.msra.mxu0 0
      %233 = vmatprep.subr.bf16.mxu0 0
      %234 = vmatpush1.bf16.msra.mxu0 0
      %235 = vmatprep.subr.bf16.mxu0 0
      %236 = vmatpush1.bf16.msra.mxu0 0
      %237 = vmatprep.subr.bf16.mxu0 0
      %238 = vmatpush1.bf16.msra.mxu0 0
      %239 = vmatprep.subr.bf16.mxu0 0
      %240 = vmatpush1.bf16.msra.mxu0 0
      %241 = vmatprep.mubr.bf16.mxu0 0
      %242 = vmatmul.mubr.bf16.gmra.mrb[0].mxu0 %v207
      %v243 = vpop.f32.mrb[0].mxu0
      %v244 = vadd.f32 %v191, %v243
      %v245 = vpop.f32.mrb[0].mxu0
      %v246 = vpop.f32.mrb[0].mxu0
      %v247 = vadd.f32 %v191, %v246
      %v248 = vpop.f32.mrb[0].mxu0
      %249 = vdwg.mxu0
      %s250 = sld [smem:[#allocation3 + %s21]]
      %v251 = vlaneseq
      %v252 = vand.u32 %v251, 127
      %v253 = vstv %s250
      %vm254 = vcmp.lt.s32.totalorder %v252, %v253
      %v255 = vmul.f32 %v244, 0.35355338
      %v256 = vmul.f32 %v247, 0.35355338
      %v257 = vpack.c.bf16 %v256, %v255
      %v258 = vpack.c.bf16 %v247, %v244
      %260 = vrot.lane.b32.xlu0 %v258, 96
      %v261 = vpop.permute.xlu0 %260
      %vm262 = vcmask 64512
      %v264 = vsel %vm262, %v257, 0
      %v267 = vsel %vm262, %v261, 0
      %269 = vmatprep.subr.bf16.mxu0 0
      %270 = vmatpush1.bf16.xpose.msra.mxu0 %v267
      %271 = vmatprep.subr.bf16.mxu0 0
      %272 = vmatpush1.bf16.xpose.msra.mxu0 0
      %273 = vmatprep.subr.bf16.mxu0 0
      %274 = vmatpush1.bf16.xpose.msra.mxu0 0
      %275 = vmatprep.subr.bf16.mxu0 0
      %276 = vmatpush1.bf16.xpose.msra.mxu0 0
      %277 = vmatprep.subr.bf16.mxu0 0
      %278 = vmatpush1.bf16.xpose.msra.mxu0 0
      %279 = vmatprep.subr.bf16.mxu0 0
      %280 = vmatpush1.bf16.xpose.msra.mxu0 0
      %281 = vmatprep.subr.bf16.mxu0 0
      %282 = vmatpush1.bf16.xpose.msra.mxu0 0
      %283 = vmatprep.subr.bf16.mxu0 0
      %284 = vmatpush1.bf16.xpose.msra.mxu0 0
      %285 = vmatprep.subr.bf16.mxu0 0
      %286 = vmatpush1.bf16.xpose.msra.mxu0 0
      %287 = vmatprep.subr.bf16.mxu0 0
      %288 = vmatpush1.bf16.xpose.msra.mxu0 0
      %289 = vmatprep.subr.bf16.mxu0 0
      %290 = vmatpush1.bf16.xpose.msra.mxu0 0
      %291 = vmatprep.subr.bf16.mxu0 0
      %292 = vmatpush1.bf16.xpose.msra.mxu0 0
      %293 = vmatprep.subr.bf16.mxu0 0
      %294 = vmatpush1.bf16.xpose.msra.mxu0 0
      %295 = vmatprep.subr.bf16.mxu0 0
      %296 = vmatpush1.bf16.xpose.msra.mxu0 0
      %297 = vmatprep.subr.bf16.mxu0 0
      %298 = vmatpush1.bf16.xpose.msra.mxu0 0
      %299 = vmatprep.subr.bf16.mxu0 0
      %300 = vmatpush1.bf16.xpose.msra.mxu0 0
      %301 = vmatprep.mubr.bf16.mxu0 0
      %302 = vmatmul.mubr.bf16.gmra.mrb[0].mxu0 %v264
      %v303 = vpop.f32.mrb[0].mxu0
      %v304 = vadd.f32 0.0, %v303
      %v305 = vpop.f32.mrb[0].mxu0
      %v306 = vpop.f32.mrb[0].mxu0
      %v307 = vadd.f32 0.0, %v306
      %v308 = vpop.f32.mrb[0].mxu0
      %309 = vdwg.mxu0
      %v310 = vsel %vm254, %v304, -1e+09
      %v311 = vsel %vm254, %v307, -1e+09
      %vm312 = vcmask 130048
      %v313 = vsel %vm312, %v310, -inf
      %314 = vmax.xlane.f32.xlu0 %v313
      %v315 = vpop.xlane.xlu0 %314
      %v316 = vsel %vm312, %v311, -inf
      %317 = vmax.xlane.f32.xlu0 %v316
      %v318 = vpop.xlane.xlu0 %317
      %v319 = vsub.f32 %v310, %v315
      %v320 = vsub.f32 %v311, %v318
      %v321 = vmul.f32 %v319, 1.442695
      %v322 = vpow.pop %v321
      %v323 = vmul.f32 %v320, 1.442695
      %v324 = vpow.pop %v323
      %v325 = vsel %vm312, %v322, 0.0
      %326 = vadd.xlane.f32.xlu0 %v325
      %v327 = vpop.xlane.xlu0 %326
      %v328 = vsel %vm312, %v324, 0.0
      %329 = vadd.xlane.f32.xlu0 %v328
      %v330 = vpop.xlane.xlu0 %329
      %v331 = vrcp.pop %v327
      %v332 = vrcp.pop %v330
      %v333 = vmul.f32 %v322, %v331
      %v334 = vmul.f32 %v324, %v332
      %v335 = vpack.c.bf16 %v334, %v333
      %336 = vrot.lane.b32.xlu0 %v258, 64
      %v337 = vpop.permute.xlu0 %336
      %v340 = vsel %vm312, %v335, 0
      %342 = vmatprep.subr.bf16.mxu0 0
      %343 = vmatpush1.bf16.msra.mxu0 %v337
      %344 = vmatprep.subr.bf16.mxu0 0
      %345 = vmatpush1.bf16.msra.mxu0 0
      %346 = vmatprep.subr.bf16.mxu0 0
      %347 = vmatpush1.bf16.msra.mxu0 0
      %348 = vmatprep.subr.bf16.mxu0 0
      %349 = vmatpush1.bf16.msra.mxu0 0
      %350 = vmatprep.subr.bf16.mxu0 0
      %351 = vmatpush1.bf16.msra.mxu0 0
      %352 = vmatprep.subr.bf16.mxu0 0
      %353 = vmatpush1.bf16.msra.mxu0 0
      %354 = vmatprep.subr.bf16.mxu0 0
      %355 = vmatpush1.bf16.msra.mxu0 0
      %356 = vmatprep.subr.bf16.mxu0 0
      %357 = vmatpush1.bf16.msra.mxu0 0
      %358 = vmatprep.subr.bf16.mxu0 0
      %359 = vmatpush1.bf16.msra.mxu0 0
      %360 = vmatprep.subr.bf16.mxu0 0
      %361 = vmatpush1.bf16.msra.mxu0 0
      %362 = vmatprep.subr.bf16.mxu0 0
      %363 = vmatpush1.bf16.msra.mxu0 0
      %364 = vmatprep.subr.bf16.mxu0 0
      %365 = vmatpush1.bf16.msra.mxu0 0
      %366 = vmatprep.subr.bf16.mxu0 0
      %367 = vmatpush1.bf16.msra.mxu0 0
      %368 = vmatprep.subr.bf16.mxu0 0
      %369 = vmatpush1.bf16.msra.mxu0 0
      %370 = vmatprep.subr.bf16.mxu0 0
      %371 = vmatpush1.bf16.msra.mxu0 0
      %372 = vmatprep.subr.bf16.mxu0 0
      %373 = vmatpush1.bf16.msra.mxu0 0
      %374 = vmatprep.mubr.bf16.mxu0 0
      %375 = vmatmul.mubr.bf16.gmra.mrb[0].mxu0 %v340
      %v376 = vpop.f32.mrb[0].mxu0
      %v377 = vadd.f32 0.0, %v376
      %v378 = vpop.f32.mrb[0].mxu0
      %v379 = vpop.f32.mrb[0].mxu0
      %v380 = vadd.f32 0.0, %v379
      %v381 = vpop.f32.mrb[0].mxu0
      %382 = vdwg.mxu0
      %384 = vrot.lane.b32.xlu0 %v257, 120
      %v385 = vpop.permute.xlu0 %384
      %386 = vrot.lane.b32.xlu0 %v258, 88
      %v387 = vpop.permute.xlu0 %386
      %v389 = vsel %vm262, %v385, 0
      %v392 = vsel %vm262, %v387, 0
      %394 = vmatprep.subr.bf16.mxu0 0
      %395 = vmatpush1.bf16.xpose.msra.mxu0 %v392
      %396 = vmatprep.subr.bf16.mxu0 0
      %397 = vmatpush1.bf16.xpose.msra.mxu0 0
      %398 = vmatprep.subr.bf16.mxu0 0
      %399 = vmatpush1.bf16.xpose.msra.mxu0 0
      %400 = vmatprep.subr.bf16.mxu0 0
      %401 = vmatpush1.bf16.xpose.msra.mxu0 0
      %402 = vmatprep.subr.bf16.mxu0 0
      %403 = vmatpush1.bf16.xpose.msra.mxu0 0
      %404 = vmatprep.subr.bf16.mxu0 0
      %405 = vmatpush1.bf16.xpose.msra.mxu0 0
      %406 = vmatprep.subr.bf16.mxu0 0
      %407 = vmatpush1.bf16.xpose.msra.mxu0 0
      %408 = vmatprep.subr.bf16.mxu0 0
      %409 = vmatpush1.bf16.xpose.msra.mxu0 0
      %410 = vmatprep.subr.bf16.mxu0 0
      %411 = vmatpush1.bf16.xpose.msra.mxu0 0
      %412 = vmatprep.subr.bf16.mxu0 0
      %413 = vmatpush1.bf16.xpose.msra.mxu0 0
      %414 = vmatprep.subr.bf16.mxu0 0
      %415 = vmatpush1.bf16.xpose.msra.mxu0 0
      %416 = vmatprep.subr.bf16.mxu0 0
      %417 = vmatpush1.bf16.xpose.msra.mxu0 0
      %418 = vmatprep.subr.bf16.mxu0 0
      %419 = vmatpush1.bf16.xpose.msra.mxu0 0
      %420 = vmatprep.subr.bf16.mxu0 0
      %421 = vmatpush1.bf16.xpose.msra.mxu0 0
      %422 = vmatprep.subr.bf16.mxu0 0
      %423 = vmatpush1.bf16.xpose.msra.mxu0 0
      %424 = vmatprep.subr.bf16.mxu0 0
      %425 = vmatpush1.bf16.xpose.msra.mxu0 0
      %426 = vmatprep.mubr.bf16.mxu0 0
      %427 = vmatmul.mubr.bf16.gmra.mrb[0].mxu0 %v389
      %v428 = vpop.f32.mrb[0].mxu0
      %v429 = vadd.f32 0.0, %v428
      %v430 = vpop.f32.mrb[0].mxu0
      %v431 = vpop.f32.mrb[0].mxu0
      %v432 = vadd.f32 0.0, %v431
      %v433 = vpop.f32.mrb[0].mxu0
      %434 = vdwg.mxu0
      %v435 = vsel %vm254, %v429, -1e+09
      %v436 = vsel %vm254, %v432, -1e+09
      %v437 = vsel %vm312, %v435, -inf
      %438 = vmax.xlane.f32.xlu0 %v437
      %v439 = vpop.xlane.xlu0 %438
      %v440 = vsel %vm312, %v436, -inf
      %441 = vmax.xlane.f32.xlu0 %v440
      %v442 = vpop.xlane.xlu0 %441
      %v443 = vsub.f32 %v435, %v439
      %v444 = vsub.f32 %v436, %v442
      %v445 = vmul.f32 %v443, 1.442695
      %v446 = vpow.pop %v445
      %v447 = vmul.f32 %v444, 1.442695
      %v448 = vpow.pop %v447
      %v449 = vsel %vm312, %v446, 0.0
      %450 = vadd.xlane.f32.xlu0 %v449
      %v451 = vpop.xlane.xlu0 %450
      %v452 = vsel %vm312, %v448, 0.0
      %453 = vadd.xlane.f32.xlu0 %v452
      %v454 = vpop.xlane.xlu0 %453
      %v455 = vrcp.pop %v451
      %v456 = vrcp.pop %v454
      %v457 = vmul.f32 %v446, %v455
      %v458 = vmul.f32 %v448, %v456
      %v459 = vpack.c.bf16 %v458, %v457
      %460 = vrot.lane.b32.xlu0 %v258, 56
      %v461 = vpop.permute.xlu0 %460
      %v464 = vsel %vm312, %v459, 0
      %466 = vmatprep.subr.bf16.mxu0 0
      %467 = vmatpush1.bf16.msra.mxu0 %v461
      %468 = vmatprep.subr.bf16.mxu0 0
      %469 = vmatpush1.bf16.msra.mxu0 0
      %470 = vmatprep.subr.bf16.mxu0 0
      %471 = vmatpush1.bf16.msra.mxu0 0
      %472 = vmatprep.subr.bf16.mxu0 0
      %473 = vmatpush1.bf16.msra.mxu0 0
      %474 = vmatprep.subr.bf16.mxu0 0
      %475 = vmatpush1.bf16.msra.mxu0 0
      %476 = vmatprep.subr.bf16.mxu0 0
      %477 = vmatpush1.bf16.msra.mxu0 0
      %478 = vmatprep.subr.bf16.mxu0 0
      %479 = vmatpush1.bf16.msra.mxu0 0
      %480 = vmatprep.subr.bf16.mxu0 0
      %481 = vmatpush1.bf16.msra.mxu0 0
      %482 = vmatprep.subr.bf16.mxu0 0
      %483 = vmatpush1.bf16.msra.mxu0 0
      %484 = vmatprep.subr.bf16.mxu0 0
      %485 = vmatpush1.bf16.msra.mxu0 0
      %486 = vmatprep.subr.bf16.mxu0 0
      %487 = vmatpush1.bf16.msra.mxu0 0
      %488 = vmatprep.subr.bf16.mxu0 0
      %489 = vmatpush1.bf16.msra.mxu0 0
      %490 = vmatprep.subr.bf16.mxu0 0
      %491 = vmatpush1.bf16.msra.mxu0 0
      %492 = vmatprep.subr.bf16.mxu0 0
      %493 = vmatpush1.bf16.msra.mxu0 0
      %494 = vmatprep.subr.bf16.mxu0 0
      %495 = vmatpush1.bf16.msra.mxu0 0
      %496 = vmatprep.subr.bf16.mxu0 0
      %497 = vmatpush1.bf16.msra.mxu0 0
      %498 = vmatprep.mubr.bf16.mxu0 0
      %499 = vmatmul.mubr.bf16.gmra.mrb[0].mxu0 %v464
      %v500 = vpop.f32.mrb[0].mxu0
      %v501 = vadd.f32 0.0, %v500
      %v502 = vpop.f32.mrb[0].mxu0
      %v503 = vpop.f32.mrb[0].mxu0
      %v504 = vadd.f32 0.0, %v503
      %v505 = vpop.f32.mrb[0].mxu0
      %506 = vdwg.mxu0
      %507 = vrot.lane.b32.xlu0 %v257, 112
      %v508 = vpop.permute.xlu0 %507
      %509 = vrot.lane.b32.xlu0 %v258, 80
      %v510 = vpop.permute.xlu0 %509
      %v512 = vsel %vm262, %v508, 0
      %v515 = vsel %vm262, %v510, 0
      %517 = vmatprep.subr.bf16.mxu0 0
      %518 = vmatpush1.bf16.xpose.msra.mxu0 %v515
      %519 = vmatprep.subr.bf16.mxu0 0
      %520 = vmatpush1.bf16.xpose.msra.mxu0 0
      %521 = vmatprep.subr.bf16.mxu0 0
      %522 = vmatpush1.bf16.xpose.msra.mxu0 0
      %523 = vmatprep.subr.bf16.mxu0 0
      %524 = vmatpush1.bf16.xpose.msra.mxu0 0
      %525 = vmatprep.subr.bf16.mxu0 0
      %526 = vmatpush1.bf16.xpose.msra.mxu0 0
      %527 = vmatprep.subr.bf16.mxu0 0
      %528 = vmatpush1.bf16.xpose.msra.mxu0 0
      %529 = vmatprep.subr.bf16.mxu0 0
      %530 = vmatpush1.bf16.xpose.msra.mxu0 0
      %531 = vmatprep.subr.bf16.mxu0 0
      %532 = vmatpush1.bf16.xpose.msra.mxu0 0
      %533 = vmatprep.subr.bf16.mxu0 0
      %534 = vmatpush1.bf16.xpose.msra.mxu0 0
      %535 = vmatprep.subr.bf16.mxu0 0
      %536 = vmatpush1.bf16.xpose.msra.mxu0 0
      %537 = vmatprep.subr.bf16.mxu0 0
      %538 = vmatpush1.bf16.xpose.msra.mxu0 0
      %539 = vmatprep.subr.bf16.mxu0 0
      %540 = vmatpush1.bf16.xpose.msra.mxu0 0
      %541 = vmatprep.subr.bf16.mxu0 0
      %542 = vmatpush1.bf16.xpose.msra.mxu0 0
      %543 = vmatprep.subr.bf16.mxu0 0
      %544 = vmatpush1.bf16.xpose.msra.mxu0 0
      %545 = vmatprep.subr.bf16.mxu0 0
      %546 = vmatpush1.bf16.xpose.msra.mxu0 0
      %547 = vmatprep.subr.bf16.mxu0 0
      %548 = vmatpush1.bf16.xpose.msra.mxu0 0
      %549 = vmatprep.mubr.bf16.mxu0 0
      %550 = vmatmul.mubr.bf16.gmra.mrb[0].mxu0 %v512
      %v551 = vpop.f32.mrb[0].mxu0
      %v552 = vadd.f32 0.0, %v551
      %v553 = vpop.f32.mrb[0].mxu0
      %v554 = vpop.f32.mrb[0].mxu0
      %v555 = vadd.f32 0.0, %v554
      %v556 = vpop.f32.mrb[0].mxu0
      %557 = vdwg.mxu0
      %v558 = vsel %vm254, %v552, -1e+09
      %v559 = vsel %vm254, %v555, -1e+09
      %v560 = vsel %vm312, %v558, -inf
      %561 = vmax.xlane.f32.xlu0 %v560
      %v562 = vpop.xlane.xlu0 %561
      %v563 = vsel %vm312, %v559, -inf
      %564 = vmax.xlane.f32.xlu0 %v563
      %v565 = vpop.xlane.xlu0 %564
      %v566 = vsub.f32 %v558, %v562
      %v567 = vsub.f32 %v559, %v565
      %v568 = vmul.f32 %v566, 1.442695
      %v569 = vpow.pop %v568
      %v570 = vmul.f32 %v567, 1.442695
      %v571 = vpow.pop %v570
      %v572 = vsel %vm312, %v569, 0.0
      %573 = vadd.xlane.f32.xlu0 %v572
      %v574 = vpop.xlane.xlu0 %573
      %v575 = vsel %vm312, %v571, 0.0
      %576 = vadd.xlane.f32.xlu0 %v575
      %v577 = vpop.xlane.xlu0 %576
      %v578 = vrcp.pop %v574
      %v579 = vrcp.pop %v577
      %v580 = vmul.f32 %v569, %v578
      %v581 = vmul.f32 %v571, %v579
      %v582 = vpack.c.bf16 %v581, %v580
      %583 = vrot.lane.b32.xlu0 %v258, 48
      %v584 = vpop.permute.xlu0 %583
      %v587 = vsel %vm312, %v582, 0
      %589 = vmatprep.subr.bf16.mxu0 0
      %590 = vmatpush1.bf16.msra.mxu0 %v584
      %591 = vmatprep.subr.bf16.mxu0 0
      %592 = vmatpush1.bf16.msra.mxu0 0
      %593 = vmatprep.subr.bf16.mxu0 0
      %594 = vmatpush1.bf16.msra.mxu0 0
      %595 = vmatprep.subr.bf16.mxu0 0
      %596 = vmatpush1.bf16.msra.mxu0 0
      %597 = vmatprep.subr.bf16.mxu0 0
      %598 = vmatpush1.bf16.msra.mxu0 0
      %599 = vmatprep.subr.bf16.mxu0 0
      %600 = vmatpush1.bf16.msra.mxu0 0
      %601 = vmatprep.subr.bf16.mxu0 0
      %602 = vmatpush1.bf16.msra.mxu0 0
      %603 = vmatprep.subr.bf16.mxu0 0
      %604 = vmatpush1.bf16.msra.mxu0 0
      %605 = vmatprep.subr.bf16.mxu0 0
      %606 = vmatpush1.bf16.msra.mxu0 0
      %607 = vmatprep.subr.bf16.mxu0 0
      %608 = vmatpush1.bf16.msra.mxu0 0
      %609 = vmatprep.subr.bf16.mxu0 0
      %610 = vmatpush1.bf16.msra.mxu0 0
      %611 = vmatprep.subr.bf16.mxu0 0
      %612 = vmatpush1.bf16.msra.mxu0 0
      %613 = vmatprep.subr.bf16.mxu0 0
      %614 = vmatpush1.bf16.msra.mxu0 0
      %615 = vmatprep.subr.bf16.mxu0 0
      %616 = vmatpush1.bf16.msra.mxu0 0
      %617 = vmatprep.subr.bf16.mxu0 0
      %618 = vmatpush1.bf16.msra.mxu0 0
      %619 = vmatprep.subr.bf16.mxu0 0
      %620 = vmatpush1.bf16.msra.mxu0 0
      %621 = vmatprep.mubr.bf16.mxu0 0
      %622 = vmatmul.mubr.bf16.gmra.mrb[0].mxu0 %v587
      %v623 = vpop.f32.mrb[0].mxu0
      %v624 = vadd.f32 0.0, %v623
      %v625 = vpop.f32.mrb[0].mxu0
      %v626 = vpop.f32.mrb[0].mxu0
      %v627 = vadd.f32 0.0, %v626
      %v628 = vpop.f32.mrb[0].mxu0
      %629 = vdwg.mxu0
      %630 = vrot.lane.b32.xlu0 %v257, 104
      %v631 = vpop.permute.xlu0 %630
      %632 = vrot.lane.b32.xlu0 %v258, 72
      %v633 = vpop.permute.xlu0 %632
      %v635 = vsel %vm262, %v631, 0
      %v638 = vsel %vm262, %v633, 0
      %640 = vmatprep.subr.bf16.mxu0 0
      %641 = vmatpush1.bf16.xpose.msra.mxu0 %v638
      %642 = vmatprep.subr.bf16.mxu0 0
      %643 = vmatpush1.bf16.xpose.msra.mxu0 0
      %644 = vmatprep.subr.bf16.mxu0 0
      %645 = vmatpush1.bf16.xpose.msra.mxu0 0
      %646 = vmatprep.subr.bf16.mxu0 0
      %647 = vmatpush1.bf16.xpose.msra.mxu0 0
      %648 = vmatprep.subr.bf16.mxu0 0
      %649 = vmatpush1.bf16.xpose.msra.mxu0 0
      %650 = vmatprep.subr.bf16.mxu0 0
      %651 = vmatpush1.bf16.xpose.msra.mxu0 0
      %652 = vmatprep.subr.bf16.mxu0 0
      %653 = vmatpush1.bf16.xpose.msra.mxu0 0
      %654 = vmatprep.subr.bf16.mxu0 0
      %655 = vmatpush1.bf16.xpose.msra.mxu0 0
      %656 = vmatprep.subr.bf16.mxu0 0
      %657 = vmatpush1.bf16.xpose.msra.mxu0 0
      %658 = vmatprep.subr.bf16.mxu0 0
      %659 = vmatpush1.bf16.xpose.msra.mxu0 0
      %660 = vmatprep.subr.bf16.mxu0 0
      %661 = vmatpush1.bf16.xpose.msra.mxu0 0
      %662 = vmatprep.subr.bf16.mxu0 0
      %663 = vmatpush1.bf16.xpose.msra.mxu0 0
      %664 = vmatprep.subr.bf16.mxu0 0
      %665 = vmatpush1.bf16.xpose.msra.mxu0 0
      %666 = vmatprep.subr.bf16.mxu0 0
      %667 = vmatpush1.bf16.xpose.msra.mxu0 0
      %668 = vmatprep.subr.bf16.mxu0 0
      %669 = vmatpush1.bf16.xpose.msra.mxu0 0
      %670 = vmatprep.subr.bf16.mxu0 0
      %671 = vmatpush1.bf16.xpose.msra.mxu0 0
      %672 = vmatprep.mubr.bf16.mxu0 0
      %673 = vmatmul.mubr.bf16.gmra.mrb[0].mxu0 %v635
      %v674 = vpop.f32.mrb[0].mxu0
      %v675 = vadd.f32 0.0, %v674
      %v676 = vpop.f32.mrb[0].mxu0
      %v677 = vpop.f32.mrb[0].mxu0
      %v678 = vadd.f32 0.0, %v677
      %v679 = vpop.f32.mrb[0].mxu0
      %680 = vdwg.mxu0
      %v681 = vsel %vm254, %v675, -1e+09
      %v682 = vsel %vm254, %v678, -1e+09
      %v683 = vsel %vm312, %v681, -inf
      %684 = vmax.xlane.f32.xlu0 %v683
      %v685 = vpop.xlane.xlu0 %684
      %v686 = vsel %vm312, %v682, -inf
      %687 = vmax.xlane.f32.xlu0 %v686
      %v688 = vpop.xlane.xlu0 %687
      %v689 = vsub.f32 %v681, %v685
      %v690 = vsub.f32 %v682, %v688
      %v691 = vmul.f32 %v689, 1.442695
      %v692 = vpow.pop %v691
      %v693 = vmul.f32 %v690, 1.442695
      %v694 = vpow.pop %v693
      %v695 = vsel %vm312, %v692, 0.0
      %696 = vadd.xlane.f32.xlu0 %v695
      %v697 = vpop.xlane.xlu0 %696
      %v698 = vsel %vm312, %v694, 0.0
      %699 = vadd.xlane.f32.xlu0 %v698
      %v700 = vpop.xlane.xlu0 %699
      %v701 = vrcp.pop %v697
      %v702 = vrcp.pop %v700
      %v703 = vmul.f32 %v692, %v701
      %v704 = vmul.f32 %v694, %v702
      %v705 = vpack.c.bf16 %v704, %v703
      %706 = vrot.lane.b32.xlu0 %v258, 40
      %v707 = vpop.permute.xlu0 %706
      %v710 = vsel %vm312, %v705, 0
      %712 = vmatprep.subr.bf16.mxu0 0
      %713 = vmatpush1.bf16.msra.mxu0 %v707
      %714 = vmatprep.subr.bf16.mxu0 0
      %715 = vmatpush1.bf16.msra.mxu0 0
      %716 = vmatprep.subr.bf16.mxu0 0
      %717 = vmatpush1.bf16.msra.mxu0 0
      %718 = vmatprep.subr.bf16.mxu0 0
      %719 = vmatpush1.bf16.msra.mxu0 0
      %720 = vmatprep.subr.bf16.mxu0 0
      %721 = vmatpush1.bf16.msra.mxu0 0
      %722 = vmatprep.subr.bf16.mxu0 0
      %723 = vmatpush1.bf16.msra.mxu0 0
      %724 = vmatprep.subr.bf16.mxu0 0
      %725 = vmatpush1.bf16.msra.mxu0 0
      %726 = vmatprep.subr.bf16.mxu0 0
      %727 = vmatpush1.bf16.msra.mxu0 0
      %728 = vmatprep.subr.bf16.mxu0 0
      %729 = vmatpush1.bf16.msra.mxu0 0
      %730 = vmatprep.subr.bf16.mxu0 0
      %731 = vmatpush1.bf16.msra.mxu0 0
      %732 = vmatprep.subr.bf16.mxu0 0
      %733 = vmatpush1.bf16.msra.mxu0 0
      %734 = vmatprep.subr.bf16.mxu0 0
      %735 = vmatpush1.bf16.msra.mxu0 0
      %736 = vmatprep.subr.bf16.mxu0 0
      %737 = vmatpush1.bf16.msra.mxu0 0
      %738 = vmatprep.subr.bf16.mxu0 0
      %739 = vmatpush1.bf16.msra.mxu0 0
      %740 = vmatprep.subr.bf16.mxu0 0
      %741 = vmatpush1.bf16.msra.mxu0 0
      %742 = vmatprep.subr.bf16.mxu0 0
      %743 = vmatpush1.bf16.msra.mxu0 0
      %744 = vmatprep.mubr.bf16.mxu0 0
      %745 = vmatmul.mubr.bf16.gmra.mrb[0].mxu0 %v710
      %v746 = vpop.f32.mrb[0].mxu0
      %v747 = vadd.f32 0.0, %v746
      %v748 = vpop.f32.mrb[0].mxu0
      %v749 = vpop.f32.mrb[0].mxu0
      %v750 = vadd.f32 0.0, %v749
      %v751 = vpop.f32.mrb[0].mxu0
      %752 = vdwg.mxu0
      %755 = vrot.lane.b32.xlu0 %v501, 8
      %v756 = vpop.permute.xlu0 %755
      %757 = vrot.lane.b32.xlu0 %v504, 8
      %v758 = vpop.permute.xlu0 %757
      %763 = vrot.lane.b32.xlu0 %v624, 16
      %v764 = vpop.permute.xlu0 %763
      %765 = vrot.lane.b32.xlu0 %v627, 16
      %v766 = vpop.permute.xlu0 %765
      %771 = vrot.lane.b32.xlu0 %v747, 24
      %v772 = vpop.permute.xlu0 %771
      %773 = vrot.lane.b32.xlu0 %v750, 24
      %v774 = vpop.permute.xlu0 %773
      %v777 = vsel %vm262, %v377, %v756
      %v778 = vsel %vm262, %v380, %v758
      %v779 = vsel %vm312, %v777, %v764
      %v780 = vsel %vm312, %v778, %v766
      %vm781 = vcmask 195584
      %v782 = vsel %vm781, %v779, %v772
      %v783 = vsel %vm781, %v780, %v774
      %v784 = vpack.c.bf16 %v783, %v782
      %v786 = vunpack.c.l.b16 %v784
      %v787 = vunpack.c.h.b16 %v784
      %v788 = vpack.c.b16 %v786, %v786
      %v789 = vpack.c.b16 %v787, %v787
      %vm792 = vcmask 257024
      %793 = vst.msk [vmem:[%s177] sm:$0xf] %vm792, %v788
      %794 = vst.msk [vmem:[%s177 + $0x4] sm:$0xf] %vm792, %v789
      %p795 = scmp.lt.s32.totalorder %s21, 1
      %s796 = scalar_select %p795, %s21, 1
      %s797 = smul.addr %s796, 2
      %s798 = smul.addr %s797, 4
      %s799 = scalar_lea.vmem %s4, %s798
      // Predicated region
      $region33: #{_lambda_.19} parent=31 // pred_check
        %p800 = pneg %p107
      $region34: #{_lambda_.19} parent=31 // pred_check_branch
        %802 = sbr.rel (%p800) target = $region36
      $region35: #{_lambda_.19} parent=31 // pred_region
        _
      $region36: #{_lambda_.19} parent=31 // pred_fallthru
        _
    $region32: #{_lambda_.19} parent=5 // pred_fallthru
      _
    %p803 = scmp.le.s32.totalorder 2, %s16
    // Predicated region
    $region37: #{_lambda_.19} parent=5 // pred_check
      %p804 = pneg %p803
    $region38: #{_lambda_.19} parent=5 // pred_check_branch
      %806 = sbr.rel (%p804) target = $region40
    $region39: #{_lambda_.19} parent=5 // pred_region
      %s807 = ssub.s32 %s16, 2
      // Predicated region
      $region41: #{_lambda_.19} parent=39 // pred_check
        %p808 = pneg %p113
      $region42: #{_lambda_.19} parent=39 // pred_check_branch
        %810 = sbr.rel (%p808) target = $region44
      $region43: #{_lambda_.19} parent=39 // pred_region
        %p811 = scmp.lt.s32.totalorder %s22, 1
        %s812 = scalar_select %p811, %s22, 1
        %s813 = smul.addr %s812, 2
        %s814 = smul.addr %s813, 4
        %s815 = scalar_lea.vmem %s4, %s814
      $region44: #{_lambda_.19} parent=39 // pred_fallthru
        _
    $region40: #{_lambda_.19} parent=5 // pred_fallthru
      _
  $region6: #{_lambda_.19} parent=0 // loop_footer
    %s20 = sadd.s32 1, %s16
  $region7: #{_lambda_.19} parent=0 // loop_footer_branch
    %15 = sbr.rel target = $region3
  $region8: #{_lambda_.19} parent=0 // loop_exit
    _

// kernel: _lambda_.23
$region0: #{_lambda_.23}
  #allocation0 [shape = 'u32[]', space=smem, size = 0x4, offset = 0x4, fixed_abs, tag = 'smem constant byte address 0x4 - core index']
  #allocation1 [shape = 'u32[144,128]{1,0:T(1,128)}', space=vmem, size = 0x12000, scoped, tag = 'internal scratch']
  #allocation2 [shape = 's32[1]{0}', space=sflag, size = 0x4, scoped, tag = 'scoped memory for _lambda_.23']
  #allocation3 [shape = 'u8[512]{0}', space=smem, size = 0x200, scoped, tag = 'prefetched SMEM operand 0']
  %s0 = inlined_call_operand.vmem [shape: s32[2], index: 0, kind: input, shape index: {}]
  %s1 = inlined_call_operand.vmem [shape: f32[2,8,32], index: 1, kind: input, shape index: {}]
  %s2 = inlined_call_operand.vmem [shape: bf16[32,96], index: 2, kind: input, shape index: {}]
  %s3 = inlined_call_operand.vmem [shape: f32[1,96], index: 3, kind: input, shape index: {}]
  %s4 = inlined_call_operand.vmem [shape: bf16[2,8,32], index: 4, kind: output, shape index: {}]
  %s5 = sld [smem:[#allocation0]]
  $region45: #{_lambda_.23} parent=0
    _
  %s7 = ssub.s32 1, %s5
  %s8 = scalar_select 0, %s7, %s5
  %s9 = sshll.u32 %s0, 4
  %s10 = int_to_ptr.vmem [resolvable:$true] %s9
  %12 = dma.vmem_to_smem %s10, 16, [#allocation3], [#allocation2]
  %13 = dma.done [#allocation2], 16
  %14 = sfence
  loop: start=0, step=1, limit=4
  $region2: #{_lambda_.23} parent=0 // loop_pre_header
    _
  $region3: #{_lambda_.23} parent=0 // loop_header
    %s16 = sphi 0, %s20
    %p17 = scmp.ge.s32.totalorder %s16, 4
    %s26 = sphi 0, %s28
    %s29 = sphi 0, %s26
    %s30 = sphi 0, %s29
    %s46 = sphi 0, %s30
    %s50 = sphi 0, %s50
    %s52 = sphi 0, %s50
    %s53 = sphi 0, %s52
    %s67 = sphi 0, %s53
    %s71 = sphi 0, %s71
    %s73 = sphi 0, %s71
    %s74 = sphi 0, %s73
    %s88 = sphi 0, %s74
    %s94 = sphi 0, %s96
    %s97 = sphi 0, %s94
    %s98 = sphi 0, %s97
    %s114 = sphi 0, %s98
  $region4: #{_lambda_.23} parent=0 // loop_header_branch
    %19 = sbr.rel (%p17) target = $region8
  $region5: #{_lambda_.23} parent=0 // loop_body
    %s21 = ssub.s32 %s16, 1
    %s22 = ssub.s32 %s16, 2
    %s23 = sadd.s32 %s16, 1
    %s24 = ssub.s32 %s16, %s23
    %p25 = scmp.eq.s32.totalorder %s24, 0
    %s27 = sadd.s32 %s26, 1
    %s28 = scalar_select %p25, %s26, %s27
    %p31 = pneg %p25
    %p32 = scmp.eq.s32.totalorder %s16, 1
    %p33 = por %p31, %p32
    %p34 = scmp.ne.s32.totalorder %s26, %s29
    %p35 = scmp.eq.s32.totalorder %s16, 0
    %p36 = por %p34, %p35
    %p37 = scmp.ne.s32.totalorder %s26, %s29
    %p38 = scmp.eq.s32.totalorder %s21, 1
    %p39 = por %p37, %p38
    %p40 = scmp.ne.s32.totalorder %s29, %s30
    %p41 = scmp.eq.s32.totalorder %s21, 0
    %p42 = por %p40, %p41
    %p43 = scmp.ne.s32.totalorder %s29, %s30
    %p44 = scmp.eq.s32.totalorder %s22, 1
    %p45 = por %p43, %p44
    %p47 = scmp.ne.s32.totalorder %s30, %s46
    %p48 = scmp.eq.s32.totalorder %s22, 0
    %p49 = por %p47, %p48
    %s51 = sadd.s32 %s50, 1
    %p54 = scmp.eq.s32.totalorder %s16, 1
    %p55 = scmp.ne.s32.totalorder %s50, %s52
    %p56 = scmp.eq.s32.totalorder %s16, 0
    %p57 = por %p55, %p56
    %p58 = scmp.ne.s32.totalorder %s50, %s52
    %p59 = scmp.eq.s32.totalorder %s21, 1
    %p60 = por %p58, %p59
    %p61 = scmp.ne.s32.totalorder %s52, %s53
    %p62 = scmp.eq.s32.totalorder %s21, 0
    %p63 = por %p61, %p62
    %p64 = scmp.ne.s32.totalorder %s52, %s53
    %p65 = scmp.eq.s32.totalorder %s22, 1
    %p66 = por %p64, %p65
    %p68 = scmp.ne.s32.totalorder %s53, %s67
    %p69 = scmp.eq.s32.totalorder %s22, 0
    %p70 = por %p68, %p69
    %s72 = sadd.s32 %s71, 1
    %p75 = scmp.eq.s32.totalorder %s16, 1
    %p76 = scmp.ne.s32.totalorder %s71, %s73
    %p77 = scmp.eq.s32.totalorder %s16, 0
    %p78 = por %p76, %p77
    %p79 = scmp.ne.s32.totalorder %s71, %s73
    %p80 = scmp.eq.s32.totalorder %s21, 1
    %p81 = por %p79, %p80
    %p82 = scmp.ne.s32.totalorder %s73, %s74
    %p83 = scmp.eq.s32.totalorder %s21, 0
    %p84 = por %p82, %p83
    %p85 = scmp.ne.s32.totalorder %s73, %s74
    %p86 = scmp.eq.s32.totalorder %s22, 1
    %p87 = por %p85, %p86
    %p89 = scmp.ne.s32.totalorder %s74, %s88
    %p90 = scmp.eq.s32.totalorder %s22, 0
    %p91 = por %p89, %p90
    %s92 = ssub.s32 %s16, %s23
    %p93 = scmp.eq.s32.totalorder %s92, 0
    %s95 = sadd.s32 %s94, 1
    %s96 = scalar_select %p93, %s94, %s95
    %p99 = pneg %p93
    %p100 = scmp.eq.s32.totalorder %s16, 1
    %p101 = por %p99, %p100
    %p102 = scmp.ne.s32.totalorder %s94, %s97
    %p103 = scmp.eq.s32.totalorder %s16, 0
    %p104 = por %p102, %p103
    %p105 = scmp.ne.s32.totalorder %s94, %s97
    %p106 = scmp.eq.s32.totalorder %s21, 1
    %p107 = por %p105, %p106
    %p108 = scmp.ne.s32.totalorder %s97, %s98
    %p109 = scmp.eq.s32.totalorder %s21, 0
    %p110 = por %p108, %p109
    %p111 = scmp.ne.s32.totalorder %s97, %s98
    %p112 = scmp.eq.s32.totalorder %s22, 1
    %p113 = por %p111, %p112
    %p115 = scmp.ne.s32.totalorder %s98, %s114
    %p116 = scmp.eq.s32.totalorder %s22, 0
    %p117 = por %p115, %p116
    %p118 = scmp.le.s32.totalorder 1, %s16
    %p119 = scmp.lt.s32.totalorder %s16, 3
    %p120 = pnand %p118, %p119
    %p121 = pneg %p120
    // Predicated region
    $region9: #{_lambda_.23} parent=5 // pred_check
      _
    $region10: #{_lambda_.23} parent=5 // pred_check_branch
      %123 = sbr.rel (%p120) target = $region12
    $region11: #{_lambda_.23} parent=5 // pred_region
      %s124 = ssub.s32 %s16, 1
      // Predicated region
      $region13: #{_lambda_.23} parent=11 // pred_check
        %p125 = pneg %p63
      $region14: #{_lambda_.23} parent=11 // pred_check_branch
        %127 = sbr.rel (%p125) target = $region16
      $region15: #{_lambda_.23} parent=11 // pred_region
        _
      $region16: #{_lambda_.23} parent=11 // pred_fallthru
        _
      // Predicated region
      $region17: #{_lambda_.23} parent=11 // pred_check
        %p128 = pneg %p84
      $region18: #{_lambda_.23} parent=11 // pred_check_branch
        %130 = sbr.rel (%p128) target = $region20
      $region19: #{_lambda_.23} parent=11 // pred_region
        _
      $region20: #{_lambda_.23} parent=11 // pred_fallthru
        _
    $region12: #{_lambda_.23} parent=5 // pred_fallthru
      _
    %p131 = scmp.lt.s32.totalorder %s16, 2
    // Predicated region
    $region21: #{_lambda_.23} parent=5 // pred_check
      %p132 = pneg %p131
    $region22: #{_lambda_.23} parent=5 // pred_check_branch
      %134 = sbr.rel (%p132) target = $region24
    $region23: #{_lambda_.23} parent=5 // pred_region
      // Predicated region
      $region25: #{_lambda_.23} parent=23 // pred_check
        %p135 = pneg %p36
      $region26: #{_lambda_.23} parent=23 // pred_check_branch
        %137 = sbr.rel (%p135) target = $region28
      $region27: #{_lambda_.23} parent=23 // pred_region
        %p138 = scmp.lt.s32.totalorder %s16, 1
        %s139 = scalar_select %p138, %s16, 1
        %s140 = smul.addr %s139, 8
        %s141 = scalar_lea.vmem %s1, %s140
      $region28: #{_lambda_.23} parent=23 // pred_fallthru
        _
    $region24: #{_lambda_.23} parent=5 // pred_fallthru
      _
    %p142 = scmp.le.s32.totalorder 1, %s16
    %p143 = scmp.lt.s32.totalorder %s16, 3
    %p144 = pnand %p142, %p143
    %p145 = pneg %p144
    // Predicated region
    $region29: #{_lambda_.23} parent=5 // pred_check
      _
    $region30: #{_lambda_.23} parent=5 // pred_check_branch
      %147 = sbr.rel (%p144) target = $region32
    $region31: #{_lambda_.23} parent=5 // pred_region
      %s148 = ssub.s32 %s16, 1
      %p149 = scmp.lt.s32.totalorder %s21, 1
      %s150 = scalar_select %p149, %s21, 1
      %s151 = smul.addr %s150, 8
      %s152 = scalar_lea.vmem %s1, %s151
      %p153 = pneg %p42
      %p154 = pneg %p39
      %p155 = pneg %p63
      %p156 = pneg %p60
      %p157 = pneg %p84
      %p158 = pneg %p81
      %p159 = pneg %p110
      %p160 = pneg %p107
      %p161 = scmp.lt.s32.totalorder %s21, 1
      %s162 = scalar_select %p161, %s21, 1
      %s163 = smul.addr %s162, 4
      %s164 = scalar_lea.vmem %s4, %s163
      %p165 = scmp.lt.s32.totalorder %s21, 1
      %s166 = scalar_select %p165, %s21, 1
      %s167 = smul.addr %s166, 8
      %s168 = scalar_lea.vmem %s1, %s167
      %p169 = scmp.lt.s32.totalorder %s21, 1
      %s170 = scalar_select %p169, %s21, 1
      %s171 = smul.addr %s170, 4
      %s172 = scalar_lea.vmem %s4, %s171
      %v174 = vld [vmem:[%s168] sm:$0xff]
      %v175 = vpack.c.bf16 %v174, %v174
      %v176 = vld [vmem:[%s2] sm:$0xf]
      %v177 = vld [vmem:[%s2 + $0x4] sm:$0xf]
      %v178 = vld [vmem:[%s2 + $0x8] sm:$0xf]
      %v179 = vld [vmem:[%s2 + $0xc] sm:$0xf]
      %v180 = vld [vmem:[%s3] sm:$0x1]
      %v182 = vlaneseq
      %v183 = vshrl.u32 %v182, 7
      %v184 = vsub.s32 0, %v183
      %v185 = vrot.slane %v180, %v184
      %v191 = vunpack.c.l.b16 %v176
      %v192 = vunpack.c.l.b16 %v177
      %v193 = vunpack.c.l.b16 %v178
      %v194 = vunpack.c.l.b16 %v179
      %v195 = vpack.c.b16 %v192, %v191
      %v196 = vpack.c.b16 %v194, %v193
      %vm199 = vcmask 261120
      %v201 = vsel %vm199, %v175, 0
      %203 = vmatprep.subr.bf16.mxu0 0
      %204 = vmatpush1.bf16.msra.mxu0 %v195
      %205 = vmatprep.subr.bf16.mxu0 0
      %206 = vmatpush1.bf16.msra.mxu0 %v196
      %207 = vmatprep.subr.bf16.mxu0 0
      %208 = vmatpush1.bf16.msra.mxu0 0
      %209 = vmatprep.subr.bf16.mxu0 0
      %210 = vmatpush1.bf16.msra.mxu0 0
      %211 = vmatprep.subr.bf16.mxu0 0
      %212 = vmatpush1.bf16.msra.mxu0 0
      %213 = vmatprep.subr.bf16.mxu0 0
      %214 = vmatpush1.bf16.msra.mxu0 0
      %215 = vmatprep.subr.bf16.mxu0 0
      %216 = vmatpush1.bf16.msra.mxu0 0
      %217 = vmatprep.subr.bf16.mxu0 0
      %218 = vmatpush1.bf16.msra.mxu0 0
      %219 = vmatprep.subr.bf16.mxu0 0
      %220 = vmatpush1.bf16.msra.mxu0 0
      %221 = vmatprep.subr.bf16.mxu0 0
      %222 = vmatpush1.bf16.msra.mxu0 0
      %223 = vmatprep.subr.bf16.mxu0 0
      %224 = vmatpush1.bf16.msra.mxu0 0
      %225 = vmatprep.subr.bf16.mxu0 0
      %226 = vmatpush1.bf16.msra.mxu0 0
      %227 = vmatprep.subr.bf16.mxu0 0
      %228 = vmatpush1.bf16.msra.mxu0 0
      %229 = vmatprep.subr.bf16.mxu0 0
      %230 = vmatpush1.bf16.msra.mxu0 0
      %231 = vmatprep.subr.bf16.mxu0 0
      %232 = vmatpush1.bf16.msra.mxu0 0
      %233 = vmatprep.subr.bf16.mxu0 0
      %234 = vmatpush1.bf16.msra.mxu0 0
      %235 = vmatprep.mubr.bf16.mxu0 0
      %236 = vmatmul.mubr.bf16.gmra.mrb[0].mxu0 %v201
      %v237 = vpop.f32.mrb[0].mxu0
      %v238 = vadd.f32 %v185, %v237
      %v239 = vpop.f32.mrb[0].mxu0
      %v240 = vpop.f32.mrb[0].mxu0
      %v241 = vpop.f32.mrb[0].mxu0
      %242 = vdwg.mxu0
      %s243 = sld [smem:[#allocation3 + %s21]]
      %v244 = vlaneseq
      %v245 = vand.u32 %v244, 127
      %v246 = vstv %s243
      %vm247 = vcmp.lt.s32.totalorder %v245, %v246
      %v248 = vlaneseq
      %v249 = vshrl.u32 %v248, 7
      %vm250 = vcmp.le.s32.totalorder %v245, %v249
      %vm251 = vmand %vm247, %vm250
      %v252 = vmul.f32 %v238, 0.35355338
      %v253 = vpack.c.bf16 %v252, %v252
      %v254 = vpack.c.bf16 %v238, %v238
      %256 = vrot.lane.b32.xlu0 %v254, 96
      %v257 = vpop.permute.xlu0 %256
      %vm258 = vcmask 64512
      %v260 = vsel %vm258, %v253, 0
      %v263 = vsel %vm258, %v257, 0
      %265 = vmatprep.subr.bf16.mxu0 0
      %266 = vmatpush1.bf16.xpose.msra.mxu0 %v263
      %267 = vmatprep.subr.bf16.mxu0 0
      %268 = vmatpush1.bf16.xpose.msra.mxu0 0
      %269 = vmatprep.subr.bf16.mxu0 0
      %270 = vmatpush1.bf16.xpose.msra.mxu0 0
      %271 = vmatprep.subr.bf16.mxu0 0
      %272 = vmatpush1.bf16.xpose.msra.mxu0 0
      %273 = vmatprep.subr.bf16.mxu0 0
      %274 = vmatpush1.bf16.xpose.msra.mxu0 0
      %275 = vmatprep.subr.bf16.mxu0 0
      %276 = vmatpush1.bf16.xpose.msra.mxu0 0
      %277 = vmatprep.subr.bf16.mxu0 0
      %278 = vmatpush1.bf16.xpose.msra.mxu0 0
      %279 = vmatprep.subr.bf16.mxu0 0
      %280 = vmatpush1.bf16.xpose.msra.mxu0 0
      %281 = vmatprep.subr.bf16.mxu0 0
      %282 = vmatpush1.bf16.xpose.msra.mxu0 0
      %283 = vmatprep.subr.bf16.mxu0 0
      %284 = vmatpush1.bf16.xpose.msra.mxu0 0
      %285 = vmatprep.subr.bf16.mxu0 0
      %286 = vmatpush1.bf16.xpose.msra.mxu0 0
      %287 = vmatprep.subr.bf16.mxu0 0
      %288 = vmatpush1.bf16.xpose.msra.mxu0 0
      %289 = vmatprep.subr.bf16.mxu0 0
      %290 = vmatpush1.bf16.xpose.msra.mxu0 0
      %291 = vmatprep.subr.bf16.mxu0 0
      %292 = vmatpush1.bf16.xpose.msra.mxu0 0
      %293 = vmatprep.subr.bf16.mxu0 0
      %294 = vmatpush1.bf16.xpose.msra.mxu0 0
      %295 = vmatprep.subr.bf16.mxu0 0
      %296 = vmatpush1.bf16.xpose.msra.mxu0 0
      %297 = vmatprep.mubr.bf16.mxu0 0
      %298 = vmatmul.mubr.bf16.gmra.mrb[0].mxu0 %v260
      %v299 = vpop.f32.mrb[0].mxu0
      %v300 = vadd.f32 0.0, %v299
      %v301 = vpop.f32.mrb[0].mxu0
      %v302 = vpop.f32.mrb[0].mxu0
      %v303 = vpop.f32.mrb[0].mxu0
      %304 = vdwg.mxu0
      %v305 = vsel %vm251, %v300, -1e+09
      %v306 = vsel %vm258, %v305, -inf
      %307 = vmax.xlane.f32.xlu0 %v306
      %v308 = vpop.xlane.xlu0 %307
      %v309 = vsub.f32 %v305, %v308
      %v310 = vmul.f32 %v309, 1.442695
      %v311 = vpow.pop %v310
      %v312 = vsel %vm258, %v311, 0.0
      %313 = vadd.xlane.f32.xlu0 %v312
      %v314 = vpop.xlane.xlu0 %313
      %v315 = vrcp.pop %v314
      %v316 = vmul.f32 %v311, %v315
      %v317 = vpack.c.bf16 %v316, %v316
      %318 = vrot.lane.b32.xlu0 %v254, 64
      %v319 = vpop.permute.xlu0 %318
      %v321 = vsel %vm258, %v317, 0
      %vm323 = vcmask 1043456
      %v325 = vsel %vm323, %v319, 0
      %327 = vmatprep.subr.bf16.mxu0 0
      %328 = vmatpush1.bf16.msra.mxu0 %v325
      %329 = vmatprep.subr.bf16.mxu0 0
      %330 = vmatpush1.bf16.msra.mxu0 0
      %331 = vmatprep.subr.bf16.mxu0 0
      %332 = vmatpush1.bf16.msra.mxu0 0
      %333 = vmatprep.subr.bf16.mxu0 0
      %334 = vmatpush1.bf16.msra.mxu0 0
      %335 = vmatprep.subr.bf16.mxu0 0
      %336 = vmatpush1.bf16.msra.mxu0 0
      %337 = vmatprep.subr.bf16.mxu0 0
      %338 = vmatpush1.bf16.msra.mxu0 0
      %339 = vmatprep.subr.bf16.mxu0 0
      %340 = vmatpush1.bf16.msra.mxu0 0
      %341 = vmatprep.subr.bf16.mxu0 0
      %342 = vmatpush1.bf16.msra.mxu0 0
      %343 = vmatprep.subr.bf16.mxu0 0
      %344 = vmatpush1.bf16.msra.mxu0 0
      %345 = vmatprep.subr.bf16.mxu0 0
      %346 = vmatpush1.bf16.msra.mxu0 0
      %347 = vmatprep.subr.bf16.mxu0 0
      %348 = vmatpush1.bf16.msra.mxu0 0
      %349 = vmatprep.subr.bf16.mxu0 0
      %350 = vmatpush1.bf16.msra.mxu0 0
      %351 = vmatprep.subr.bf16.mxu0 0
      %352 = vmatpush1.bf16.msra.mxu0 0
      %353 = vmatprep.subr.bf16.mxu0 0
      %354 = vmatpush1.bf16.msra.mxu0 0
      %355 = vmatprep.subr.bf16.mxu0 0
      %356 = vmatpush1.bf16.msra.mxu0 0
      %357 = vmatprep.subr.bf16.mxu0 0
      %358 = vmatpush1.bf16.msra.mxu0 0
      %359 = vmatprep.mubr.bf16.mxu0 0
      %360 = vmatmul.mubr.bf16.gmra.mrb[0].mxu0 %v321
      %v361 = vpop.f32.mrb[0].mxu0
      %v362 = vadd.f32 0.0, %v361
      %v363 = vpop.f32.mrb[0].mxu0
      %v364 = vpop.f32.mrb[0].mxu0
      %v365 = vpop.f32.mrb[0].mxu0
      %366 = vdwg.mxu0
      %368 = vrot.lane.b32.xlu0 %v253, 120
      %v369 = vpop.permute.xlu0 %368
      %370 = vrot.lane.b32.xlu0 %v254, 88
      %v371 = vpop.permute.xlu0 %370
      %v373 = vsel %vm258, %v369, 0
      %v376 = vsel %vm258, %v371, 0
      %378 = vmatprep.subr.bf16.mxu0 0
      %379 = vmatpush1.bf16.xpose.msra.mxu0 %v376
      %380 = vmatprep.subr.bf16.mxu0 0
      %381 = vmatpush1.bf16.xpose.msra.mxu0 0
      %382 = vmatprep.subr.bf16.mxu0 0
      %383 = vmatpush1.bf16.xpose.msra.mxu0 0
      %384 = vmatprep.subr.bf16.mxu0 0
      %385 = vmatpush1.bf16.xpose.msra.mxu0 0
      %386 = vmatprep.subr.bf16.mxu0 0
      %387 = vmatpush1.bf16.xpose.msra.mxu0 0
      %388 = vmatprep.subr.bf16.mxu0 0
      %389 = vmatpush1.bf16.xpose.msra.mxu0 0
      %390 = vmatprep.subr.bf16.mxu0 0
      %391 = vmatpush1.bf16.xpose.msra.mxu0 0
      %392 = vmatprep.subr.bf16.mxu0 0
      %393 = vmatpush1.bf16.xpose.msra.mxu0 0
      %394 = vmatprep.subr.bf16.mxu0 0
      %395 = vmatpush1.bf16.xpose.msra.mxu0 0
      %396 = vmatprep.subr.bf16.mxu0 0
      %397 = vmatpush1.bf16.xpose.msra.mxu0 0
      %398 = vmatprep.subr.bf16.mxu0 0
      %399 = vmatpush1.bf16.xpose.msra.mxu0 0
      %400 = vmatprep.subr.bf16.mxu0 0
      %401 = vmatpush1.bf16.xpose.msra.mxu0 0
      %402 = vmatprep.subr.bf16.mxu0 0
      %403 = vmatpush1.bf16.xpose.msra.mxu0 0
      %404 = vmatprep.subr.bf16.mxu0 0
      %405 = vmatpush1.bf16.xpose.msra.mxu0 0
      %406 = vmatprep.subr.bf16.mxu0 0
      %407 = vmatpush1.bf16.xpose.msra.mxu0 0
      %408 = vmatprep.subr.bf16.mxu0 0
      %409 = vmatpush1.bf16.xpose.msra.mxu0 0
      %410 = vmatprep.mubr.bf16.mxu0 0
      %411 = vmatmul.mubr.bf16.gmra.mrb[0].mxu0 %v373
      %v412 = vpop.f32.mrb[0].mxu0
      %v413 = vadd.f32 0.0, %v412
      %v414 = vpop.f32.mrb[0].mxu0
      %v415 = vpop.f32.mrb[0].mxu0
      %v416 = vpop.f32.mrb[0].mxu0
      %417 = vdwg.mxu0
      %v418 = vsel %vm251, %v413, -1e+09
      %v419 = vsel %vm258, %v418, -inf
      %420 = vmax.xlane.f32.xlu0 %v419
      %v421 = vpop.xlane.xlu0 %420
      %v422 = vsub.f32 %v418, %v421
      %v423 = vmul.f32 %v422, 1.442695
      %v424 = vpow.pop %v423
      %v425 = vsel %vm258, %v424, 0.0
      %426 = vadd.xlane.f32.xlu0 %v425
      %v427 = vpop.xlane.xlu0 %426
      %v428 = vrcp.pop %v427
      %v429 = vmul.f32 %v424, %v428
      %v430 = vpack.c.bf16 %v429, %v429
      %431 = vrot.lane.b32.xlu0 %v254, 56
      %v432 = vpop.permute.xlu0 %431
      %v434 = vsel %vm258, %v430, 0
      %v437 = vsel %vm323, %v432, 0
      %439 = vmatprep.subr.bf16.mxu0 0
      %440 = vmatpush1.bf16.msra.mxu0 %v437
      %441 = vmatprep.subr.bf16.mxu0 0
      %442 = vmatpush1.bf16.msra.mxu0 0
      %443 = vmatprep.subr.bf16.mxu0 0
      %444 = vmatpush1.bf16.msra.mxu0 0
      %445 = vmatprep.subr.bf16.mxu0 0
      %446 = vmatpush1.bf16.msra.mxu0 0
      %447 = vmatprep.subr.bf16.mxu0 0
      %448 = vmatpush1.bf16.msra.mxu0 0
      %449 = vmatprep.subr.bf16.mxu0 0
      %450 = vmatpush1.bf16.msra.mxu0 0
      %451 = vmatprep.subr.bf16.mxu0 0
      %452 = vmatpush1.bf16.msra.mxu0 0
      %453 = vmatprep.subr.bf16.mxu0 0
      %454 = vmatpush1.bf16.msra.mxu0 0
      %455 = vmatprep.subr.bf16.mxu0 0
      %456 = vmatpush1.bf16.msra.mxu0 0
      %457 = vmatprep.subr.bf16.mxu0 0
      %458 = vmatpush1.bf16.msra.mxu0 0
      %459 = vmatprep.subr.bf16.mxu0 0
      %460 = vmatpush1.bf16.msra.mxu0 0
      %461 = vmatprep.subr.bf16.mxu0 0
      %462 = vmatpush1.bf16.msra.mxu0 0
      %463 = vmatprep.subr.bf16.mxu0 0
      %464 = vmatpush1.bf16.msra.mxu0 0
      %465 = vmatprep.subr.bf16.mxu0 0
      %466 = vmatpush1.bf16.msra.mxu0 0
      %467 = vmatprep.subr.bf16.mxu0 0
      %468 = vmatpush1.bf16.msra.mxu0 0
      %469 = vmatprep.subr.bf16.mxu0 0
      %470 = vmatpush1.bf16.msra.mxu0 0
      %471 = vmatprep.mubr.bf16.mxu0 0
      %472 = vmatmul.mubr.bf16.gmra.mrb[0].mxu0 %v434
      %v473 = vpop.f32.mrb[0].mxu0
      %v474 = vadd.f32 0.0, %v473
      %v475 = vpop.f32.mrb[0].mxu0
      %v476 = vpop.f32.mrb[0].mxu0
      %v477 = vpop.f32.mrb[0].mxu0
      %478 = vdwg.mxu0
      %479 = vrot.lane.b32.xlu0 %v253, 112
      %v480 = vpop.permute.xlu0 %479
      %481 = vrot.lane.b32.xlu0 %v254, 80
      %v482 = vpop.permute.xlu0 %481
      %v484 = vsel %vm258, %v480, 0
      %v487 = vsel %vm258, %v482, 0
      %489 = vmatprep.subr.bf16.mxu0 0
      %490 = vmatpush1.bf16.xpose.msra.mxu0 %v487
      %491 = vmatprep.subr.bf16.mxu0 0
      %492 = vmatpush1.bf16.xpose.msra.mxu0 0
      %493 = vmatprep.subr.bf16.mxu0 0
      %494 = vmatpush1.bf16.xpose.msra.mxu0 0
      %495 = vmatprep.subr.bf16.mxu0 0
      %496 = vmatpush1.bf16.xpose.msra.mxu0 0
      %497 = vmatprep.subr.bf16.mxu0 0
      %498 = vmatpush1.bf16.xpose.msra.mxu0 0
      %499 = vmatprep.subr.bf16.mxu0 0
      %500 = vmatpush1.bf16.xpose.msra.mxu0 0
      %501 = vmatprep.subr.bf16.mxu0 0
      %502 = vmatpush1.bf16.xpose.msra.mxu0 0
      %503 = vmatprep.subr.bf16.mxu0 0
      %504 = vmatpush1.bf16.xpose.msra.mxu0 0
      %505 = vmatprep.subr.bf16.mxu0 0
      %506 = vmatpush1.bf16.xpose.msra.mxu0 0
      %507 = vmatprep.subr.bf16.mxu0 0
      %508 = vmatpush1.bf16.xpose.msra.mxu0 0
      %509 = vmatprep.subr.bf16.mxu0 0
      %510 = vmatpush1.bf16.xpose.msra.mxu0 0
      %511 = vmatprep.subr.bf16.mxu0 0
      %512 = vmatpush1.bf16.xpose.msra.mxu0 0
      %513 = vmatprep.subr.bf16.mxu0 0
      %514 = vmatpush1.bf16.xpose.msra.mxu0 0
      %515 = vmatprep.subr.bf16.mxu0 0
      %516 = vmatpush1.bf16.xpose.msra.mxu0 0
      %517 = vmatprep.subr.bf16.mxu0 0
      %518 = vmatpush1.bf16.xpose.msra.mxu0 0
      %519 = vmatprep.subr.bf16.mxu0 0
      %520 = vmatpush1.bf16.xpose.msra.mxu0 0
      %521 = vmatprep.mubr.bf16.mxu0 0
      %522 = vmatmul.mubr.bf16.gmra.mrb[0].mxu0 %v484
      %v523 = vpop.f32.mrb[0].mxu0
      %v524 = vadd.f32 0.0, %v523
      %v525 = vpop.f32.mrb[0].mxu0
      %v526 = vpop.f32.mrb[0].mxu0
      %v527 = vpop.f32.mrb[0].mxu0
      %528 = vdwg.mxu0
      %v529 = vsel %vm251, %v524, -1e+09
      %v530 = vsel %vm258, %v529, -inf
      %531 = vmax.xlane.f32.xlu0 %v530
      %v532 = vpop.xlane.xlu0 %531
      %v533 = vsub.f32 %v529, %v532
      %v534 = vmul.f32 %v533, 1.442695
      %v535 = vpow.pop %v534
      %v536 = vsel %vm258, %v535, 0.0
      %537 = vadd.xlane.f32.xlu0 %v536
      %v538 = vpop.xlane.xlu0 %537
      %v539 = vrcp.pop %v538
      %v540 = vmul.f32 %v535, %v539
      %v541 = vpack.c.bf16 %v540, %v540
      %542 = vrot.lane.b32.xlu0 %v254, 48
      %v543 = vpop.permute.xlu0 %542
      %v545 = vsel %vm258, %v541, 0
      %v548 = vsel %vm323, %v543, 0
      %550 = vmatprep.subr.bf16.mxu0 0
      %551 = vmatpush1.bf16.msra.mxu0 %v548
      %552 = vmatprep.subr.bf16.mxu0 0
      %553 = vmatpush1.bf16.msra.mxu0 0
      %554 = vmatprep.subr.bf16.mxu0 0
      %555 = vmatpush1.bf16.msra.mxu0 0
      %556 = vmatprep.subr.bf16.mxu0 0
      %557 = vmatpush1.bf16.msra.mxu0 0
      %558 = vmatprep.subr.bf16.mxu0 0
      %559 = vmatpush1.bf16.msra.mxu0 0
      %560 = vmatprep.subr.bf16.mxu0 0
      %561 = vmatpush1.bf16.msra.mxu0 0
      %562 = vmatprep.subr.bf16.mxu0 0
      %563 = vmatpush1.bf16.msra.mxu0 0
      %564 = vmatprep.subr.bf16.mxu0 0
      %565 = vmatpush1.bf16.msra.mxu0 0
      %566 = vmatprep.subr.bf16.mxu0 0
      %567 = vmatpush1.bf16.msra.mxu0 0
      %568 = vmatprep.subr.bf16.mxu0 0
      %569 = vmatpush1.bf16.msra.mxu0 0
      %570 = vmatprep.subr.bf16.mxu0 0
      %571 = vmatpush1.bf16.msra.mxu0 0
      %572 = vmatprep.subr.bf16.mxu0 0
      %573 = vmatpush1.bf16.msra.mxu0 0
      %574 = vmatprep.subr.bf16.mxu0 0
      %575 = vmatpush1.bf16.msra.mxu0 0
      %576 = vmatprep.subr.bf16.mxu0 0
      %577 = vmatpush1.bf16.msra.mxu0 0
      %578 = vmatprep.subr.bf16.mxu0 0
      %579 = vmatpush1.bf16.msra.mxu0 0
      %580 = vmatprep.subr.bf16.mxu0 0
      %581 = vmatpush1.bf16.msra.mxu0 0
      %582 = vmatprep.mubr.bf16.mxu0 0
      %583 = vmatmul.mubr.bf16.gmra.mrb[0].mxu0 %v545
      %v584 = vpop.f32.mrb[0].mxu0
      %v585 = vadd.f32 0.0, %v584
      %v586 = vpop.f32.mrb[0].mxu0
      %v587 = vpop.f32.mrb[0].mxu0
      %v588 = vpop.f32.mrb[0].mxu0
      %589 = vdwg.mxu0
      %590 = vrot.lane.b32.xlu0 %v253, 104
      %v591 = vpop.permute.xlu0 %590
      %592 = vrot.lane.b32.xlu0 %v254, 72
      %v593 = vpop.permute.xlu0 %592
      %v595 = vsel %vm258, %v591, 0
      %v598 = vsel %vm258, %v593, 0
      %600 = vmatprep.subr.bf16.mxu0 0
      %601 = vmatpush1.bf16.xpose.msra.mxu0 %v598
      %602 = vmatprep.subr.bf16.mxu0 0
      %603 = vmatpush1.bf16.xpose.msra.mxu0 0
      %604 = vmatprep.subr.bf16.mxu0 0
      %605 = vmatpush1.bf16.xpose.msra.mxu0 0
      %606 = vmatprep.subr.bf16.mxu0 0
      %607 = vmatpush1.bf16.xpose.msra.mxu0 0
      %608 = vmatprep.subr.bf16.mxu0 0
      %609 = vmatpush1.bf16.xpose.msra.mxu0 0
      %610 = vmatprep.subr.bf16.mxu0 0
      %611 = vmatpush1.bf16.xpose.msra.mxu0 0
      %612 = vmatprep.subr.bf16.mxu0 0
      %613 = vmatpush1.bf16.xpose.msra.mxu0 0
      %614 = vmatprep.subr.bf16.mxu0 0
      %615 = vmatpush1.bf16.xpose.msra.mxu0 0
      %616 = vmatprep.subr.bf16.mxu0 0
      %617 = vmatpush1.bf16.xpose.msra.mxu0 0
      %618 = vmatprep.subr.bf16.mxu0 0
      %619 = vmatpush1.bf16.xpose.msra.mxu0 0
      %620 = vmatprep.subr.bf16.mxu0 0
      %621 = vmatpush1.bf16.xpose.msra.mxu0 0
      %622 = vmatprep.subr.bf16.mxu0 0
      %623 = vmatpush1.bf16.xpose.msra.mxu0 0
      %624 = vmatprep.subr.bf16.mxu0 0
      %625 = vmatpush1.bf16.xpose.msra.mxu0 0
      %626 = vmatprep.subr.bf16.mxu0 0
      %627 = vmatpush1.bf16.xpose.msra.mxu0 0
      %628 = vmatprep.subr.bf16.mxu0 0
      %629 = vmatpush1.bf16.xpose.msra.mxu0 0
      %630 = vmatprep.subr.bf16.mxu0 0
      %631 = vmatpush1.bf16.xpose.msra.mxu0 0
      %632 = vmatprep.mubr.bf16.mxu0 0
      %633 = vmatmul.mubr.bf16.gmra.mrb[0].mxu0 %v595
      %v634 = vpop.f32.mrb[0].mxu0
      %v635 = vadd.f32 0.0, %v634
      %v636 = vpop.f32.mrb[0].mxu0
      %v637 = vpop.f32.mrb[0].mxu0
      %v638 = vpop.f32.mrb[0].mxu0
      %639 = vdwg.mxu0
      %v640 = vsel %vm251, %v635, -1e+09
      %v641 = vsel %vm258, %v640, -inf
      %642 = vmax.xlane.f32.xlu0 %v641
      %v643 = vpop.xlane.xlu0 %642
      %v644 = vsub.f32 %v640, %v643
      %v645 = vmul.f32 %v644, 1.442695
      %v646 = vpow.pop %v645
      %v647 = vsel %vm258, %v646, 0.0
      %648 = vadd.xlane.f32.xlu0 %v647
      %v649 = vpop.xlane.xlu0 %648
      %v650 = vrcp.pop %v649
      %v651 = vmul.f32 %v646, %v650
      %v652 = vpack.c.bf16 %v651, %v651
      %653 = vrot.lane.b32.xlu0 %v254, 40
      %v654 = vpop.permute.xlu0 %653
      %v656 = vsel %vm258, %v652, 0
      %v659 = vsel %vm323, %v654, 0
      %661 = vmatprep.subr.bf16.mxu0 0
      %662 = vmatpush1.bf16.msra.mxu0 %v659
      %663 = vmatprep.subr.bf16.mxu0 0
      %664 = vmatpush1.bf16.msra.mxu0 0
      %665 = vmatprep.subr.bf16.mxu0 0
      %666 = vmatpush1.bf16.msra.mxu0 0
      %667 = vmatprep.subr.bf16.mxu0 0
      %668 = vmatpush1.bf16.msra.mxu0 0
      %669 = vmatprep.subr.bf16.mxu0 0
      %670 = vmatpush1.bf16.msra.mxu0 0
      %671 = vmatprep.subr.bf16.mxu0 0
      %672 = vmatpush1.bf16.msra.mxu0 0
      %673 = vmatprep.subr.bf16.mxu0 0
      %674 = vmatpush1.bf16.msra.mxu0 0
      %675 = vmatprep.subr.bf16.mxu0 0
      %676 = vmatpush1.bf16.msra.mxu0 0
      %677 = vmatprep.subr.bf16.mxu0 0
      %678 = vmatpush1.bf16.msra.mxu0 0
      %679 = vmatprep.subr.bf16.mxu0 0
      %680 = vmatpush1.bf16.msra.mxu0 0
      %681 = vmatprep.subr.bf16.mxu0 0
      %682 = vmatpush1.bf16.msra.mxu0 0
      %683 = vmatprep.subr.bf16.mxu0 0
      %684 = vmatpush1.bf16.msra.mxu0 0
      %685 = vmatprep.subr.bf16.mxu0 0
      %686 = vmatpush1.bf16.msra.mxu0 0
      %687 = vmatprep.subr.bf16.mxu0 0
      %688 = vmatpush1.bf16.msra.mxu0 0
      %689 = vmatprep.subr.bf16.mxu0 0
      %690 = vmatpush1.bf16.msra.mxu0 0
      %691 = vmatprep.subr.bf16.mxu0 0
      %692 = vmatpush1.bf16.msra.mxu0 0
      %693 = vmatprep.mubr.bf16.mxu0 0
      %694 = vmatmul.mubr.bf16.gmra.mrb[0].mxu0 %v656
      %v695 = vpop.f32.mrb[0].mxu0
      %v696 = vadd.f32 0.0, %v695
      %v697 = vpop.f32.mrb[0].mxu0
      %v698 = vpop.f32.mrb[0].mxu0
      %v699 = vpop.f32.mrb[0].mxu0
      %700 = vdwg.mxu0
      %702 = vrot.lane.b32.xlu0 %v474, 8
      %v703 = vpop.permute.xlu0 %702
      %706 = vrot.lane.b32.xlu0 %v585, 16
      %v707 = vpop.permute.xlu0 %706
      %710 = vrot.lane.b32.xlu0 %v696, 24
      %v711 = vpop.permute.xlu0 %710
      %v713 = vsel %vm258, %v362, %v703
      %vm714 = vcmask 130048
      %v715 = vsel %vm714, %v713, %v707
      %vm716 = vcmask 195584
      %v717 = vsel %vm716, %v715, %v711
      %v718 = vpack.c.bf16 %v717, %v717
      %vm719 = vcmask 257024
      %720 = vst.msk [vmem:[%s172] sm:$0xf] %vm719, %v718
      %p721 = scmp.lt.s32.totalorder %s21, 1
      %s722 = scalar_select %p721, %s21, 1
      %s723 = smul.addr %s722, 4
      %s724 = scalar_lea.vmem %s4, %s723
      // Predicated region
      $region33: #{_lambda_.23} parent=31 // pred_check
        %p725 = pneg %p107
      $region34: #{_lambda_.23} parent=31 // pred_check_branch
        %727 = sbr.rel (%p725) target = $region36
      $region35: #{_lambda_.23} parent=31 // pred_region
        _
      $region36: #{_lambda_.23} parent=31 // pred_fallthru
        _
    $region32: #{_lambda_.23} parent=5 // pred_fallthru
      _
    %p728 = scmp.le.s32.totalorder 2, %s16
    // Predicated region
    $region37: #{_lambda_.23} parent=5 // pred_check
      %p729 = pneg %p728
    $region38: #{_lambda_.23} parent=5 // pred_check_branch
      %731 = sbr.rel (%p729) target = $region40
    $region39: #{_lambda_.23} parent=5 // pred_region
      %s732 = ssub.s32 %s16, 2
      // Predicated region
      $region41: #{_lambda_.23} parent=39 // pred_check
        %p733 = pneg %p113
      $region42: #{_lambda_.23} parent=39 // pred_check_branch
        %735 = sbr.rel (%p733) target = $region44
      $region43: #{_lambda_.23} parent=39 // pred_region
        %p736 = scmp.lt.s32.totalorder %s22, 1
        %s737 = scalar_select %p736, %s22, 1
        %s738 = smul.addr %s737, 4
        %s739 = scalar_lea.vmem %s4, %s738
      $region44: #{_lambda_.23} parent=39 // pred_fallthru
        _
    $region40: #{_lambda_.23} parent=5 // pred_fallthru
      _
  $region6: #{_lambda_.23} parent=0 // loop_footer
    %s20 = sadd.s32 1, %s16
  $region7: #{_lambda_.23} parent=0 // loop_footer_branch
    %15 = sbr.rel target = $region3
  $region8: #{_lambda_.23} parent=0 // loop_exit
    _

// kernel: _lambda_.24
$region0: #{_lambda_.24}
  #allocation0 [shape = 'u32[]', space=smem, size = 0x4, offset = 0x4, fixed_abs, tag = 'smem constant byte address 0x4 - core index']
  #allocation1 [shape = 'u32[144,128]{1,0:T(1,128)}', space=vmem, size = 0x12000, scoped, tag = 'internal scratch']
  %s0 = inlined_call_operand.vmem [shape: bf16[16,32], index: 0, kind: input, shape index: {}]
  %s1 = inlined_call_operand.vmem [shape: f32[16,32], index: 1, kind: input, shape index: {}]
  %s2 = inlined_call_operand.vmem [shape: bf16[32,32], index: 2, kind: input, shape index: {}]
  %s3 = inlined_call_operand.vmem [shape: f32[1,32], index: 3, kind: input, shape index: {}]
  %s4 = inlined_call_operand.vmem [shape: f32[1,32], index: 4, kind: input, shape index: {}]
  %s5 = inlined_call_operand.vmem [shape: f32[1,32], index: 5, kind: input, shape index: {}]
  %s6 = inlined_call_operand.vmem [shape: f32[16,32], index: 6, kind: output, shape index: {}]
  %s7 = sld [smem:[#allocation0]]
  $region34: #{_lambda_.24} parent=0
    _
  %s9 = ssub.s32 1, %s7
  %s10 = scalar_select 0, %s9, %s7
  // Predicated region
  $region2: #{_lambda_.24} parent=0 // pred_check
    _
  $region3: #{_lambda_.24} parent=0 // pred_check_branch
    %12 = sbr.rel (0) target = $region5
  $region4: #{_lambda_.24} parent=0 // pred_region
    _
  $region5: #{_lambda_.24} parent=0 // pred_fallthru
    _
  // Predicated region
  $region6: #{_lambda_.24} parent=0 // pred_check
    _
  $region7: #{_lambda_.24} parent=0 // pred_check_branch
    %14 = sbr.rel (0) target = $region9
  $region8: #{_lambda_.24} parent=0 // pred_region
    _
  $region9: #{_lambda_.24} parent=0 // pred_fallthru
    _
  // Predicated region
  $region10: #{_lambda_.24} parent=0 // pred_check
    _
  $region11: #{_lambda_.24} parent=0 // pred_check_branch
    %16 = sbr.rel (0) target = $region13
  $region12: #{_lambda_.24} parent=0 // pred_region
    _
  $region13: #{_lambda_.24} parent=0 // pred_fallthru
    _
  // Predicated region
  $region14: #{_lambda_.24} parent=0 // pred_check
    _
  $region15: #{_lambda_.24} parent=0 // pred_check_branch
    %18 = sbr.rel (0) target = $region17
  $region16: #{_lambda_.24} parent=0 // pred_region
    _
  $region17: #{_lambda_.24} parent=0 // pred_fallthru
    _
  // Predicated region
  $region18: #{_lambda_.24} parent=0 // pred_check
    _
  $region19: #{_lambda_.24} parent=0 // pred_check_branch
    %20 = sbr.rel (0) target = $region21
  $region20: #{_lambda_.24} parent=0 // pred_region
    _
  $region21: #{_lambda_.24} parent=0 // pred_fallthru
    _
  // Predicated region
  $region22: #{_lambda_.24} parent=0 // pred_check
    _
  $region23: #{_lambda_.24} parent=0 // pred_check_branch
    %22 = sbr.rel (0) target = $region25
  $region24: #{_lambda_.24} parent=0 // pred_region
    _
  $region25: #{_lambda_.24} parent=0 // pred_fallthru
    _
  %v24 = vld [vmem:[%s0] sm:$0xf]
  %v25 = vld [vmem:[%s0 + $0x4] sm:$0xf]
  %v26 = vld [vmem:[%s2] sm:$0xf]
  %v27 = vld [vmem:[%s2 + $0x4] sm:$0xf]
  %v28 = vld [vmem:[%s2 + $0x8] sm:$0xf]
  %v29 = vld [vmem:[%s2 + $0xc] sm:$0xf]
  %v30 = vld [vmem:[%s3] sm:$0x1]
  %v32 = vlaneseq
  %v33 = vshrl.u32 %v32, 7
  %v34 = vsub.s32 0, %v33
  %v35 = vrot.slane %v30, %v34
  %v39 = vunpack.c.l.b16 %v24
  %v40 = vunpack.c.l.b16 %v25
  %v41 = vpack.c.b16 %v40, %v39
  %v46 = vunpack.c.l.b16 %v26
  %v47 = vunpack.c.l.b16 %v27
  %v48 = vunpack.c.l.b16 %v28
  %v49 = vunpack.c.l.b16 %v29
  %v50 = vpack.c.b16 %v47, %v46
  %v51 = vpack.c.b16 %v49, %v48
  %vm54 = vcmask 261120
  %v56 = vsel %vm54, %v41, 0
  %58 = vmatprep.subr.bf16.mxu0 0
  %59 = vmatpush1.bf16.msra.mxu0 %v50
  %60 = vmatprep.subr.bf16.mxu0 0
  %61 = vmatpush1.bf16.msra.mxu0 %v51
  %62 = vmatprep.subr.bf16.mxu0 0
  %63 = vmatpush1.bf16.msra.mxu0 0
  %64 = vmatprep.subr.bf16.mxu0 0
  %65 = vmatpush1.bf16.msra.mxu0 0
  %66 = vmatprep.subr.bf16.mxu0 0
  %67 = vmatpush1.bf16.msra.mxu0 0
  %68 = vmatprep.subr.bf16.mxu0 0
  %69 = vmatpush1.bf16.msra.mxu0 0
  %70 = vmatprep.subr.bf16.mxu0 0
  %71 = vmatpush1.bf16.msra.mxu0 0
  %72 = vmatprep.subr.bf16.mxu0 0
  %73 = vmatpush1.bf16.msra.mxu0 0
  %74 = vmatprep.subr.bf16.mxu0 0
  %75 = vmatpush1.bf16.msra.mxu0 0
  %76 = vmatprep.subr.bf16.mxu0 0
  %77 = vmatpush1.bf16.msra.mxu0 0
  %78 = vmatprep.subr.bf16.mxu0 0
  %79 = vmatpush1.bf16.msra.mxu0 0
  %80 = vmatprep.subr.bf16.mxu0 0
  %81 = vmatpush1.bf16.msra.mxu0 0
  %82 = vmatprep.subr.bf16.mxu0 0
  %83 = vmatpush1.bf16.msra.mxu0 0
  %84 = vmatprep.subr.bf16.mxu0 0
  %85 = vmatpush1.bf16.msra.mxu0 0
  %86 = vmatprep.subr.bf16.mxu0 0
  %87 = vmatpush1.bf16.msra.mxu0 0
  %88 = vmatprep.subr.bf16.mxu0 0
  %89 = vmatpush1.bf16.msra.mxu0 0
  %90 = vmatprep.mubr.bf16.mxu0 0
  %91 = vmatmul.mubr.bf16.gmra.mrb[0].mxu0 %v56
  %v92 = vpop.f32.mrb[0].mxu0
  %v93 = vadd.f32 %v35, %v92
  %v94 = vpop.f32.mrb[0].mxu0
  %v95 = vpop.f32.mrb[0].mxu0
  %v96 = vadd.f32 %v35, %v95
  %v97 = vpop.f32.mrb[0].mxu0
  %98 = vdwg.mxu0
  %v99 = vld [vmem:[%s1] sm:$0xff]
  %v100 = vld [vmem:[%s1 + $0x8] sm:$0xff]
  %v101 = vadd.f32 %v93, %v99
  %v102 = vadd.f32 %v96, %v100
  %v103 = vsel %vm54, %v101, 0.0
  %104 = vadd.xlane.f32.xlu0 %v103
  %v105 = vpop.xlane.xlu0 %104
  %v106 = vsel %vm54, %v102, 0.0
  %107 = vadd.xlane.f32.xlu0 %v106
  %v108 = vpop.xlane.xlu0 %107
  %v109 = vrcp.pop 32.0
  %v110 = vmul.f32 %v105, %v109
  %v111 = vmul.f32 %v108, %v109
  %v112 = vsub.f32 %v101, %v110
  %v113 = vsub.f32 %v102, %v111
  %v114 = vmul.f32 %v112, %v112
  %v115 = vmul.f32 %v113, %v113
  %v116 = vsel %vm54, %v114, 0.0
  %117 = vadd.xlane.f32.xlu0 %v116
  %v118 = vpop.xlane.xlu0 %117
  %v119 = vsel %vm54, %v115, 0.0
  %120 = vadd.xlane.f32.xlu0 %v119
  %v121 = vpop.xlane.xlu0 %120
  %v122 = vmul.f32 %v118, %v109
  %v123 = vmul.f32 %v121, %v109
  %v124 = vadd.f32 %v122, 1e-06
  %v125 = vadd.f32 %v123, 1e-06
  %v126 = vrsqrt.pop %v124
  %v127 = vrsqrt.pop %v125
  %v128 = vmul.f32 %v112, %v126
  %v129 = vmul.f32 %v113, %v127
  %v130 = vld [vmem:[%s4] sm:$0x1]
  %v132 = vlaneseq
  %v133 = vshrl.u32 %v132, 7
  %v134 = vsub.s32 0, %v133
  %v135 = vrot.slane %v130, %v134
  %v137 = vmul.f32 %v128, %v135
  %v138 = vmul.f32 %v129, %v135
  %v139 = vld [vmem:[%s5] sm:$0x1]
  %v141 = vlaneseq
  %v142 = vshrl.u32 %v141, 7
  %v143 = vsub.s32 0, %v142
  %v144 = vrot.slane %v139, %v143
  %v146 = vadd.f32 %v137, %v144
  %v147 = vadd.f32 %v138, %v144
  %148 = vst.msk [vmem:[%s6] sm:$0xff] %vm54, %v146
  %149 = vst.msk [vmem:[%s6 + $0x8] sm:$0xff] %vm54, %v147
  // Predicated region
  $region26: #{_lambda_.24} parent=0 // pred_check
    _
  $region27: #{_lambda_.24} parent=0 // pred_check_branch
    %151 = sbr.rel (0) target = $region29
  $region28: #{_lambda_.24} parent=0 // pred_region
    _
  $region29: #{_lambda_.24} parent=0 // pred_fallthru
    _
  // Predicated region
  $region30: #{_lambda_.24} parent=0 // pred_check
    _
  $region31: #{_lambda_.24} parent=0 // pred_check_branch
    %153 = sbr.rel (0) target = $region33
  $region32: #{_lambda_.24} parent=0 // pred_region
    _
  $region33: #{_lambda_.24} parent=0 // pred_fallthru
    _

// kernel: _lambda_.22
$region0: #{_lambda_.22}
  #allocation0 [shape = 'u32[]', space=smem, size = 0x4, offset = 0x4, fixed_abs, tag = 'smem constant byte address 0x4 - core index']
  #allocation1 [shape = 'u32[144,128]{1,0:T(1,128)}', space=vmem, size = 0x12000, scoped, tag = 'internal scratch']
  %s0 = inlined_call_operand.vmem [shape: f32[16,32], index: 0, kind: input, shape index: {}]
  %s1 = inlined_call_operand.vmem [shape: bf16[32,32], index: 1, kind: input, shape index: {}]
  %s2 = inlined_call_operand.vmem [shape: f32[1,32], index: 2, kind: input, shape index: {}]
  %s3 = inlined_call_operand.vmem [shape: bf16[16,32], index: 3, kind: output, shape index: {}]
  %s4 = sld [smem:[#allocation0]]
  $region22: #{_lambda_.22} parent=0
    _
  %s6 = ssub.s32 1, %s4
  %s7 = scalar_select 0, %s6, %s4
  // Predicated region
  $region2: #{_lambda_.22} parent=0 // pred_check
    _
  $region3: #{_lambda_.22} parent=0 // pred_check_branch
    %9 = sbr.rel (0) target = $region5
  $region4: #{_lambda_.22} parent=0 // pred_region
    _
  $region5: #{_lambda_.22} parent=0 // pred_fallthru
    _
  // Predicated region
  $region6: #{_lambda_.22} parent=0 // pred_check
    _
  $region7: #{_lambda_.22} parent=0 // pred_check_branch
    %11 = sbr.rel (0) target = $region9
  $region8: #{_lambda_.22} parent=0 // pred_region
    _
  $region9: #{_lambda_.22} parent=0 // pred_fallthru
    _
  // Predicated region
  $region10: #{_lambda_.22} parent=0 // pred_check
    _
  $region11: #{_lambda_.22} parent=0 // pred_check_branch
    %13 = sbr.rel (0) target = $region13
  $region12: #{_lambda_.22} parent=0 // pred_region
    _
  $region13: #{_lambda_.22} parent=0 // pred_fallthru
    _
  %v15 = vld [vmem:[%s0] sm:$0xff]
  %v16 = vld [vmem:[%s0 + $0x8] sm:$0xff]
  %v17 = vpack.c.bf16 %v16, %v15
  %v18 = vld [vmem:[%s1] sm:$0xf]
  %v19 = vld [vmem:[%s1 + $0x4] sm:$0xf]
  %v20 = vld [vmem:[%s1 + $0x8] sm:$0xf]
  %v21 = vld [vmem:[%s1 + $0xc] sm:$0xf]
  %v22 = vld [vmem:[%s2] sm:$0x1]
  %v24 = vlaneseq
  %v25 = vshrl.u32 %v24, 7
  %v26 = vsub.s32 0, %v25
  %v27 = vrot.slane %v22, %v26
  %v33 = vunpack.c.l.b16 %v18
  %v34 = vunpack.c.l.b16 %v19
  %v35 = vunpack.c.l.b16 %v20
  %v36 = vunpack.c.l.b16 %v21
  %v37 = vpack.c.b16 %v34, %v33
  %v38 = vpack.c.b16 %v36, %v35
  %vm41 = vcmask 261120
  %v43 = vsel %vm41, %v17, 0
  %45 = vmatprep.subr.bf16.mxu0 0
  %46 = vmatpush1.bf16.msra.mxu0 %v37
  %47 = vmatprep.subr.bf16.mxu0 0
  %48 = vmatpush1.bf16.msra.mxu0 %v38
  %49 = vmatprep.subr.bf16.mxu0 0
  %50 = vmatpush1.bf16.msra.mxu0 0
  %51 = vmatprep.subr.bf16.mxu0 0
  %52 = vmatpush1.bf16.msra.mxu0 0
  %53 = vmatprep.subr.bf16.mxu0 0
  %54 = vmatpush1.bf16.msra.mxu0 0
  %55 = vmatprep.subr.bf16.mxu0 0
  %56 = vmatpush1.bf16.msra.mxu0 0
  %57 = vmatprep.subr.bf16.mxu0 0
  %58 = vmatpush1.bf16.msra.mxu0 0
  %59 = vmatprep.subr.bf16.mxu0 0
  %60 = vmatpush1.bf16.msra.mxu0 0
  %61 = vmatprep.subr.bf16.mxu0 0
  %62 = vmatpush1.bf16.msra.mxu0 0
  %63 = vmatprep.subr.bf16.mxu0 0
  %64 = vmatpush1.bf16.msra.mxu0 0
  %65 = vmatprep.subr.bf16.mxu0 0
  %66 = vmatpush1.bf16.msra.mxu0 0
  %67 = vmatprep.subr.bf16.mxu0 0
  %68 = vmatpush1.bf16.msra.mxu0 0
  %69 = vmatprep.subr.bf16.mxu0 0
  %70 = vmatpush1.bf16.msra.mxu0 0
  %71 = vmatprep.subr.bf16.mxu0 0
  %72 = vmatpush1.bf16.msra.mxu0 0
  %73 = vmatprep.subr.bf16.mxu0 0
  %74 = vmatpush1.bf16.msra.mxu0 0
  %75 = vmatprep.subr.bf16.mxu0 0
  %76 = vmatpush1.bf16.msra.mxu0 0
  %77 = vmatprep.mubr.bf16.mxu0 0
  %78 = vmatmul.mubr.bf16.gmra.mrb[0].mxu0 %v43
  %v79 = vpop.f32.mrb[0].mxu0
  %v80 = vadd.f32 %v27, %v79
  %v81 = vpop.f32.mrb[0].mxu0
  %v82 = vpop.f32.mrb[0].mxu0
  %v83 = vadd.f32 %v27, %v82
  %v84 = vpop.f32.mrb[0].mxu0
  %85 = vdwg.mxu0
  %v86 = vtanh.pop %v80
  %v87 = vtanh.pop %v83
  %v88 = vpack.c.bf16 %v87, %v86
  %v90 = vunpack.c.l.b16 %v88
  %v91 = vunpack.c.h.b16 %v88
  %v92 = vpack.c.b16 %v90, %v90
  %v93 = vpack.c.b16 %v91, %v91
  %vm96 = vcmask 257024
  %97 = vst.msk [vmem:[%s3] sm:$0xf] %vm96, %v92
  %98 = vst.msk [vmem:[%s3 + $0x4] sm:$0xf] %vm96, %v93
  // Predicated region
  $region14: #{_lambda_.22} parent=0 // pred_check
    _
  $region15: #{_lambda_.22} parent=0 // pred_check_branch
    %100 = sbr.rel (0) target = $region17
  $region16: #{_lambda_.22} parent=0 // pred_region
    _
  $region17: #{_lambda_.22} parent=0 // pred_fallthru
    _
  // Predicated region
  $region18: #{_lambda_.22} parent=0 // pred_check
    _
  $region19: #{_lambda_.22} parent=0 // pred_check_branch
    %102 = sbr.rel (0) target = $region21
  $region20: #{_lambda_.22} parent=0 // pred_region
    _
  $region21: #{_lambda_.22} parent=0 // pred_fallthru
    _

// kernel: _lambda_.25
$region0: #{_lambda_.25}
  #allocation0 [shape = 'u32[]', space=smem, size = 0x4, offset = 0x4, fixed_abs, tag = 'smem constant byte address 0x4 - core index']
  #allocation1 [shape = 'u32[144,128]{1,0:T(1,128)}', space=vmem, size = 0x12000, scoped, tag = 'internal scratch']
  #allocation2 [shape = 's32[1]{0}', space=sflag, size = 0x4, scoped, tag = 'scoped memory for _lambda_.25']
  #allocation3 [shape = 'u8[512]{0}', space=smem, size = 0x200, scoped, tag = 'prefetched SMEM operand 0']
  %s0 = inlined_call_operand.vmem [shape: s32[2], index: 0, kind: input, shape index: {}]
  %s1 = inlined_call_operand.vmem [shape: f32[2,8,32], index: 1, kind: input, shape index: {}]
  %s2 = inlined_call_operand.vmem [shape: bf16[2,16,32], index: 2, kind: input, shape index: {}]
  %s3 = inlined_call_operand.vmem [shape: bf16[32,32], index: 3, kind: input, shape index: {}]
  %s4 = inlined_call_operand.vmem [shape: f32[1,32], index: 4, kind: input, shape index: {}]
  %s5 = inlined_call_operand.vmem [shape: bf16[32,64], index: 5, kind: input, shape index: {}]
  %s6 = inlined_call_operand.vmem [shape: f32[1,64], index: 6, kind: input, shape index: {}]
  %s7 = inlined_call_operand.vmem [shape: bf16[2,8,32], index: 7, kind: output, shape index: {}]
  %s8 = sld [smem:[#allocation0]]
  $region57: #{_lambda_.25} parent=0
    _
  %s10 = ssub.s32 1, %s8
  %s11 = scalar_select 0, %s10, %s8
  %s12 = sshll.u32 %s0, 4
  %s13 = int_to_ptr.vmem [resolvable:$true] %s12
  %15 = dma.vmem_to_smem %s13, 16, [#allocation3], [#allocation2]
  %16 = dma.done [#allocation2], 16
  %17 = sfence
  loop: start=0, step=1, limit=4
  $region2: #{_lambda_.25} parent=0 // loop_pre_header
    _
  $region3: #{_lambda_.25} parent=0 // loop_header
    %s19 = sphi 0, %s23
    %p20 = scmp.ge.s32.totalorder %s19, 4
    %s29 = sphi 0, %s31
    %s32 = sphi 0, %s29
    %s33 = sphi 0, %s32
    %s49 = sphi 0, %s33
    %s55 = sphi 0, %s57
    %s58 = sphi 0, %s55
    %s59 = sphi 0, %s58
    %s75 = sphi 0, %s59
    %s79 = sphi 0, %s79
    %s81 = sphi 0, %s79
    %s82 = sphi 0, %s81
    %s96 = sphi 0, %s82
    %s100 = sphi 0, %s100
    %s102 = sphi 0, %s100
    %s103 = sphi 0, %s102
    %s117 = sphi 0, %s103
    %s121 = sphi 0, %s121
    %s123 = sphi 0, %s121
    %s124 = sphi 0, %s123
    %s138 = sphi 0, %s124
    %s142 = sphi 0, %s142
    %s144 = sphi 0, %s142
    %s145 = sphi 0, %s144
    %s159 = sphi 0, %s145
    %s165 = sphi 0, %s167
    %s168 = sphi 0, %s165
    %s169 = sphi 0, %s168
    %s185 = sphi 0, %s169
  $region4: #{_lambda_.25} parent=0 // loop_header_branch
    %22 = sbr.rel (%p20) target = $region8
  $region5: #{_lambda_.25} parent=0 // loop_body
    %s24 = ssub.s32 %s19, 1
    %s25 = ssub.s32 %s19, 2
    %s26 = sadd.s32 %s19, 1
    %s27 = ssub.s32 %s19, %s26
    %p28 = scmp.eq.s32.totalorder %s27, 0
    %s30 = sadd.s32 %s29, 1
    %s31 = scalar_select %p28, %s29, %s30
    %p34 = pneg %p28
    %p35 = scmp.eq.s32.totalorder %s19, 1
    %p36 = por %p34, %p35
    %p37 = scmp.ne.s32.totalorder %s29, %s32
    %p38 = scmp.eq.s32.totalorder %s19, 0
    %p39 = por %p37, %p38
    %p40 = scmp.ne.s32.totalorder %s29, %s32
    %p41 = scmp.eq.s32.totalorder %s24, 1
    %p42 = por %p40, %p41
    %p43 = scmp.ne.s32.totalorder %s32, %s33
    %p44 = scmp.eq.s32.totalorder %s24, 0
    %p45 = por %p43, %p44
    %p46 = scmp.ne.s32.totalorder %s32, %s33
    %p47 = scmp.eq.s32.totalorder %s25, 1
    %p48 = por %p46, %p47
    %p50 = scmp.ne.s32.totalorder %s33, %s49
    %p51 = scmp.eq.s32.totalorder %s25, 0
    %p52 = por %p50, %p51
    %s53 = ssub.s32 %s19, %s26
    %p54 = scmp.eq.s32.totalorder %s53, 0
    %s56 = sadd.s32 %s55, 1
    %s57 = scalar_select %p54, %s55, %s56
    %p60 = pneg %p54
    %p61 = scmp.eq.s32.totalorder %s19, 1
    %p62 = por %p60, %p61
    %p63 = scmp.ne.s32.totalorder %s55, %s58
    %p64 = scmp.eq.s32.totalorder %s19, 0
    %p65 = por %p63, %p64
    %p66 = scmp.ne.s32.totalorder %s55, %s58
    %p67 = scmp.eq.s32.totalorder %s24, 1
    %p68 = por %p66, %p67
    %p69 = scmp.ne.s32.totalorder %s58, %s59
    %p70 = scmp.eq.s32.totalorder %s24, 0
    %p71 = por %p69, %p70
    %p72 = scmp.ne.s32.totalorder %s58, %s59
    %p73 = scmp.eq.s32.totalorder %s25, 1
    %p74 = por %p72, %p73
    %p76 = scmp.ne.s32.totalorder %s59, %s75
    %p77 = scmp.eq.s32.totalorder %s25, 0
    %p78 = por %p76, %p77
    %s80 = sadd.s32 %s79, 1
    %p83 = scmp.eq.s32.totalorder %s19, 1
    %p84 = scmp.ne.s32.totalorder %s79, %s81
    %p85 = scmp.eq.s32.totalorder %s19, 0
    %p86 = por %p84, %p85
    %p87 = scmp.ne.s32.totalorder %s79, %s81
    %p88 = scmp.eq.s32.totalorder %s24, 1
    %p89 = por %p87, %p88
    %p90 = scmp.ne.s32.totalorder %s81, %s82
    %p91 = scmp.eq.s32.totalorder %s24, 0
    %p92 = por %p90, %p91
    %p93 = scmp.ne.s32.totalorder %s81, %s82
    %p94 = scmp.eq.s32.totalorder %s25, 1
    %p95 = por %p93, %p94
    %p97 = scmp.ne.s32.totalorder %s82, %s96
    %p98 = scmp.eq.s32.totalorder %s25, 0
    %p99 = por %p97, %p98
    %s101 = sadd.s32 %s100, 1
    %p104 = scmp.eq.s32.totalorder %s19, 1
    %p105 = scmp.ne.s32.totalorder %s100, %s102
    %p106 = scmp.eq.s32.totalorder %s19, 0
    %p107 = por %p105, %p106
    %p108 = scmp.ne.s32.totalorder %s100, %s102
    %p109 = scmp.eq.s32.totalorder %s24, 1
    %p110 = por %p108, %p109
    %p111 = scmp.ne.s32.totalorder %s102, %s103
    %p112 = scmp.eq.s32.totalorder %s24, 0
    %p113 = por %p111, %p112
    %p114 = scmp.ne.s32.totalorder %s102, %s103
    %p115 = scmp.eq.s32.totalorder %s25, 1
    %p116 = por %p114, %p115
    %p118 = scmp.ne.s32.totalorder %s103, %s117
    %p119 = scmp.eq.s32.totalorder %s25, 0
    %p120 = por %p118, %p119
    %s122 = sadd.s32 %s121, 1
    %p125 = scmp.eq.s32.totalorder %s19, 1
    %p126 = scmp.ne.s32.totalorder %s121, %s123
    %p127 = scmp.eq.s32.totalorder %s19, 0
    %p128 = por %p126, %p127
    %p129 = scmp.ne.s32.totalorder %s121, %s123
    %p130 = scmp.eq.s32.totalorder %s24, 1
    %p131 = por %p129, %p130
    %p132 = scmp.ne.s32.totalorder %s123, %s124
    %p133 = scmp.eq.s32.totalorder %s24, 0
    %p134 = por %p132, %p133
    %p135 = scmp.ne.s32.totalorder %s123, %s124
    %p136 = scmp.eq.s32.totalorder %s25, 1
    %p137 = por %p135, %p136
    %p139 = scmp.ne.s32.totalorder %s124, %s138
    %p140 = scmp.eq.s32.totalorder %s25, 0
    %p141 = por %p139, %p140
    %s143 = sadd.s32 %s142, 1
    %p146 = scmp.eq.s32.totalorder %s19, 1
    %p147 = scmp.ne.s32.totalorder %s142, %s144
    %p148 = scmp.eq.s32.totalorder %s19, 0
    %p149 = por %p147, %p148
    %p150 = scmp.ne.s32.totalorder %s142, %s144
    %p151 = scmp.eq.s32.totalorder %s24, 1
    %p152 = por %p150, %p151
    %p153 = scmp.ne.s32.totalorder %s144, %s145
    %p154 = scmp.eq.s32.totalorder %s24, 0
    %p155 = por %p153, %p154
    %p156 = scmp.ne.s32.totalorder %s144, %s145
    %p157 = scmp.eq.s32.totalorder %s25, 1
    %p158 = por %p156, %p157
    %p160 = scmp.ne.s32.totalorder %s145, %s159
    %p161 = scmp.eq.s32.totalorder %s25, 0
    %p162 = por %p160, %p161
    %s163 = ssub.s32 %s19, %s26
    %p164 = scmp.eq.s32.totalorder %s163, 0
    %s166 = sadd.s32 %s165, 1
    %s167 = scalar_select %p164, %s165, %s166
    %p170 = pneg %p164
    %p171 = scmp.eq.s32.totalorder %s19, 1
    %p172 = por %p170, %p171
    %p173 = scmp.ne.s32.totalorder %s165, %s168
    %p174 = scmp.eq.s32.totalorder %s19, 0
    %p175 = por %p173, %p174
    %p176 = scmp.ne.s32.totalorder %s165, %s168
    %p177 = scmp.eq.s32.totalorder %s24, 1
    %p178 = por %p176, %p177
    %p179 = scmp.ne.s32.totalorder %s168, %s169
    %p180 = scmp.eq.s32.totalorder %s24, 0
    %p181 = por %p179, %p180
    %p182 = scmp.ne.s32.totalorder %s168, %s169
    %p183 = scmp.eq.s32.totalorder %s25, 1
    %p184 = por %p182, %p183
    %p186 = scmp.ne.s32.totalorder %s169, %s185
    %p187 = scmp.eq.s32.totalorder %s25, 0
    %p188 = por %p186, %p187
    %p189 = scmp.le.s32.totalorder 1, %s19
    %p190 = scmp.lt.s32.totalorder %s19, 3
    %p191 = pnand %p189, %p190
    %p192 = pneg %p191
    // Predicated region
    $region9: #{_lambda_.25} parent=5 // pred_check
      _
    $region10: #{_lambda_.25} parent=5 // pred_check_branch
      %194 = sbr.rel (%p191) target = $region12
    $region11: #{_lambda_.25} parent=5 // pred_region
      %s195 = ssub.s32 %s19, 1
      // Predicated region
      $region13: #{_lambda_.25} parent=11 // pred_check
        %p196 = pneg %p92
      $region14: #{_lambda_.25} parent=11 // pred_check_branch
        %198 = sbr.rel (%p196) target = $region16
      $region15: #{_lambda_.25} parent=11 // pred_region
        _
      $region16: #{_lambda_.25} parent=11 // pred_fallthru
        _
      // Predicated region
      $region17: #{_lambda_.25} parent=11 // pred_check
        %p199 = pneg %p113
      $region18: #{_lambda_.25} parent=11 // pred_check_branch
        %201 = sbr.rel (%p199) target = $region20
      $region19: #{_lambda_.25} parent=11 // pred_region
        _
      $region20: #{_lambda_.25} parent=11 // pred_fallthru
        _
      // Predicated region
      $region21: #{_lambda_.25} parent=11 // pred_check
        %p202 = pneg %p134
      $region22: #{_lambda_.25} parent=11 // pred_check_branch
        %204 = sbr.rel (%p202) target = $region24
      $region23: #{_lambda_.25} parent=11 // pred_region
        _
      $region24: #{_lambda_.25} parent=11 // pred_fallthru
        _
      // Predicated region
      $region25: #{_lambda_.25} parent=11 // pred_check
        %p205 = pneg %p155
      $region26: #{_lambda_.25} parent=11 // pred_check_branch
        %207 = sbr.rel (%p205) target = $region28
      $region27: #{_lambda_.25} parent=11 // pred_region
        _
      $region28: #{_lambda_.25} parent=11 // pred_fallthru
        _
    $region12: #{_lambda_.25} parent=5 // pred_fallthru
      _
    %p208 = scmp.lt.s32.totalorder %s19, 2
    // Predicated region
    $region29: #{_lambda_.25} parent=5 // pred_check
      %p209 = pneg %p208
    $region30: #{_lambda_.25} parent=5 // pred_check_branch
      %211 = sbr.rel (%p209) target = $region32
    $region31: #{_lambda_.25} parent=5 // pred_region
      // Predicated region
      $region33: #{_lambda_.25} parent=31 // pred_check
        %p212 = pneg %p39
      $region34: #{_lambda_.25} parent=31 // pred_check_branch
        %214 = sbr.rel (%p212) target = $region36
      $region35: #{_lambda_.25} parent=31 // pred_region
        %p215 = scmp.lt.s32.totalorder %s19, 1
        %s216 = scalar_select %p215, %s19, 1
        %s217 = smul.addr %s216, 8
        %s218 = scalar_lea.vmem %s1, %s217
      $region36: #{_lambda_.25} parent=31 // pred_fallthru
        _
      // Predicated region
      $region37: #{_lambda_.25} parent=31 // pred_check
        %p219 = pneg %p65
      $region38: #{_lambda_.25} parent=31 // pred_check_branch
        %221 = sbr.rel (%p219) target = $region40
      $region39: #{_lambda_.25} parent=31 // pred_region
        %p222 = scmp.lt.s32.totalorder %s19, 1
        %s223 = scalar_select %p222, %s19, 1
        %s224 = smul.addr %s223, 2
        %s225 = smul.addr %s224, 4
        %s226 = scalar_lea.vmem %s2, %s225
      $region40: #{_lambda_.25} parent=31 // pred_fallthru
        _
    $region32: #{_lambda_.25} parent=5 // pred_fallthru
      _
    %p227 = scmp.le.s32.totalorder 1, %s19
    %p228 = scmp.lt.s32.totalorder %s19, 3
    %p229 = pnand %p227, %p228
    %p230 = pneg %p229
    // Predicated region
    $region41: #{_lambda_.25} parent=5 // pred_check
      _
    $region42: #{_lambda_.25} parent=5 // pred_check_branch
      %232 = sbr.rel (%p229) target = $region44
    $region43: #{_lambda_.25} parent=5 // pred_region
      %s233 = ssub.s32 %s19, 1
      %p234 = scmp.lt.s32.totalorder %s24, 1
      %s235 = scalar_select %p234, %s24, 1
      %s236 = smul.addr %s235, 8
      %s237 = scalar_lea.vmem %s1, %s236
      %p238 = pneg %p45
      %p239 = pneg %p42
      %p240 = scmp.lt.s32.totalorder %s24, 1
      %s241 = scalar_select %p240, %s24, 1
      %s242 = smul.addr %s241, 2
      %s243 = smul.addr %s242, 4
      %s244 = scalar_lea.vmem %s2, %s243
      %p245 = pneg %p71
      %p246 = pneg %p68
      %p247 = pneg %p92
      %p248 = pneg %p89
      %p249 = pneg %p113
      %p250 = pneg %p110
      %p251 = pneg %p134
      %p252 = pneg %p131
      %p253 = pneg %p155
      %p254 = pneg %p152
      %p255 = pneg %p181
      %p256 = pneg %p178
      %p257 = scmp.lt.s32.totalorder %s24, 1
      %s258 = scalar_select %p257, %s24, 1
      %s259 = smul.addr %s258, 4
      %s260 = scalar_lea.vmem %s7, %s259
      %p261 = scmp.lt.s32.totalorder %s24, 1
      %s262 = scalar_select %p261, %s24, 1
      %s263 = smul.addr %s262, 8
      %s264 = scalar_lea.vmem %s1, %s263
      %p265 = scmp.lt.s32.totalorder %s24, 1
      %s266 = scalar_select %p265, %s24, 1
      %s267 = smul.addr %s266, 2
      %s268 = smul.addr %s267, 4
      %s269 = scalar_lea.vmem %s2, %s268
      %p270 = scmp.lt.s32.totalorder %s24, 1
      %s271 = scalar_select %p270, %s24, 1
      %s272 = smul.addr %s271, 4
      %s273 = scalar_lea.vmem %s7, %s272
      %v275 = vld [vmem:[%s264] sm:$0xff]
      %v276 = vpack.c.bf16 %v275, %v275
      %v277 = vld [vmem:[%s269] sm:$0xf]
      %v278 = vld [vmem:[%s269 + $0x4] sm:$0xf]
      %v279 = vld [vmem:[%s3] sm:$0xf]
      %v280 = vld [vmem:[%s3 + $0x4] sm:$0xf]
      %v281 = vld [vmem:[%s3 + $0x8] sm:$0xf]
      %v282 = vld [vmem:[%s3 + $0xc] sm:$0xf]
      %v283 = vld [vmem:[%s4] sm:$0x1]
      %v285 = vlaneseq
      %v286 = vshrl.u32 %v285, 7
      %v287 = vsub.s32 0, %v286
      %v288 = vrot.slane %v283, %v287
      %v294 = vunpack.c.l.b16 %v279
      %v295 = vunpack.c.l.b16 %v280
      %v296 = vunpack.c.l.b16 %v281
      %v297 = vunpack.c.l.b16 %v282
      %v298 = vpack.c.b16 %v295, %v294
      %v299 = vpack.c.b16 %v297, %v296
      %vm302 = vcmask 261120
      %v304 = vsel %vm302, %v276, 0
      %306 = vmatprep.subr.bf16.mxu0 0
      %307 = vmatpush1.bf16.msra.mxu0 %v298
      %308 = vmatprep.subr.bf16.mxu0 0
      %309 = vmatpush1.bf16.msra.mxu0 %v299
      %310 = vmatprep.subr.bf16.mxu0 0
      %311 = vmatpush1.bf16.msra.mxu0 0
      %312 = vmatprep.subr.bf16.mxu0 0
      %313 = vmatpush1.bf16.msra.mxu0 0
      %314 = vmatprep.subr.bf16.mxu0 0
      %315 = vmatpush1.bf16.msra.mxu0 0
      %316 = vmatprep.subr.bf16.mxu0 0
      %317 = vmatpush1.bf16.msra.mxu0 0
      %318 = vmatprep.subr.bf16.mxu0 0
      %319 = vmatpush1.bf16.msra.mxu0 0
      %320 = vmatprep.subr.bf16.mxu0 0
      %321 = vmatpush1.bf16.msra.mxu0 0
      %322 = vmatprep.subr.bf16.mxu0 0
      %323 = vmatpush1.bf16.msra.mxu0 0
      %324 = vmatprep.subr.bf16.mxu0 0
      %325 = vmatpush1.bf16.msra.mxu0 0
      %326 = vmatprep.subr.bf16.mxu0 0
      %327 = vmatpush1.bf16.msra.mxu0 0
      %328 = vmatprep.subr.bf16.mxu0 0
      %329 = vmatpush1.bf16.msra.mxu0 0
      %330 = vmatprep.subr.bf16.mxu0 0
      %331 = vmatpush1.bf16.msra.mxu0 0
      %332 = vmatprep.subr.bf16.mxu0 0
      %333 = vmatpush1.bf16.msra.mxu0 0
      %334 = vmatprep.subr.bf16.mxu0 0
      %335 = vmatpush1.bf16.msra.mxu0 0
      %336 = vmatprep.subr.bf16.mxu0 0
      %337 = vmatpush1.bf16.msra.mxu0 0
      %338 = vmatprep.mubr.bf16.mxu0 0
      %339 = vmatmul.mubr.bf16.gmra.mrb[0].mxu0 %v304
      %v340 = vpop.f32.mrb[0].mxu0
      %v341 = vadd.f32 %v288, %v340
      %v342 = vpop.f32.mrb[0].mxu0
      %v343 = vpop.f32.mrb[0].mxu0
      %v344 = vpop.f32.mrb[0].mxu0
      %345 = vdwg.mxu0
      %v346 = vld [vmem:[%s5] sm:$0xf]
      %v347 = vld [vmem:[%s5 + $0x4] sm:$0xf]
      %v348 = vld [vmem:[%s5 + $0x8] sm:$0xf]
      %v349 = vld [vmem:[%s5 + $0xc] sm:$0xf]
      %v350 = vld [vmem:[%s6] sm:$0x1]
      %v352 = vlaneseq
      %v353 = vshrl.u32 %v352, 7
      %v354 = vsub.s32 0, %v353
      %v355 = vrot.slane %v350, %v354
      %v359 = vunpack.c.l.b16 %v277
      %v360 = vunpack.c.l.b16 %v278
      %v361 = vpack.c.b16 %v360, %v359
      %v366 = vunpack.c.l.b16 %v346
      %v367 = vunpack.c.l.b16 %v347
      %v368 = vunpack.c.l.b16 %v348
      %v369 = vunpack.c.l.b16 %v349
      %v370 = vpack.c.b16 %v367, %v366
      %v371 = vpack.c.b16 %v369, %v368
      %v375 = vsel %vm302, %v361, 0
      %377 = vmatprep.subr.bf16.mxu0 0
      %378 = vmatpush1.bf16.msra.mxu0 %v370
      %379 = vmatprep.subr.bf16.mxu0 0
      %380 = vmatpush1.bf16.msra.mxu0 %v371
      %381 = vmatprep.subr.bf16.mxu0 0
      %382 = vmatpush1.bf16.msra.mxu0 0
      %383 = vmatprep.subr.bf16.mxu0 0
      %384 = vmatpush1.bf16.msra.mxu0 0
      %385 = vmatprep.subr.bf16.mxu0 0
      %386 = vmatpush1.bf16.msra.mxu0 0
      %387 = vmatprep.subr.bf16.mxu0 0
      %388 = vmatpush1.bf16.msra.mxu0 0
      %389 = vmatprep.subr.bf16.mxu0 0
      %390 = vmatpush1.bf16.msra.mxu0 0
      %391 = vmatprep.subr.bf16.mxu0 0
      %392 = vmatpush1.bf16.msra.mxu0 0
      %393 = vmatprep.subr.bf16.mxu0 0
      %394 = vmatpush1.bf16.msra.mxu0 0
      %395 = vmatprep.subr.bf16.mxu0 0
      %396 = vmatpush1.bf16.msra.mxu0 0
      %397 = vmatprep.subr.bf16.mxu0 0
      %398 = vmatpush1.bf16.msra.mxu0 0
      %399 = vmatprep.subr.bf16.mxu0 0
      %400 = vmatpush1.bf16.msra.mxu0 0
      %401 = vmatprep.subr.bf16.mxu0 0
      %402 = vmatpush1.bf16.msra.mxu0 0
      %403 = vmatprep.subr.bf16.mxu0 0
      %404 = vmatpush1.bf16.msra.mxu0 0
      %405 = vmatprep.subr.bf16.mxu0 0
      %406 = vmatpush1.bf16.msra.mxu0 0
      %407 = vmatprep.subr.bf16.mxu0 0
      %408 = vmatpush1.bf16.msra.mxu0 0
      %409 = vmatprep.mubr.bf16.mxu0 0
      %410 = vmatmul.mubr.bf16.gmra.mrb[0].mxu0 %v375
      %v411 = vpop.f32.mrb[0].mxu0
      %v412 = vadd.f32 %v355, %v411
      %v413 = vpop.f32.mrb[0].mxu0
      %v414 = vpop.f32.mrb[0].mxu0
      %v415 = vadd.f32 %v355, %v414
      %v416 = vpop.f32.mrb[0].mxu0
      %417 = vdwg.mxu0
      %v418 = vlaneseq
      %v419 = vand.u32 %v418, 127
      %s420 = sld [smem:[#allocation3 + %s24]]
      %v421 = vstv %s420
      %vm422 = vcmp.lt.s32.totalorder %v419, %v421
      %v423 = vmul.f32 %v341, 0.35355338
      %v424 = vpack.c.bf16 %v423, %v423
      %v425 = vpack.c.bf16 %v415, %v412
      %vm426 = vcmask 64512
      %v428 = vsel %vm426, %v424, 0
      %v431 = vsel %vm426, %v425, 0
      %433 = vmatprep.subr.bf16.mxu0 0
      %434 = vmatpush1.bf16.xpose.msra.mxu0 %v431
      %435 = vmatprep.subr.bf16.mxu0 0
      %436 = vmatpush1.bf16.xpose.msra.mxu0 0
      %437 = vmatprep.subr.bf16.mxu0 0
      %438 = vmatpush1.bf16.xpose.msra.mxu0 0
      %439 = vmatprep.subr.bf16.mxu0 0
      %440 = vmatpush1.bf16.xpose.msra.mxu0 0
      %441 = vmatprep.subr.bf16.mxu0 0
      %442 = vmatpush1.bf16.xpose.msra.mxu0 0
      %443 = vmatprep.subr.bf16.mxu0 0
      %444 = vmatpush1.bf16.xpose.msra.mxu0 0
      %445 = vmatprep.subr.bf16.mxu0 0
      %446 = vmatpush1.bf16.xpose.msra.mxu0 0
      %447 = vmatprep.subr.bf16.mxu0 0
      %448 = vmatpush1.bf16.xpose.msra.mxu0 0
      %449 = vmatprep.subr.bf16.mxu0 0
      %450 = vmatpush1.bf16.xpose.msra.mxu0 0
      %451 = vmatprep.subr.bf16.mxu0 0
      %452 = vmatpush1.bf16.xpose.msra.mxu0 0
      %453 = vmatprep.subr.bf16.mxu0 0
      %454 = vmatpush1.bf16.xpose.msra.mxu0 0
      %455 = vmatprep.subr.bf16.mxu0 0
      %456 = vmatpush1.bf16.xpose.msra.mxu0 0
      %457 = vmatprep.subr.bf16.mxu0 0
      %458 = vmatpush1.bf16.xpose.msra.mxu0 0
      %459 = vmatprep.subr.bf16.mxu0 0
      %460 = vmatpush1.bf16.xpose.msra.mxu0 0
      %461 = vmatprep.subr.bf16.mxu0 0
      %462 = vmatpush1.bf16.xpose.msra.mxu0 0
      %463 = vmatprep.subr.bf16.mxu0 0
      %464 = vmatpush1.bf16.xpose.msra.mxu0 0
      %465 = vmatprep.mubr.bf16.mxu0 0
      %466 = vmatmul.mubr.bf16.gmra.mrb[0].mxu0 %v428
      %v467 = vpop.f32.mrb[0].mxu0
      %v468 = vadd.f32 0.0, %v467
      %v469 = vpop.f32.mrb[0].mxu0
      %v470 = vpop.f32.mrb[0].mxu0
      %v471 = vpop.f32.mrb[0].mxu0
      %472 = vdwg.mxu0
      %v473 = vsel %vm422, %v468, -1e+09
      %vm474 = vcmask 130048
      %v475 = vsel %vm474, %v473, -inf
      %476 = vmax.xlane.f32.xlu0 %v475
      %v477 = vpop.xlane.xlu0 %476
      %v478 = vsub.f32 %v473, %v477
      %v479 = vmul.f32 %v478, 1.442695
      %v480 = vpow.pop %v479
      %v481 = vsel %vm474, %v480, 0.0
      %482 = vadd.xlane.f32.xlu0 %v481
      %v483 = vpop.xlane.xlu0 %482
      %v484 = vrcp.pop %v483
      %v485 = vmul.f32 %v480, %v484
      %v486 = vpack.c.bf16 %v485, %v485
      %488 = vrot.lane.b32.xlu0 %v425, 96
      %v489 = vpop.permute.xlu0 %488
      %v492 = vsel %vm474, %v486, 0
      %494 = vmatprep.subr.bf16.mxu0 0
      %495 = vmatpush1.bf16.msra.mxu0 %v489
      %496 = vmatprep.subr.bf16.mxu0 0
      %497 = vmatpush1.bf16.msra.mxu0 0
      %498 = vmatprep.subr.bf16.mxu0 0
      %499 = vmatpush1.bf16.msra.mxu0 0
      %500 = vmatprep.subr.bf16.mxu0 0
      %501 = vmatpush1.bf16.msra.mxu0 0
      %502 = vmatprep.subr.bf16.mxu0 0
      %503 = vmatpush1.bf16.msra.mxu0 0
      %504 = vmatprep.subr.bf16.mxu0 0
      %505 = vmatpush1.bf16.msra.mxu0 0
      %506 = vmatprep.subr.bf16.mxu0 0
      %507 = vmatpush1.bf16.msra.mxu0 0
      %508 = vmatprep.subr.bf16.mxu0 0
      %509 = vmatpush1.bf16.msra.mxu0 0
      %510 = vmatprep.subr.bf16.mxu0 0
      %511 = vmatpush1.bf16.msra.mxu0 0
      %512 = vmatprep.subr.bf16.mxu0 0
      %513 = vmatpush1.bf16.msra.mxu0 0
      %514 = vmatprep.subr.bf16.mxu0 0
      %515 = vmatpush1.bf16.msra.mxu0 0
      %516 = vmatprep.subr.bf16.mxu0 0
      %517 = vmatpush1.bf16.msra.mxu0 0
      %518 = vmatprep.subr.bf16.mxu0 0
      %519 = vmatpush1.bf16.msra.mxu0 0
      %520 = vmatprep.subr.bf16.mxu0 0
      %521 = vmatpush1.bf16.msra.mxu0 0
      %522 = vmatprep.subr.bf16.mxu0 0
      %523 = vmatpush1.bf16.msra.mxu0 0
      %524 = vmatprep.subr.bf16.mxu0 0
      %525 = vmatpush1.bf16.msra.mxu0 0
      %526 = vmatprep.mubr.bf16.mxu0 0
      %527 = vmatmul.mubr.bf16.gmra.mrb[0].mxu0 %v492
      %v528 = vpop.f32.mrb[0].mxu0
      %v529 = vadd.f32 0.0, %v528
      %v530 = vpop.f32.mrb[0].mxu0
      %v531 = vpop.f32.mrb[0].mxu0
      %v532 = vpop.f32.mrb[0].mxu0
      %533 = vdwg.mxu0
      %535 = vrot.lane.b32.xlu0 %v424, 120
      %v536 = vpop.permute.xlu0 %535
      %537 = vrot.lane.b32.xlu0 %v425, 120
      %v538 = vpop.permute.xlu0 %537
      %v540 = vsel %vm426, %v536, 0
      %v543 = vsel %vm426, %v538, 0
      %545 = vmatprep.subr.bf16.mxu0 0
      %546 = vmatpush1.bf16.xpose.msra.mxu0 %v543
      %547 = vmatprep.subr.bf16.mxu0 0
      %548 = vmatpush1.bf16.xpose.msra.mxu0 0
      %549 = vmatprep.subr.bf16.mxu0 0
      %550 = vmatpush1.bf16.xpose.msra.mxu0 0
      %551 = vmatprep.subr.bf16.mxu0 0
      %552 = vmatpush1.bf16.xpose.msra.mxu0 0
      %553 = vmatprep.subr.bf16.mxu0 0
      %554 = vmatpush1.bf16.xpose.msra.mxu0 0
      %555 = vmatprep.subr.bf16.mxu0 0
      %556 = vmatpush1.bf16.xpose.msra.mxu0 0
      %557 = vmatprep.subr.bf16.mxu0 0
      %558 = vmatpush1.bf16.xpose.msra.mxu0 0
      %559 = vmatprep.subr.bf16.mxu0 0
      %560 = vmatpush1.bf16.xpose.msra.mxu0 0
      %561 = vmatprep.subr.bf16.mxu0 0
      %562 = vmatpush1.bf16.xpose.msra.mxu0 0
      %563 = vmatprep.subr.bf16.mxu0 0
      %564 = vmatpush1.bf16.xpose.msra.mxu0 0
      %565 = vmatprep.subr.bf16.mxu0 0
      %566 = vmatpush1.bf16.xpose.msra.mxu0 0
      %567 = vmatprep.subr.bf16.mxu0 0
      %568 = vmatpush1.bf16.xpose.msra.mxu0 0
      %569 = vmatprep.subr.bf16.mxu0 0
      %570 = vmatpush1.bf16.xpose.msra.mxu0 0
      %571 = vmatprep.subr.bf16.mxu0 0
      %572 = vmatpush1.bf16.xpose.msra.mxu0 0
      %573 = vmatprep.subr.bf16.mxu0 0
      %574 = vmatpush1.bf16.xpose.msra.mxu0 0
      %575 = vmatprep.subr.bf16.mxu0 0
      %576 = vmatpush1.bf16.xpose.msra.mxu0 0
      %577 = vmatprep.mubr.bf16.mxu0 0
      %578 = vmatmul.mubr.bf16.gmra.mrb[0].mxu0 %v540
      %v579 = vpop.f32.mrb[0].mxu0
      %v580 = vadd.f32 0.0, %v579
      %v581 = vpop.f32.mrb[0].mxu0
      %v582 = vpop.f32.mrb[0].mxu0
      %v583 = vpop.f32.mrb[0].mxu0
      %584 = vdwg.mxu0
      %v585 = vsel %vm422, %v580, -1e+09
      %v586 = vsel %vm474, %v585, -inf
      %587 = vmax.xlane.f32.xlu0 %v586
      %v588 = vpop.xlane.xlu0 %587
      %v589 = vsub.f32 %v585, %v588
      %v590 = vmul.f32 %v589, 1.442695
      %v591 = vpow.pop %v590
      %v592 = vsel %vm474, %v591, 0.0
      %593 = vadd.xlane.f32.xlu0 %v592
      %v594 = vpop.xlane.xlu0 %593
      %v595 = vrcp.pop %v594
      %v596 = vmul.f32 %v591, %v595
      %v597 = vpack.c.bf16 %v596, %v596
      %598 = vrot.lane.b32.xlu0 %v425, 88
      %v599 = vpop.permute.xlu0 %598
      %v602 = vsel %vm474, %v597, 0
      %604 = vmatprep.subr.bf16.mxu0 0
      %605 = vmatpush1.bf16.msra.mxu0 %v599
      %606 = vmatprep.subr.bf16.mxu0 0
      %607 = vmatpush1.bf16.msra.mxu0 0
      %608 = vmatprep.subr.bf16.mxu0 0
      %609 = vmatpush1.bf16.msra.mxu0 0
      %610 = vmatprep.subr.bf16.mxu0 0
      %611 = vmatpush1.bf16.msra.mxu0 0
      %612 = vmatprep.subr.bf16.mxu0 0
      %613 = vmatpush1.bf16.msra.mxu0 0
      %614 = vmatprep.subr.bf16.mxu0 0
      %615 = vmatpush1.bf16.msra.mxu0 0
      %616 = vmatprep.subr.bf16.mxu0 0
      %617 = vmatpush1.bf16.msra.mxu0 0
      %618 = vmatprep.subr.bf16.mxu0 0
      %619 = vmatpush1.bf16.msra.mxu0 0
      %620 = vmatprep.subr.bf16.mxu0 0
      %621 = vmatpush1.bf16.msra.mxu0 0
      %622 = vmatprep.subr.bf16.mxu0 0
      %623 = vmatpush1.bf16.msra.mxu0 0
      %624 = vmatprep.subr.bf16.mxu0 0
      %625 = vmatpush1.bf16.msra.mxu0 0
      %626 = vmatprep.subr.bf16.mxu0 0
      %627 = vmatpush1.bf16.msra.mxu0 0
      %628 = vmatprep.subr.bf16.mxu0 0
      %629 = vmatpush1.bf16.msra.mxu0 0
      %630 = vmatprep.subr.bf16.mxu0 0
      %631 = vmatpush1.bf16.msra.mxu0 0
      %632 = vmatprep.subr.bf16.mxu0 0
      %633 = vmatpush1.bf16.msra.mxu0 0
      %634 = vmatprep.subr.bf16.mxu0 0
      %635 = vmatpush1.bf16.msra.mxu0 0
      %636 = vmatprep.mubr.bf16.mxu0 0
      %637 = vmatmul.mubr.bf16.gmra.mrb[0].mxu0 %v602
      %v638 = vpop.f32.mrb[0].mxu0
      %v639 = vadd.f32 0.0, %v638
      %v640 = vpop.f32.mrb[0].mxu0
      %v641 = vpop.f32.mrb[0].mxu0
      %v642 = vpop.f32.mrb[0].mxu0
      %643 = vdwg.mxu0
      %644 = vrot.lane.b32.xlu0 %v424, 112
      %v645 = vpop.permute.xlu0 %644
      %646 = vrot.lane.b32.xlu0 %v425, 112
      %v647 = vpop.permute.xlu0 %646
      %v649 = vsel %vm426, %v645, 0
      %v652 = vsel %vm426, %v647, 0
      %654 = vmatprep.subr.bf16.mxu0 0
      %655 = vmatpush1.bf16.xpose.msra.mxu0 %v652
      %656 = vmatprep.subr.bf16.mxu0 0
      %657 = vmatpush1.bf16.xpose.msra.mxu0 0
      %658 = vmatprep.subr.bf16.mxu0 0
      %659 = vmatpush1.bf16.xpose.msra.mxu0 0
      %660 = vmatprep.subr.bf16.mxu0 0
      %661 = vmatpush1.bf16.xpose.msra.mxu0 0
      %662 = vmatprep.subr.bf16.mxu0 0
      %663 = vmatpush1.bf16.xpose.msra.mxu0 0
      %664 = vmatprep.subr.bf16.mxu0 0
      %665 = vmatpush1.bf16.xpose.msra.mxu0 0
      %666 = vmatprep.subr.bf16.mxu0 0
      %667 = vmatpush1.bf16.xpose.msra.mxu0 0
      %668 = vmatprep.subr.bf16.mxu0 0
      %669 = vmatpush1.bf16.xpose.msra.mxu0 0
      %670 = vmatprep.subr.bf16.mxu0 0
      %671 = vmatpush1.bf16.xpose.msra.mxu0 0
      %672 = vmatprep.subr.bf16.mxu0 0
      %673 = vmatpush1.bf16.xpose.msra.mxu0 0
      %674 = vmatprep.subr.bf16.mxu0 0
      %675 = vmatpush1.bf16.xpose.msra.mxu0 0
      %676 = vmatprep.subr.bf16.mxu0 0
      %677 = vmatpush1.bf16.xpose.msra.mxu0 0
      %678 = vmatprep.subr.bf16.mxu0 0
      %679 = vmatpush1.bf16.xpose.msra.mxu0 0
      %680 = vmatprep.subr.bf16.mxu0 0
      %681 = vmatpush1.bf16.xpose.msra.mxu0 0
      %682 = vmatprep.subr.bf16.mxu0 0
      %683 = vmatpush1.bf16.xpose.msra.mxu0 0
      %684 = vmatprep.subr.bf16.mxu0 0
      %685 = vmatpush1.bf16.xpose.msra.mxu0 0
      %686 = vmatprep.mubr.bf16.mxu0 0
      %687 = vmatmul.mubr.bf16.gmra.mrb[0].mxu0 %v649
      %v688 = vpop.f32.mrb[0].mxu0
      %v689 = vadd.f32 0.0, %v688
      %v690 = vpop.f32.mrb[0].mxu0
      %v691 = vpop.f32.mrb[0].mxu0
      %v692 = vpop.f32.mrb[0].mxu0
      %693 = vdwg.mxu0
      %v694 = vsel %vm422, %v689, -1e+09
      %v695 = vsel %vm474, %v694, -inf
      %696 = vmax.xlane.f32.xlu0 %v695
      %v697 = vpop.xlane.xlu0 %696
      %v698 = vsub.f32 %v694, %v697
      %v699 = vmul.f32 %v698, 1.442695
      %v700 = vpow.pop %v699
      %v701 = vsel %vm474, %v700, 0.0
      %702 = vadd.xlane.f32.xlu0 %v701
      %v703 = vpop.xlane.xlu0 %702
      %v704 = vrcp.pop %v703
      %v705 = vmul.f32 %v700, %v704
      %v706 = vpack.c.bf16 %v705, %v705
      %707 = vrot.lane.b32.xlu0 %v425, 80
      %v708 = vpop.permute.xlu0 %707
      %v711 = vsel %vm474, %v706, 0
      %713 = vmatprep.subr.bf16.mxu0 0
      %714 = vmatpush1.bf16.msra.mxu0 %v708
      %715 = vmatprep.subr.bf16.mxu0 0
      %716 = vmatpush1.bf16.msra.mxu0 0
      %717 = vmatprep.subr.bf16.mxu0 0
      %718 = vmatpush1.bf16.msra.mxu0 0
      %719 = vmatprep.subr.bf16.mxu0 0
      %720 = vmatpush1.bf16.msra.mxu0 0
      %721 = vmatprep.subr.bf16.mxu0 0
      %722 = vmatpush1.bf16.msra.mxu0 0
      %723 = vmatprep.subr.bf16.mxu0 0
      %724 = vmatpush1.bf16.msra.mxu0 0
      %725 = vmatprep.subr.bf16.mxu0 0
      %726 = vmatpush1.bf16.msra.mxu0 0
      %727 = vmatprep.subr.bf16.mxu0 0
      %728 = vmatpush1.bf16.msra.mxu0 0
      %729 = vmatprep.subr.bf16.mxu0 0
      %730 = vmatpush1.bf16.msra.mxu0 0
      %731 = vmatprep.subr.bf16.mxu0 0
      %732 = vmatpush1.bf16.msra.mxu0 0
      %733 = vmatprep.subr.bf16.mxu0 0
      %734 = vmatpush1.bf16.msra.mxu0 0
      %735 = vmatprep.subr.bf16.mxu0 0
      %736 = vmatpush1.bf16.msra.mxu0 0
      %737 = vmatprep.subr.bf16.mxu0 0
      %738 = vmatpush1.bf16.msra.mxu0 0
      %739 = vmatprep.subr.bf16.mxu0 0
      %740 = vmatpush1.bf16.msra.mxu0 0
      %741 = vmatprep.subr.bf16.mxu0 0
      %742 = vmatpush1.bf16.msra.mxu0 0
      %743 = vmatprep.subr.bf16.mxu0 0
      %744 = vmatpush1.bf16.msra.mxu0 0
      %745 = vmatprep.mubr.bf16.mxu0 0
      %746 = vmatmul.mubr.bf16.gmra.mrb[0].mxu0 %v711
      %v747 = vpop.f32.mrb[0].mxu0
      %v748 = vadd.f32 0.0, %v747
      %v749 = vpop.f32.mrb[0].mxu0
      %v750 = vpop.f32.mrb[0].mxu0
      %v751 = vpop.f32.mrb[0].mxu0
      %752 = vdwg.mxu0
      %753 = vrot.lane.b32.xlu0 %v424, 104
      %v754 = vpop.permute.xlu0 %753
      %755 = vrot.lane.b32.xlu0 %v425, 104
      %v756 = vpop.permute.xlu0 %755
      %v758 = vsel %vm426, %v754, 0
      %v761 = vsel %vm426, %v756, 0
      %763 = vmatprep.subr.bf16.mxu0 0
      %764 = vmatpush1.bf16.xpose.msra.mxu0 %v761
      %765 = vmatprep.subr.bf16.mxu0 0
      %766 = vmatpush1.bf16.xpose.msra.mxu0 0
      %767 = vmatprep.subr.bf16.mxu0 0
      %768 = vmatpush1.bf16.xpose.msra.mxu0 0
      %769 = vmatprep.subr.bf16.mxu0 0
      %770 = vmatpush1.bf16.xpose.msra.mxu0 0
      %771 = vmatprep.subr.bf16.mxu0 0
      %772 = vmatpush1.bf16.xpose.msra.mxu0 0
      %773 = vmatprep.subr.bf16.mxu0 0
      %774 = vmatpush1.bf16.xpose.msra.mxu0 0
      %775 = vmatprep.subr.bf16.mxu0 0
      %776 = vmatpush1.bf16.xpose.msra.mxu0 0
      %777 = vmatprep.subr.bf16.mxu0 0
      %778 = vmatpush1.bf16.xpose.msra.mxu0 0
      %779 = vmatprep.subr.bf16.mxu0 0
      %780 = vmatpush1.bf16.xpose.msra.mxu0 0
      %781 = vmatprep.subr.bf16.mxu0 0
      %782 = vmatpush1.bf16.xpose.msra.mxu0 0
      %783 = vmatprep.subr.bf16.mxu0 0
      %784 = vmatpush1.bf16.xpose.msra.mxu0 0
      %785 = vmatprep.subr.bf16.mxu0 0
      %786 = vmatpush1.bf16.xpose.msra.mxu0 0
      %787 = vmatprep.subr.bf16.mxu0 0
      %788 = vmatpush1.bf16.xpose.msra.mxu0 0
      %789 = vmatprep.subr.bf16.mxu0 0
      %790 = vmatpush1.bf16.xpose.msra.mxu0 0
      %791 = vmatprep.subr.bf16.mxu0 0
      %792 = vmatpush1.bf16.xpose.msra.mxu0 0
      %793 = vmatprep.subr.bf16.mxu0 0
      %794 = vmatpush1.bf16.xpose.msra.mxu0 0
      %795 = vmatprep.mubr.bf16.mxu0 0
      %796 = vmatmul.mubr.bf16.gmra.mrb[0].mxu0 %v758
      %v797 = vpop.f32.mrb[0].mxu0
      %v798 = vadd.f32 0.0, %v797
      %v799 = vpop.f32.mrb[0].mxu0
      %v800 = vpop.f32.mrb[0].mxu0
      %v801 = vpop.f32.mrb[0].mxu0
      %802 = vdwg.mxu0
      %v803 = vsel %vm422, %v798, -1e+09
      %v804 = vsel %vm474, %v803, -inf
      %805 = vmax.xlane.f32.xlu0 %v804
      %v806 = vpop.xlane.xlu0 %805
      %v807 = vsub.f32 %v803, %v806
      %v808 = vmul.f32 %v807, 1.442695
      %v809 = vpow.pop %v808
      %v810 = vsel %vm474, %v809, 0.0
      %811 = vadd.xlane.f32.xlu0 %v810
      %v812 = vpop.xlane.xlu0 %811
      %v813 = vrcp.pop %v812
      %v814 = vmul.f32 %v809, %v813
      %v815 = vpack.c.bf16 %v814, %v814
      %816 = vrot.lane.b32.xlu0 %v425, 72
      %v817 = vpop.permute.xlu0 %816
      %v820 = vsel %vm474, %v815, 0
      %822 = vmatprep.subr.bf16.mxu0 0
      %823 = vmatpush1.bf16.msra.mxu0 %v817
      %824 = vmatprep.subr.bf16.mxu0 0
      %825 = vmatpush1.bf16.msra.mxu0 0
      %826 = vmatprep.subr.bf16.mxu0 0
      %827 = vmatpush1.bf16.msra.mxu0 0
      %828 = vmatprep.subr.bf16.mxu0 0
      %829 = vmatpush1.bf16.msra.mxu0 0
      %830 = vmatprep.subr.bf16.mxu0 0
      %831 = vmatpush1.bf16.msra.mxu0 0
      %832 = vmatprep.subr.bf16.mxu0 0
      %833 = vmatpush1.bf16.msra.mxu0 0
      %834 = vmatprep.subr.bf16.mxu0 0
      %835 = vmatpush1.bf16.msra.mxu0 0
      %836 = vmatprep.subr.bf16.mxu0 0
      %837 = vmatpush1.bf16.msra.mxu0 0
      %838 = vmatprep.subr.bf16.mxu0 0
      %839 = vmatpush1.bf16.msra.mxu0 0
      %840 = vmatprep.subr.bf16.mxu0 0
      %841 = vmatpush1.bf16.msra.mxu0 0
      %842 = vmatprep.subr.bf16.mxu0 0
      %843 = vmatpush1.bf16.msra.mxu0 0
      %844 = vmatprep.subr.bf16.mxu0 0
      %845 = vmatpush1.bf16.msra.mxu0 0
      %846 = vmatprep.subr.bf16.mxu0 0
      %847 = vmatpush1.bf16.msra.mxu0 0
      %848 = vmatprep.subr.bf16.mxu0 0
      %849 = vmatpush1.bf16.msra.mxu0 0
      %850 = vmatprep.subr.bf16.mxu0 0
      %851 = vmatpush1.bf16.msra.mxu0 0
      %852 = vmatprep.subr.bf16.mxu0 0
      %853 = vmatpush1.bf16.msra.mxu0 0
      %854 = vmatprep.mubr.bf16.mxu0 0
      %855 = vmatmul.mubr.bf16.gmra.mrb[0].mxu0 %v820
      %v856 = vpop.f32.mrb[0].mxu0
      %v857 = vadd.f32 0.0, %v856
      %v858 = vpop.f32.mrb[0].mxu0
      %v859 = vpop.f32.mrb[0].mxu0
      %v860 = vpop.f32.mrb[0].mxu0
      %861 = vdwg.mxu0
      %863 = vrot.lane.b32.xlu0 %v639, 8
      %v864 = vpop.permute.xlu0 %863
      %867 = vrot.lane.b32.xlu0 %v748, 16
      %v868 = vpop.permute.xlu0 %867
      %871 = vrot.lane.b32.xlu0 %v857, 24
      %v872 = vpop.permute.xlu0 %871
      %v874 = vsel %vm426, %v529, %v864
      %v875 = vsel %vm474, %v874, %v868
      %vm876 = vcmask 195584
      %v877 = vsel %vm876, %v875, %v872
      %v878 = vpack.c.bf16 %v877, %v877
      %vm879 = vcmask 257024
      %880 = vst.msk [vmem:[%s273] sm:$0xf] %vm879, %v878
      %p881 = scmp.lt.s32.totalorder %s24, 1
      %s882 = scalar_select %p881, %s24, 1
      %s883 = smul.addr %s882, 4
      %s884 = scalar_lea.vmem %s7, %s883
      // Predicated region
      $region45: #{_lambda_.25} parent=43 // pred_check
        %p885 = pneg %p178
      $region46: #{_lambda_.25} parent=43 // pred_check_branch
        %887 = sbr.rel (%p885) target = $region48
      $region47: #{_lambda_.25} parent=43 // pred_region
        _
      $region48: #{_lambda_.25} parent=43 // pred_fallthru
        _
    $region44: #{_lambda_.25} parent=5 // pred_fallthru
      _
    %p888 = scmp.le.s32.totalorder 2, %s19
    // Predicated region
    $region49: #{_lambda_.25} parent=5 // pred_check
      %p889 = pneg %p888
    $region50: #{_lambda_.25} parent=5 // pred_check_branch
      %891 = sbr.rel (%p889) target = $region52
    $region51: #{_lambda_.25} parent=5 // pred_region
      %s892 = ssub.s32 %s19, 2
      // Predicated region
      $region53: #{_lambda_.25} parent=51 // pred_check
        %p893 = pneg %p184
      $region54: #{_lambda_.25} parent=51 // pred_check_branch
        %895 = sbr.rel (%p893) target = $region56
      $region55: #{_lambda_.25} parent=51 // pred_region
        %p896 = scmp.lt.s32.totalorder %s25, 1
        %s897 = scalar_select %p896, %s25, 1
        %s898 = smul.addr %s897, 4
        %s899 = scalar_lea.vmem %s7, %s898
      $region56: #{_lambda_.25} parent=51 // pred_fallthru
        _
    $region52: #{_lambda_.25} parent=5 // pred_fallthru
      _
  $region6: #{_lambda_.25} parent=0 // loop_footer
    %s23 = sadd.s32 1, %s19
  $region7: #{_lambda_.25} parent=0 // loop_footer_branch
    %18 = sbr.rel target = $region3
  $region8: #{_lambda_.25} parent=0 // loop_exit
    _

// kernel: squeeze.1
$region0: #{squeeze.1}
  %s0 = inlined_call_operand.vmem [shape: f32[14], index: 0, kind: input, shape index: {}]
  %s1 = inlined_call_operand.vmem [shape: f32[2,7], index: 1, kind: output, shape index: {}]
  $region1: #{squeeze.1} parent=0
    #allocation0 [shape = 'u8[4096]{0}', space=vmem, size = 0x1000, scoped, tag = 'scoped mem for output reshape']
    #allocation1 [shape = 'u8[4096]{0}', space=vmem, size = 0x1000, scoped, tag = 'scoped mem for input reshape']
    %s3 = sshllo.u32 0, 1
    %v4 = vld [vmem:[%s0] sm:%s3]
    %5 = vst [vmem:[#allocation1] sm:%s3] %v4
    %v6 = vld [vmem:[#allocation1] sm:$0x1]
    %vm7 = vcmask 56320
    %8 = vst.msk [vmem:[#allocation0] sm:$0x1] %vm7, %v6
    %v9 = vld [vmem:[#allocation1] sm:$0x1]
    %10 = vrot.lane.b32.xlu0 %v9, 121
    %v11 = vpop.permute.xlu0 %10
    %vm12 = vcmask 56320
    %s13 = scalar_lea.vmem [#allocation0], 1
    %14 = vst.msk [vmem:[%s13] sm:$0x1] %vm12, %v11
    %s16 = sshllo.u32 0, 2
    %v18 = vld [vmem:[#allocation0] sm:%s16]
    %s19 = sshllo.u32 0, 2
    %20 = vst [vmem:[%s1] sm:%s19] %v18

// kernel: _lambda_.29
$region0: #{_lambda_.29}
  #allocation0 [shape = 'u32[]', space=smem, size = 0x4, offset = 0x4, fixed_abs, tag = 'smem constant byte address 0x4 - core index']
  #allocation1 [shape = 'u32[144,128]{1,0:T(1,128)}', space=vmem, size = 0x12000, scoped, tag = 'internal scratch']
  %s0 = inlined_call_operand.vmem [shape: f32[16,32], index: 0, kind: input, shape index: {}]
  %s1 = inlined_call_operand.vmem [shape: bf16[32,64], index: 1, kind: input, shape index: {}]
  %s2 = inlined_call_operand.vmem [shape: f32[1,64], index: 2, kind: input, shape index: {}]
  %s3 = inlined_call_operand.vmem [shape: bf16[64,32], index: 3, kind: input, shape index: {}]
  %s4 = inlined_call_operand.vmem [shape: f32[1,32], index: 4, kind: input, shape index: {}]
  %s5 = inlined_call_operand.vmem [shape: f32[1,32], index: 5, kind: input, shape index: {}]
  %s6 = inlined_call_operand.vmem [shape: f32[1,32], index: 6, kind: input, shape index: {}]
  %s7 = inlined_call_operand.vmem [shape: f32[16,32], index: 7, kind: output, shape index: {}]
  %s8 = sld [smem:[#allocation0]]
  $region38: #{_lambda_.29} parent=0
    _
  %s10 = ssub.s32 1, %s8
  %s11 = scalar_select 0, %s10, %s8
  // Predicated region
  $region2: #{_lambda_.29} parent=0 // pred_check
    _
  $region3: #{_lambda_.29} parent=0 // pred_check_branch
    %13 = sbr.rel (0) target = $region5
  $region4: #{_lambda_.29} parent=0 // pred_region
    _
  $region5: #{_lambda_.29} parent=0 // pred_fallthru
    _
  // Predicated region
  $region6: #{_lambda_.29} parent=0 // pred_check
    _
  $region7: #{_lambda_.29} parent=0 // pred_check_branch
    %15 = sbr.rel (0) target = $region9
  $region8: #{_lambda_.29} parent=0 // pred_region
    _
  $region9: #{_lambda_.29} parent=0 // pred_fallthru
    _
  // Predicated region
  $region10: #{_lambda_.29} parent=0 // pred_check
    _
  $region11: #{_lambda_.29} parent=0 // pred_check_branch
    %17 = sbr.rel (0) target = $region13
  $region12: #{_lambda_.29} parent=0 // pred_region
    _
  $region13: #{_lambda_.29} parent=0 // pred_fallthru
    _
  // Predicated region
  $region14: #{_lambda_.29} parent=0 // pred_check
    _
  $region15: #{_lambda_.29} parent=0 // pred_check_branch
    %19 = sbr.rel (0) target = $region17
  $region16: #{_lambda_.29} parent=0 // pred_region
    _
  $region17: #{_lambda_.29} parent=0 // pred_fallthru
    _
  // Predicated region
  $region18: #{_lambda_.29} parent=0 // pred_check
    _
  $region19: #{_lambda_.29} parent=0 // pred_check_branch
    %21 = sbr.rel (0) target = $region21
  $region20: #{_lambda_.29} parent=0 // pred_region
    _
  $region21: #{_lambda_.29} parent=0 // pred_fallthru
    _
  // Predicated region
  $region22: #{_lambda_.29} parent=0 // pred_check
    _
  $region23: #{_lambda_.29} parent=0 // pred_check_branch
    %23 = sbr.rel (0) target = $region25
  $region24: #{_lambda_.29} parent=0 // pred_region
    _
  $region25: #{_lambda_.29} parent=0 // pred_fallthru
    _
  // Predicated region
  $region26: #{_lambda_.29} parent=0 // pred_check
    _
  $region27: #{_lambda_.29} parent=0 // pred_check_branch
    %25 = sbr.rel (0) target = $region29
  $region28: #{_lambda_.29} parent=0 // pred_region
    _
  $region29: #{_lambda_.29} parent=0 // pred_fallthru
    _
  %v27 = vld [vmem:[%s0] sm:$0xff]
  %v28 = vld [vmem:[%s0 + $0x8] sm:$0xff]
  %v29 = vpack.c.bf16 %v28, %v27
  %v30 = vld [vmem:[%s1] sm:$0xf]
  %v31 = vld [vmem:[%s1 + $0x4] sm:$0xf]
  %v32 = vld [vmem:[%s1 + $0x8] sm:$0xf]
  %v33 = vld [vmem:[%s1 + $0xc] sm:$0xf]
  %v34 = vld [vmem:[%s2] sm:$0x1]
  %v36 = vlaneseq
  %v37 = vshrl.u32 %v36, 7
  %v38 = vsub.s32 0, %v37
  %v39 = vrot.slane %v34, %v38
  %v45 = vunpack.c.l.b16 %v30
  %v46 = vunpack.c.l.b16 %v31
  %v47 = vunpack.c.l.b16 %v32
  %v48 = vunpack.c.l.b16 %v33
  %v49 = vpack.c.b16 %v46, %v45
  %v50 = vpack.c.b16 %v48, %v47
  %vm53 = vcmask 261120
  %v55 = vsel %vm53, %v29, 0
  %57 = vmatprep.subr.bf16.mxu0 0
  %58 = vmatpush1.bf16.msra.mxu0 %v49
  %59 = vmatprep.subr.bf16.mxu0 0
  %60 = vmatpush1.bf16.msra.mxu0 %v50
  %61 = vmatprep.subr.bf16.mxu0 0
  %62 = vmatpush1.bf16.msra.mxu0 0
  %63 = vmatprep.subr.bf16.mxu0 0
  %64 = vmatpush1.bf16.msra.mxu0 0
  %65 = vmatprep.subr.bf16.mxu0 0
  %66 = vmatpush1.bf16.msra.mxu0 0
  %67 = vmatprep.subr.bf16.mxu0 0
  %68 = vmatpush1.bf16.msra.mxu0 0
  %69 = vmatprep.subr.bf16.mxu0 0
  %70 = vmatpush1.bf16.msra.mxu0 0
  %71 = vmatprep.subr.bf16.mxu0 0
  %72 = vmatpush1.bf16.msra.mxu0 0
  %73 = vmatprep.subr.bf16.mxu0 0
  %74 = vmatpush1.bf16.msra.mxu0 0
  %75 = vmatprep.subr.bf16.mxu0 0
  %76 = vmatpush1.bf16.msra.mxu0 0
  %77 = vmatprep.subr.bf16.mxu0 0
  %78 = vmatpush1.bf16.msra.mxu0 0
  %79 = vmatprep.subr.bf16.mxu0 0
  %80 = vmatpush1.bf16.msra.mxu0 0
  %81 = vmatprep.subr.bf16.mxu0 0
  %82 = vmatpush1.bf16.msra.mxu0 0
  %83 = vmatprep.subr.bf16.mxu0 0
  %84 = vmatpush1.bf16.msra.mxu0 0
  %85 = vmatprep.subr.bf16.mxu0 0
  %86 = vmatpush1.bf16.msra.mxu0 0
  %87 = vmatprep.subr.bf16.mxu0 0
  %88 = vmatpush1.bf16.msra.mxu0 0
  %89 = vmatprep.mubr.bf16.mxu0 0
  %90 = vmatmul.mubr.bf16.gmra.mrb[0].mxu0 %v55
  %v91 = vpop.f32.mrb[0].mxu0
  %v92 = vadd.f32 %v39, %v91
  %v93 = vpop.f32.mrb[0].mxu0
  %v94 = vpop.f32.mrb[0].mxu0
  %v95 = vadd.f32 %v39, %v94
  %v96 = vpop.f32.mrb[0].mxu0
  %97 = vdwg.mxu0
  %v98 = vmax.f32 %v92, 0.0
  %v99 = vmax.f32 %v95, 0.0
  %v100 = vpack.c.bf16 %v99, %v98
  %v101 = vld [vmem:[%s3] sm:$0xf]
  %v102 = vld [vmem:[%s3 + $0x4] sm:$0xf]
  %v103 = vld [vmem:[%s3 + $0x8] sm:$0xf]
  %v104 = vld [vmem:[%s3 + $0xc] sm:$0xf]
  %v105 = vld [vmem:[%s3 + $0x10] sm:$0xf]
  %v106 = vld [vmem:[%s3 + $0x14] sm:$0xf]
  %v107 = vld [vmem:[%s3 + $0x18] sm:$0xf]
  %v108 = vld [vmem:[%s3 + $0x1c] sm:$0xf]
  %v109 = vld [vmem:[%s4] sm:$0x1]
  %v111 = vlaneseq
  %v112 = vshrl.u32 %v111, 7
  %v113 = vsub.s32 0, %v112
  %v114 = vrot.slane %v109, %v113
  %v124 = vunpack.c.l.b16 %v101
  %v125 = vunpack.c.l.b16 %v102
  %v126 = vunpack.c.l.b16 %v103
  %v127 = vunpack.c.l.b16 %v104
  %v128 = vunpack.c.l.b16 %v105
  %v129 = vunpack.c.l.b16 %v106
  %v130 = vunpack.c.l.b16 %v107
  %v131 = vunpack.c.l.b16 %v108
  %v132 = vpack.c.b16 %v125, %v124
  %v133 = vpack.c.b16 %v127, %v126
  %v134 = vpack.c.b16 %v129, %v128
  %v135 = vpack.c.b16 %v131, %v130
  %vm140 = vcmask 523264
  %v142 = vsel %vm140, %v100, 0
  %144 = vmatprep.subr.bf16.mxu0 0
  %145 = vmatpush1.bf16.msra.mxu0 %v132
  %146 = vmatprep.subr.bf16.mxu0 0
  %147 = vmatpush1.bf16.msra.mxu0 %v133
  %148 = vmatprep.subr.bf16.mxu0 0
  %149 = vmatpush1.bf16.msra.mxu0 %v134
  %150 = vmatprep.subr.bf16.mxu0 0
  %151 = vmatpush1.bf16.msra.mxu0 %v135
  %152 = vmatprep.subr.bf16.mxu0 0
  %153 = vmatpush1.bf16.msra.mxu0 0
  %154 = vmatprep.subr.bf16.mxu0 0
  %155 = vmatpush1.bf16.msra.mxu0 0
  %156 = vmatprep.subr.bf16.mxu0 0
  %157 = vmatpush1.bf16.msra.mxu0 0
  %158 = vmatprep.subr.bf16.mxu0 0
  %159 = vmatpush1.bf16.msra.mxu0 0
  %160 = vmatprep.subr.bf16.mxu0 0
  %161 = vmatpush1.bf16.msra.mxu0 0
  %162 = vmatprep.subr.bf16.mxu0 0
  %163 = vmatpush1.bf16.msra.mxu0 0
  %164 = vmatprep.subr.bf16.mxu0 0
  %165 = vmatpush1.bf16.msra.mxu0 0
  %166 = vmatprep.subr.bf16.mxu0 0
  %167 = vmatpush1.bf16.msra.mxu0 0
  %168 = vmatprep.subr.bf16.mxu0 0
  %169 = vmatpush1.bf16.msra.mxu0 0
  %170 = vmatprep.subr.bf16.mxu0 0
  %171 = vmatpush1.bf16.msra.mxu0 0
  %172 = vmatprep.subr.bf16.mxu0 0
  %173 = vmatpush1.bf16.msra.mxu0 0
  %174 = vmatprep.subr.bf16.mxu0 0
  %175 = vmatpush1.bf16.msra.mxu0 0
  %176 = vmatprep.mubr.bf16.mxu0 0
  %177 = vmatmul.mubr.bf16.gmra.mrb[0].mxu0 %v142
  %v178 = vpop.f32.mrb[0].mxu0
  %v179 = vadd.f32 %v114, %v178
  %v180 = vpop.f32.mrb[0].mxu0
  %v181 = vpop.f32.mrb[0].mxu0
  %v182 = vadd.f32 %v114, %v181
  %v183 = vpop.f32.mrb[0].mxu0
  %184 = vdwg.mxu0
  %v185 = vadd.f32 %v179, %v27
  %v186 = vadd.f32 %v182, %v28
  %v187 = vsel %vm53, %v185, 0.0
  %188 = vadd.xlane.f32.xlu0 %v187
  %v189 = vpop.xlane.xlu0 %188
  %v190 = vsel %vm53, %v186, 0.0
  %191 = vadd.xlane.f32.xlu0 %v190
  %v192 = vpop.xlane.xlu0 %191
  %v193 = vrcp.pop 32.0
  %v194 = vmul.f32 %v189, %v193
  %v195 = vmul.f32 %v192, %v193
  %v196 = vsub.f32 %v185, %v194
  %v197 = vsub.f32 %v186, %v195
  %v198 = vmul.f32 %v196, %v196
  %v199 = vmul.f32 %v197, %v197
  %v200 = vsel %vm53, %v198, 0.0
  %201 = vadd.xlane.f32.xlu0 %v200
  %v202 = vpop.xlane.xlu0 %201
  %v203 = vsel %vm53, %v199, 0.0
  %204 = vadd.xlane.f32.xlu0 %v203
  %v205 = vpop.xlane.xlu0 %204
  %v206 = vmul.f32 %v202, %v193
  %v207 = vmul.f32 %v205, %v193
  %v208 = vadd.f32 %v206, 1e-06
  %v209 = vadd.f32 %v207, 1e-06
  %v210 = vrsqrt.pop %v208
  %v211 = vrsqrt.pop %v209
  %v212 = vmul.f32 %v196, %v210
  %v213 = vmul.f32 %v197, %v211
  %v214 = vld [vmem:[%s5] sm:$0x1]
  %v216 = vlaneseq
  %v217 = vshrl.u32 %v216, 7
  %v218 = vsub.s32 0, %v217
  %v219 = vrot.slane %v214, %v218
  %v221 = vmul.f32 %v212, %v219
  %v222 = vmul.f32 %v213, %v219
  %v223 = vld [vmem:[%s6] sm:$0x1]
  %v225 = vlaneseq
  %v226 = vshrl.u32 %v225, 7
  %v227 = vsub.s32 0, %v226
  %v228 = vrot.slane %v223, %v227
  %v230 = vadd.f32 %v221, %v228
  %v231 = vadd.f32 %v222, %v228
  %232 = vst.msk [vmem:[%s7] sm:$0xff] %vm53, %v230
  %233 = vst.msk [vmem:[%s7 + $0x8] sm:$0xff] %vm53, %v231
  // Predicated region
  $region30: #{_lambda_.29} parent=0 // pred_check
    _
  $region31: #{_lambda_.29} parent=0 // pred_check_branch
    %235 = sbr.rel (0) target = $region33
  $region32: #{_lambda_.29} parent=0 // pred_region
    _
  $region33: #{_lambda_.29} parent=0 // pred_fallthru
    _
  // Predicated region
  $region34: #{_lambda_.29} parent=0 // pred_check
    _
  $region35: #{_lambda_.29} parent=0 // pred_check_branch
    %237 = sbr.rel (0) target = $region37
  $region36: #{_lambda_.29} parent=0 // pred_region
    _
  $region37: #{_lambda_.29} parent=0 // pred_fallthru
    _

// kernel: _lambda_.27
$region0: #{_lambda_.27}
  #allocation0 [shape = 'u32[]', space=smem, size = 0x4, offset = 0x4, fixed_abs, tag = 'smem constant byte address 0x4 - core index']
  #allocation1 [shape = 'u32[144,128]{1,0:T(1,128)}', space=vmem, size = 0x12000, scoped, tag = 'internal scratch']
  #allocation2 [shape = 's32[1]{0}', space=sflag, size = 0x4, scoped, tag = 'scoped memory for _lambda_.27']
  #allocation3 [shape = 'u8[512]{0}', space=smem, size = 0x200, scoped, tag = 'prefetched SMEM operand 0']
  %s0 = inlined_call_operand.vmem [shape: s32[2], index: 0, kind: input, shape index: {}]
  %s1 = inlined_call_operand.vmem [shape: f32[2,8,32], index: 1, kind: input, shape index: {}]
  %s2 = inlined_call_operand.vmem [shape: bf16[2,8,32], index: 2, kind: input, shape index: {}]
  %s3 = inlined_call_operand.vmem [shape: bf16[32,32], index: 3, kind: input, shape index: {}]
  %s4 = inlined_call_operand.vmem [shape: f32[1,32], index: 4, kind: input, shape index: {}]
  %s5 = inlined_call_operand.vmem [shape: bf16[32,64], index: 5, kind: input, shape index: {}]
  %s6 = inlined_call_operand.vmem [shape: f32[1,64], index: 6, kind: input, shape index: {}]
  %s7 = inlined_call_operand.vmem [shape: bf16[2,8,32], index: 7, kind: output, shape index: {}]
  %s8 = sld [smem:[#allocation0]]
  $region57: #{_lambda_.27} parent=0
    _
  %s10 = ssub.s32 1, %s8
  %s11 = scalar_select 0, %s10, %s8
  %s12 = sshll.u32 %s0, 4
  %s13 = int_to_ptr.vmem [resolvable:$true] %s12
  %15 = dma.vmem_to_smem %s13, 16, [#allocation3], [#allocation2]
  %16 = dma.done [#allocation2], 16
  %17 = sfence
  loop: start=0, step=1, limit=4
  $region2: #{_lambda_.27} parent=0 // loop_pre_header
    _
  $region3: #{_lambda_.27} parent=0 // loop_header
    %s19 = sphi 0, %s23
    %p20 = scmp.ge.s32.totalorder %s19, 4
    %s29 = sphi 0, %s31
    %s32 = sphi 0, %s29
    %s33 = sphi 0, %s32
    %s49 = sphi 0, %s33
    %s55 = sphi 0, %s57
    %s58 = sphi 0, %s55
    %s59 = sphi 0, %s58
    %s75 = sphi 0, %s59
    %s79 = sphi 0, %s79
    %s81 = sphi 0, %s79
    %s82 = sphi 0, %s81
    %s96 = sphi 0, %s82
    %s100 = sphi 0, %s100
    %s102 = sphi 0, %s100
    %s103 = sphi 0, %s102
    %s117 = sphi 0, %s103
    %s121 = sphi 0, %s121
    %s123 = sphi 0, %s121
    %s124 = sphi 0, %s123
    %s138 = sphi 0, %s124
    %s142 = sphi 0, %s142
    %s144 = sphi 0, %s142
    %s145 = sphi 0, %s144
    %s159 = sphi 0, %s145
    %s165 = sphi 0, %s167
    %s168 = sphi 0, %s165
    %s169 = sphi 0, %s168
    %s185 = sphi 0, %s169
  $region4: #{_lambda_.27} parent=0 // loop_header_branch
    %22 = sbr.rel (%p20) target = $region8
  $region5: #{_lambda_.27} parent=0 // loop_body
    %s24 = ssub.s32 %s19, 1
    %s25 = ssub.s32 %s19, 2
    %s26 = sadd.s32 %s19, 1
    %s27 = ssub.s32 %s19, %s26
    %p28 = scmp.eq.s32.totalorder %s27, 0
    %s30 = sadd.s32 %s29, 1
    %s31 = scalar_select %p28, %s29, %s30
    %p34 = pneg %p28
    %p35 = scmp.eq.s32.totalorder %s19, 1
    %p36 = por %p34, %p35
    %p37 = scmp.ne.s32.totalorder %s29, %s32
    %p38 = scmp.eq.s32.totalorder %s19, 0
    %p39 = por %p37, %p38
    %p40 = scmp.ne.s32.totalorder %s29, %s32
    %p41 = scmp.eq.s32.totalorder %s24, 1
    %p42 = por %p40, %p41
    %p43 = scmp.ne.s32.totalorder %s32, %s33
    %p44 = scmp.eq.s32.totalorder %s24, 0
    %p45 = por %p43, %p44
    %p46 = scmp.ne.s32.totalorder %s32, %s33
    %p47 = scmp.eq.s32.totalorder %s25, 1
    %p48 = por %p46, %p47
    %p50 = scmp.ne.s32.totalorder %s33, %s49
    %p51 = scmp.eq.s32.totalorder %s25, 0
    %p52 = por %p50, %p51
    %s53 = ssub.s32 %s19, %s26
    %p54 = scmp.eq.s32.totalorder %s53, 0
    %s56 = sadd.s32 %s55, 1
    %s57 = scalar_select %p54, %s55, %s56
    %p60 = pneg %p54
    %p61 = scmp.eq.s32.totalorder %s19, 1
    %p62 = por %p60, %p61
    %p63 = scmp.ne.s32.totalorder %s55, %s58
    %p64 = scmp.eq.s32.totalorder %s19, 0
    %p65 = por %p63, %p64
    %p66 = scmp.ne.s32.totalorder %s55, %s58
    %p67 = scmp.eq.s32.totalorder %s24, 1
    %p68 = por %p66, %p67
    %p69 = scmp.ne.s32.totalorder %s58, %s59
    %p70 = scmp.eq.s32.totalorder %s24, 0
    %p71 = por %p69, %p70
    %p72 = scmp.ne.s32.totalorder %s58, %s59
    %p73 = scmp.eq.s32.totalorder %s25, 1
    %p74 = por %p72, %p73
    %p76 = scmp.ne.s32.totalorder %s59, %s75
    %p77 = scmp.eq.s32.totalorder %s25, 0
    %p78 = por %p76, %p77
    %s80 = sadd.s32 %s79, 1
    %p83 = scmp.eq.s32.totalorder %s19, 1
    %p84 = scmp.ne.s32.totalorder %s79, %s81
    %p85 = scmp.eq.s32.totalorder %s19, 0
    %p86 = por %p84, %p85
    %p87 = scmp.ne.s32.totalorder %s79, %s81
    %p88 = scmp.eq.s32.totalorder %s24, 1
    %p89 = por %p87, %p88
    %p90 = scmp.ne.s32.totalorder %s81, %s82
    %p91 = scmp.eq.s32.totalorder %s24, 0
    %p92 = por %p90, %p91
    %p93 = scmp.ne.s32.totalorder %s81, %s82
    %p94 = scmp.eq.s32.totalorder %s25, 1
    %p95 = por %p93, %p94
    %p97 = scmp.ne.s32.totalorder %s82, %s96
    %p98 = scmp.eq.s32.totalorder %s25, 0
    %p99 = por %p97, %p98
    %s101 = sadd.s32 %s100, 1
    %p104 = scmp.eq.s32.totalorder %s19, 1
    %p105 = scmp.ne.s32.totalorder %s100, %s102
    %p106 = scmp.eq.s32.totalorder %s19, 0
    %p107 = por %p105, %p106
    %p108 = scmp.ne.s32.totalorder %s100, %s102
    %p109 = scmp.eq.s32.totalorder %s24, 1
    %p110 = por %p108, %p109
    %p111 = scmp.ne.s32.totalorder %s102, %s103
    %p112 = scmp.eq.s32.totalorder %s24, 0
    %p113 = por %p111, %p112
    %p114 = scmp.ne.s32.totalorder %s102, %s103
    %p115 = scmp.eq.s32.totalorder %s25, 1
    %p116 = por %p114, %p115
    %p118 = scmp.ne.s32.totalorder %s103, %s117
    %p119 = scmp.eq.s32.totalorder %s25, 0
    %p120 = por %p118, %p119
    %s122 = sadd.s32 %s121, 1
    %p125 = scmp.eq.s32.totalorder %s19, 1
    %p126 = scmp.ne.s32.totalorder %s121, %s123
    %p127 = scmp.eq.s32.totalorder %s19, 0
    %p128 = por %p126, %p127
    %p129 = scmp.ne.s32.totalorder %s121, %s123
    %p130 = scmp.eq.s32.totalorder %s24, 1
    %p131 = por %p129, %p130
    %p132 = scmp.ne.s32.totalorder %s123, %s124
    %p133 = scmp.eq.s32.totalorder %s24, 0
    %p134 = por %p132, %p133
    %p135 = scmp.ne.s32.totalorder %s123, %s124
    %p136 = scmp.eq.s32.totalorder %s25, 1
    %p137 = por %p135, %p136
    %p139 = scmp.ne.s32.totalorder %s124, %s138
    %p140 = scmp.eq.s32.totalorder %s25, 0
    %p141 = por %p139, %p140
    %s143 = sadd.s32 %s142, 1
    %p146 = scmp.eq.s32.totalorder %s19, 1
    %p147 = scmp.ne.s32.totalorder %s142, %s144
    %p148 = scmp.eq.s32.totalorder %s19, 0
    %p149 = por %p147, %p148
    %p150 = scmp.ne.s32.totalorder %s142, %s144
    %p151 = scmp.eq.s32.totalorder %s24, 1
    %p152 = por %p150, %p151
    %p153 = scmp.ne.s32.totalorder %s144, %s145
    %p154 = scmp.eq.s32.totalorder %s24, 0
    %p155 = por %p153, %p154
    %p156 = scmp.ne.s32.totalorder %s144, %s145
    %p157 = scmp.eq.s32.totalorder %s25, 1
    %p158 = por %p156, %p157
    %p160 = scmp.ne.s32.totalorder %s145, %s159
    %p161 = scmp.eq.s32.totalorder %s25, 0
    %p162 = por %p160, %p161
    %s163 = ssub.s32 %s19, %s26
    %p164 = scmp.eq.s32.totalorder %s163, 0
    %s166 = sadd.s32 %s165, 1
    %s167 = scalar_select %p164, %s165, %s166
    %p170 = pneg %p164
    %p171 = scmp.eq.s32.totalorder %s19, 1
    %p172 = por %p170, %p171
    %p173 = scmp.ne.s32.totalorder %s165, %s168
    %p174 = scmp.eq.s32.totalorder %s19, 0
    %p175 = por %p173, %p174
    %p176 = scmp.ne.s32.totalorder %s165, %s168
    %p177 = scmp.eq.s32.totalorder %s24, 1
    %p178 = por %p176, %p177
    %p179 = scmp.ne.s32.totalorder %s168, %s169
    %p180 = scmp.eq.s32.totalorder %s24, 0
    %p181 = por %p179, %p180
    %p182 = scmp.ne.s32.totalorder %s168, %s169
    %p183 = scmp.eq.s32.totalorder %s25, 1
    %p184 = por %p182, %p183
    %p186 = scmp.ne.s32.totalorder %s169, %s185
    %p187 = scmp.eq.s32.totalorder %s25, 0
    %p188 = por %p186, %p187
    %p189 = scmp.le.s32.totalorder 1, %s19
    %p190 = scmp.lt.s32.totalorder %s19, 3
    %p191 = pnand %p189, %p190
    %p192 = pneg %p191
    // Predicated region
    $region9: #{_lambda_.27} parent=5 // pred_check
      _
    $region10: #{_lambda_.27} parent=5 // pred_check_branch
      %194 = sbr.rel (%p191) target = $region12
    $region11: #{_lambda_.27} parent=5 // pred_region
      %s195 = ssub.s32 %s19, 1
      // Predicated region
      $region13: #{_lambda_.27} parent=11 // pred_check
        %p196 = pneg %p92
      $region14: #{_lambda_.27} parent=11 // pred_check_branch
        %198 = sbr.rel (%p196) target = $region16
      $region15: #{_lambda_.27} parent=11 // pred_region
        _
      $region16: #{_lambda_.27} parent=11 // pred_fallthru
        _
      // Predicated region
      $region17: #{_lambda_.27} parent=11 // pred_check
        %p199 = pneg %p113
      $region18: #{_lambda_.27} parent=11 // pred_check_branch
        %201 = sbr.rel (%p199) target = $region20
      $region19: #{_lambda_.27} parent=11 // pred_region
        _
      $region20: #{_lambda_.27} parent=11 // pred_fallthru
        _
      // Predicated region
      $region21: #{_lambda_.27} parent=11 // pred_check
        %p202 = pneg %p134
      $region22: #{_lambda_.27} parent=11 // pred_check_branch
        %204 = sbr.rel (%p202) target = $region24
      $region23: #{_lambda_.27} parent=11 // pred_region
        _
      $region24: #{_lambda_.27} parent=11 // pred_fallthru
        _
      // Predicated region
      $region25: #{_lambda_.27} parent=11 // pred_check
        %p205 = pneg %p155
      $region26: #{_lambda_.27} parent=11 // pred_check_branch
        %207 = sbr.rel (%p205) target = $region28
      $region27: #{_lambda_.27} parent=11 // pred_region
        _
      $region28: #{_lambda_.27} parent=11 // pred_fallthru
        _
    $region12: #{_lambda_.27} parent=5 // pred_fallthru
      _
    %p208 = scmp.lt.s32.totalorder %s19, 2
    // Predicated region
    $region29: #{_lambda_.27} parent=5 // pred_check
      %p209 = pneg %p208
    $region30: #{_lambda_.27} parent=5 // pred_check_branch
      %211 = sbr.rel (%p209) target = $region32
    $region31: #{_lambda_.27} parent=5 // pred_region
      // Predicated region
      $region33: #{_lambda_.27} parent=31 // pred_check
        %p212 = pneg %p39
      $region34: #{_lambda_.27} parent=31 // pred_check_branch
        %214 = sbr.rel (%p212) target = $region36
      $region35: #{_lambda_.27} parent=31 // pred_region
        %p215 = scmp.lt.s32.totalorder %s19, 1
        %s216 = scalar_select %p215, %s19, 1
        %s217 = smul.addr %s216, 8
        %s218 = scalar_lea.vmem %s1, %s217
      $region36: #{_lambda_.27} parent=31 // pred_fallthru
        _
      // Predicated region
      $region37: #{_lambda_.27} parent=31 // pred_check
        %p219 = pneg %p65
      $region38: #{_lambda_.27} parent=31 // pred_check_branch
        %221 = sbr.rel (%p219) target = $region40
      $region39: #{_lambda_.27} parent=31 // pred_region
        %p222 = scmp.lt.s32.totalorder %s19, 1
        %s223 = scalar_select %p222, %s19, 1
        %s224 = smul.addr %s223, 4
        %s225 = scalar_lea.vmem %s2, %s224
      $region40: #{_lambda_.27} parent=31 // pred_fallthru
        _
    $region32: #{_lambda_.27} parent=5 // pred_fallthru
      _
    %p226 = scmp.le.s32.totalorder 1, %s19
    %p227 = scmp.lt.s32.totalorder %s19, 3
    %p228 = pnand %p226, %p227
    %p229 = pneg %p228
    // Predicated region
    $region41: #{_lambda_.27} parent=5 // pred_check
      _
    $region42: #{_lambda_.27} parent=5 // pred_check_branch
      %231 = sbr.rel (%p228) target = $region44
    $region43: #{_lambda_.27} parent=5 // pred_region
      %s232 = ssub.s32 %s19, 1
      %p233 = scmp.lt.s32.totalorder %s24, 1
      %s234 = scalar_select %p233, %s24, 1
      %s235 = smul.addr %s234, 8
      %s236 = scalar_lea.vmem %s1, %s235
      %p237 = pneg %p45
      %p238 = pneg %p42
      %p239 = scmp.lt.s32.totalorder %s24, 1
      %s240 = scalar_select %p239, %s24, 1
      %s241 = smul.addr %s240, 4
      %s242 = scalar_lea.vmem %s2, %s241
      %p243 = pneg %p71
      %p244 = pneg %p68
      %p245 = pneg %p92
      %p246 = pneg %p89
      %p247 = pneg %p113
      %p248 = pneg %p110
      %p249 = pneg %p134
      %p250 = pneg %p131
      %p251 = pneg %p155
      %p252 = pneg %p152
      %p253 = pneg %p181
      %p254 = pneg %p178
      %p255 = scmp.lt.s32.totalorder %s24, 1
      %s256 = scalar_select %p255, %s24, 1
      %s257 = smul.addr %s256, 4
      %s258 = scalar_lea.vmem %s7, %s257
      %p259 = scmp.lt.s32.totalorder %s24, 1
      %s260 = scalar_select %p259, %s24, 1
      %s261 = smul.addr %s260, 8
      %s262 = scalar_lea.vmem %s1, %s261
      %p263 = scmp.lt.s32.totalorder %s24, 1
      %s264 = scalar_select %p263, %s24, 1
      %s265 = smul.addr %s264, 4
      %s266 = scalar_lea.vmem %s2, %s265
      %p267 = scmp.lt.s32.totalorder %s24, 1
      %s268 = scalar_select %p267, %s24, 1
      %s269 = smul.addr %s268, 4
      %s270 = scalar_lea.vmem %s7, %s269
      %v272 = vld [vmem:[%s262] sm:$0xff]
      %v273 = vpack.c.bf16 %v272, %v272
      %v274 = vld [vmem:[%s266] sm:$0xf]
      %v275 = vld [vmem:[%s3] sm:$0xf]
      %v276 = vld [vmem:[%s3 + $0x4] sm:$0xf]
      %v277 = vld [vmem:[%s3 + $0x8] sm:$0xf]
      %v278 = vld [vmem:[%s3 + $0xc] sm:$0xf]
      %v279 = vld [vmem:[%s4] sm:$0x1]
      %v281 = vlaneseq
      %v282 = vshrl.u32 %v281, 7
      %v283 = vsub.s32 0, %v282
      %v284 = vrot.slane %v279, %v283
      %v290 = vunpack.c.l.b16 %v275
      %v291 = vunpack.c.l.b16 %v276
      %v292 = vunpack.c.l.b16 %v277
      %v293 = vunpack.c.l.b16 %v278
      %v294 = vpack.c.b16 %v291, %v290
      %v295 = vpack.c.b16 %v293, %v292
      %vm298 = vcmask 261120
      %v300 = vsel %vm298, %v273, 0
      %302 = vmatprep.subr.bf16.mxu0 0
      %303 = vmatpush1.bf16.msra.mxu0 %v294
      %304 = vmatprep.subr.bf16.mxu0 0
      %305 = vmatpush1.bf16.msra.mxu0 %v295
      %306 = vmatprep.subr.bf16.mxu0 0
      %307 = vmatpush1.bf16.msra.mxu0 0
      %308 = vmatprep.subr.bf16.mxu0 0
      %309 = vmatpush1.bf16.msra.mxu0 0
      %310 = vmatprep.subr.bf16.mxu0 0
      %311 = vmatpush1.bf16.msra.mxu0 0
      %312 = vmatprep.subr.bf16.mxu0 0
      %313 = vmatpush1.bf16.msra.mxu0 0
      %314 = vmatprep.subr.bf16.mxu0 0
      %315 = vmatpush1.bf16.msra.mxu0 0
      %316 = vmatprep.subr.bf16.mxu0 0
      %317 = vmatpush1.bf16.msra.mxu0 0
      %318 = vmatprep.subr.bf16.mxu0 0
      %319 = vmatpush1.bf16.msra.mxu0 0
      %320 = vmatprep.subr.bf16.mxu0 0
      %321 = vmatpush1.bf16.msra.mxu0 0
      %322 = vmatprep.subr.bf16.mxu0 0
      %323 = vmatpush1.bf16.msra.mxu0 0
      %324 = vmatprep.subr.bf16.mxu0 0
      %325 = vmatpush1.bf16.msra.mxu0 0
      %326 = vmatprep.subr.bf16.mxu0 0
      %327 = vmatpush1.bf16.msra.mxu0 0
      %328 = vmatprep.subr.bf16.mxu0 0
      %329 = vmatpush1.bf16.msra.mxu0 0
      %330 = vmatprep.subr.bf16.mxu0 0
      %331 = vmatpush1.bf16.msra.mxu0 0
      %332 = vmatprep.subr.bf16.mxu0 0
      %333 = vmatpush1.bf16.msra.mxu0 0
      %334 = vmatprep.mubr.bf16.mxu0 0
      %335 = vmatmul.mubr.bf16.gmra.mrb[0].mxu0 %v300
      %v336 = vpop.f32.mrb[0].mxu0
      %v337 = vadd.f32 %v284, %v336
      %v338 = vpop.f32.mrb[0].mxu0
      %v339 = vpop.f32.mrb[0].mxu0
      %v340 = vpop.f32.mrb[0].mxu0
      %341 = vdwg.mxu0
      %v342 = vld [vmem:[%s5] sm:$0xf]
      %v343 = vld [vmem:[%s5 + $0x4] sm:$0xf]
      %v344 = vld [vmem:[%s5 + $0x8] sm:$0xf]
      %v345 = vld [vmem:[%s5 + $0xc] sm:$0xf]
      %v346 = vld [vmem:[%s6] sm:$0x1]
      %v348 = vlaneseq
      %v349 = vshrl.u32 %v348, 7
      %v350 = vsub.s32 0, %v349
      %v351 = vrot.slane %v346, %v350
      %v357 = vunpack.c.l.b16 %v342
      %v358 = vunpack.c.l.b16 %v343
      %v359 = vunpack.c.l.b16 %v344
      %v360 = vunpack.c.l.b16 %v345
      %v361 = vpack.c.b16 %v358, %v357
      %v362 = vpack.c.b16 %v360, %v359
      %v366 = vsel %vm298, %v274, 0
      %368 = vmatprep.subr.bf16.mxu0 0
      %369 = vmatpush1.bf16.msra.mxu0 %v361
      %370 = vmatprep.subr.bf16.mxu0 0
      %371 = vmatpush1.bf16.msra.mxu0 %v362
      %372 = vmatprep.subr.bf16.mxu0 0
      %373 = vmatpush1.bf16.msra.mxu0 0
      %374 = vmatprep.subr.bf16.mxu0 0
      %375 = vmatpush1.bf16.msra.mxu0 0
      %376 = vmatprep.subr.bf16.mxu0 0
      %377 = vmatpush1.bf16.msra.mxu0 0
      %378 = vmatprep.subr.bf16.mxu0 0
      %379 = vmatpush1.bf16.msra.mxu0 0
      %380 = vmatprep.subr.bf16.mxu0 0
      %381 = vmatpush1.bf16.msra.mxu0 0
      %382 = vmatprep.subr.bf16.mxu0 0
      %383 = vmatpush1.bf16.msra.mxu0 0
      %384 = vmatprep.subr.bf16.mxu0 0
      %385 = vmatpush1.bf16.msra.mxu0 0
      %386 = vmatprep.subr.bf16.mxu0 0
      %387 = vmatpush1.bf16.msra.mxu0 0
      %388 = vmatprep.subr.bf16.mxu0 0
      %389 = vmatpush1.bf16.msra.mxu0 0
      %390 = vmatprep.subr.bf16.mxu0 0
      %391 = vmatpush1.bf16.msra.mxu0 0
      %392 = vmatprep.subr.bf16.mxu0 0
      %393 = vmatpush1.bf16.msra.mxu0 0
      %394 = vmatprep.subr.bf16.mxu0 0
      %395 = vmatpush1.bf16.msra.mxu0 0
      %396 = vmatprep.subr.bf16.mxu0 0
      %397 = vmatpush1.bf16.msra.mxu0 0
      %398 = vmatprep.subr.bf16.mxu0 0
      %399 = vmatpush1.bf16.msra.mxu0 0
      %400 = vmatprep.mubr.bf16.mxu0 0
      %401 = vmatmul.mubr.bf16.gmra.mrb[0].mxu0 %v366
      %v402 = vpop.f32.mrb[0].mxu0
      %v403 = vadd.f32 %v351, %v402
      %v404 = vpop.f32.mrb[0].mxu0
      %v405 = vpop.f32.mrb[0].mxu0
      %v406 = vpop.f32.mrb[0].mxu0
      %407 = vdwg.mxu0
      %v408 = vlaneseq
      %v409 = vand.u32 %v408, 127
      %s410 = sld [smem:[#allocation3 + %s24]]
      %v411 = vstv %s410
      %vm412 = vcmp.lt.s32.totalorder %v409, %v411
      %v413 = vmul.f32 %v337, 0.35355338
      %v414 = vpack.c.bf16 %v413, %v413
      %v415 = vpack.c.bf16 %v403, %v403
      %vm416 = vcmask 64512
      %v418 = vsel %vm416, %v414, 0
      %v421 = vsel %vm416, %v415, 0
      %423 = vmatprep.subr.bf16.mxu0 0
      %424 = vmatpush1.bf16.xpose.msra.mxu0 %v421
      %425 = vmatprep.subr.bf16.mxu0 0
      %426 = vmatpush1.bf16.xpose.msra.mxu0 0
      %427 = vmatprep.subr.bf16.mxu0 0
      %428 = vmatpush1.bf16.xpose.msra.mxu0 0
      %429 = vmatprep.subr.bf16.mxu0 0
      %430 = vmatpush1.bf16.xpose.msra.mxu0 0
      %431 = vmatprep.subr.bf16.mxu0 0
      %432 = vmatpush1.bf16.xpose.msra.mxu0 0
      %433 = vmatprep.subr.bf16.mxu0 0
      %434 = vmatpush1.bf16.xpose.msra.mxu0 0
      %435 = vmatprep.subr.bf16.mxu0 0
      %436 = vmatpush1.bf16.xpose.msra.mxu0 0
      %437 = vmatprep.subr.bf16.mxu0 0
      %438 = vmatpush1.bf16.xpose.msra.mxu0 0
      %439 = vmatprep.subr.bf16.mxu0 0
      %440 = vmatpush1.bf16.xpose.msra.mxu0 0
      %441 = vmatprep.subr.bf16.mxu0 0
      %442 = vmatpush1.bf16.xpose.msra.mxu0 0
      %443 = vmatprep.subr.bf16.mxu0 0
      %444 = vmatpush1.bf16.xpose.msra.mxu0 0
      %445 = vmatprep.subr.bf16.mxu0 0
      %446 = vmatpush1.bf16.xpose.msra.mxu0 0
      %447 = vmatprep.subr.bf16.mxu0 0
      %448 = vmatpush1.bf16.xpose.msra.mxu0 0
      %449 = vmatprep.subr.bf16.mxu0 0
      %450 = vmatpush1.bf16.xpose.msra.mxu0 0
      %451 = vmatprep.subr.bf16.mxu0 0
      %452 = vmatpush1.bf16.xpose.msra.mxu0 0
      %453 = vmatprep.subr.bf16.mxu0 0
      %454 = vmatpush1.bf16.xpose.msra.mxu0 0
      %455 = vmatprep.mubr.bf16.mxu0 0
      %456 = vmatmul.mubr.bf16.gmra.mrb[0].mxu0 %v418
      %v457 = vpop.f32.mrb[0].mxu0
      %v458 = vadd.f32 0.0, %v457
      %v459 = vpop.f32.mrb[0].mxu0
      %v460 = vpop.f32.mrb[0].mxu0
      %v461 = vpop.f32.mrb[0].mxu0
      %462 = vdwg.mxu0
      %v463 = vsel %vm412, %v458, -1e+09
      %v464 = vsel %vm416, %v463, -inf
      %465 = vmax.xlane.f32.xlu0 %v464
      %v466 = vpop.xlane.xlu0 %465
      %v467 = vsub.f32 %v463, %v466
      %v468 = vmul.f32 %v467, 1.442695
      %v469 = vpow.pop %v468
      %v470 = vsel %vm416, %v469, 0.0
      %471 = vadd.xlane.f32.xlu0 %v470
      %v472 = vpop.xlane.xlu0 %471
      %v473 = vrcp.pop %v472
      %v474 = vmul.f32 %v469, %v473
      %v475 = vpack.c.bf16 %v474, %v474
      %477 = vrot.lane.b32.xlu0 %v415, 96
      %v478 = vpop.permute.xlu0 %477
      %v480 = vsel %vm416, %v475, 0
      %vm482 = vcmask 1043456
      %v484 = vsel %vm482, %v478, 0
      %486 = vmatprep.subr.bf16.mxu0 0
      %487 = vmatpush1.bf16.msra.mxu0 %v484
      %488 = vmatprep.subr.bf16.mxu0 0
      %489 = vmatpush1.bf16.msra.mxu0 0
      %490 = vmatprep.subr.bf16.mxu0 0
      %491 = vmatpush1.bf16.msra.mxu0 0
      %492 = vmatprep.subr.bf16.mxu0 0
      %493 = vmatpush1.bf16.msra.mxu0 0
      %494 = vmatprep.subr.bf16.mxu0 0
      %495 = vmatpush1.bf16.msra.mxu0 0
      %496 = vmatprep.subr.bf16.mxu0 0
      %497 = vmatpush1.bf16.msra.mxu0 0
      %498 = vmatprep.subr.bf16.mxu0 0
      %499 = vmatpush1.bf16.msra.mxu0 0
      %500 = vmatprep.subr.bf16.mxu0 0
      %501 = vmatpush1.bf16.msra.mxu0 0
      %502 = vmatprep.subr.bf16.mxu0 0
      %503 = vmatpush1.bf16.msra.mxu0 0
      %504 = vmatprep.subr.bf16.mxu0 0
      %505 = vmatpush1.bf16.msra.mxu0 0
      %506 = vmatprep.subr.bf16.mxu0 0
      %507 = vmatpush1.bf16.msra.mxu0 0
      %508 = vmatprep.subr.bf16.mxu0 0
      %509 = vmatpush1.bf16.msra.mxu0 0
      %510 = vmatprep.subr.bf16.mxu0 0
      %511 = vmatpush1.bf16.msra.mxu0 0
      %512 = vmatprep.subr.bf16.mxu0 0
      %513 = vmatpush1.bf16.msra.mxu0 0
      %514 = vmatprep.subr.bf16.mxu0 0
      %515 = vmatpush1.bf16.msra.mxu0 0
      %516 = vmatprep.subr.bf16.mxu0 0
      %517 = vmatpush1.bf16.msra.mxu0 0
      %518 = vmatprep.mubr.bf16.mxu0 0
      %519 = vmatmul.mubr.bf16.gmra.mrb[0].mxu0 %v480
      %v520 = vpop.f32.mrb[0].mxu0
      %v521 = vadd.f32 0.0, %v520
      %v522 = vpop.f32.mrb[0].mxu0
      %v523 = vpop.f32.mrb[0].mxu0
      %v524 = vpop.f32.mrb[0].mxu0
      %525 = vdwg.mxu0
      %527 = vrot.lane.b32.xlu0 %v414, 120
      %v528 = vpop.permute.xlu0 %527
      %529 = vrot.lane.b32.xlu0 %v415, 120
      %v530 = vpop.permute.xlu0 %529
      %v532 = vsel %vm416, %v528, 0
      %v535 = vsel %vm416, %v530, 0
      %537 = vmatprep.subr.bf16.mxu0 0
      %538 = vmatpush1.bf16.xpose.msra.mxu0 %v535
      %539 = vmatprep.subr.bf16.mxu0 0
      %540 = vmatpush1.bf16.xpose.msra.mxu0 0
      %541 = vmatprep.subr.bf16.mxu0 0
      %542 = vmatpush1.bf16.xpose.msra.mxu0 0
      %543 = vmatprep.subr.bf16.mxu0 0
      %544 = vmatpush1.bf16.xpose.msra.mxu0 0
      %545 = vmatprep.subr.bf16.mxu0 0
      %546 = vmatpush1.bf16.xpose.msra.mxu0 0
      %547 = vmatprep.subr.bf16.mxu0 0
      %548 = vmatpush1.bf16.xpose.msra.mxu0 0
      %549 = vmatprep.subr.bf16.mxu0 0
      %550 = vmatpush1.bf16.xpose.msra.mxu0 0
      %551 = vmatprep.subr.bf16.mxu0 0
      %552 = vmatpush1.bf16.xpose.msra.mxu0 0
      %553 = vmatprep.subr.bf16.mxu0 0
      %554 = vmatpush1.bf16.xpose.msra.mxu0 0
      %555 = vmatprep.subr.bf16.mxu0 0
      %556 = vmatpush1.bf16.xpose.msra.mxu0 0
      %557 = vmatprep.subr.bf16.mxu0 0
      %558 = vmatpush1.bf16.xpose.msra.mxu0 0
      %559 = vmatprep.subr.bf16.mxu0 0
      %560 = vmatpush1.bf16.xpose.msra.mxu0 0
      %561 = vmatprep.subr.bf16.mxu0 0
      %562 = vmatpush1.bf16.xpose.msra.mxu0 0
      %563 = vmatprep.subr.bf16.mxu0 0
      %564 = vmatpush1.bf16.xpose.msra.mxu0 0
      %565 = vmatprep.subr.bf16.mxu0 0
      %566 = vmatpush1.bf16.xpose.msra.mxu0 0
      %567 = vmatprep.subr.bf16.mxu0 0
      %568 = vmatpush1.bf16.xpose.msra.mxu0 0
      %569 = vmatprep.mubr.bf16.mxu0 0
      %570 = vmatmul.mubr.bf16.gmra.mrb[0].mxu0 %v532
      %v571 = vpop.f32.mrb[0].mxu0
      %v572 = vadd.f32 0.0, %v571
      %v573 = vpop.f32.mrb[0].mxu0
      %v574 = vpop.f32.mrb[0].mxu0
      %v575 = vpop.f32.mrb[0].mxu0
      %576 = vdwg.mxu0
      %v577 = vsel %vm412, %v572, -1e+09
      %v578 = vsel %vm416, %v577, -inf
      %579 = vmax.xlane.f32.xlu0 %v578
      %v580 = vpop.xlane.xlu0 %579
      %v581 = vsub.f32 %v577, %v580
      %v582 = vmul.f32 %v581, 1.442695
      %v583 = vpow.pop %v582
      %v584 = vsel %vm416, %v583, 0.0
      %585 = vadd.xlane.f32.xlu0 %v584
      %v586 = vpop.xlane.xlu0 %585
      %v587 = vrcp.pop %v586
      %v588 = vmul.f32 %v583, %v587
      %v589 = vpack.c.bf16 %v588, %v588
      %590 = vrot.lane.b32.xlu0 %v415, 88
      %v591 = vpop.permute.xlu0 %590
      %v593 = vsel %vm416, %v589, 0
      %v596 = vsel %vm482, %v591, 0
      %598 = vmatprep.subr.bf16.mxu0 0
      %599 = vmatpush1.bf16.msra.mxu0 %v596
      %600 = vmatprep.subr.bf16.mxu0 0
      %601 = vmatpush1.bf16.msra.mxu0 0
      %602 = vmatprep.subr.bf16.mxu0 0
      %603 = vmatpush1.bf16.msra.mxu0 0
      %604 = vmatprep.subr.bf16.mxu0 0
      %605 = vmatpush1.bf16.msra.mxu0 0
      %606 = vmatprep.subr.bf16.mxu0 0
      %607 = vmatpush1.bf16.msra.mxu0 0
      %608 = vmatprep.subr.bf16.mxu0 0
      %609 = vmatpush1.bf16.msra.mxu0 0
      %610 = vmatprep.subr.bf16.mxu0 0
      %611 = vmatpush1.bf16.msra.mxu0 0
      %612 = vmatprep.subr.bf16.mxu0 0
      %613 = vmatpush1.bf16.msra.mxu0 0
      %614 = vmatprep.subr.bf16.mxu0 0
      %615 = vmatpush1.bf16.msra.mxu0 0
      %616 = vmatprep.subr.bf16.mxu0 0
      %617 = vmatpush1.bf16.msra.mxu0 0
      %618 = vmatprep.subr.bf16.mxu0 0
      %619 = vmatpush1.bf16.msra.mxu0 0
      %620 = vmatprep.subr.bf16.mxu0 0
      %621 = vmatpush1.bf16.msra.mxu0 0
      %622 = vmatprep.subr.bf16.mxu0 0
      %623 = vmatpush1.bf16.msra.mxu0 0
      %624 = vmatprep.subr.bf16.mxu0 0
      %625 = vmatpush1.bf16.msra.mxu0 0
      %626 = vmatprep.subr.bf16.mxu0 0
      %627 = vmatpush1.bf16.msra.mxu0 0
      %628 = vmatprep.subr.bf16.mxu0 0
      %629 = vmatpush1.bf16.msra.mxu0 0
      %630 = vmatprep.mubr.bf16.mxu0 0
      %631 = vmatmul.mubr.bf16.gmra.mrb[0].mxu0 %v593
      %v632 = vpop.f32.mrb[0].mxu0
      %v633 = vadd.f32 0.0, %v632
      %v634 = vpop.f32.mrb[0].mxu0
      %v635 = vpop.f32.mrb[0].mxu0
      %v636 = vpop.f32.mrb[0].mxu0
      %637 = vdwg.mxu0
      %638 = vrot.lane.b32.xlu0 %v414, 112
      %v639 = vpop.permute.xlu0 %638
      %640 = vrot.lane.b32.xlu0 %v415, 112
      %v641 = vpop.permute.xlu0 %640
      %v643 = vsel %vm416, %v639, 0
      %v646 = vsel %vm416, %v641, 0
      %648 = vmatprep.subr.bf16.mxu0 0
      %649 = vmatpush1.bf16.xpose.msra.mxu0 %v646
      %650 = vmatprep.subr.bf16.mxu0 0
      %651 = vmatpush1.bf16.xpose.msra.mxu0 0
      %652 = vmatprep.subr.bf16.mxu0 0
      %653 = vmatpush1.bf16.xpose.msra.mxu0 0
      %654 = vmatprep.subr.bf16.mxu0 0
      %655 = vmatpush1.bf16.xpose.msra.mxu0 0
      %656 = vmatprep.subr.bf16.mxu0 0
      %657 = vmatpush1.bf16.xpose.msra.mxu0 0
      %658 = vmatprep.subr.bf16.mxu0 0
      %659 = vmatpush1.bf16.xpose.msra.mxu0 0
      %660 = vmatprep.subr.bf16.mxu0 0
      %661 = vmatpush1.bf16.xpose.msra.mxu0 0
      %662 = vmatprep.subr.bf16.mxu0 0
      %663 = vmatpush1.bf16.xpose.msra.mxu0 0
      %664 = vmatprep.subr.bf16.mxu0 0
      %665 = vmatpush1.bf16.xpose.msra.mxu0 0
      %666 = vmatprep.subr.bf16.mxu0 0
      %667 = vmatpush1.bf16.xpose.msra.mxu0 0
      %668 = vmatprep.subr.bf16.mxu0 0
      %669 = vmatpush1.bf16.xpose.msra.mxu0 0
      %670 = vmatprep.subr.bf16.mxu0 0
      %671 = vmatpush1.bf16.xpose.msra.mxu0 0
      %672 = vmatprep.subr.bf16.mxu0 0
      %673 = vmatpush1.bf16.xpose.msra.mxu0 0
      %674 = vmatprep.subr.bf16.mxu0 0
      %675 = vmatpush1.bf16.xpose.msra.mxu0 0
      %676 = vmatprep.subr.bf16.mxu0 0
      %677 = vmatpush1.bf16.xpose.msra.mxu0 0
      %678 = vmatprep.subr.bf16.mxu0 0
      %679 = vmatpush1.bf16.xpose.msra.mxu0 0
      %680 = vmatprep.mubr.bf16.mxu0 0
      %681 = vmatmul.mubr.bf16.gmra.mrb[0].mxu0 %v643
      %v682 = vpop.f32.mrb[0].mxu0
      %v683 = vadd.f32 0.0, %v682
      %v684 = vpop.f32.mrb[0].mxu0
      %v685 = vpop.f32.mrb[0].mxu0
      %v686 = vpop.f32.mrb[0].mxu0
      %687 = vdwg.mxu0
      %v688 = vsel %vm412, %v683, -1e+09
      %v689 = vsel %vm416, %v688, -inf
      %690 = vmax.xlane.f32.xlu0 %v689
      %v691 = vpop.xlane.xlu0 %690
      %v692 = vsub.f32 %v688, %v691
      %v693 = vmul.f32 %v692, 1.442695
      %v694 = vpow.pop %v693
      %v695 = vsel %vm416, %v694, 0.0
      %696 = vadd.xlane.f32.xlu0 %v695
      %v697 = vpop.xlane.xlu0 %696
      %v698 = vrcp.pop %v697
      %v699 = vmul.f32 %v694, %v698
      %v700 = vpack.c.bf16 %v699, %v699
      %701 = vrot.lane.b32.xlu0 %v415, 80
      %v702 = vpop.permute.xlu0 %701
      %v704 = vsel %vm416, %v700, 0
      %v707 = vsel %vm482, %v702, 0
      %709 = vmatprep.subr.bf16.mxu0 0
      %710 = vmatpush1.bf16.msra.mxu0 %v707
      %711 = vmatprep.subr.bf16.mxu0 0
      %712 = vmatpush1.bf16.msra.mxu0 0
      %713 = vmatprep.subr.bf16.mxu0 0
      %714 = vmatpush1.bf16.msra.mxu0 0
      %715 = vmatprep.subr.bf16.mxu0 0
      %716 = vmatpush1.bf16.msra.mxu0 0
      %717 = vmatprep.subr.bf16.mxu0 0
      %718 = vmatpush1.bf16.msra.mxu0 0
      %719 = vmatprep.subr.bf16.mxu0 0
      %720 = vmatpush1.bf16.msra.mxu0 0
      %721 = vmatprep.subr.bf16.mxu0 0
      %722 = vmatpush1.bf16.msra.mxu0 0
      %723 = vmatprep.subr.bf16.mxu0 0
      %724 = vmatpush1.bf16.msra.mxu0 0
      %725 = vmatprep.subr.bf16.mxu0 0
      %726 = vmatpush1.bf16.msra.mxu0 0
      %727 = vmatprep.subr.bf16.mxu0 0
      %728 = vmatpush1.bf16.msra.mxu0 0
      %729 = vmatprep.subr.bf16.mxu0 0
      %730 = vmatpush1.bf16.msra.mxu0 0
      %731 = vmatprep.subr.bf16.mxu0 0
      %732 = vmatpush1.bf16.msra.mxu0 0
      %733 = vmatprep.subr.bf16.mxu0 0
      %734 = vmatpush1.bf16.msra.mxu0 0
      %735 = vmatprep.subr.bf16.mxu0 0
      %736 = vmatpush1.bf16.msra.mxu0 0
      %737 = vmatprep.subr.bf16.mxu0 0
      %738 = vmatpush1.bf16.msra.mxu0 0
      %739 = vmatprep.subr.bf16.mxu0 0
      %740 = vmatpush1.bf16.msra.mxu0 0
      %741 = vmatprep.mubr.bf16.mxu0 0
      %742 = vmatmul.mubr.bf16.gmra.mrb[0].mxu0 %v704
      %v743 = vpop.f32.mrb[0].mxu0
      %v744 = vadd.f32 0.0, %v743
      %v745 = vpop.f32.mrb[0].mxu0
      %v746 = vpop.f32.mrb[0].mxu0
      %v747 = vpop.f32.mrb[0].mxu0
      %748 = vdwg.mxu0
      %749 = vrot.lane.b32.xlu0 %v414, 104
      %v750 = vpop.permute.xlu0 %749
      %751 = vrot.lane.b32.xlu0 %v415, 104
      %v752 = vpop.permute.xlu0 %751
      %v754 = vsel %vm416, %v750, 0
      %v757 = vsel %vm416, %v752, 0
      %759 = vmatprep.subr.bf16.mxu0 0
      %760 = vmatpush1.bf16.xpose.msra.mxu0 %v757
      %761 = vmatprep.subr.bf16.mxu0 0
      %762 = vmatpush1.bf16.xpose.msra.mxu0 0
      %763 = vmatprep.subr.bf16.mxu0 0
      %764 = vmatpush1.bf16.xpose.msra.mxu0 0
      %765 = vmatprep.subr.bf16.mxu0 0
      %766 = vmatpush1.bf16.xpose.msra.mxu0 0
      %767 = vmatprep.subr.bf16.mxu0 0
      %768 = vmatpush1.bf16.xpose.msra.mxu0 0
      %769 = vmatprep.subr.bf16.mxu0 0
      %770 = vmatpush1.bf16.xpose.msra.mxu0 0
      %771 = vmatprep.subr.bf16.mxu0 0
      %772 = vmatpush1.bf16.xpose.msra.mxu0 0
      %773 = vmatprep.subr.bf16.mxu0 0
      %774 = vmatpush1.bf16.xpose.msra.mxu0 0
      %775 = vmatprep.subr.bf16.mxu0 0
      %776 = vmatpush1.bf16.xpose.msra.mxu0 0
      %777 = vmatprep.subr.bf16.mxu0 0
      %778 = vmatpush1.bf16.xpose.msra.mxu0 0
      %779 = vmatprep.subr.bf16.mxu0 0
      %780 = vmatpush1.bf16.xpose.msra.mxu0 0
      %781 = vmatprep.subr.bf16.mxu0 0
      %782 = vmatpush1.bf16.xpose.msra.mxu0 0
      %783 = vmatprep.subr.bf16.mxu0 0
      %784 = vmatpush1.bf16.xpose.msra.mxu0 0
      %785 = vmatprep.subr.bf16.mxu0 0
      %786 = vmatpush1.bf16.xpose.msra.mxu0 0
      %787 = vmatprep.subr.bf16.mxu0 0
      %788 = vmatpush1.bf16.xpose.msra.mxu0 0
      %789 = vmatprep.subr.bf16.mxu0 0
      %790 = vmatpush1.bf16.xpose.msra.mxu0 0
      %791 = vmatprep.mubr.bf16.mxu0 0
      %792 = vmatmul.mubr.bf16.gmra.mrb[0].mxu0 %v754
      %v793 = vpop.f32.mrb[0].mxu0
      %v794 = vadd.f32 0.0, %v793
      %v795 = vpop.f32.mrb[0].mxu0
      %v796 = vpop.f32.mrb[0].mxu0
      %v797 = vpop.f32.mrb[0].mxu0
      %798 = vdwg.mxu0
      %v799 = vsel %vm412, %v794, -1e+09
      %v800 = vsel %vm416, %v799, -inf
      %801 = vmax.xlane.f32.xlu0 %v800
      %v802 = vpop.xlane.xlu0 %801
      %v803 = vsub.f32 %v799, %v802
      %v804 = vmul.f32 %v803, 1.442695
      %v805 = vpow.pop %v804
      %v806 = vsel %vm416, %v805, 0.0
      %807 = vadd.xlane.f32.xlu0 %v806
      %v808 = vpop.xlane.xlu0 %807
      %v809 = vrcp.pop %v808
      %v810 = vmul.f32 %v805, %v809
      %v811 = vpack.c.bf16 %v810, %v810
      %812 = vrot.lane.b32.xlu0 %v415, 72
      %v813 = vpop.permute.xlu0 %812
      %v815 = vsel %vm416, %v811, 0
      %v818 = vsel %vm482, %v813, 0
      %820 = vmatprep.subr.bf16.mxu0 0
      %821 = vmatpush1.bf16.msra.mxu0 %v818
      %822 = vmatprep.subr.bf16.mxu0 0
      %823 = vmatpush1.bf16.msra.mxu0 0
      %824 = vmatprep.subr.bf16.mxu0 0
      %825 = vmatpush1.bf16.msra.mxu0 0
      %826 = vmatprep.subr.bf16.mxu0 0
      %827 = vmatpush1.bf16.msra.mxu0 0
      %828 = vmatprep.subr.bf16.mxu0 0
      %829 = vmatpush1.bf16.msra.mxu0 0
      %830 = vmatprep.subr.bf16.mxu0 0
      %831 = vmatpush1.bf16.msra.mxu0 0
      %832 = vmatprep.subr.bf16.mxu0 0
      %833 = vmatpush1.bf16.msra.mxu0 0
      %834 = vmatprep.subr.bf16.mxu0 0
      %835 = vmatpush1.bf16.msra.mxu0 0
      %836 = vmatprep.subr.bf16.mxu0 0
      %837 = vmatpush1.bf16.msra.mxu0 0
      %838 = vmatprep.subr.bf16.mxu0 0
      %839 = vmatpush1.bf16.msra.mxu0 0
      %840 = vmatprep.subr.bf16.mxu0 0
      %841 = vmatpush1.bf16.msra.mxu0 0
      %842 = vmatprep.subr.bf16.mxu0 0
      %843 = vmatpush1.bf16.msra.mxu0 0
      %844 = vmatprep.subr.bf16.mxu0 0
      %845 = vmatpush1.bf16.msra.mxu0 0
      %846 = vmatprep.subr.bf16.mxu0 0
      %847 = vmatpush1.bf16.msra.mxu0 0
      %848 = vmatprep.subr.bf16.mxu0 0
      %849 = vmatpush1.bf16.msra.mxu0 0
      %850 = vmatprep.subr.bf16.mxu0 0
      %851 = vmatpush1.bf16.msra.mxu0 0
      %852 = vmatprep.mubr.bf16.mxu0 0
      %853 = vmatmul.mubr.bf16.gmra.mrb[0].mxu0 %v815
      %v854 = vpop.f32.mrb[0].mxu0
      %v855 = vadd.f32 0.0, %v854
      %v856 = vpop.f32.mrb[0].mxu0
      %v857 = vpop.f32.mrb[0].mxu0
      %v858 = vpop.f32.mrb[0].mxu0
      %859 = vdwg.mxu0
      %861 = vrot.lane.b32.xlu0 %v633, 8
      %v862 = vpop.permute.xlu0 %861
      %865 = vrot.lane.b32.xlu0 %v744, 16
      %v866 = vpop.permute.xlu0 %865
      %869 = vrot.lane.b32.xlu0 %v855, 24
      %v870 = vpop.permute.xlu0 %869
      %v872 = vsel %vm416, %v521, %v862
      %vm873 = vcmask 130048
      %v874 = vsel %vm873, %v872, %v866
      %vm875 = vcmask 195584
      %v876 = vsel %vm875, %v874, %v870
      %v877 = vpack.c.bf16 %v876, %v876
      %vm878 = vcmask 257024
      %879 = vst.msk [vmem:[%s270] sm:$0xf] %vm878, %v877
      %p880 = scmp.lt.s32.totalorder %s24, 1
      %s881 = scalar_select %p880, %s24, 1
      %s882 = smul.addr %s881, 4
      %s883 = scalar_lea.vmem %s7, %s882
      // Predicated region
      $region45: #{_lambda_.27} parent=43 // pred_check
        %p884 = pneg %p178
      $region46: #{_lambda_.27} parent=43 // pred_check_branch
        %886 = sbr.rel (%p884) target = $region48
      $region47: #{_lambda_.27} parent=43 // pred_region
        _
      $region48: #{_lambda_.27} parent=43 // pred_fallthru
        _
    $region44: #{_lambda_.27} parent=5 // pred_fallthru
      _
    %p887 = scmp.le.s32.totalorder 2, %s19
    // Predicated region
    $region49: #{_lambda_.27} parent=5 // pred_check
      %p888 = pneg %p887
    $region50: #{_lambda_.27} parent=5 // pred_check_branch
      %890 = sbr.rel (%p888) target = $region52
    $region51: #{_lambda_.27} parent=5 // pred_region
      %s891 = ssub.s32 %s19, 2
      // Predicated region
      $region53: #{_lambda_.27} parent=51 // pred_check
        %p892 = pneg %p184
      $region54: #{_lambda_.27} parent=51 // pred_check_branch
        %894 = sbr.rel (%p892) target = $region56
      $region55: #{_lambda_.27} parent=51 // pred_region
        %p895 = scmp.lt.s32.totalorder %s25, 1
        %s896 = scalar_select %p895, %s25, 1
        %s897 = smul.addr %s896, 4
        %s898 = scalar_lea.vmem %s7, %s897
      $region56: #{_lambda_.27} parent=51 // pred_fallthru
        _
    $region52: #{_lambda_.27} parent=5 // pred_fallthru
      _
  $region6: #{_lambda_.27} parent=0 // loop_footer
    %s23 = sadd.s32 1, %s19
  $region7: #{_lambda_.27} parent=0 // loop_footer_branch
    %18 = sbr.rel target = $region3
  $region8: #{_lambda_.27} parent=0 // loop_exit
    _

// kernel: _lambda_.37
$region0: #{_lambda_.37}
  #allocation0 [shape = 'u32[]', space=smem, size = 0x4, offset = 0x4, fixed_abs, tag = 'smem constant byte address 0x4 - core index']
  #allocation1 [shape = 'u32[144,128]{1,0:T(1,128)}', space=vmem, size = 0x12000, scoped, tag = 'internal scratch']
  #allocation2 [shape = 'f32[16,1]{1,0:T(8,128)}', space=vmem, size = 0x2000, scoped, tag = 'scratch operand']
  #allocation3 [shape = 'f32[16,1]{1,0:T(8,128)}', space=vmem, size = 0x2000, scoped, tag = 'scratch operand']
  #allocation4 [shape = 'f32[16,1]{1,0:T(8,128)}', space=vmem, size = 0x2000, scoped, tag = 'scratch operand']
  %s0 = inlined_call_operand.vmem [shape: f32[16,32], index: 0, kind: input, shape index: {}]
  %s1 = inlined_call_operand.vmem [shape: s32[16,1], index: 1, kind: input, shape index: {}]
  %s2 = inlined_call_operand.vmem [shape: bf16[32,50], index: 2, kind: input, shape index: {}]
  %s3 = inlined_call_operand.vmem [shape: f32[1,50], index: 3, kind: input, shape index: {}]
  %s4 = inlined_call_operand.vmem [shape: f32[16,128], index: 4, kind: output, shape index: {}]
  %s5 = sld [smem:[#allocation0]]
  $region34: #{_lambda_.37} parent=0
    _
  %s7 = ssub.s32 1, %s5
  %s8 = scalar_select 0, %s7, %s5
  // Predicated region
  $region2: #{_lambda_.37} parent=0 // pred_check
    _
  $region3: #{_lambda_.37} parent=0 // pred_check_branch
    %10 = sbr.rel (0) target = $region5
  $region4: #{_lambda_.37} parent=0 // pred_region
    _
  $region5: #{_lambda_.37} parent=0 // pred_fallthru
    _
  // Predicated region
  $region6: #{_lambda_.37} parent=0 // pred_check
    _
  $region7: #{_lambda_.37} parent=0 // pred_check_branch
    %12 = sbr.rel (0) target = $region9
  $region8: #{_lambda_.37} parent=0 // pred_region
    _
  $region9: #{_lambda_.37} parent=0 // pred_fallthru
    _
  // Predicated region
  $region10: #{_lambda_.37} parent=0 // pred_check
    _
  $region11: #{_lambda_.37} parent=0 // pred_check_branch
    %14 = sbr.rel (0) target = $region13
  $region12: #{_lambda_.37} parent=0 // pred_region
    _
  $region13: #{_lambda_.37} parent=0 // pred_fallthru
    _
  // Predicated region
  $region14: #{_lambda_.37} parent=0 // pred_check
    _
  $region15: #{_lambda_.37} parent=0 // pred_check_branch
    %16 = sbr.rel (0) target = $region17
  $region16: #{_lambda_.37} parent=0 // pred_region
    _
  $region17: #{_lambda_.37} parent=0 // pred_fallthru
    _
  %p18 = scmp.eq.s32.totalorder 0, 0
  // Predicated region
  $region18: #{_lambda_.37} parent=0 // pred_check
    %p19 = pneg %p18
  $region19: #{_lambda_.37} parent=0 // pred_check_branch
    %21 = sbr.rel (%p19) target = $region21
  $region20: #{_lambda_.37} parent=0 // pred_region
    %vm22 = vcmask 7168
    %23 = vst.msk [vmem:[#allocation2] sm:$0xff] %vm22, -1e+30
    %24 = vst.msk [vmem:[#allocation2 + $0x8] sm:$0xff] %vm22, -1e+30
    %25 = vst.msk [vmem:[#allocation3] sm:$0xff] %vm22, 0.0
    %26 = vst.msk [vmem:[#allocation3 + $0x8] sm:$0xff] %vm22, 0.0
    %27 = vst.msk [vmem:[#allocation4] sm:$0xff] %vm22, 0.0
    %28 = vst.msk [vmem:[#allocation4 + $0x8] sm:$0xff] %vm22, 0.0
  $region21: #{_lambda_.37} parent=0 // pred_fallthru
    _
  %v29 = vld [vmem:[%s0] sm:$0xff]
  %v30 = vld [vmem:[%s0 + $0x8] sm:$0xff]
  %v31 = vpack.c.bf16 %v30, %v29
  %v32 = vld [vmem:[%s2] sm:$0xf]
  %v33 = vld [vmem:[%s2 + $0x4] sm:$0xf]
  %v34 = vld [vmem:[%s2 + $0x8] sm:$0xf]
  %v35 = vld [vmem:[%s2 + $0xc] sm:$0xf]
  %v36 = vld [vmem:[%s3] sm:$0x1]
  %v38 = vlaneseq
  %v39 = vshrl.u32 %v38, 7
  %v40 = vsub.s32 0, %v39
  %v41 = vrot.slane %v36, %v40
  %v47 = vunpack.c.l.b16 %v32
  %v48 = vunpack.c.l.b16 %v33
  %v49 = vunpack.c.l.b16 %v34
  %v50 = vunpack.c.l.b16 %v35
  %v51 = vpack.c.b16 %v48, %v47
  %v52 = vpack.c.b16 %v50, %v49
  %vm55 = vcmask 261120
  %v57 = vsel %vm55, %v31, 0
  %59 = vmatprep.subr.bf16.mxu0 0
  %60 = vmatpush1.bf16.msra.mxu0 %v51
  %61 = vmatprep.subr.bf16.mxu0 0
  %62 = vmatpush1.bf16.msra.mxu0 %v52
  %63 = vmatprep.subr.bf16.mxu0 0
  %64 = vmatpush1.bf16.msra.mxu0 0
  %65 = vmatprep.subr.bf16.mxu0 0
  %66 = vmatpush1.bf16.msra.mxu0 0
  %67 = vmatprep.subr.bf16.mxu0 0
  %68 = vmatpush1.bf16.msra.mxu0 0
  %69 = vmatprep.subr.bf16.mxu0 0
  %70 = vmatpush1.bf16.msra.mxu0 0
  %71 = vmatprep.subr.bf16.mxu0 0
  %72 = vmatpush1.bf16.msra.mxu0 0
  %73 = vmatprep.subr.bf16.mxu0 0
  %74 = vmatpush1.bf16.msra.mxu0 0
  %75 = vmatprep.subr.bf16.mxu0 0
  %76 = vmatpush1.bf16.msra.mxu0 0
  %77 = vmatprep.subr.bf16.mxu0 0
  %78 = vmatpush1.bf16.msra.mxu0 0
  %79 = vmatprep.subr.bf16.mxu0 0
  %80 = vmatpush1.bf16.msra.mxu0 0
  %81 = vmatprep.subr.bf16.mxu0 0
  %82 = vmatpush1.bf16.msra.mxu0 0
  %83 = vmatprep.subr.bf16.mxu0 0
  %84 = vmatpush1.bf16.msra.mxu0 0
  %85 = vmatprep.subr.bf16.mxu0 0
  %86 = vmatpush1.bf16.msra.mxu0 0
  %87 = vmatprep.subr.bf16.mxu0 0
  %88 = vmatpush1.bf16.msra.mxu0 0
  %89 = vmatprep.subr.bf16.mxu0 0
  %90 = vmatpush1.bf16.msra.mxu0 0
  %91 = vmatprep.mubr.bf16.mxu0 0
  %92 = vmatmul.mubr.bf16.gmra.mrb[0].mxu0 %v57
  %v93 = vpop.f32.mrb[0].mxu0
  %v94 = vadd.f32 %v41, %v93
  %v95 = vpop.f32.mrb[0].mxu0
  %v96 = vpop.f32.mrb[0].mxu0
  %v97 = vadd.f32 %v41, %v96
  %v98 = vpop.f32.mrb[0].mxu0
  %99 = vdwg.mxu0
  %s100 = smul.u32 0, 50
  %v101 = vlaneseq
  %v102 = vand.u32 %v101, 127
  %v103 = vstv %s100
  %v104 = vadd.s32 %v103, %v102
  %vm105 = vcmp.lt.s32.totalorder %v104, 50
  %v106 = vsel %vm105, %v94, -1e+30
  %v107 = vsel %vm105, %v97, -1e+30
  %v108 = vld [vmem:[%s1] sm:$0xff]
  %v109 = vld [vmem:[%s1 + $0x8] sm:$0xff]
  %v110 = vld [vmem:[#allocation4] sm:$0xff]
  %v111 = vld [vmem:[#allocation4 + $0x8] sm:$0xff]
  %112 = vset.pattern.permute.xlu0 0
  %113 = vperm.xlu0 %112, %v108
  %v114 = vpop.permute.xlu0 %113
  %115 = vset.pattern.permute.xlu0 0
  %116 = vperm.xlu0 %115, %v109
  %v117 = vpop.permute.xlu0 %116
  %vm118 = vcmp.eq.s32.totalorder %v104, %v114
  %vm119 = vcmp.eq.s32.totalorder %v104, %v117
  %v120 = vsel %vm118, %v106, 0.0
  %v121 = vsel %vm119, %v107, 0.0
  %vm122 = vcmask 408576
  %v123 = vsel %vm122, %v120, 0.0
  %124 = vadd.xlane.f32.xlu0 %v123
  %v125 = vpop.xlane.xlu0 %124
  %v126 = vsel %vm122, %v121, 0.0
  %127 = vadd.xlane.f32.xlu0 %v126
  %v128 = vpop.xlane.xlu0 %127
  %v129 = vadd.f32 %v110, %v125
  %v130 = vadd.f32 %v111, %v128
  %vm131 = vcmask 7168
  %132 = vst.msk [vmem:[#allocation4] sm:$0xff] %vm131, %v129
  %133 = vst.msk [vmem:[#allocation4 + $0x8] sm:$0xff] %vm131, %v130
  %v134 = vld [vmem:[#allocation2] sm:$0xff]
  %v135 = vld [vmem:[#allocation2 + $0x8] sm:$0xff]
  %v136 = vsel %vm122, %v106, -inf
  %137 = vmax.xlane.f32.xlu0 %v136
  %v138 = vpop.xlane.xlu0 %137
  %v139 = vsel %vm122, %v107, -inf
  %140 = vmax.xlane.f32.xlu0 %v139
  %v141 = vpop.xlane.xlu0 %140
  %v142 = vmax.f32 %v134, %v138
  %v143 = vmax.f32 %v135, %v141
  %v144 = vld [vmem:[#allocation3] sm:$0xff]
  %v145 = vld [vmem:[#allocation3 + $0x8] sm:$0xff]
  %v146 = vsub.f32 %v134, %v142
  %v147 = vsub.f32 %v135, %v143
  %v148 = vmul.f32 %v146, 1.442695
  %v149 = vpow.pop %v148
  %v150 = vmul.f32 %v147, 1.442695
  %v151 = vpow.pop %v150
  %v152 = vmul.f32 %v144, %v149
  %v153 = vmul.f32 %v145, %v151
  %155 = vset.pattern.permute.xlu0 0
  %156 = vperm.xlu0 %155, %v142
  %v157 = vpop.permute.xlu0 %156
  %160 = vset.pattern.permute.xlu0 0
  %161 = vperm.xlu0 %160, %v143
  %v162 = vpop.permute.xlu0 %161
  %v164 = vsub.f32 %v106, %v157
  %v165 = vsub.f32 %v107, %v162
  %v166 = vmul.f32 %v164, 1.442695
  %v167 = vpow.pop %v166
  %v168 = vmul.f32 %v165, 1.442695
  %v169 = vpow.pop %v168
  %v170 = vsel %vm122, %v167, 0.0
  %171 = vadd.xlane.f32.xlu0 %v170
  %v172 = vpop.xlane.xlu0 %171
  %v173 = vsel %vm122, %v169, 0.0
  %174 = vadd.xlane.f32.xlu0 %v173
  %v175 = vpop.xlane.xlu0 %174
  %v176 = vadd.f32 %v152, %v172
  %v177 = vadd.f32 %v153, %v175
  %178 = vst.msk [vmem:[#allocation3] sm:$0xff] %vm131, %v176
  %179 = vst.msk [vmem:[#allocation3 + $0x8] sm:$0xff] %vm131, %v177
  %180 = vst.msk [vmem:[#allocation2] sm:$0xff] %vm131, %v142
  %181 = vst.msk [vmem:[#allocation2 + $0x8] sm:$0xff] %vm131, %v143
  // Predicated region
  $region22: #{_lambda_.37} parent=0 // pred_check
    %p182 = pneg %p18
  $region23: #{_lambda_.37} parent=0 // pred_check_branch
    %184 = sbr.rel (%p182) target = $region25
  $region24: #{_lambda_.37} parent=0 // pred_region
    %v185 = vld [vmem:[#allocation2] sm:$0xff]
    %v186 = vld [vmem:[#allocation2 + $0x8] sm:$0xff]
    %v187 = vld [vmem:[#allocation3] sm:$0xff]
    %v188 = vld [vmem:[#allocation3 + $0x8] sm:$0xff]
    %v189 = vlog2.pop %v187
    %v190 = vmul.f32 %v189, 0.6931472
    %v191 = vlog2.pop %v188
    %v192 = vmul.f32 %v191, 0.6931472
    %v193 = vadd.f32 %v185, %v190
    %v194 = vadd.f32 %v186, %v192
    %v195 = vld [vmem:[#allocation4] sm:$0xff]
    %v196 = vld [vmem:[#allocation4 + $0x8] sm:$0xff]
    %v197 = vsub.f32 %v193, %v195
    %v198 = vsub.f32 %v194, %v196
    %200 = vset.pattern.permute.xlu0 0
    %201 = vperm.xlu0 %200, %v197
    %v202 = vpop.permute.xlu0 %201
    %205 = vset.pattern.permute.xlu0 0
    %206 = vperm.xlu0 %205, %v198
    %v207 = vpop.permute.xlu0 %206
    %209 = vst [vmem:[%s4] sm:$0xff] %v202
    %210 = vst [vmem:[%s4 + $0x8] sm:$0xff] %v207
  $region25: #{_lambda_.37} parent=0 // pred_fallthru
    _
  // Predicated region
  $region26: #{_lambda_.37} parent=0 // pred_check
    _
  $region27: #{_lambda_.37} parent=0 // pred_check_branch
    %212 = sbr.rel (0) target = $region29
  $region28: #{_lambda_.37} parent=0 // pred_region
    _
  $region29: #{_lambda_.37} parent=0 // pred_fallthru
    _
  // Predicated region
  $region30: #{_lambda_.37} parent=0 // pred_check
    _
  $region31: #{_lambda_.37} parent=0 // pred_check_branch
    %214 = sbr.rel (0) target = $region33
  $region32: #{_lambda_.37} parent=0 // pred_region
    _
  $region33: #{_lambda_.37} parent=0 // pred_fallthru
    _

</llo_original>
